<compile_context>
chip_gen: v7x
topology: tpu7x:2x2x1
jax: 0.10.0
libtpu: 0.0.40
codegen_flags: <defaults>
</compile_context>

<pallas_src>
import functools

import jax
import jax.numpy as jnp
import numpy as np
from jax.experimental import pallas as pl
from jax.experimental.pallas import tpu as pltpu


# --------------------------------------------------------------------------- kernels

def _conv_pool_kernel(x_ref, m_ref, scale_ref, bias_ref, o_ref, *, h2, wcin, wco):
    """Fused 3x3 conv (pad=1) + folded BN/bias + ReLU + 2x2 maxpool for TB images.

    x_ref:  (TB, H/2+1, 2*W*Cin) bf16 -- zero-row-padded image, adjacent padded row
            pairs packed into lanes (packed row r = padded rows 2r, 2r+1); lanes
            within a half are ordered (w, cin).
    m_ref:  (3*W*Cin, W*Cout) bf16 banded weight: rows ordered (kh, w_in, cin),
            cols ordered (wp, wh, cout); kw taps, W zero-padding and the pool
            column parity are all folded into the band structure.
    scale_ref, bias_ref: (1, W*Cout) f32 folded BN scale/bias (tiled over (wp, wh)).
    o_ref:  (TB, H/2, (W/2)*Cout) bf16 pooled output; lanes ordered (wh, cout).
    """
    tb = o_ref.shape[0]
    # Packed row r holds padded rows (2r, 2r+1) in its two lane halves.
    xa = x_ref[:, 0:h2, :]          # padded rows (2i,   2i+1), i = pool-row index
    xc = x_ref[:, 1:h2 + 1, :]      # padded rows (2i+2, 2i+3)
    # Stack the TB images along the matmul M dimension (h2 is a multiple of 8,
    # so these reshapes are layout-free).
    xa2 = xa.reshape(tb * h2, 2 * wcin)
    xc2 = xc.reshape(tb * h2, 2 * wcin)

    if wcin % 128 == 0:
        # conv2/conv3: kh taps merged into K -> 2 MXU matmuls per block
        # (K = 3*W*Cin = 768, N = W*Cout = 512); lane-concat pieces are vreg-aligned.
        m = m_ref[...]
        lhs0 = jnp.concatenate([xa2, xc2[:, 0:wcin]], axis=1)      # padded rows 2i, 2i+1, 2i+2
        lhs1 = jnp.concatenate([xa2[:, wcin:], xc2], axis=1)       # padded rows 2i+1, 2i+2, 2i+3
        y0 = jnp.dot(lhs0, m, preferred_element_type=jnp.float32)  # conv rows 2i
        y1 = jnp.dot(lhs1, m, preferred_element_type=jnp.float32)  # conv rows 2i+1
    else:
        # conv1 (W*Cin = 8 lanes): same banded weight, but split the contraction to
        # avoid sub-128-lane concatenation.  The layer is FLOP-negligible.
        y0 = (jnp.dot(xa2, m_ref[0:2 * wcin, :], preferred_element_type=jnp.float32)
              + jnp.dot(xc2[:, 0:wcin], m_ref[2 * wcin:3 * wcin, :],
                        preferred_element_type=jnp.float32))
        y1 = (jnp.dot(xa2[:, wcin:2 * wcin], m_ref[0:wcin, :],
                      preferred_element_type=jnp.float32)
              + jnp.dot(xc2, m_ref[wcin:3 * wcin, :],
                        preferred_element_type=jnp.float32))

    # f32 epilogue (v5e-safe): folded BN/bias + ReLU, then the fused 2x2 maxpool.
    scale = scale_ref[...]
    bias = bias_ref[...]
    p0 = jnp.maximum(y0 * scale + bias, 0.0)
    p1 = jnp.maximum(y1 * scale + bias, 0.0)
    q = jnp.maximum(p0, p1)                                  # pool over the two conv rows
    pooled = jnp.maximum(q[:, 0:wco], q[:, wco:2 * wco])     # pool over the two conv cols
    o_ref[...] = pooled.reshape(tb, h2, wco).astype(o_ref.dtype)


def _fc_stack_kernel(x_ref, w1_ref, b1_ref, w2_ref, b2_ref, w3_ref, b3_ref,
                     w4_ref, b4_ref, o_ref):
    """Entire MLP head fused: intermediates never leave VMEM.

    Dropout is eval-mode identity.  MXU operands bf16, epilogues f32.
    """
    h = jnp.dot(x_ref[...].astype(jnp.bfloat16), w1_ref[...],
                preferred_element_type=jnp.float32)
    h = jnp.tanh(h + b1_ref[...])
    h = jnp.dot(h.astype(jnp.bfloat16), w2_ref[...], preferred_element_type=jnp.float32)
    h = jnp.tanh(h + b2_ref[...])
    h = jnp.dot(h.astype(jnp.bfloat16), w3_ref[...], preferred_element_type=jnp.float32)
    h = jnp.maximum(h + b3_ref[...], 0.0)
    h = jnp.dot(h.astype(jnp.bfloat16), w4_ref[...], preferred_element_type=jnp.float32)
    o_ref[...] = (h + b4_ref[...]).astype(o_ref.dtype)


# --------------------------------------------------------------------------- wrappers

_COMPILER_PARAMS = pltpu.CompilerParams(
    dimension_semantics=("parallel",),          # image-block axis -> both TCs on v7x
    vmem_limit_bytes=32 * 1024 * 1024,          # explicit headroom (safe on v5e..v7x)
)


def conv_block_pooled(x_packed, m, scale, bias, tb=None):
    """Fused conv3x3(pad=1) + BN/bias + ReLU + maxpool2x2 over blocks of TB images.

    x_packed: (N, H/2+1, 2*W*Cin) bf16 (row-pair packed, zero-row-padded).
    m:        (3*W*Cin, W*Cout) bf16 banded weight.
    returns   (N, H/2, (W/2)*Cout) bf16, lanes ordered (w, cout).
    """
    n, hr, wc2 = x_packed.shape
    h2 = hr - 1
    wcin = wc2 // 2
    wn = m.shape[1]
    wco = wn // 2
    assert m.shape[0] == 3 * wcin
    if tb is None:
        # Batch images per grid step (MXU fill / per-step overhead), but keep the
        # parallel grid >= 2 steps whenever N >= 2 so v7x's two TCs both get work.
        tb = max(1, min(16, pl.cdiv(n, 2)))
    kernel = functools.partial(_conv_pool_kernel, h2=h2, wcin=wcin, wco=wco)
    return pl.pallas_call(
        kernel,
        out_shape=jax.ShapeDtypeStruct((n, h2, wco), jnp.bfloat16),
        grid=(pl.cdiv(n, tb),),
        in_specs=[
            pl.BlockSpec((tb, hr, wc2), lambda i: (i, 0, 0)),   # TB-image block
            pl.BlockSpec(m.shape, lambda i: (0, 0)),            # weight stays resident
            pl.BlockSpec(scale.shape, lambda i: (0, 0)),
            pl.BlockSpec(bias.shape, lambda i: (0, 0)),
        ],
        out_specs=pl.BlockSpec((tb, h2, wco), lambda i: (i, 0, 0)),  # lane-dense store
        compiler_params=_COMPILER_PARAMS,
    )(x_packed, m, scale, bias)


def fc_stack(x, w1, b1, w2, b2, w3, b3, w4, b4):
    """fc1..fc4 (tanh/tanh/relu/linear) in a single pallas_call, tiled over rows."""
    n, d = x.shape
    c = w4.shape[1]
    tm = min(n, 512)

    def resident(a):
        return pl.BlockSpec(a.shape, lambda i, nd=a.ndim: (0,) * nd)

    return pl.pallas_call(
        _fc_stack_kernel,
        out_shape=jax.ShapeDtypeStruct((n, c), jnp.float32),
        grid=(pl.cdiv(n, tm),),
        in_specs=[pl.BlockSpec((tm, d), lambda i: (i, 0)),
                  resident(w1), resident(b1), resident(w2), resident(b2),
                  resident(w3), resident(b3), resident(w4), resident(b4)],
        out_specs=pl.BlockSpec((tm, c), lambda i: (i, 0)),
        compiler_params=_COMPILER_PARAMS,
    )(x, w1, b1, w2, b2, w3, b3, w4, b4)


# --------------------------------------------------------------------------- param prep

def fold_bn(gamma, beta, mean, var, conv_bias, eps=1e-5):
    """Eval-mode BatchNorm folded (with the conv bias) into per-channel scale/bias."""
    s = gamma / jnp.sqrt(var + eps)
    return s, s * (conv_bias - mean) + beta


def banded_conv_weights(w_oihw, w_size):
    """Fold the kw taps, the W zero-padding, and the maxpool column parity of a
    3x3 conv into a single banded matmul weight.

    Returns M of shape (3*W*Cin, W*Cout) with
      M[kh*W*Cin + w_in*Cin + ci, wp*(W//2)*Cout + wh*Cout + co]
        = w[co, ci, kh, w_in - (2*wh + wp) + 1]
    and zeros outside the 3-tap band (which implements the W padding).
    """
    w = np.asarray(w_oihw, np.float32)
    co_n, ci_n = w.shape[0], w.shape[1]
    wo = w_size // 2
    wco = wo * co_n
    w4 = np.transpose(w, (2, 3, 1, 0))                       # (kh, kw, ci, co)
    m = np.zeros((3 * w_size * ci_n, w_size * co_n), np.float32)
    for kh in range(3):
        for wp in range(2):
            for wh in range(wo):
                w_out = 2 * wh + wp
                for kw in range(3):
                    w_in = w_out + kw - 1
                    if 0 <= w_in < w_size:
                        r0 = kh * w_size * ci_n + w_in * ci_n
                        c0 = wp * wco + wh * co_n
                        m[r0:r0 + ci_n, c0:c0 + co_n] = w4[kh, kw]
    return jnp.asarray(m)


def prepare_params(p, in_w=8):
    """Torch-layout params -> kernel layout (done once, outside the forward jit)."""
    kp = {}

    def conv_entry(name, w, conv_b, bn_stats, w_size):
        if bn_stats is not None:
            scale, bias = fold_bn(*bn_stats, conv_b)
        else:
            scale, bias = jnp.ones_like(conv_b), conv_b
        kp[name + "_m"] = banded_conv_weights(w, w_size).astype(jnp.bfloat16)
        # scale/bias tiled over (wp, wh) -> (1, W*Cout), matching the weight columns.
        kp[name + "_s"] = jnp.tile(scale.astype(jnp.float32), w_size).reshape(1, -1)
        kp[name + "_b"] = jnp.tile(bias.astype(jnp.float32), w_size).reshape(1, -1)

    conv_entry("c1", p["conv1_w"], p["conv1_b"], p["bn1"], w_size=in_w)
    conv_entry("c2", p["conv2_w"], p["conv2_b"], p["bn2"], w_size=in_w // 2)
    conv_entry("c3", p["conv3_w"], p["conv3_b"], None, w_size=in_w // 4)

    # fc1: torch flattens NCHW -> feature index (c, h, w); the kernel's flatten
    # order is (h, w, c).  Absorb the permutation + transpose into the weight.
    c3 = p["conv3_w"].shape[0]
    w3 = max(in_w // 8, 1)
    h3 = p["fc1_w"].shape[1] // (c3 * w3)
    w1 = p["fc1_w"].reshape(-1, c3, h3, w3)                     # (out, c, h, w)
    w1 = jnp.transpose(w1, (2, 3, 1, 0)).reshape(c3 * h3 * w3, -1)
    kp["fc1_w"] = w1.astype(jnp.bfloat16)
    kp["fc1_b"] = p["fc1_b"].reshape(1, -1).astype(jnp.float32)
    for i in (2, 3, 4):
        kp[f"fc{i}_w"] = p[f"fc{i}_w"].T.astype(jnp.bfloat16)   # pre-transposed once
        kp[f"fc{i}_b"] = p[f"fc{i}_b"].reshape(1, -1).astype(jnp.float32)
    return kp


# --------------------------------------------------------------------------- forward

def _pack_rows(x):
    """Zero-pad H by 1 row each side (conv pad=1) and pack adjacent padded-row pairs
    into lanes: (N, H, WC) -> (N, (H+2)//2, 2*WC).  bf16; the reshape is a free
    row-major relabel."""
    n, h, wc = x.shape
    xp = jnp.pad(x, ((0, 0), (1, 1), (0, 0)))
    return xp.reshape(n, (h + 2) // 2, 2 * wc)


def cnn2d_forward(x_nchw, kp):
    n, cin, h, w = x_nchw.shape
    # NCHW -> (N, H, W*Cin) slabs, lanes ordered (w, cin); bf16 (MXU operand dtype).
    x = jnp.transpose(x_nchw, (0, 2, 3, 1)).reshape(n, h, w * cin).astype(jnp.bfloat16)

    x = conv_block_pooled(_pack_rows(x), kp["c1_m"], kp["c1_s"], kp["c1_b"])
    x = conv_block_pooled(_pack_rows(x), kp["c2_m"], kp["c2_s"], kp["c2_b"])
    x = conv_block_pooled(_pack_rows(x), kp["c3_m"], kp["c3_s"], kp["c3_b"])

    # Flatten; torch's (c, h, w) feature order is absorbed into the fc1 weight.
    x = x.reshape(n, -1)
    return fc_stack(x, kp["fc1_w"], kp["fc1_b"], kp["fc2_w"], kp["fc2_b"],
                    kp["fc3_w"], kp["fc3_b"], kp["fc4_w"], kp["fc4_b"])


# --------------------------------------------------------------------------- params

def init_params(key, num_classes=10):
    ks = jax.random.split(key, 32)
    i = iter(range(32))

    def conv(cout, cin):
        w = jax.random.normal(ks[next(i)], (cout, cin, 3, 3), jnp.float32) * 0.05
        b = jax.random.normal(ks[next(i)], (cout,), jnp.float32) * 0.05
        return w, b

    def bn(c):
        gamma = 1.0 + 0.1 * jax.random.normal(ks[next(i)], (c,), jnp.float32)
        beta = 0.1 * jax.random.normal(ks[next(i)], (c,), jnp.float32)
        mean = 0.1 * jax.random.normal(ks[next(i)], (c,), jnp.float32)
        var = 1.0 + 0.1 * jax.random.uniform(ks[next(i)], (c,), jnp.float32)
        return gamma, beta, mean, var

    def linear(dout, din):
        w = jax.random.normal(ks[next(i)], (dout, din), jnp.float32) * 0.05
        b = jax.random.normal(ks[next(i)], (dout,), jnp.float32) * 0.05
        return w, b

    p = {}
    p["conv1_w"], p["conv1_b"] = conv(64, 1)
    p["bn1"] = bn(64)
    p["conv2_w"], p["conv2_b"] = conv(128, 64)
    p["bn2"] = bn(128)
    p["conv3_w"], p["conv3_b"] = conv(256, 128)
    p["fc1_w"], p["fc1_b"] = linear(64, 256 * 8 * 1)
    p["fc2_w"], p["fc2_b"] = linear(32, 64)
    p["fc3_w"], p["fc3_b"] = linear(16, 32)
    p["fc4_w"], p["fc4_b"] = linear(num_classes, 16)
    return p


# --------------------------------------------------------------------------- reference

def reference_forward(x_nchw, p):
    """Pure-JAX/XLA reference mirroring the PyTorch module in eval mode."""
    def conv3x3(x, w, b):
        y = jax.lax.conv_general_dilated(
            x, w, window_strides=(1, 1), padding=((1, 1), (1, 1)),
            dimension_numbers=("NCHW", "OIHW", "NCHW"))
        return y + b[None, :, None, None]

    def bn(x, stats, eps=1e-5):
        gamma, beta, mean, var = stats
        inv = (gamma / jnp.sqrt(var + eps))[None, :, None, None]
        return (x - mean[None, :, None, None]) * inv + beta[None, :, None, None]

    def pool(x):
        return jax.lax.reduce_window(x, -jnp.inf, jax.lax.max,
                                     (1, 1, 2, 2), (1, 1, 2, 2), "VALID")

    with jax.default_matmul_precision("float32"):
        x = x_nchw.astype(jnp.float32)
        x = pool(jax.nn.relu(bn(conv3x3(x, p["conv1_w"], p["conv1_b"]), p["bn1"])))
        x = pool(jax.nn.relu(bn(conv3x3(x, p["conv2_w"], p["conv2_b"]), p["bn2"])))
        x = pool(jax.nn.relu(conv3x3(x, p["conv3_w"], p["conv3_b"])))
        x = x.reshape(x.shape[0], -1)
        x = jnp.tanh(x @ p["fc1_w"].T + p["fc1_b"])
        x = jnp.tanh(x @ p["fc2_w"].T + p["fc2_b"])
        x = jax.nn.relu(x @ p["fc3_w"].T + p["fc3_b"])
        return x @ p["fc4_w"].T + p["fc4_b"]


# --------------------------------------------------------------------------- main

if __name__ == "__main__":
    key = jax.random.PRNGKey(0)
    k_param, k_input = jax.random.split(key)
    params = init_params(k_param, num_classes=10)
    kparams = prepare_params(params, in_w=8)   # one-time layout/BN-fold prep

    # Input H=64, W=8: after three 2x2 pools the map is 8x1 -> 256*8*1 = 2048 = fc1 in-features.
    x = jax.random.normal(k_input, (2, 1, 64, 8), jnp.float32)

    out = jax.jit(cnn2d_forward)(x, kparams)
    out = jax.block_until_ready(out)
    assert out.shape == (2, 10), out.shape

    # Numerical check vs the pure-JAX reference (bf16 MXU operands and bf16
    # inter-stage activation storage -> loose tolerance).
    ref = reference_forward(x, params)
    np.testing.assert_allclose(np.asarray(out), np.asarray(ref), rtol=5e-2, atol=5e-2)

    print("KERNEL_OK")
</pallas_src>

<mosaic_0001>
module attributes {stable_mosaic.version = 11 : i64} {
  func.func @_conv_pool_kernel(%arg0: i32, %arg1: memref<1x17x512xbf16, #tpu.memory_space<vmem>>, %arg2: memref<768x512xbf16, #tpu.memory_space<vmem>>, %arg3: memref<1x512xf32, #tpu.memory_space<vmem>>, %arg4: memref<1x512xf32, #tpu.memory_space<vmem>>, %arg5: memref<1x16x256xbf16, #tpu.memory_space<vmem>>) attributes {dimension_semantics = [#tpu.dimension_semantics<parallel>], iteration_bounds = array<i64: 2>, scalar_prefetch = 0 : i64, scratch_operands = 0 : i64, tpu.core_type = #tpu.core_type<tc>, window_params = [{transform_indices = @transform_0, window_bounds = array<i64: 1, 17, 512>}, {pipeline_mode = #tpu.pipeline_mode<synchronous>, transform_indices = @transform_1, window_bounds = array<i64: 768, 512>}, {pipeline_mode = #tpu.pipeline_mode<synchronous>, transform_indices = @transform_2, window_bounds = array<i64: 1, 512>}, {pipeline_mode = #tpu.pipeline_mode<synchronous>, transform_indices = @transform_3, window_bounds = array<i64: 1, 512>}, {transform_indices = @transform_4, window_bounds = array<i64: 1, 16, 256>}]} {
    %c0 = arith.constant 0 : index
    %c0_0 = arith.constant 0 : index
    %c0_1 = arith.constant 0 : index
    %0 = vector.load %arg1[%c0, %c0_0, %c0_1] : memref<1x17x512xbf16, #tpu.memory_space<vmem>>, vector<1x16x512xbf16>
    %c0_2 = arith.constant 0 : index
    %c1 = arith.constant 1 : index
    %c0_3 = arith.constant 0 : index
    %1 = vector.load %arg1[%c0_2, %c1, %c0_3] : memref<1x17x512xbf16, #tpu.memory_space<vmem>>, vector<1x16x512xbf16>
    %2 = vector.shape_cast %0 : vector<1x16x512xbf16> to vector<16x512xbf16>
    %3 = vector.shape_cast %1 : vector<1x16x512xbf16> to vector<16x512xbf16>
    %c0_4 = arith.constant 0 : index
    %c0_5 = arith.constant 0 : index
    %4 = vector.load %arg2[%c0_4, %c0_5] : memref<768x512xbf16, #tpu.memory_space<vmem>>, vector<768x512xbf16>
    %5 = vector.extract_strided_slice %3 {offsets = [0, 0], sizes = [16, 256], strides = [1, 1]} : vector<16x512xbf16> to vector<16x256xbf16>
    %6 = tpu.concatenate %2, %5 in 1 : vector<16x512xbf16>, vector<16x256xbf16> -> vector<16x768xbf16>
    %7 = vector.extract_strided_slice %2 {offsets = [0, 256], sizes = [16, 256], strides = [1, 1]} : vector<16x512xbf16> to vector<16x256xbf16>
    %8 = tpu.concatenate %7, %3 in 1 : vector<16x256xbf16>, vector<16x512xbf16> -> vector<16x768xbf16>
    %cst = arith.constant dense<0.000000e+00> : vector<16x512xf32>
    %9 = tpu.matmul %6, %4, %cst {dimension_numbers = #tpu.dot_dimension_numbers<[1], [0], [0], [1], [0, 0, 1, 1], [], []>} : vector<16x768xbf16>, vector<768x512xbf16>, vector<16x512xf32> -> vector<16x512xf32>
    %cst_6 = arith.constant dense<0.000000e+00> : vector<16x512xf32>
    %10 = tpu.matmul %8, %4, %cst_6 {dimension_numbers = #tpu.dot_dimension_numbers<[1], [0], [0], [1], [0, 0, 1, 1], [], []>} : vector<16x768xbf16>, vector<768x512xbf16>, vector<16x512xf32> -> vector<16x512xf32>
    %c0_7 = arith.constant 0 : index
    %c0_8 = arith.constant 0 : index
    %11 = vector.load %arg3[%c0_7, %c0_8] : memref<1x512xf32, #tpu.memory_space<vmem>>, vector<1x512xf32>
    %c0_9 = arith.constant 0 : index
    %c0_10 = arith.constant 0 : index
    %12 = vector.load %arg4[%c0_9, %c0_10] : memref<1x512xf32, #tpu.memory_space<vmem>>, vector<1x512xf32>
    %13 = vector.broadcast %11 : vector<1x512xf32> to vector<16x512xf32>
    %14 = arith.mulf %9, %13 : vector<16x512xf32>
    %15 = vector.broadcast %12 : vector<1x512xf32> to vector<16x512xf32>
    %16 = arith.addf %14, %15 : vector<16x512xf32>
    %cst_11 = arith.constant 0.000000e+00 : f32
    %17 = vector.broadcast %cst_11 : f32 to vector<16x512xf32>
    %18 = arith.maximumf %16, %17 : vector<16x512xf32>
    %19 = vector.broadcast %11 : vector<1x512xf32> to vector<16x512xf32>
    %20 = arith.mulf %10, %19 : vector<16x512xf32>
    %21 = vector.broadcast %12 : vector<1x512xf32> to vector<16x512xf32>
    %22 = arith.addf %20, %21 : vector<16x512xf32>
    %cst_12 = arith.constant 0.000000e+00 : f32
    %23 = vector.broadcast %cst_12 : f32 to vector<16x512xf32>
    %24 = arith.maximumf %22, %23 : vector<16x512xf32>
    %25 = arith.maximumf %18, %24 : vector<16x512xf32>
    %26 = vector.extract_strided_slice %25 {offsets = [0, 0], sizes = [16, 256], strides = [1, 1]} : vector<16x512xf32> to vector<16x256xf32>
    %27 = vector.extract_strided_slice %25 {offsets = [0, 256], sizes = [16, 256], strides = [1, 1]} : vector<16x512xf32> to vector<16x256xf32>
    %28 = arith.maximumf %26, %27 : vector<16x256xf32>
    %29 = vector.shape_cast %28 : vector<16x256xf32> to vector<1x16x256xf32>
    %30 = arith.truncf %29 : vector<1x16x256xf32> to vector<1x16x256xbf16>
    %c0_13 = arith.constant 0 : index
    %c0_14 = arith.constant 0 : index
    %c0_15 = arith.constant 0 : index
    %31 = vector.load %arg5[%c0_13, %c0_14, %c0_15] : memref<1x16x256xbf16, #tpu.memory_space<vmem>>, vector<1x16x256xbf16>
    tpu.vector_store %arg5[%c0_13, %c0_14, %c0_15], %30 {strides = array<i32>} : memref<1x16x256xbf16, #tpu.memory_space<vmem>>, vector<1x16x256xbf16>,
    return
  }
  func.func @transform_0(%arg0: i32) -> (i32, i32, i32) {
    %c0_i32 = arith.constant 0 : i32
    %c0_i32_0 = arith.constant 0 : i32
    %c0_i32_1 = arith.constant 0 : i32
    return %arg0, %c0_i32, %c0_i32_0 : i32, i32, i32
  }
  func.func @transform_1(%arg0: i32) -> (i32, i32) {
    %c0_i32 = arith.constant 0 : i32
    %c0_i32_0 = arith.constant 0 : i32
    %c0_i32_1 = arith.constant 0 : i32
    return %c0_i32, %c0_i32_0 : i32, i32
  }
  func.func @transform_2(%arg0: i32) -> (i32, i32) {
    %c0_i32 = arith.constant 0 : i32
    %c0_i32_0 = arith.constant 0 : i32
    %c0_i32_1 = arith.constant 0 : i32
    return %c0_i32, %c0_i32_0 : i32, i32
  }
  func.func @transform_3(%arg0: i32) -> (i32, i32) {
    %c0_i32 = arith.constant 0 : i32
    %c0_i32_0 = arith.constant 0 : i32
    %c0_i32_1 = arith.constant 0 : i32
    return %c0_i32, %c0_i32_0 : i32, i32
  }
  func.func @transform_4(%arg0: i32) -> (i32, i32, i32) {
    %c0_i32 = arith.constant 0 : i32
    %c0_i32_0 = arith.constant 0 : i32
    %c0_i32_1 = arith.constant 0 : i32
    return %arg0, %c0_i32, %c0_i32_0 : i32, i32, i32
  }
}

module attributes {stable_mosaic.version = 11 : i64} {
  func.func @_conv_pool_kernel(%arg0: i32, %arg1: memref<1x33x16xbf16, #tpu.memory_space<vmem>>, %arg2: memref<24x512xbf16, #tpu.memory_space<vmem>>, %arg3: memref<1x512xf32, #tpu.memory_space<vmem>>, %arg4: memref<1x512xf32, #tpu.memory_space<vmem>>, %arg5: memref<1x32x256xbf16, #tpu.memory_space<vmem>>) attributes {dimension_semantics = [#tpu.dimension_semantics<parallel>], iteration_bounds = array<i64: 2>, scalar_prefetch = 0 : i64, scratch_operands = 0 : i64, tpu.core_type = #tpu.core_type<tc>, window_params = [{transform_indices = @transform_0, window_bounds = array<i64: 1, 33, 16>}, {pipeline_mode = #tpu.pipeline_mode<synchronous>, transform_indices = @transform_1, window_bounds = array<i64: 24, 512>}, {pipeline_mode = #tpu.pipeline_mode<synchronous>, transform_indices = @transform_2, window_bounds = array<i64: 1, 512>}, {pipeline_mode = #tpu.pipeline_mode<synchronous>, transform_indices = @transform_3, window_bounds = array<i64: 1, 512>}, {transform_indices = @transform_4, window_bounds = array<i64: 1, 32, 256>}]} {
    %c0 = arith.constant 0 : index
    %c0_0 = arith.constant 0 : index
    %c0_1 = arith.constant 0 : index
    %0 = vector.load %arg1[%c0, %c0_0, %c0_1] : memref<1x33x16xbf16, #tpu.memory_space<vmem>>, vector<1x32x16xbf16>
    %c0_2 = arith.constant 0 : index
    %c1 = arith.constant 1 : index
    %c0_3 = arith.constant 0 : index
    %1 = vector.load %arg1[%c0_2, %c1, %c0_3] : memref<1x33x16xbf16, #tpu.memory_space<vmem>>, vector<1x32x16xbf16>
    %2 = vector.shape_cast %0 : vector<1x32x16xbf16> to vector<32x16xbf16>
    %3 = vector.shape_cast %1 : vector<1x32x16xbf16> to vector<32x16xbf16>
    %c0_4 = arith.constant 0 : index
    %c0_5 = arith.constant 0 : index
    %4 = vector.load %arg2[%c0_4, %c0_5] : memref<24x512xbf16, #tpu.memory_space<vmem>>, vector<16x512xbf16>
    %cst = arith.constant dense<0.000000e+00> : vector<32x512xf32>
    %5 = tpu.matmul %2, %4, %cst {dimension_numbers = #tpu.dot_dimension_numbers<[1], [0], [0], [1], [0, 0, 1, 1], [], []>} : vector<32x16xbf16>, vector<16x512xbf16>, vector<32x512xf32> -> vector<32x512xf32>
    %6 = vector.extract_strided_slice %3 {offsets = [0, 0], sizes = [32, 8], strides = [1, 1]} : vector<32x16xbf16> to vector<32x8xbf16>
    %c16 = arith.constant 16 : index
    %c0_6 = arith.constant 0 : index
    %7 = vector.load %arg2[%c16, %c0_6] : memref<24x512xbf16, #tpu.memory_space<vmem>>, vector<8x512xbf16>
    %cst_7 = arith.constant dense<0.000000e+00> : vector<32x512xf32>
    %8 = tpu.matmul %6, %7, %cst_7 {dimension_numbers = #tpu.dot_dimension_numbers<[1], [0], [0], [1], [0, 0, 1, 1], [], []>} : vector<32x8xbf16>, vector<8x512xbf16>, vector<32x512xf32> -> vector<32x512xf32>
    %9 = arith.addf %5, %8 : vector<32x512xf32>
    %10 = vector.extract_strided_slice %2 {offsets = [0, 8], sizes = [32, 8], strides = [1, 1]} : vector<32x16xbf16> to vector<32x8xbf16>
    %c0_8 = arith.constant 0 : index
    %c0_9 = arith.constant 0 : index
    %11 = vector.load %arg2[%c0_8, %c0_9] : memref<24x512xbf16, #tpu.memory_space<vmem>>, vector<8x512xbf16>
    %cst_10 = arith.constant dense<0.000000e+00> : vector<32x512xf32>
    %12 = tpu.matmul %10, %11, %cst_10 {dimension_numbers = #tpu.dot_dimension_numbers<[1], [0], [0], [1], [0, 0, 1, 1], [], []>} : vector<32x8xbf16>, vector<8x512xbf16>, vector<32x512xf32> -> vector<32x512xf32>
    %c8 = arith.constant 8 : index
    %c0_11 = arith.constant 0 : index
    %13 = vector.load %arg2[%c8, %c0_11] : memref<24x512xbf16, #tpu.memory_space<vmem>>, vector<16x512xbf16>
    %cst_12 = arith.constant dense<0.000000e+00> : vector<32x512xf32>
    %14 = tpu.matmul %3, %13, %cst_12 {dimension_numbers = #tpu.dot_dimension_numbers<[1], [0], [0], [1], [0, 0, 1, 1], [], []>} : vector<32x16xbf16>, vector<16x512xbf16>, vector<32x512xf32> -> vector<32x512xf32>
    %15 = arith.addf %12, %14 : vector<32x512xf32>
    %c0_13 = arith.constant 0 : index
    %c0_14 = arith.constant 0 : index
    %16 = vector.load %arg3[%c0_13, %c0_14] : memref<1x512xf32, #tpu.memory_space<vmem>>, vector<1x512xf32>
    %c0_15 = arith.constant 0 : index
    %c0_16 = arith.constant 0 : index
    %17 = vector.load %arg4[%c0_15, %c0_16] : memref<1x512xf32, #tpu.memory_space<vmem>>, vector<1x512xf32>
    %18 = vector.broadcast %16 : vector<1x512xf32> to vector<32x512xf32>
    %19 = arith.mulf %9, %18 : vector<32x512xf32>
    %20 = vector.broadcast %17 : vector<1x512xf32> to vector<32x512xf32>
    %21 = arith.addf %19, %20 : vector<32x512xf32>
    %cst_17 = arith.constant 0.000000e+00 : f32
    %22 = vector.broadcast %cst_17 : f32 to vector<32x512xf32>
    %23 = arith.maximumf %21, %22 : vector<32x512xf32>
    %24 = vector.broadcast %16 : vector<1x512xf32> to vector<32x512xf32>
    %25 = arith.mulf %15, %24 : vector<32x512xf32>
    %26 = vector.broadcast %17 : vector<1x512xf32> to vector<32x512xf32>
    %27 = arith.addf %25, %26 : vector<32x512xf32>
    %cst_18 = arith.constant 0.000000e+00 : f32
    %28 = vector.broadcast %cst_18 : f32 to vector<32x512xf32>
    %29 = arith.maximumf %27, %28 : vector<32x512xf32>
    %30 = arith.maximumf %23, %29 : vector<32x512xf32>
    %31 = vector.extract_strided_slice %30 {offsets = [0, 0], sizes = [32, 256], strides = [1, 1]} : vector<32x512xf32> to vector<32x256xf32>
    %32 = vector.extract_strided_slice %30 {offsets = [0, 256], sizes = [32, 256], strides = [1, 1]} : vector<32x512xf32> to vector<32x256xf32>
    %33 = arith.maximumf %31, %32 : vector<32x256xf32>
    %34 = vector.shape_cast %33 : vector<32x256xf32> to vector<1x32x256xf32>
    %35 = arith.truncf %34 : vector<1x32x256xf32> to vector<1x32x256xbf16>
    %c0_19 = arith.constant 0 : index
    %c0_20 = arith.constant 0 : index
    %c0_21 = arith.constant 0 : index
    %36 = vector.load %arg5[%c0_19, %c0_20, %c0_21] : memref<1x32x256xbf16, #tpu.memory_space<vmem>>, vector<1x32x256xbf16>
    tpu.vector_store %arg5[%c0_19, %c0_20, %c0_21], %35 {strides = array<i32>} : memref<1x32x256xbf16, #tpu.memory_space<vmem>>, vector<1x32x256xbf16>,
    return
  }
  func.func @transform_0(%arg0: i32) -> (i32, i32, i32) {
    %c0_i32 = arith.constant 0 : i32
    %c0_i32_0 = arith.constant 0 : i32
    %c0_i32_1 = arith.constant 0 : i32
    return %arg0, %c0_i32, %c0_i32_0 : i32, i32, i32
  }
  func.func @transform_1(%arg0: i32) -> (i32, i32) {
    %c0_i32 = arith.constant 0 : i32
    %c0_i32_0 = arith.constant 0 : i32
    %c0_i32_1 = arith.constant 0 : i32
    return %c0_i32, %c0_i32_0 : i32, i32
  }
  func.func @transform_2(%arg0: i32) -> (i32, i32) {
    %c0_i32 = arith.constant 0 : i32
    %c0_i32_0 = arith.constant 0 : i32
    %c0_i32_1 = arith.constant 0 : i32
    return %c0_i32, %c0_i32_0 : i32, i32
  }
  func.func @transform_3(%arg0: i32) -> (i32, i32) {
    %c0_i32 = arith.constant 0 : i32
    %c0_i32_0 = arith.constant 0 : i32
    %c0_i32_1 = arith.constant 0 : i32
    return %c0_i32, %c0_i32_0 : i32, i32
  }
  func.func @transform_4(%arg0: i32) -> (i32, i32, i32) {
    %c0_i32 = arith.constant 0 : i32
    %c0_i32_0 = arith.constant 0 : i32
    %c0_i32_1 = arith.constant 0 : i32
    return %arg0, %c0_i32, %c0_i32_0 : i32, i32, i32
  }
}

module attributes {stable_mosaic.version = 11 : i64} {
  func.func @_conv_pool_kernel(%arg0: i32, %arg1: memref<1x9x512xbf16, #tpu.memory_space<vmem>>, %arg2: memref<768x512xbf16, #tpu.memory_space<vmem>>, %arg3: memref<1x512xf32, #tpu.memory_space<vmem>>, %arg4: memref<1x512xf32, #tpu.memory_space<vmem>>, %arg5: memref<1x8x256xbf16, #tpu.memory_space<vmem>>) attributes {dimension_semantics = [#tpu.dimension_semantics<parallel>], iteration_bounds = array<i64: 2>, scalar_prefetch = 0 : i64, scratch_operands = 0 : i64, tpu.core_type = #tpu.core_type<tc>, window_params = [{transform_indices = @transform_0, window_bounds = array<i64: 1, 9, 512>}, {pipeline_mode = #tpu.pipeline_mode<synchronous>, transform_indices = @transform_1, window_bounds = array<i64: 768, 512>}, {pipeline_mode = #tpu.pipeline_mode<synchronous>, transform_indices = @transform_2, window_bounds = array<i64: 1, 512>}, {pipeline_mode = #tpu.pipeline_mode<synchronous>, transform_indices = @transform_3, window_bounds = array<i64: 1, 512>}, {transform_indices = @transform_4, window_bounds = array<i64: 1, 8, 256>}]} {
    %c0 = arith.constant 0 : index
    %c0_0 = arith.constant 0 : index
    %c0_1 = arith.constant 0 : index
    %0 = vector.load %arg1[%c0, %c0_0, %c0_1] : memref<1x9x512xbf16, #tpu.memory_space<vmem>>, vector<1x8x512xbf16>
    %c0_2 = arith.constant 0 : index
    %c1 = arith.constant 1 : index
    %c0_3 = arith.constant 0 : index
    %1 = vector.load %arg1[%c0_2, %c1, %c0_3] : memref<1x9x512xbf16, #tpu.memory_space<vmem>>, vector<1x8x512xbf16>
    %2 = vector.shape_cast %0 : vector<1x8x512xbf16> to vector<8x512xbf16>
    %3 = vector.shape_cast %1 : vector<1x8x512xbf16> to vector<8x512xbf16>
    %c0_4 = arith.constant 0 : index
    %c0_5 = arith.constant 0 : index
    %4 = vector.load %arg2[%c0_4, %c0_5] : memref<768x512xbf16, #tpu.memory_space<vmem>>, vector<768x512xbf16>
    %5 = vector.extract_strided_slice %3 {offsets = [0, 0], sizes = [8, 256], strides = [1, 1]} : vector<8x512xbf16> to vector<8x256xbf16>
    %6 = tpu.concatenate %2, %5 in 1 : vector<8x512xbf16>, vector<8x256xbf16> -> vector<8x768xbf16>
    %7 = vector.extract_strided_slice %2 {offsets = [0, 256], sizes = [8, 256], strides = [1, 1]} : vector<8x512xbf16> to vector<8x256xbf16>
    %8 = tpu.concatenate %7, %3 in 1 : vector<8x256xbf16>, vector<8x512xbf16> -> vector<8x768xbf16>
    %cst = arith.constant dense<0.000000e+00> : vector<8x512xf32>
    %9 = tpu.matmul %6, %4, %cst {dimension_numbers = #tpu.dot_dimension_numbers<[1], [0], [0], [1], [0, 0, 1, 1], [], []>} : vector<8x768xbf16>, vector<768x512xbf16>, vector<8x512xf32> -> vector<8x512xf32>
    %cst_6 = arith.constant dense<0.000000e+00> : vector<8x512xf32>
    %10 = tpu.matmul %8, %4, %cst_6 {dimension_numbers = #tpu.dot_dimension_numbers<[1], [0], [0], [1], [0, 0, 1, 1], [], []>} : vector<8x768xbf16>, vector<768x512xbf16>, vector<8x512xf32> -> vector<8x512xf32>
    %c0_7 = arith.constant 0 : index
    %c0_8 = arith.constant 0 : index
    %11 = vector.load %arg3[%c0_7, %c0_8] : memref<1x512xf32, #tpu.memory_space<vmem>>, vector<1x512xf32>
    %c0_9 = arith.constant 0 : index
    %c0_10 = arith.constant 0 : index
    %12 = vector.load %arg4[%c0_9, %c0_10] : memref<1x512xf32, #tpu.memory_space<vmem>>, vector<1x512xf32>
    %13 = vector.broadcast %11 : vector<1x512xf32> to vector<8x512xf32>
    %14 = arith.mulf %9, %13 : vector<8x512xf32>
    %15 = vector.broadcast %12 : vector<1x512xf32> to vector<8x512xf32>
    %16 = arith.addf %14, %15 : vector<8x512xf32>
    %cst_11 = arith.constant 0.000000e+00 : f32
    %17 = vector.broadcast %cst_11 : f32 to vector<8x512xf32>
    %18 = arith.maximumf %16, %17 : vector<8x512xf32>
    %19 = vector.broadcast %11 : vector<1x512xf32> to vector<8x512xf32>
    %20 = arith.mulf %10, %19 : vector<8x512xf32>
    %21 = vector.broadcast %12 : vector<1x512xf32> to vector<8x512xf32>
    %22 = arith.addf %20, %21 : vector<8x512xf32>
    %cst_12 = arith.constant 0.000000e+00 : f32
    %23 = vector.broadcast %cst_12 : f32 to vector<8x512xf32>
    %24 = arith.maximumf %22, %23 : vector<8x512xf32>
    %25 = arith.maximumf %18, %24 : vector<8x512xf32>
    %26 = vector.extract_strided_slice %25 {offsets = [0, 0], sizes = [8, 256], strides = [1, 1]} : vector<8x512xf32> to vector<8x256xf32>
    %27 = vector.extract_strided_slice %25 {offsets = [0, 256], sizes = [8, 256], strides = [1, 1]} : vector<8x512xf32> to vector<8x256xf32>
    %28 = arith.maximumf %26, %27 : vector<8x256xf32>
    %29 = vector.shape_cast %28 : vector<8x256xf32> to vector<1x8x256xf32>
    %30 = arith.truncf %29 : vector<1x8x256xf32> to vector<1x8x256xbf16>
    %c0_13 = arith.constant 0 : index
    %c0_14 = arith.constant 0 : index
    %c0_15 = arith.constant 0 : index
    %31 = vector.load %arg5[%c0_13, %c0_14, %c0_15] : memref<1x8x256xbf16, #tpu.memory_space<vmem>>, vector<1x8x256xbf16>
    tpu.vector_store %arg5[%c0_13, %c0_14, %c0_15], %30 {strides = array<i32>} : memref<1x8x256xbf16, #tpu.memory_space<vmem>>, vector<1x8x256xbf16>,
    return
  }
  func.func @transform_0(%arg0: i32) -> (i32, i32, i32) {
    %c0_i32 = arith.constant 0 : i32
    %c0_i32_0 = arith.constant 0 : i32
    %c0_i32_1 = arith.constant 0 : i32
    return %arg0, %c0_i32, %c0_i32_0 : i32, i32, i32
  }
  func.func @transform_1(%arg0: i32) -> (i32, i32) {
    %c0_i32 = arith.constant 0 : i32
    %c0_i32_0 = arith.constant 0 : i32
    %c0_i32_1 = arith.constant 0 : i32
    return %c0_i32, %c0_i32_0 : i32, i32
  }
  func.func @transform_2(%arg0: i32) -> (i32, i32) {
    %c0_i32 = arith.constant 0 : i32
    %c0_i32_0 = arith.constant 0 : i32
    %c0_i32_1 = arith.constant 0 : i32
    return %c0_i32, %c0_i32_0 : i32, i32
  }
  func.func @transform_3(%arg0: i32) -> (i32, i32) {
    %c0_i32 = arith.constant 0 : i32
    %c0_i32_0 = arith.constant 0 : i32
    %c0_i32_1 = arith.constant 0 : i32
    return %c0_i32, %c0_i32_0 : i32, i32
  }
  func.func @transform_4(%arg0: i32) -> (i32, i32, i32) {
    %c0_i32 = arith.constant 0 : i32
    %c0_i32_0 = arith.constant 0 : i32
    %c0_i32_1 = arith.constant 0 : i32
    return %arg0, %c0_i32, %c0_i32_0 : i32, i32, i32
  }
}

module attributes {stable_mosaic.version = 11 : i64} {
  func.func @_fc_stack_kernel(%arg0: i32, %arg1: memref<2x2048xbf16, #tpu.memory_space<vmem>>, %arg2: memref<2048x64xbf16, #tpu.memory_space<vmem>>, %arg3: memref<1x64xf32, #tpu.memory_space<vmem>>, %arg4: memref<64x32xbf16, #tpu.memory_space<vmem>>, %arg5: memref<1x32xf32, #tpu.memory_space<vmem>>, %arg6: memref<32x16xbf16, #tpu.memory_space<vmem>>, %arg7: memref<1x16xf32, #tpu.memory_space<vmem>>, %arg8: memref<16x10xbf16, #tpu.memory_space<vmem>>, %arg9: memref<1x10xf32, #tpu.memory_space<vmem>>, %arg10: memref<2x10xf32, #tpu.memory_space<vmem>>) attributes {dimension_semantics = [#tpu.dimension_semantics<parallel>], iteration_bounds = array<i64: 1>, scalar_prefetch = 0 : i64, scratch_operands = 0 : i64, tpu.core_type = #tpu.core_type<tc>, window_params = [{transform_indices = @transform_0, window_bounds = array<i64: 2, 2048>}, {pipeline_mode = #tpu.pipeline_mode<synchronous>, transform_indices = @transform_1, window_bounds = array<i64: 2048, 64>}, {pipeline_mode = #tpu.pipeline_mode<synchronous>, transform_indices = @transform_2, window_bounds = array<i64: 1, 64>}, {pipeline_mode = #tpu.pipeline_mode<synchronous>, transform_indices = @transform_3, window_bounds = array<i64: 64, 32>}, {pipeline_mode = #tpu.pipeline_mode<synchronous>, transform_indices = @transform_4, window_bounds = array<i64: 1, 32>}, {pipeline_mode = #tpu.pipeline_mode<synchronous>, transform_indices = @transform_5, window_bounds = array<i64: 32, 16>}, {pipeline_mode = #tpu.pipeline_mode<synchronous>, transform_indices = @transform_6, window_bounds = array<i64: 1, 16>}, {pipeline_mode = #tpu.pipeline_mode<synchronous>, transform_indices = @transform_7, window_bounds = array<i64: 16, 10>}, {pipeline_mode = #tpu.pipeline_mode<synchronous>, transform_indices = @transform_8, window_bounds = array<i64: 1, 10>}, {transform_indices = @transform_9, window_bounds = array<i64: 2, 10>}]} {
    %c0 = arith.constant 0 : index
    %c0_0 = arith.constant 0 : index
    %0 = vector.load %arg1[%c0, %c0_0] : memref<2x2048xbf16, #tpu.memory_space<vmem>>, vector<2x2048xbf16>
    %c0_1 = arith.constant 0 : index
    %c0_2 = arith.constant 0 : index
    %1 = vector.load %arg2[%c0_1, %c0_2] : memref<2048x64xbf16, #tpu.memory_space<vmem>>, vector<2048x64xbf16>
    %cst = arith.constant dense<0.000000e+00> : vector<2x64xf32>
    %2 = tpu.matmul %0, %1, %cst {dimension_numbers = #tpu.dot_dimension_numbers<[1], [0], [0], [1], [0, 0, 1, 1], [], []>} : vector<2x2048xbf16>, vector<2048x64xbf16>, vector<2x64xf32> -> vector<2x64xf32>
    %c0_3 = arith.constant 0 : index
    %c0_4 = arith.constant 0 : index
    %3 = vector.load %arg3[%c0_3, %c0_4] : memref<1x64xf32, #tpu.memory_space<vmem>>, vector<1x64xf32>
    %4 = vector.broadcast %3 : vector<1x64xf32> to vector<2x64xf32>
    %5 = arith.addf %2, %4 : vector<2x64xf32>
    %6 = math.tanh %5 : vector<2x64xf32>
    %7 = arith.truncf %6 : vector<2x64xf32> to vector<2x64xbf16>
    %c0_5 = arith.constant 0 : index
    %c0_6 = arith.constant 0 : index
    %8 = vector.load %arg4[%c0_5, %c0_6] : memref<64x32xbf16, #tpu.memory_space<vmem>>, vector<64x32xbf16>
    %cst_7 = arith.constant dense<0.000000e+00> : vector<2x32xf32>
    %9 = tpu.matmul %7, %8, %cst_7 {dimension_numbers = #tpu.dot_dimension_numbers<[1], [0], [0], [1], [0, 0, 1, 1], [], []>} : vector<2x64xbf16>, vector<64x32xbf16>, vector<2x32xf32> -> vector<2x32xf32>
    %c0_8 = arith.constant 0 : index
    %c0_9 = arith.constant 0 : index
    %10 = vector.load %arg5[%c0_8, %c0_9] : memref<1x32xf32, #tpu.memory_space<vmem>>, vector<1x32xf32>
    %11 = vector.broadcast %10 : vector<1x32xf32> to vector<2x32xf32>
    %12 = arith.addf %9, %11 : vector<2x32xf32>
    %13 = math.tanh %12 : vector<2x32xf32>
    %14 = arith.truncf %13 : vector<2x32xf32> to vector<2x32xbf16>
    %c0_10 = arith.constant 0 : index
    %c0_11 = arith.constant 0 : index
    %15 = vector.load %arg6[%c0_10, %c0_11] : memref<32x16xbf16, #tpu.memory_space<vmem>>, vector<32x16xbf16>
    %cst_12 = arith.constant dense<0.000000e+00> : vector<2x16xf32>
    %16 = tpu.matmul %14, %15, %cst_12 {dimension_numbers = #tpu.dot_dimension_numbers<[1], [0], [0], [1], [0, 0, 1, 1], [], []>} : vector<2x32xbf16>, vector<32x16xbf16>, vector<2x16xf32> -> vector<2x16xf32>
    %c0_13 = arith.constant 0 : index
    %c0_14 = arith.constant 0 : index
    %17 = vector.load %arg7[%c0_13, %c0_14] : memref<1x16xf32, #tpu.memory_space<vmem>>, vector<1x16xf32>
    %18 = vector.broadcast %17 : vector<1x16xf32> to vector<2x16xf32>
    %19 = arith.addf %16, %18 : vector<2x16xf32>
    %cst_15 = arith.constant 0.000000e+00 : f32
    %20 = vector.broadcast %cst_15 : f32 to vector<2x16xf32>
    %21 = arith.maximumf %19, %20 : vector<2x16xf32>
    %22 = arith.truncf %21 : vector<2x16xf32> to vector<2x16xbf16>
    %c0_16 = arith.constant 0 : index
    %c0_17 = arith.constant 0 : index
    %23 = vector.load %arg8[%c0_16, %c0_17] : memref<16x10xbf16, #tpu.memory_space<vmem>>, vector<16x10xbf16>
    %cst_18 = arith.constant dense<0.000000e+00> : vector<2x10xf32>
    %24 = tpu.matmul %22, %23, %cst_18 {dimension_numbers = #tpu.dot_dimension_numbers<[1], [0], [0], [1], [0, 0, 1, 1], [], []>} : vector<2x16xbf16>, vector<16x10xbf16>, vector<2x10xf32> -> vector<2x10xf32>
    %c0_19 = arith.constant 0 : index
    %c0_20 = arith.constant 0 : index
    %25 = vector.load %arg9[%c0_19, %c0_20] : memref<1x10xf32, #tpu.memory_space<vmem>>, vector<1x10xf32>
    %26 = vector.broadcast %25 : vector<1x10xf32> to vector<2x10xf32>
    %27 = arith.addf %24, %26 : vector<2x10xf32>
    %c0_21 = arith.constant 0 : index
    %c0_22 = arith.constant 0 : index
    %28 = vector.load %arg10[%c0_21, %c0_22] : memref<2x10xf32, #tpu.memory_space<vmem>>, vector<2x10xf32>
    tpu.vector_store %arg10[%c0_21, %c0_22], %27 {strides = array<i32>} : memref<2x10xf32, #tpu.memory_space<vmem>>, vector<2x10xf32>,
    return
  }
  func.func @transform_0(%arg0: i32) -> (i32, i32) {
    %c0_i32 = arith.constant 0 : i32
    %c0_i32_0 = arith.constant 0 : i32
    return %arg0, %c0_i32 : i32, i32
  }
  func.func @transform_1(%arg0: i32) -> (i32, i32) {
    %c0_i32 = arith.constant 0 : i32
    %c0_i32_0 = arith.constant 0 : i32
    %c0_i32_1 = arith.constant 0 : i32
    return %c0_i32, %c0_i32_0 : i32, i32
  }
  func.func @transform_2(%arg0: i32) -> (i32, i32) {
    %c0_i32 = arith.constant 0 : i32
    %c0_i32_0 = arith.constant 0 : i32
    %c0_i32_1 = arith.constant 0 : i32
    return %c0_i32, %c0_i32_0 : i32, i32
  }
  func.func @transform_3(%arg0: i32) -> (i32, i32) {
    %c0_i32 = arith.constant 0 : i32
    %c0_i32_0 = arith.constant 0 : i32
    %c0_i32_1 = arith.constant 0 : i32
    return %c0_i32, %c0_i32_0 : i32, i32
  }
  func.func @transform_4(%arg0: i32) -> (i32, i32) {
    %c0_i32 = arith.constant 0 : i32
    %c0_i32_0 = arith.constant 0 : i32
    %c0_i32_1 = arith.constant 0 : i32
    return %c0_i32, %c0_i32_0 : i32, i32
  }
  func.func @transform_5(%arg0: i32) -> (i32, i32) {
    %c0_i32 = arith.constant 0 : i32
    %c0_i32_0 = arith.constant 0 : i32
    %c0_i32_1 = arith.constant 0 : i32
    return %c0_i32, %c0_i32_0 : i32, i32
  }
  func.func @transform_6(%arg0: i32) -> (i32, i32) {
    %c0_i32 = arith.constant 0 : i32
    %c0_i32_0 = arith.constant 0 : i32
    %c0_i32_1 = arith.constant 0 : i32
    return %c0_i32, %c0_i32_0 : i32, i32
  }
  func.func @transform_7(%arg0: i32) -> (i32, i32) {
    %c0_i32 = arith.constant 0 : i32
    %c0_i32_0 = arith.constant 0 : i32
    %c0_i32_1 = arith.constant 0 : i32
    return %c0_i32, %c0_i32_0 : i32, i32
  }
  func.func @transform_8(%arg0: i32) -> (i32, i32) {
    %c0_i32 = arith.constant 0 : i32
    %c0_i32_0 = arith.constant 0 : i32
    %c0_i32_1 = arith.constant 0 : i32
    return %c0_i32, %c0_i32_0 : i32, i32
  }
  func.func @transform_9(%arg0: i32) -> (i32, i32) {
    %c0_i32 = arith.constant 0 : i32
    %c0_i32_0 = arith.constant 0 : i32
    return %arg0, %c0_i32 : i32, i32
  }
}

</mosaic_0001>

<llo_original>
// kernel: cnn2d_forward.4
$region0: #{cnn2d_forward.4}
  #allocation0 [shape = 'u32[]', space=smem, size = 0x4, offset = 0x4, fixed_abs, tag = 'smem constant byte address 0x4 - core index']
  #allocation1 [shape = 'u32[144,128]{1,0:T(1,128)}', space=vmem, size = 0x12000, scoped, tag = 'internal scratch']
  %s0 = inlined_call_operand.vmem [shape: bf16[2,33,16], index: 0, kind: input, shape index: {}]
  %s1 = inlined_call_operand.hbm [shape: bf16[24,512], index: 1, kind: input, shape index: {}]
  %s2 = inlined_call_operand.hbm [shape: f32[1,512], index: 2, kind: input, shape index: {}]
  %s3 = inlined_call_operand.hbm [shape: f32[1,512], index: 3, kind: input, shape index: {}]
  %s4 = inlined_call_operand.vmem [shape: bf16[2,32,256], index: 4, kind: output, shape index: {}]
  %s5 = sld [smem:[#allocation0]]
  $region61: #{cnn2d_forward.4} parent=0
    _
  %s7 = ssub.s32 1, %s5
  %s8 = scalar_select 0, %s7, %s5
  $region1: #{cnn2d_forward.4} parent=0
    #allocation2 [shape = 'u8[24576]{0}', space=vmem, size = 0x6000, scoped, tag = 'input window, operand 1, single buffered']
    #allocation3 [shape = 's32[2]{0}', space=sflag, size = 0x8, scoped, tag = 'scoped memory for cnn2d_forward.4']
    #allocation4 [shape = 'u8[2048]{0}', space=vmem, size = 0x800, scoped, tag = 'input window, operand 2, single buffered']
    #allocation5 [shape = 's32[1]{0}', space=sflag, size = 0x4, scoped, tag = 'scoped memory for cnn2d_forward.4']
    #allocation6 [shape = 'u8[2048]{0}', space=vmem, size = 0x800, scoped, tag = 'input window, operand 3, single buffered']
    %9 = vsyncpa [#allocation3], 0
    %10 = vsyncpa [#allocation5], 0
    loop: start=0, step=1, limit=4
    $region2: #{cnn2d_forward.4} parent=1 // loop_pre_header
      _
    $region3: #{cnn2d_forward.4} parent=1 // loop_header
      %s12 = sphi 0, %s16
      %p13 = scmp.ge.s32.totalorder %s12, 4
      %s22 = sphi 0, %s24
      %s25 = sphi 0, %s22
      %s26 = sphi 0, %s25
      %s42 = sphi 0, %s26
      %s46 = sphi 0, %s46
      %s48 = sphi 0, %s46
      %s49 = sphi 0, %s48
      %s63 = sphi 0, %s49
      %s67 = sphi 0, %s67
      %s69 = sphi 0, %s67
      %s70 = sphi 0, %s69
      %s84 = sphi 0, %s70
      %s88 = sphi 0, %s88
      %s90 = sphi 0, %s88
      %s91 = sphi 0, %s90
      %s105 = sphi 0, %s91
      %s111 = sphi 0, %s113
      %s114 = sphi 0, %s111
      %s115 = sphi 0, %s114
      %s131 = sphi 0, %s115
    $region4: #{cnn2d_forward.4} parent=1 // loop_header_branch
      %15 = sbr.rel (%p13) target = $region8
    $region5: #{cnn2d_forward.4} parent=1 // loop_body
      %s17 = ssub.s32 %s12, 1
      %s18 = ssub.s32 %s12, 2
      %s19 = sadd.s32 %s12, 1
      %s20 = ssub.s32 %s12, %s19
      %p21 = scmp.eq.s32.totalorder %s20, 0
      %s23 = sadd.s32 %s22, 1
      %s24 = scalar_select %p21, %s22, %s23
      %p27 = pneg %p21
      %p28 = scmp.eq.s32.totalorder %s12, 1
      %p29 = por %p27, %p28
      %p30 = scmp.ne.s32.totalorder %s22, %s25
      %p31 = scmp.eq.s32.totalorder %s12, 0
      %p32 = por %p30, %p31
      %p33 = scmp.ne.s32.totalorder %s22, %s25
      %p34 = scmp.eq.s32.totalorder %s17, 1
      %p35 = por %p33, %p34
      %p36 = scmp.ne.s32.totalorder %s25, %s26
      %p37 = scmp.eq.s32.totalorder %s17, 0
      %p38 = por %p36, %p37
      %p39 = scmp.ne.s32.totalorder %s25, %s26
      %p40 = scmp.eq.s32.totalorder %s18, 1
      %p41 = por %p39, %p40
      %p43 = scmp.ne.s32.totalorder %s26, %s42
      %p44 = scmp.eq.s32.totalorder %s18, 0
      %p45 = por %p43, %p44
      %s47 = sadd.s32 %s46, 1
      %p50 = scmp.eq.s32.totalorder %s12, 1
      %p51 = scmp.ne.s32.totalorder %s46, %s48
      %p52 = scmp.eq.s32.totalorder %s12, 0
      %p53 = por %p51, %p52
      %p54 = scmp.ne.s32.totalorder %s46, %s48
      %p55 = scmp.eq.s32.totalorder %s17, 1
      %p56 = por %p54, %p55
      %p57 = scmp.ne.s32.totalorder %s48, %s49
      %p58 = scmp.eq.s32.totalorder %s17, 0
      %p59 = por %p57, %p58
      %p60 = scmp.ne.s32.totalorder %s48, %s49
      %p61 = scmp.eq.s32.totalorder %s18, 1
      %p62 = por %p60, %p61
      %p64 = scmp.ne.s32.totalorder %s49, %s63
      %p65 = scmp.eq.s32.totalorder %s18, 0
      %p66 = por %p64, %p65
      %s68 = sadd.s32 %s67, 1
      %p71 = scmp.eq.s32.totalorder %s12, 1
      %p72 = scmp.ne.s32.totalorder %s67, %s69
      %p73 = scmp.eq.s32.totalorder %s12, 0
      %p74 = por %p72, %p73
      %p75 = scmp.ne.s32.totalorder %s67, %s69
      %p76 = scmp.eq.s32.totalorder %s17, 1
      %p77 = por %p75, %p76
      %p78 = scmp.ne.s32.totalorder %s69, %s70
      %p79 = scmp.eq.s32.totalorder %s17, 0
      %p80 = por %p78, %p79
      %p81 = scmp.ne.s32.totalorder %s69, %s70
      %p82 = scmp.eq.s32.totalorder %s18, 1
      %p83 = por %p81, %p82
      %p85 = scmp.ne.s32.totalorder %s70, %s84
      %p86 = scmp.eq.s32.totalorder %s18, 0
      %p87 = por %p85, %p86
      %s89 = sadd.s32 %s88, 1
      %p92 = scmp.eq.s32.totalorder %s12, 1
      %p93 = scmp.ne.s32.totalorder %s88, %s90
      %p94 = scmp.eq.s32.totalorder %s12, 0
      %p95 = por %p93, %p94
      %p96 = scmp.ne.s32.totalorder %s88, %s90
      %p97 = scmp.eq.s32.totalorder %s17, 1
      %p98 = por %p96, %p97
      %p99 = scmp.ne.s32.totalorder %s90, %s91
      %p100 = scmp.eq.s32.totalorder %s17, 0
      %p101 = por %p99, %p100
      %p102 = scmp.ne.s32.totalorder %s90, %s91
      %p103 = scmp.eq.s32.totalorder %s18, 1
      %p104 = por %p102, %p103
      %p106 = scmp.ne.s32.totalorder %s91, %s105
      %p107 = scmp.eq.s32.totalorder %s18, 0
      %p108 = por %p106, %p107
      %s109 = ssub.s32 %s12, %s19
      %p110 = scmp.eq.s32.totalorder %s109, 0
      %s112 = sadd.s32 %s111, 1
      %s113 = scalar_select %p110, %s111, %s112
      %p116 = pneg %p110
      %p117 = scmp.eq.s32.totalorder %s12, 1
      %p118 = por %p116, %p117
      %p119 = scmp.ne.s32.totalorder %s111, %s114
      %p120 = scmp.eq.s32.totalorder %s12, 0
      %p121 = por %p119, %p120
      %p122 = scmp.ne.s32.totalorder %s111, %s114
      %p123 = scmp.eq.s32.totalorder %s17, 1
      %p124 = por %p122, %p123
      %p125 = scmp.ne.s32.totalorder %s114, %s115
      %p126 = scmp.eq.s32.totalorder %s17, 0
      %p127 = por %p125, %p126
      %p128 = scmp.ne.s32.totalorder %s114, %s115
      %p129 = scmp.eq.s32.totalorder %s18, 1
      %p130 = por %p128, %p129
      %p132 = scmp.ne.s32.totalorder %s115, %s131
      %p133 = scmp.eq.s32.totalorder %s18, 0
      %p134 = por %p132, %p133
      %p135 = scmp.le.s32.totalorder 1, %s12
      %p136 = scmp.lt.s32.totalorder %s12, 3
      %p137 = pnand %p135, %p136
      %p138 = pneg %p137
      // Predicated region
      $region9: #{cnn2d_forward.4} parent=5 // pred_check
        _
      $region10: #{cnn2d_forward.4} parent=5 // pred_check_branch
        %140 = sbr.rel (%p137) target = $region12
      $region11: #{cnn2d_forward.4} parent=5 // pred_region
        %s141 = ssub.s32 %s12, 1
        // Predicated region
        $region13: #{cnn2d_forward.4} parent=11 // pred_check
          %p142 = pneg %p59
        $region14: #{cnn2d_forward.4} parent=11 // pred_check_branch
          %144 = sbr.rel (%p142) target = $region16
        $region15: #{cnn2d_forward.4} parent=11 // pred_region
          %s146 = ssub.s32 768, 768
          %147 = vsyncadd [#allocation3], %s146
          %s148 = sshll.u32 [#allocation2], 4
          %s149 = int_to_ptr.vmem [resolvable:$true] %s148
          %154 = dma.hbm_to_vmem [thread:$0]  %s1, 768, %s149, [#allocation3], 256, 256, 16
        $region16: #{cnn2d_forward.4} parent=11 // pred_fallthru
          _
        // Predicated region
        $region17: #{cnn2d_forward.4} parent=11 // pred_check
          %p155 = pneg %p80
        $region18: #{cnn2d_forward.4} parent=11 // pred_check_branch
          %157 = sbr.rel (%p155) target = $region20
        $region19: #{cnn2d_forward.4} parent=11 // pred_region
          %s159 = ssub.s32 64, 64
          %160 = vsyncadd [#allocation5], %s159
          %s162 = sshll.u32 [#allocation4], 4
          %s163 = int_to_ptr.vmem [resolvable:$true] %s162
          %165 = dma.hbm_to_vmem [thread:$0]  %s2, 64, %s163, [#allocation5]
        $region20: #{cnn2d_forward.4} parent=11 // pred_fallthru
          _
        // Predicated region
        $region21: #{cnn2d_forward.4} parent=11 // pred_check
          %p166 = pneg %p101
        $region22: #{cnn2d_forward.4} parent=11 // pred_check_branch
          %168 = sbr.rel (%p166) target = $region24
        $region23: #{cnn2d_forward.4} parent=11 // pred_region
          %s170 = ssub.s32 64, 64
          %171 = vsyncadd [#allocation5], %s170
          %s173 = sshll.u32 [#allocation6], 4
          %s174 = int_to_ptr.vmem [resolvable:$true] %s173
          %176 = dma.hbm_to_vmem [thread:$0]  %s3, 64, %s174, [#allocation5]
        $region24: #{cnn2d_forward.4} parent=11 // pred_fallthru
          _
      $region12: #{cnn2d_forward.4} parent=5 // pred_fallthru
        _
      %p177 = scmp.lt.s32.totalorder %s12, 2
      // Predicated region
      $region25: #{cnn2d_forward.4} parent=5 // pred_check
        %p178 = pneg %p177
      $region26: #{cnn2d_forward.4} parent=5 // pred_check_branch
        %180 = sbr.rel (%p178) target = $region28
      $region27: #{cnn2d_forward.4} parent=5 // pred_region
        // Predicated region
        $region29: #{cnn2d_forward.4} parent=27 // pred_check
          %p181 = pneg %p32
        $region30: #{cnn2d_forward.4} parent=27 // pred_check_branch
          %183 = sbr.rel (%p181) target = $region32
        $region31: #{cnn2d_forward.4} parent=27 // pred_region
          %p184 = scmp.lt.s32.totalorder %s12, 1
          %s185 = scalar_select %p184, %s12, 1
          %s186 = smul.addr %s185, 5
          %s187 = smul.addr %s186, 4
          %s188 = scalar_lea.vmem %s0, %s187
        $region32: #{cnn2d_forward.4} parent=27 // pred_fallthru
          _
      $region28: #{cnn2d_forward.4} parent=5 // pred_fallthru
        _
      %p189 = scmp.le.s32.totalorder 1, %s12
      %p190 = scmp.lt.s32.totalorder %s12, 3
      %p191 = pnand %p189, %p190
      %p192 = pneg %p191
      // Predicated region
      $region33: #{cnn2d_forward.4} parent=5 // pred_check
        _
      $region34: #{cnn2d_forward.4} parent=5 // pred_check_branch
        %194 = sbr.rel (%p191) target = $region36
      $region35: #{cnn2d_forward.4} parent=5 // pred_region
        %s195 = ssub.s32 %s12, 1
        // Predicated region
        $region37: #{cnn2d_forward.4} parent=35 // pred_check
          %p196 = pneg %p59
        $region38: #{cnn2d_forward.4} parent=35 // pred_check_branch
          %198 = sbr.rel (%p196) target = $region40
        $region39: #{cnn2d_forward.4} parent=35 // pred_region
          %199 = dma.done [#allocation3], 768
        $region40: #{cnn2d_forward.4} parent=35 // pred_fallthru
          _
        // Predicated region
        $region41: #{cnn2d_forward.4} parent=35 // pred_check
          %p200 = pneg %p80
        $region42: #{cnn2d_forward.4} parent=35 // pred_check_branch
          %202 = sbr.rel (%p200) target = $region44
        $region43: #{cnn2d_forward.4} parent=35 // pred_region
          %203 = dma.done [#allocation5], 64
        $region44: #{cnn2d_forward.4} parent=35 // pred_fallthru
          _
        // Predicated region
        $region45: #{cnn2d_forward.4} parent=35 // pred_check
          %p204 = pneg %p101
        $region46: #{cnn2d_forward.4} parent=35 // pred_check_branch
          %206 = sbr.rel (%p204) target = $region48
        $region47: #{cnn2d_forward.4} parent=35 // pred_region
          %207 = dma.done [#allocation5], 64
        $region48: #{cnn2d_forward.4} parent=35 // pred_fallthru
          _
        %p208 = scmp.lt.s32.totalorder %s17, 1
        %s209 = scalar_select %p208, %s17, 1
        %s210 = smul.addr %s209, 5
        %s211 = smul.addr %s210, 4
        %s212 = scalar_lea.vmem %s0, %s211
        %p213 = pneg %p38
        %p214 = pneg %p35
        %p215 = pneg %p59
        %p216 = pneg %p56
        %p217 = pneg %p80
        %p218 = pneg %p77
        %p219 = pneg %p101
        %p220 = pneg %p98
        %p221 = pneg %p127
        %p222 = pneg %p124
        %p223 = scmp.lt.s32.totalorder %s17, 1
        %s224 = scalar_select %p223, %s17, 1
        %s225 = smul.addr %s224, 8
        %s226 = smul.addr %s225, 4
        %s227 = scalar_lea.vmem %s4, %s226
        %p228 = scmp.lt.s32.totalorder %s17, 1
        %s229 = scalar_select %p228, %s17, 1
        %s230 = smul.addr %s229, 5
        %s231 = smul.addr %s230, 4
        %s232 = scalar_lea.vmem %s0, %s231
        %p233 = scmp.lt.s32.totalorder %s17, 1
        %s234 = scalar_select %p233, %s17, 1
        %s235 = smul.addr %s234, 8
        %s236 = smul.addr %s235, 4
        %s237 = scalar_lea.vmem %s4, %s236
        %v239 = vld [vmem:[%s232] sm:$0xf]
        %v240 = vld [vmem:[%s232 + $0x4] sm:$0xf]
        %v241 = vld [vmem:[%s232 + $0x8] sm:$0xf]
        %v242 = vld [vmem:[%s232 + $0xc] sm:$0xf]
        %v243 = vld [vmem:[%s232 + $0x10] sm:$0x1]
        %v244 = vld [vmem:[#allocation2] sm:$0xff]
        %v245 = vld [vmem:[#allocation2 + $0x8] sm:$0xff]
        %v246 = vld [vmem:[#allocation2 + $0x10] sm:$0xff]
        %v247 = vld [vmem:[#allocation2 + $0x18] sm:$0xff]
        %v248 = vld [vmem:[#allocation2 + $0x20] sm:$0xff]
        %v249 = vld [vmem:[#allocation2 + $0x28] sm:$0xff]
        %v255 = vunpack.c.l.b16 %v239
        %v256 = vunpack.c.l.b16 %v240
        %v257 = vunpack.c.l.b16 %v241
        %v258 = vunpack.c.l.b16 %v242
        %v259 = vunpack.c.l.b16 %v243
        %v260 = vpack.c.b16 %v256, %v255
        %v261 = vpack.c.b16 %v258, %v257
        %v262 = vpack.c.b16 %v259, %v259
        %vm263 = vsmask.f32 7424
        %v265 = vshrl.u32 %v260, 16
        %v267 = vshll.u32 %v260, 16
        %v269 = vrot.slane %v267, 1
        %v270 = vor.u32 %v265, %v269
        %v272 = vshll.u32 %v261, 16
        %v274 = vrot.slane %v272, 1
        %v275 = vsel %vm263, %v270, %v274
        %v276 = vshrl.u32 %v261, 16
        %v278 = vor.u32 %v276, %v274
        %v280 = vshll.u32 %v262, 16
        %v282 = vrot.slane %v280, 1
        %v283 = vsel %vm263, %v278, %v282
        %v286 = vunpack.c.l.b16 %v248
        %v287 = vunpack.c.h.b16 %v248
        %v288 = vunpack.c.l.b16 %v249
        %v289 = vunpack.c.h.b16 %v249
        %v290 = vpack.c.b16 %v286, %v286
        %v291 = vpack.c.b16 %v287, %v287
        %v292 = vpack.c.b16 %v288, %v288
        %v293 = vpack.c.b16 %v289, %v289
        %vm294 = vcmask 64512
        %v296 = vsel %vm294, %v275, 0
        %v299 = vsel %vm294, %v283, 0
        %vm301 = vcmask 1043456
        %v303 = vsel %vm301, %v290, 0
        %v306 = vsel %vm301, %v291, 0
        %v309 = vsel %vm301, %v292, 0
        %v312 = vsel %vm301, %v293, 0
        %314 = vmatprep.subr.bf16.mxu0 %v306
        %315 = vmatpush1.bf16.msra.mxu0 %v303
        %316 = vmatprep.subr.bf16.mxu0 0
        %317 = vmatpush1.bf16.msra.mxu0 0
        %318 = vmatprep.subr.bf16.mxu0 0
        %319 = vmatpush1.bf16.msra.mxu0 0
        %320 = vmatprep.subr.bf16.mxu0 0
        %321 = vmatpush1.bf16.msra.mxu0 0
        %322 = vmatprep.subr.bf16.mxu0 0
        %323 = vmatpush1.bf16.msra.mxu0 0
        %324 = vmatprep.subr.bf16.mxu0 0
        %325 = vmatpush1.bf16.msra.mxu0 0
        %326 = vmatprep.subr.bf16.mxu0 0
        %327 = vmatpush1.bf16.msra.mxu0 0
        %328 = vmatprep.subr.bf16.mxu0 0
        %329 = vmatpush1.bf16.msra.mxu0 0
        %330 = vmatprep.subr.bf16.mxu0 0
        %331 = vmatpush1.bf16.msra.mxu0 0
        %332 = vmatprep.subr.bf16.mxu0 0
        %333 = vmatpush1.bf16.msra.mxu0 0
        %334 = vmatprep.subr.bf16.mxu0 0
        %335 = vmatpush1.bf16.msra.mxu0 0
        %336 = vmatprep.subr.bf16.mxu0 0
        %337 = vmatpush1.bf16.msra.mxu0 0
        %338 = vmatprep.subr.bf16.mxu0 0
        %339 = vmatpush1.bf16.msra.mxu0 0
        %340 = vmatprep.subr.bf16.mxu0 0
        %341 = vmatpush1.bf16.msra.mxu0 0
        %342 = vmatprep.subr.bf16.mxu0 0
        %343 = vmatpush1.bf16.msra.mxu0 0
        %344 = vmatprep.subr.bf16.mxu0 0
        %345 = vmatpush1.bf16.msra.mxu0 0
        %346 = vmatprep.mubr.bf16.mxu0 0
        %347 = vmatmul.mubr.bf16.gmra.mrb[0].mxu0 %v296
        %v348 = vpop.f32.mrb[0].mxu0
        %v349 = vadd.f32 0.0, %v348
        %v350 = vpop.f32.mrb[0].mxu0
        %v351 = vadd.f32 0.0, %v350
        %v352 = vpop.f32.mrb[0].mxu0
        %v353 = vadd.f32 0.0, %v352
        %v354 = vpop.f32.mrb[0].mxu0
        %v355 = vadd.f32 0.0, %v354
        %356 = vmatprep.mubr.bf16.mxu0 0
        %357 = vmatmul.mubr.bf16.gmra.mrb[0].mxu0 %v299
        %v358 = vpop.f32.mrb[0].mxu0
        %v359 = vadd.f32 0.0, %v358
        %v360 = vpop.f32.mrb[0].mxu0
        %v361 = vadd.f32 0.0, %v360
        %v362 = vpop.f32.mrb[0].mxu0
        %v363 = vadd.f32 0.0, %v362
        %v364 = vpop.f32.mrb[0].mxu0
        %v365 = vadd.f32 0.0, %v364
        %366 = vdwg.mxu0
        %367 = vmatprep.subr.bf16.mxu0 %v312
        %368 = vmatpush1.bf16.msra.mxu0 %v309
        %369 = vmatprep.subr.bf16.mxu0 0
        %370 = vmatpush1.bf16.msra.mxu0 0
        %371 = vmatprep.subr.bf16.mxu0 0
        %372 = vmatpush1.bf16.msra.mxu0 0
        %373 = vmatprep.subr.bf16.mxu0 0
        %374 = vmatpush1.bf16.msra.mxu0 0
        %375 = vmatprep.subr.bf16.mxu0 0
        %376 = vmatpush1.bf16.msra.mxu0 0
        %377 = vmatprep.subr.bf16.mxu0 0
        %378 = vmatpush1.bf16.msra.mxu0 0
        %379 = vmatprep.subr.bf16.mxu0 0
        %380 = vmatpush1.bf16.msra.mxu0 0
        %381 = vmatprep.subr.bf16.mxu0 0
        %382 = vmatpush1.bf16.msra.mxu0 0
        %383 = vmatprep.subr.bf16.mxu0 0
        %384 = vmatpush1.bf16.msra.mxu0 0
        %385 = vmatprep.subr.bf16.mxu0 0
        %386 = vmatpush1.bf16.msra.mxu0 0
        %387 = vmatprep.subr.bf16.mxu0 0
        %388 = vmatpush1.bf16.msra.mxu0 0
        %389 = vmatprep.subr.bf16.mxu0 0
        %390 = vmatpush1.bf16.msra.mxu0 0
        %391 = vmatprep.subr.bf16.mxu0 0
        %392 = vmatpush1.bf16.msra.mxu0 0
        %393 = vmatprep.subr.bf16.mxu0 0
        %394 = vmatpush1.bf16.msra.mxu0 0
        %395 = vmatprep.subr.bf16.mxu0 0
        %396 = vmatpush1.bf16.msra.mxu0 0
        %397 = vmatprep.subr.bf16.mxu0 0
        %398 = vmatpush1.bf16.msra.mxu0 0
        %399 = vmatprep.mubr.bf16.mxu0 0
        %400 = vmatmul.mubr.bf16.gmra.mrb[0].mxu0 %v296
        %v401 = vpop.f32.mrb[0].mxu0
        %v402 = vadd.f32 0.0, %v401
        %v403 = vpop.f32.mrb[0].mxu0
        %v404 = vadd.f32 0.0, %v403
        %v405 = vpop.f32.mrb[0].mxu0
        %v406 = vadd.f32 0.0, %v405
        %v407 = vpop.f32.mrb[0].mxu0
        %v408 = vadd.f32 0.0, %v407
        %409 = vmatprep.mubr.bf16.mxu0 0
        %410 = vmatmul.mubr.bf16.gmra.mrb[0].mxu0 %v299
        %v411 = vpop.f32.mrb[0].mxu0
        %v412 = vadd.f32 0.0, %v411
        %v413 = vpop.f32.mrb[0].mxu0
        %v414 = vadd.f32 0.0, %v413
        %v415 = vpop.f32.mrb[0].mxu0
        %v416 = vadd.f32 0.0, %v415
        %v417 = vpop.f32.mrb[0].mxu0
        %v418 = vadd.f32 0.0, %v417
        %419 = vdwg.mxu0
        %v424 = vunpack.c.l.b16 %v244
        %v425 = vunpack.c.h.b16 %v244
        %v426 = vunpack.c.l.b16 %v245
        %v427 = vunpack.c.h.b16 %v245
        %v428 = vunpack.c.l.b16 %v246
        %v429 = vunpack.c.h.b16 %v246
        %v430 = vunpack.c.l.b16 %v247
        %v431 = vunpack.c.h.b16 %v247
        %v432 = vpack.c.b16 %v428, %v424
        %v433 = vpack.c.b16 %v429, %v425
        %v434 = vpack.c.b16 %v430, %v426
        %v435 = vpack.c.b16 %v431, %v427
        %vm440 = vcmask 130048
        %v441 = vsel %vm440, %v260, 0
        %v443 = vsel %vm440, %v261, 0
        %445 = vmatprep.subr.bf16.mxu0 %v433
        %446 = vmatpush1.bf16.msra.mxu0 %v432
        %447 = vmatprep.subr.bf16.mxu0 0
        %448 = vmatpush1.bf16.msra.mxu0 0
        %449 = vmatprep.subr.bf16.mxu0 0
        %450 = vmatpush1.bf16.msra.mxu0 0
        %451 = vmatprep.subr.bf16.mxu0 0
        %452 = vmatpush1.bf16.msra.mxu0 0
        %453 = vmatprep.subr.bf16.mxu0 0
        %454 = vmatpush1.bf16.msra.mxu0 0
        %455 = vmatprep.subr.bf16.mxu0 0
        %456 = vmatpush1.bf16.msra.mxu0 0
        %457 = vmatprep.subr.bf16.mxu0 0
        %458 = vmatpush1.bf16.msra.mxu0 0
        %459 = vmatprep.subr.bf16.mxu0 0
        %460 = vmatpush1.bf16.msra.mxu0 0
        %461 = vmatprep.subr.bf16.mxu0 0
        %462 = vmatpush1.bf16.msra.mxu0 0
        %463 = vmatprep.subr.bf16.mxu0 0
        %464 = vmatpush1.bf16.msra.mxu0 0
        %465 = vmatprep.subr.bf16.mxu0 0
        %466 = vmatpush1.bf16.msra.mxu0 0
        %467 = vmatprep.subr.bf16.mxu0 0
        %468 = vmatpush1.bf16.msra.mxu0 0
        %469 = vmatprep.subr.bf16.mxu0 0
        %470 = vmatpush1.bf16.msra.mxu0 0
        %471 = vmatprep.subr.bf16.mxu0 0
        %472 = vmatpush1.bf16.msra.mxu0 0
        %473 = vmatprep.subr.bf16.mxu0 0
        %474 = vmatpush1.bf16.msra.mxu0 0
        %475 = vmatprep.subr.bf16.mxu0 0
        %476 = vmatpush1.bf16.msra.mxu0 0
        %477 = vmatprep.mubr.bf16.mxu0 0
        %478 = vmatmul.mubr.bf16.gmra.mrb[0].mxu0 %v441
        %v479 = vpop.f32.mrb[0].mxu0
        %v480 = vadd.f32 %v349, %v479
        %v481 = vpop.f32.mrb[0].mxu0
        %v482 = vadd.f32 %v351, %v481
        %v483 = vpop.f32.mrb[0].mxu0
        %v484 = vadd.f32 %v353, %v483
        %v485 = vpop.f32.mrb[0].mxu0
        %v486 = vadd.f32 %v355, %v485
        %487 = vmatprep.mubr.bf16.mxu0 0
        %488 = vmatmul.mubr.bf16.gmra.mrb[0].mxu0 %v443
        %v489 = vpop.f32.mrb[0].mxu0
        %v490 = vadd.f32 %v359, %v489
        %v491 = vpop.f32.mrb[0].mxu0
        %v492 = vadd.f32 %v361, %v491
        %v493 = vpop.f32.mrb[0].mxu0
        %v494 = vadd.f32 %v363, %v493
        %v495 = vpop.f32.mrb[0].mxu0
        %v496 = vadd.f32 %v365, %v495
        %497 = vdwg.mxu0
        %498 = vmatprep.subr.bf16.mxu0 %v435
        %499 = vmatpush1.bf16.msra.mxu0 %v434
        %500 = vmatprep.subr.bf16.mxu0 0
        %501 = vmatpush1.bf16.msra.mxu0 0
        %502 = vmatprep.subr.bf16.mxu0 0
        %503 = vmatpush1.bf16.msra.mxu0 0
        %504 = vmatprep.subr.bf16.mxu0 0
        %505 = vmatpush1.bf16.msra.mxu0 0
        %506 = vmatprep.subr.bf16.mxu0 0
        %507 = vmatpush1.bf16.msra.mxu0 0
        %508 = vmatprep.subr.bf16.mxu0 0
        %509 = vmatpush1.bf16.msra.mxu0 0
        %510 = vmatprep.subr.bf16.mxu0 0
        %511 = vmatpush1.bf16.msra.mxu0 0
        %512 = vmatprep.subr.bf16.mxu0 0
        %513 = vmatpush1.bf16.msra.mxu0 0
        %514 = vmatprep.subr.bf16.mxu0 0
        %515 = vmatpush1.bf16.msra.mxu0 0
        %516 = vmatprep.subr.bf16.mxu0 0
        %517 = vmatpush1.bf16.msra.mxu0 0
        %518 = vmatprep.subr.bf16.mxu0 0
        %519 = vmatpush1.bf16.msra.mxu0 0
        %520 = vmatprep.subr.bf16.mxu0 0
        %521 = vmatpush1.bf16.msra.mxu0 0
        %522 = vmatprep.subr.bf16.mxu0 0
        %523 = vmatpush1.bf16.msra.mxu0 0
        %524 = vmatprep.subr.bf16.mxu0 0
        %525 = vmatpush1.bf16.msra.mxu0 0
        %526 = vmatprep.subr.bf16.mxu0 0
        %527 = vmatpush1.bf16.msra.mxu0 0
        %528 = vmatprep.subr.bf16.mxu0 0
        %529 = vmatpush1.bf16.msra.mxu0 0
        %530 = vmatprep.mubr.bf16.mxu0 0
        %531 = vmatmul.mubr.bf16.gmra.mrb[0].mxu0 %v441
        %v532 = vpop.f32.mrb[0].mxu0
        %v533 = vadd.f32 %v402, %v532
        %v534 = vpop.f32.mrb[0].mxu0
        %v535 = vadd.f32 %v404, %v534
        %v536 = vpop.f32.mrb[0].mxu0
        %v537 = vadd.f32 %v406, %v536
        %v538 = vpop.f32.mrb[0].mxu0
        %v539 = vadd.f32 %v408, %v538
        %540 = vmatprep.mubr.bf16.mxu0 0
        %541 = vmatmul.mubr.bf16.gmra.mrb[0].mxu0 %v443
        %v542 = vpop.f32.mrb[0].mxu0
        %v543 = vadd.f32 %v412, %v542
        %v544 = vpop.f32.mrb[0].mxu0
        %v545 = vadd.f32 %v414, %v544
        %v546 = vpop.f32.mrb[0].mxu0
        %v547 = vadd.f32 %v416, %v546
        %v548 = vpop.f32.mrb[0].mxu0
        %v549 = vadd.f32 %v418, %v548
        %550 = vdwg.mxu0
        %v551 = vld [vmem:[#allocation2] sm:$0xff]
        %v552 = vld [vmem:[#allocation2 + $0x8] sm:$0xff]
        %v553 = vld [vmem:[#allocation2 + $0x10] sm:$0xff]
        %v554 = vld [vmem:[#allocation2 + $0x18] sm:$0xff]
        %v557 = vunpack.c.l.b16 %v553
        %v558 = vunpack.c.h.b16 %v553
        %v559 = vunpack.c.l.b16 %v554
        %v560 = vunpack.c.h.b16 %v554
        %v561 = vpack.c.b16 %v286, %v557
        %v562 = vpack.c.b16 %v287, %v558
        %v563 = vpack.c.b16 %v288, %v559
        %v564 = vpack.c.b16 %v289, %v560
        %v569 = vsel %vm440, %v275, 0
        %v571 = vsel %vm440, %v283, 0
        %573 = vmatprep.subr.bf16.mxu0 %v562
        %574 = vmatpush1.bf16.msra.mxu0 %v561
        %575 = vmatprep.subr.bf16.mxu0 0
        %576 = vmatpush1.bf16.msra.mxu0 0
        %577 = vmatprep.subr.bf16.mxu0 0
        %578 = vmatpush1.bf16.msra.mxu0 0
        %579 = vmatprep.subr.bf16.mxu0 0
        %580 = vmatpush1.bf16.msra.mxu0 0
        %581 = vmatprep.subr.bf16.mxu0 0
        %582 = vmatpush1.bf16.msra.mxu0 0
        %583 = vmatprep.subr.bf16.mxu0 0
        %584 = vmatpush1.bf16.msra.mxu0 0
        %585 = vmatprep.subr.bf16.mxu0 0
        %586 = vmatpush1.bf16.msra.mxu0 0
        %587 = vmatprep.subr.bf16.mxu0 0
        %588 = vmatpush1.bf16.msra.mxu0 0
        %589 = vmatprep.subr.bf16.mxu0 0
        %590 = vmatpush1.bf16.msra.mxu0 0
        %591 = vmatprep.subr.bf16.mxu0 0
        %592 = vmatpush1.bf16.msra.mxu0 0
        %593 = vmatprep.subr.bf16.mxu0 0
        %594 = vmatpush1.bf16.msra.mxu0 0
        %595 = vmatprep.subr.bf16.mxu0 0
        %596 = vmatpush1.bf16.msra.mxu0 0
        %597 = vmatprep.subr.bf16.mxu0 0
        %598 = vmatpush1.bf16.msra.mxu0 0
        %599 = vmatprep.subr.bf16.mxu0 0
        %600 = vmatpush1.bf16.msra.mxu0 0
        %601 = vmatprep.subr.bf16.mxu0 0
        %602 = vmatpush1.bf16.msra.mxu0 0
        %603 = vmatprep.subr.bf16.mxu0 0
        %604 = vmatpush1.bf16.msra.mxu0 0
        %605 = vmatprep.mubr.bf16.mxu0 0
        %606 = vmatmul.mubr.bf16.gmra.mrb[0].mxu0 %v569
        %v607 = vpop.f32.mrb[0].mxu0
        %v608 = vadd.f32 0.0, %v607
        %v609 = vpop.f32.mrb[0].mxu0
        %v610 = vadd.f32 0.0, %v609
        %v611 = vpop.f32.mrb[0].mxu0
        %v612 = vadd.f32 0.0, %v611
        %v613 = vpop.f32.mrb[0].mxu0
        %v614 = vadd.f32 0.0, %v613
        %615 = vmatprep.mubr.bf16.mxu0 0
        %616 = vmatmul.mubr.bf16.gmra.mrb[0].mxu0 %v571
        %v617 = vpop.f32.mrb[0].mxu0
        %v618 = vadd.f32 0.0, %v617
        %v619 = vpop.f32.mrb[0].mxu0
        %v620 = vadd.f32 0.0, %v619
        %v621 = vpop.f32.mrb[0].mxu0
        %v622 = vadd.f32 0.0, %v621
        %v623 = vpop.f32.mrb[0].mxu0
        %v624 = vadd.f32 0.0, %v623
        %625 = vdwg.mxu0
        %626 = vmatprep.subr.bf16.mxu0 %v564
        %627 = vmatpush1.bf16.msra.mxu0 %v563
        %628 = vmatprep.subr.bf16.mxu0 0
        %629 = vmatpush1.bf16.msra.mxu0 0
        %630 = vmatprep.subr.bf16.mxu0 0
        %631 = vmatpush1.bf16.msra.mxu0 0
        %632 = vmatprep.subr.bf16.mxu0 0
        %633 = vmatpush1.bf16.msra.mxu0 0
        %634 = vmatprep.subr.bf16.mxu0 0
        %635 = vmatpush1.bf16.msra.mxu0 0
        %636 = vmatprep.subr.bf16.mxu0 0
        %637 = vmatpush1.bf16.msra.mxu0 0
        %638 = vmatprep.subr.bf16.mxu0 0
        %639 = vmatpush1.bf16.msra.mxu0 0
        %640 = vmatprep.subr.bf16.mxu0 0
        %641 = vmatpush1.bf16.msra.mxu0 0
        %642 = vmatprep.subr.bf16.mxu0 0
        %643 = vmatpush1.bf16.msra.mxu0 0
        %644 = vmatprep.subr.bf16.mxu0 0
        %645 = vmatpush1.bf16.msra.mxu0 0
        %646 = vmatprep.subr.bf16.mxu0 0
        %647 = vmatpush1.bf16.msra.mxu0 0
        %648 = vmatprep.subr.bf16.mxu0 0
        %649 = vmatpush1.bf16.msra.mxu0 0
        %650 = vmatprep.subr.bf16.mxu0 0
        %651 = vmatpush1.bf16.msra.mxu0 0
        %652 = vmatprep.subr.bf16.mxu0 0
        %653 = vmatpush1.bf16.msra.mxu0 0
        %654 = vmatprep.subr.bf16.mxu0 0
        %655 = vmatpush1.bf16.msra.mxu0 0
        %656 = vmatprep.subr.bf16.mxu0 0
        %657 = vmatpush1.bf16.msra.mxu0 0
        %658 = vmatprep.mubr.bf16.mxu0 0
        %659 = vmatmul.mubr.bf16.gmra.mrb[0].mxu0 %v569
        %v660 = vpop.f32.mrb[0].mxu0
        %v661 = vadd.f32 0.0, %v660
        %v662 = vpop.f32.mrb[0].mxu0
        %v663 = vadd.f32 0.0, %v662
        %v664 = vpop.f32.mrb[0].mxu0
        %v665 = vadd.f32 0.0, %v664
        %v666 = vpop.f32.mrb[0].mxu0
        %v667 = vadd.f32 0.0, %v666
        %668 = vmatprep.mubr.bf16.mxu0 0
        %669 = vmatmul.mubr.bf16.gmra.mrb[0].mxu0 %v571
        %v670 = vpop.f32.mrb[0].mxu0
        %v671 = vadd.f32 0.0, %v670
        %v672 = vpop.f32.mrb[0].mxu0
        %v673 = vadd.f32 0.0, %v672
        %v674 = vpop.f32.mrb[0].mxu0
        %v675 = vadd.f32 0.0, %v674
        %v676 = vpop.f32.mrb[0].mxu0
        %v677 = vadd.f32 0.0, %v676
        %678 = vdwg.mxu0
        %679 = vrot.lane.b32.xlu0 %v260, 120
        %v680 = vpop.permute.xlu0 %679
        %681 = vrot.lane.b32.xlu0 %v261, 120
        %v682 = vpop.permute.xlu0 %681
        %v685 = vunpack.c.l.b16 %v551
        %v686 = vunpack.c.h.b16 %v551
        %v687 = vunpack.c.l.b16 %v552
        %v688 = vunpack.c.h.b16 %v552
        %v689 = vpack.c.b16 %v685, %v685
        %v690 = vpack.c.b16 %v686, %v686
        %v691 = vpack.c.b16 %v687, %v687
        %v692 = vpack.c.b16 %v688, %v688
        %v694 = vsel %vm294, %v680, 0
        %v697 = vsel %vm294, %v682, 0
        %v700 = vsel %vm301, %v689, 0
        %v703 = vsel %vm301, %v690, 0
        %v706 = vsel %vm301, %v691, 0
        %v709 = vsel %vm301, %v692, 0
        %711 = vmatprep.subr.bf16.mxu0 %v703
        %712 = vmatpush1.bf16.msra.mxu0 %v700
        %713 = vmatprep.subr.bf16.mxu0 0
        %714 = vmatpush1.bf16.msra.mxu0 0
        %715 = vmatprep.subr.bf16.mxu0 0
        %716 = vmatpush1.bf16.msra.mxu0 0
        %717 = vmatprep.subr.bf16.mxu0 0
        %718 = vmatpush1.bf16.msra.mxu0 0
        %719 = vmatprep.subr.bf16.mxu0 0
        %720 = vmatpush1.bf16.msra.mxu0 0
        %721 = vmatprep.subr.bf16.mxu0 0
        %722 = vmatpush1.bf16.msra.mxu0 0
        %723 = vmatprep.subr.bf16.mxu0 0
        %724 = vmatpush1.bf16.msra.mxu0 0
        %725 = vmatprep.subr.bf16.mxu0 0
        %726 = vmatpush1.bf16.msra.mxu0 0
        %727 = vmatprep.subr.bf16.mxu0 0
        %728 = vmatpush1.bf16.msra.mxu0 0
        %729 = vmatprep.subr.bf16.mxu0 0
        %730 = vmatpush1.bf16.msra.mxu0 0
        %731 = vmatprep.subr.bf16.mxu0 0
        %732 = vmatpush1.bf16.msra.mxu0 0
        %733 = vmatprep.subr.bf16.mxu0 0
        %734 = vmatpush1.bf16.msra.mxu0 0
        %735 = vmatprep.subr.bf16.mxu0 0
        %736 = vmatpush1.bf16.msra.mxu0 0
        %737 = vmatprep.subr.bf16.mxu0 0
        %738 = vmatpush1.bf16.msra.mxu0 0
        %739 = vmatprep.subr.bf16.mxu0 0
        %740 = vmatpush1.bf16.msra.mxu0 0
        %741 = vmatprep.subr.bf16.mxu0 0
        %742 = vmatpush1.bf16.msra.mxu0 0
        %743 = vmatprep.mubr.bf16.mxu0 0
        %744 = vmatmul.mubr.bf16.gmra.mrb[0].mxu0 %v694
        %v745 = vpop.f32.mrb[0].mxu0
        %v746 = vadd.f32 %v608, %v745
        %v747 = vpop.f32.mrb[0].mxu0
        %v748 = vadd.f32 %v610, %v747
        %v749 = vpop.f32.mrb[0].mxu0
        %v750 = vadd.f32 %v612, %v749
        %v751 = vpop.f32.mrb[0].mxu0
        %v752 = vadd.f32 %v614, %v751
        %753 = vmatprep.mubr.bf16.mxu0 0
        %754 = vmatmul.mubr.bf16.gmra.mrb[0].mxu0 %v697
        %v755 = vpop.f32.mrb[0].mxu0
        %v756 = vadd.f32 %v618, %v755
        %v757 = vpop.f32.mrb[0].mxu0
        %v758 = vadd.f32 %v620, %v757
        %v759 = vpop.f32.mrb[0].mxu0
        %v760 = vadd.f32 %v622, %v759
        %v761 = vpop.f32.mrb[0].mxu0
        %v762 = vadd.f32 %v624, %v761
        %763 = vdwg.mxu0
        %764 = vmatprep.subr.bf16.mxu0 %v709
        %765 = vmatpush1.bf16.msra.mxu0 %v706
        %766 = vmatprep.subr.bf16.mxu0 0
        %767 = vmatpush1.bf16.msra.mxu0 0
        %768 = vmatprep.subr.bf16.mxu0 0
        %769 = vmatpush1.bf16.msra.mxu0 0
        %770 = vmatprep.subr.bf16.mxu0 0
        %771 = vmatpush1.bf16.msra.mxu0 0
        %772 = vmatprep.subr.bf16.mxu0 0
        %773 = vmatpush1.bf16.msra.mxu0 0
        %774 = vmatprep.subr.bf16.mxu0 0
        %775 = vmatpush1.bf16.msra.mxu0 0
        %776 = vmatprep.subr.bf16.mxu0 0
        %777 = vmatpush1.bf16.msra.mxu0 0
        %778 = vmatprep.subr.bf16.mxu0 0
        %779 = vmatpush1.bf16.msra.mxu0 0
        %780 = vmatprep.subr.bf16.mxu0 0
        %781 = vmatpush1.bf16.msra.mxu0 0
        %782 = vmatprep.subr.bf16.mxu0 0
        %783 = vmatpush1.bf16.msra.mxu0 0
        %784 = vmatprep.subr.bf16.mxu0 0
        %785 = vmatpush1.bf16.msra.mxu0 0
        %786 = vmatprep.subr.bf16.mxu0 0
        %787 = vmatpush1.bf16.msra.mxu0 0
        %788 = vmatprep.subr.bf16.mxu0 0
        %789 = vmatpush1.bf16.msra.mxu0 0
        %790 = vmatprep.subr.bf16.mxu0 0
        %791 = vmatpush1.bf16.msra.mxu0 0
        %792 = vmatprep.subr.bf16.mxu0 0
        %793 = vmatpush1.bf16.msra.mxu0 0
        %794 = vmatprep.subr.bf16.mxu0 0
        %795 = vmatpush1.bf16.msra.mxu0 0
        %796 = vmatprep.mubr.bf16.mxu0 0
        %797 = vmatmul.mubr.bf16.gmra.mrb[0].mxu0 %v694
        %v798 = vpop.f32.mrb[0].mxu0
        %v799 = vadd.f32 %v661, %v798
        %v800 = vpop.f32.mrb[0].mxu0
        %v801 = vadd.f32 %v663, %v800
        %v802 = vpop.f32.mrb[0].mxu0
        %v803 = vadd.f32 %v665, %v802
        %v804 = vpop.f32.mrb[0].mxu0
        %v805 = vadd.f32 %v667, %v804
        %806 = vmatprep.mubr.bf16.mxu0 0
        %807 = vmatmul.mubr.bf16.gmra.mrb[0].mxu0 %v697
        %v808 = vpop.f32.mrb[0].mxu0
        %v809 = vadd.f32 %v671, %v808
        %v810 = vpop.f32.mrb[0].mxu0
        %v811 = vadd.f32 %v673, %v810
        %v812 = vpop.f32.mrb[0].mxu0
        %v813 = vadd.f32 %v675, %v812
        %v814 = vpop.f32.mrb[0].mxu0
        %v815 = vadd.f32 %v677, %v814
        %816 = vdwg.mxu0
        %v817 = vld [vmem:[#allocation4] sm:$0xf]
        %v818 = vld [vmem:[#allocation6] sm:$0xf]
        %v820 = vlaneseq
        %v821 = vshrl.u32 %v820, 7
        %v822 = vsub.s32 0, %v821
        %v823 = vrot.slane %v817, %v822
        %v824 = vlaneseq
        %v825 = vshrl.u32 %v824, 7
        %v826 = vsub.s32 1, %v825
        %v827 = vrot.slane %v817, %v826
        %v828 = vlaneseq
        %v829 = vshrl.u32 %v828, 7
        %v830 = vsub.s32 2, %v829
        %v831 = vrot.slane %v817, %v830
        %v832 = vlaneseq
        %v833 = vshrl.u32 %v832, 7
        %v834 = vsub.s32 3, %v833
        %v835 = vrot.slane %v817, %v834
        %v840 = vmul.f32 %v480, %v823
        %v841 = vmul.f32 %v482, %v827
        %v842 = vmul.f32 %v533, %v831
        %v843 = vmul.f32 %v535, %v835
        %v844 = vmul.f32 %v484, %v823
        %v845 = vmul.f32 %v486, %v827
        %v846 = vmul.f32 %v537, %v831
        %v847 = vmul.f32 %v539, %v835
        %v848 = vmul.f32 %v490, %v823
        %v849 = vmul.f32 %v492, %v827
        %v850 = vmul.f32 %v543, %v831
        %v851 = vmul.f32 %v545, %v835
        %v852 = vmul.f32 %v494, %v823
        %v853 = vmul.f32 %v496, %v827
        %v854 = vmul.f32 %v547, %v831
        %v855 = vmul.f32 %v549, %v835
        %v857 = vlaneseq
        %v858 = vshrl.u32 %v857, 7
        %v859 = vsub.s32 0, %v858
        %v860 = vrot.slane %v818, %v859
        %v861 = vlaneseq
        %v862 = vshrl.u32 %v861, 7
        %v863 = vsub.s32 1, %v862
        %v864 = vrot.slane %v818, %v863
        %v865 = vlaneseq
        %v866 = vshrl.u32 %v865, 7
        %v867 = vsub.s32 2, %v866
        %v868 = vrot.slane %v818, %v867
        %v869 = vlaneseq
        %v870 = vshrl.u32 %v869, 7
        %v871 = vsub.s32 3, %v870
        %v872 = vrot.slane %v818, %v871
        %v877 = vadd.f32 %v840, %v860
        %v878 = vadd.f32 %v841, %v864
        %v879 = vadd.f32 %v842, %v868
        %v880 = vadd.f32 %v843, %v872
        %v881 = vadd.f32 %v844, %v860
        %v882 = vadd.f32 %v845, %v864
        %v883 = vadd.f32 %v846, %v868
        %v884 = vadd.f32 %v847, %v872
        %v885 = vadd.f32 %v848, %v860
        %v886 = vadd.f32 %v849, %v864
        %v887 = vadd.f32 %v850, %v868
        %v888 = vadd.f32 %v851, %v872
        %v889 = vadd.f32 %v852, %v860
        %v890 = vadd.f32 %v853, %v864
        %v891 = vadd.f32 %v854, %v868
        %v892 = vadd.f32 %v855, %v872
        %v893 = vmax.f32 %v877, 0.0
        %v894 = vmax.f32 %v878, 0.0
        %v895 = vmax.f32 %v879, 0.0
        %v896 = vmax.f32 %v880, 0.0
        %v897 = vmax.f32 %v881, 0.0
        %v898 = vmax.f32 %v882, 0.0
        %v899 = vmax.f32 %v883, 0.0
        %v900 = vmax.f32 %v884, 0.0
        %v901 = vmax.f32 %v885, 0.0
        %v902 = vmax.f32 %v886, 0.0
        %v903 = vmax.f32 %v887, 0.0
        %v904 = vmax.f32 %v888, 0.0
        %v905 = vmax.f32 %v889, 0.0
        %v906 = vmax.f32 %v890, 0.0
        %v907 = vmax.f32 %v891, 0.0
        %v908 = vmax.f32 %v892, 0.0
        %v909 = vmul.f32 %v746, %v823
        %v910 = vmul.f32 %v748, %v827
        %v911 = vmul.f32 %v799, %v831
        %v912 = vmul.f32 %v801, %v835
        %v913 = vmul.f32 %v750, %v823
        %v914 = vmul.f32 %v752, %v827
        %v915 = vmul.f32 %v803, %v831
        %v916 = vmul.f32 %v805, %v835
        %v917 = vmul.f32 %v756, %v823
        %v918 = vmul.f32 %v758, %v827
        %v919 = vmul.f32 %v809, %v831
        %v920 = vmul.f32 %v811, %v835
        %v921 = vmul.f32 %v760, %v823
        %v922 = vmul.f32 %v762, %v827
        %v923 = vmul.f32 %v813, %v831
        %v924 = vmul.f32 %v815, %v835
        %v925 = vadd.f32 %v909, %v860
        %v926 = vadd.f32 %v910, %v864
        %v927 = vadd.f32 %v911, %v868
        %v928 = vadd.f32 %v912, %v872
        %v929 = vadd.f32 %v913, %v860
        %v930 = vadd.f32 %v914, %v864
        %v931 = vadd.f32 %v915, %v868
        %v932 = vadd.f32 %v916, %v872
        %v933 = vadd.f32 %v917, %v860
        %v934 = vadd.f32 %v918, %v864
        %v935 = vadd.f32 %v919, %v868
        %v936 = vadd.f32 %v920, %v872
        %v937 = vadd.f32 %v921, %v860
        %v938 = vadd.f32 %v922, %v864
        %v939 = vadd.f32 %v923, %v868
        %v940 = vadd.f32 %v924, %v872
        %v941 = vmax.f32 %v925, 0.0
        %v942 = vmax.f32 %v926, 0.0
        %v943 = vmax.f32 %v927, 0.0
        %v944 = vmax.f32 %v928, 0.0
        %v945 = vmax.f32 %v929, 0.0
        %v946 = vmax.f32 %v930, 0.0
        %v947 = vmax.f32 %v931, 0.0
        %v948 = vmax.f32 %v932, 0.0
        %v949 = vmax.f32 %v933, 0.0
        %v950 = vmax.f32 %v934, 0.0
        %v951 = vmax.f32 %v935, 0.0
        %v952 = vmax.f32 %v936, 0.0
        %v953 = vmax.f32 %v937, 0.0
        %v954 = vmax.f32 %v938, 0.0
        %v955 = vmax.f32 %v939, 0.0
        %v956 = vmax.f32 %v940, 0.0
        %v957 = vmax.f32 %v893, %v941
        %v958 = vmax.f32 %v894, %v942
        %v959 = vmax.f32 %v895, %v943
        %v960 = vmax.f32 %v896, %v944
        %v961 = vmax.f32 %v897, %v945
        %v962 = vmax.f32 %v898, %v946
        %v963 = vmax.f32 %v899, %v947
        %v964 = vmax.f32 %v900, %v948
        %v965 = vmax.f32 %v901, %v949
        %v966 = vmax.f32 %v902, %v950
        %v967 = vmax.f32 %v903, %v951
        %v968 = vmax.f32 %v904, %v952
        %v969 = vmax.f32 %v905, %v953
        %v970 = vmax.f32 %v906, %v954
        %v971 = vmax.f32 %v907, %v955
        %v972 = vmax.f32 %v908, %v956
        %v973 = vmax.f32 %v957, %v959
        %v974 = vmax.f32 %v958, %v960
        %v975 = vmax.f32 %v961, %v963
        %v976 = vmax.f32 %v962, %v964
        %v977 = vmax.f32 %v965, %v967
        %v978 = vmax.f32 %v966, %v968
        %v979 = vmax.f32 %v969, %v971
        %v980 = vmax.f32 %v970, %v972
        %v981 = vpack.c.bf16 %v975, %v973
        %v982 = vpack.c.bf16 %v976, %v974
        %v983 = vpack.c.bf16 %v979, %v977
        %v984 = vpack.c.bf16 %v980, %v978
        %v989 = vunpack.c.l.b16 %v981
        %v990 = vunpack.c.l.b16 %v982
        %v991 = vunpack.c.h.b16 %v981
        %v992 = vunpack.c.h.b16 %v982
        %v993 = vunpack.c.l.b16 %v983
        %v994 = vunpack.c.l.b16 %v984
        %v995 = vunpack.c.h.b16 %v983
        %v996 = vunpack.c.h.b16 %v984
        %v997 = vpack.c.b16 %v990, %v989
        %v998 = vpack.c.b16 %v992, %v991
        %v999 = vpack.c.b16 %v994, %v993
        %v1000 = vpack.c.b16 %v996, %v995
        %1005 = vst [vmem:[%s237] sm:$0xff] %v997
        %1006 = vst [vmem:[%s237 + $0x8] sm:$0xff] %v998
        %1007 = vst [vmem:[%s237 + $0x10] sm:$0xff] %v999
        %1008 = vst [vmem:[%s237 + $0x18] sm:$0xff] %v1000
        %p1009 = scmp.lt.s32.totalorder %s17, 1
        %s1010 = scalar_select %p1009, %s17, 1
        %s1011 = smul.addr %s1010, 8
        %s1012 = smul.addr %s1011, 4
        %s1013 = scalar_lea.vmem %s4, %s1012
        // Predicated region
        $region49: #{cnn2d_forward.4} parent=35 // pred_check
          %p1014 = pneg %p124
        $region50: #{cnn2d_forward.4} parent=35 // pred_check_branch
          %1016 = sbr.rel (%p1014) target = $region52
        $region51: #{cnn2d_forward.4} parent=35 // pred_region
          _
        $region52: #{cnn2d_forward.4} parent=35 // pred_fallthru
          _
      $region36: #{cnn2d_forward.4} parent=5 // pred_fallthru
        _
      %p1017 = scmp.le.s32.totalorder 2, %s12
      // Predicated region
      $region53: #{cnn2d_forward.4} parent=5 // pred_check
        %p1018 = pneg %p1017
      $region54: #{cnn2d_forward.4} parent=5 // pred_check_branch
        %1020 = sbr.rel (%p1018) target = $region56
      $region55: #{cnn2d_forward.4} parent=5 // pred_region
        %s1021 = ssub.s32 %s12, 2
        // Predicated region
        $region57: #{cnn2d_forward.4} parent=55 // pred_check
          %p1022 = pneg %p130
        $region58: #{cnn2d_forward.4} parent=55 // pred_check_branch
          %1024 = sbr.rel (%p1022) target = $region60
        $region59: #{cnn2d_forward.4} parent=55 // pred_region
          %p1025 = scmp.lt.s32.totalorder %s18, 1
          %s1026 = scalar_select %p1025, %s18, 1
          %s1027 = smul.addr %s1026, 8
          %s1028 = smul.addr %s1027, 4
          %s1029 = scalar_lea.vmem %s4, %s1028
        $region60: #{cnn2d_forward.4} parent=55 // pred_fallthru
          _
      $region56: #{cnn2d_forward.4} parent=5 // pred_fallthru
        _
    $region6: #{cnn2d_forward.4} parent=1 // loop_footer
      %s16 = sadd.s32 1, %s12
    $region7: #{cnn2d_forward.4} parent=1 // loop_footer_branch
      %11 = sbr.rel target = $region3
    $region8: #{cnn2d_forward.4} parent=1 // loop_exit
      _
    %1030 = vsyncpa [#allocation3], 1
    %s1031 = scalar_lea.sflag [#allocation3], 1
    %1032 = vsyncpa %s1031, 1
    %1033 = vsyncpa [#allocation5], 1

// kernel: cnn2d_forward.5
$region0: #{cnn2d_forward.5}
  #allocation0 [shape = 'u32[]', space=smem, size = 0x4, offset = 0x4, fixed_abs, tag = 'smem constant byte address 0x4 - core index']
  #allocation1 [shape = 'u32[144,128]{1,0:T(1,128)}', space=vmem, size = 0x12000, scoped, tag = 'internal scratch']
  %s0 = inlined_call_operand.vmem [shape: bf16[2,17,512], index: 0, kind: input, shape index: {}]
  %s1 = inlined_call_operand.hbm [shape: bf16[768,512], index: 1, kind: input, shape index: {}]
  %s2 = inlined_call_operand.hbm [shape: f32[1,512], index: 2, kind: input, shape index: {}]
  %s3 = inlined_call_operand.hbm [shape: f32[1,512], index: 3, kind: input, shape index: {}]
  %s4 = inlined_call_operand.vmem [shape: bf16[2,16,256], index: 4, kind: output, shape index: {}]
  %s5 = sld [smem:[#allocation0]]
  $region61: #{cnn2d_forward.5} parent=0
    _
  %s7 = ssub.s32 1, %s5
  %s8 = scalar_select 0, %s7, %s5
  $region1: #{cnn2d_forward.5} parent=0
    #allocation2 [shape = 'u8[786432]{0}', space=vmem, size = 0xc0000, scoped, tag = 'input window, operand 1, single buffered']
    #allocation3 [shape = 's32[2]{0}', space=sflag, size = 0x8, scoped, tag = 'scoped memory for cnn2d_forward.5']
    #allocation4 [shape = 'u8[2048]{0}', space=vmem, size = 0x800, scoped, tag = 'input window, operand 2, single buffered']
    #allocation5 [shape = 's32[1]{0}', space=sflag, size = 0x4, scoped, tag = 'scoped memory for cnn2d_forward.5']
    #allocation6 [shape = 'u8[2048]{0}', space=vmem, size = 0x800, scoped, tag = 'input window, operand 3, single buffered']
    %9 = vsyncpa [#allocation3], 0
    %10 = vsyncpa [#allocation5], 0
    loop: start=0, step=1, limit=4
    $region2: #{cnn2d_forward.5} parent=1 // loop_pre_header
      _
    $region3: #{cnn2d_forward.5} parent=1 // loop_header
      %s12 = sphi 0, %s16
      %p13 = scmp.ge.s32.totalorder %s12, 4
      %s22 = sphi 0, %s24
      %s25 = sphi 0, %s22
      %s26 = sphi 0, %s25
      %s42 = sphi 0, %s26
      %s46 = sphi 0, %s46
      %s48 = sphi 0, %s46
      %s49 = sphi 0, %s48
      %s63 = sphi 0, %s49
      %s67 = sphi 0, %s67
      %s69 = sphi 0, %s67
      %s70 = sphi 0, %s69
      %s84 = sphi 0, %s70
      %s88 = sphi 0, %s88
      %s90 = sphi 0, %s88
      %s91 = sphi 0, %s90
      %s105 = sphi 0, %s91
      %s111 = sphi 0, %s113
      %s114 = sphi 0, %s111
      %s115 = sphi 0, %s114
      %s131 = sphi 0, %s115
    $region4: #{cnn2d_forward.5} parent=1 // loop_header_branch
      %15 = sbr.rel (%p13) target = $region8
    $region5: #{cnn2d_forward.5} parent=1 // loop_body
      %s17 = ssub.s32 %s12, 1
      %s18 = ssub.s32 %s12, 2
      %s19 = sadd.s32 %s12, 1
      %s20 = ssub.s32 %s12, %s19
      %p21 = scmp.eq.s32.totalorder %s20, 0
      %s23 = sadd.s32 %s22, 1
      %s24 = scalar_select %p21, %s22, %s23
      %p27 = pneg %p21
      %p28 = scmp.eq.s32.totalorder %s12, 1
      %p29 = por %p27, %p28
      %p30 = scmp.ne.s32.totalorder %s22, %s25
      %p31 = scmp.eq.s32.totalorder %s12, 0
      %p32 = por %p30, %p31
      %p33 = scmp.ne.s32.totalorder %s22, %s25
      %p34 = scmp.eq.s32.totalorder %s17, 1
      %p35 = por %p33, %p34
      %p36 = scmp.ne.s32.totalorder %s25, %s26
      %p37 = scmp.eq.s32.totalorder %s17, 0
      %p38 = por %p36, %p37
      %p39 = scmp.ne.s32.totalorder %s25, %s26
      %p40 = scmp.eq.s32.totalorder %s18, 1
      %p41 = por %p39, %p40
      %p43 = scmp.ne.s32.totalorder %s26, %s42
      %p44 = scmp.eq.s32.totalorder %s18, 0
      %p45 = por %p43, %p44
      %s47 = sadd.s32 %s46, 1
      %p50 = scmp.eq.s32.totalorder %s12, 1
      %p51 = scmp.ne.s32.totalorder %s46, %s48
      %p52 = scmp.eq.s32.totalorder %s12, 0
      %p53 = por %p51, %p52
      %p54 = scmp.ne.s32.totalorder %s46, %s48
      %p55 = scmp.eq.s32.totalorder %s17, 1
      %p56 = por %p54, %p55
      %p57 = scmp.ne.s32.totalorder %s48, %s49
      %p58 = scmp.eq.s32.totalorder %s17, 0
      %p59 = por %p57, %p58
      %p60 = scmp.ne.s32.totalorder %s48, %s49
      %p61 = scmp.eq.s32.totalorder %s18, 1
      %p62 = por %p60, %p61
      %p64 = scmp.ne.s32.totalorder %s49, %s63
      %p65 = scmp.eq.s32.totalorder %s18, 0
      %p66 = por %p64, %p65
      %s68 = sadd.s32 %s67, 1
      %p71 = scmp.eq.s32.totalorder %s12, 1
      %p72 = scmp.ne.s32.totalorder %s67, %s69
      %p73 = scmp.eq.s32.totalorder %s12, 0
      %p74 = por %p72, %p73
      %p75 = scmp.ne.s32.totalorder %s67, %s69
      %p76 = scmp.eq.s32.totalorder %s17, 1
      %p77 = por %p75, %p76
      %p78 = scmp.ne.s32.totalorder %s69, %s70
      %p79 = scmp.eq.s32.totalorder %s17, 0
      %p80 = por %p78, %p79
      %p81 = scmp.ne.s32.totalorder %s69, %s70
      %p82 = scmp.eq.s32.totalorder %s18, 1
      %p83 = por %p81, %p82
      %p85 = scmp.ne.s32.totalorder %s70, %s84
      %p86 = scmp.eq.s32.totalorder %s18, 0
      %p87 = por %p85, %p86
      %s89 = sadd.s32 %s88, 1
      %p92 = scmp.eq.s32.totalorder %s12, 1
      %p93 = scmp.ne.s32.totalorder %s88, %s90
      %p94 = scmp.eq.s32.totalorder %s12, 0
      %p95 = por %p93, %p94
      %p96 = scmp.ne.s32.totalorder %s88, %s90
      %p97 = scmp.eq.s32.totalorder %s17, 1
      %p98 = por %p96, %p97
      %p99 = scmp.ne.s32.totalorder %s90, %s91
      %p100 = scmp.eq.s32.totalorder %s17, 0
      %p101 = por %p99, %p100
      %p102 = scmp.ne.s32.totalorder %s90, %s91
      %p103 = scmp.eq.s32.totalorder %s18, 1
      %p104 = por %p102, %p103
      %p106 = scmp.ne.s32.totalorder %s91, %s105
      %p107 = scmp.eq.s32.totalorder %s18, 0
      %p108 = por %p106, %p107
      %s109 = ssub.s32 %s12, %s19
      %p110 = scmp.eq.s32.totalorder %s109, 0
      %s112 = sadd.s32 %s111, 1
      %s113 = scalar_select %p110, %s111, %s112
      %p116 = pneg %p110
      %p117 = scmp.eq.s32.totalorder %s12, 1
      %p118 = por %p116, %p117
      %p119 = scmp.ne.s32.totalorder %s111, %s114
      %p120 = scmp.eq.s32.totalorder %s12, 0
      %p121 = por %p119, %p120
      %p122 = scmp.ne.s32.totalorder %s111, %s114
      %p123 = scmp.eq.s32.totalorder %s17, 1
      %p124 = por %p122, %p123
      %p125 = scmp.ne.s32.totalorder %s114, %s115
      %p126 = scmp.eq.s32.totalorder %s17, 0
      %p127 = por %p125, %p126
      %p128 = scmp.ne.s32.totalorder %s114, %s115
      %p129 = scmp.eq.s32.totalorder %s18, 1
      %p130 = por %p128, %p129
      %p132 = scmp.ne.s32.totalorder %s115, %s131
      %p133 = scmp.eq.s32.totalorder %s18, 0
      %p134 = por %p132, %p133
      %p135 = scmp.le.s32.totalorder 1, %s12
      %p136 = scmp.lt.s32.totalorder %s12, 3
      %p137 = pnand %p135, %p136
      %p138 = pneg %p137
      // Predicated region
      $region9: #{cnn2d_forward.5} parent=5 // pred_check
        _
      $region10: #{cnn2d_forward.5} parent=5 // pred_check_branch
        %140 = sbr.rel (%p137) target = $region12
      $region11: #{cnn2d_forward.5} parent=5 // pred_region
        %s141 = ssub.s32 %s12, 1
        // Predicated region
        $region13: #{cnn2d_forward.5} parent=11 // pred_check
          %p142 = pneg %p59
        $region14: #{cnn2d_forward.5} parent=11 // pred_check_branch
          %144 = sbr.rel (%p142) target = $region16
        $region15: #{cnn2d_forward.5} parent=11 // pred_region
          %s146 = ssub.s32 24576, 24576
          %147 = vsyncadd [#allocation3], %s146
          %s148 = sshll.u32 [#allocation2], 4
          %s149 = int_to_ptr.vmem [resolvable:$true] %s148
          %154 = dma.hbm_to_vmem [thread:$0]  %s1, 24576, %s149, [#allocation3], 256, 256, 16
        $region16: #{cnn2d_forward.5} parent=11 // pred_fallthru
          _
        // Predicated region
        $region17: #{cnn2d_forward.5} parent=11 // pred_check
          %p155 = pneg %p80
        $region18: #{cnn2d_forward.5} parent=11 // pred_check_branch
          %157 = sbr.rel (%p155) target = $region20
        $region19: #{cnn2d_forward.5} parent=11 // pred_region
          %s159 = ssub.s32 64, 64
          %160 = vsyncadd [#allocation5], %s159
          %s162 = sshll.u32 [#allocation4], 4
          %s163 = int_to_ptr.vmem [resolvable:$true] %s162
          %165 = dma.hbm_to_vmem [thread:$0]  %s2, 64, %s163, [#allocation5]
        $region20: #{cnn2d_forward.5} parent=11 // pred_fallthru
          _
        // Predicated region
        $region21: #{cnn2d_forward.5} parent=11 // pred_check
          %p166 = pneg %p101
        $region22: #{cnn2d_forward.5} parent=11 // pred_check_branch
          %168 = sbr.rel (%p166) target = $region24
        $region23: #{cnn2d_forward.5} parent=11 // pred_region
          %s170 = ssub.s32 64, 64
          %171 = vsyncadd [#allocation5], %s170
          %s173 = sshll.u32 [#allocation6], 4
          %s174 = int_to_ptr.vmem [resolvable:$true] %s173
          %176 = dma.hbm_to_vmem [thread:$0]  %s3, 64, %s174, [#allocation5]
        $region24: #{cnn2d_forward.5} parent=11 // pred_fallthru
          _
      $region12: #{cnn2d_forward.5} parent=5 // pred_fallthru
        _
      %p177 = scmp.lt.s32.totalorder %s12, 2
      // Predicated region
      $region25: #{cnn2d_forward.5} parent=5 // pred_check
        %p178 = pneg %p177
      $region26: #{cnn2d_forward.5} parent=5 // pred_check_branch
        %180 = sbr.rel (%p178) target = $region28
      $region27: #{cnn2d_forward.5} parent=5 // pred_region
        // Predicated region
        $region29: #{cnn2d_forward.5} parent=27 // pred_check
          %p181 = pneg %p32
        $region30: #{cnn2d_forward.5} parent=27 // pred_check_branch
          %183 = sbr.rel (%p181) target = $region32
        $region31: #{cnn2d_forward.5} parent=27 // pred_region
          %p184 = scmp.lt.s32.totalorder %s12, 1
          %s185 = scalar_select %p184, %s12, 1
          %s186 = smul.addr %s185, 12
          %s187 = smul.addr %s186, 4
          %s188 = scalar_lea.vmem %s0, %s187
        $region32: #{cnn2d_forward.5} parent=27 // pred_fallthru
          _
      $region28: #{cnn2d_forward.5} parent=5 // pred_fallthru
        _
      %p189 = scmp.le.s32.totalorder 1, %s12
      %p190 = scmp.lt.s32.totalorder %s12, 3
      %p191 = pnand %p189, %p190
      %p192 = pneg %p191
      // Predicated region
      $region33: #{cnn2d_forward.5} parent=5 // pred_check
        _
      $region34: #{cnn2d_forward.5} parent=5 // pred_check_branch
        %194 = sbr.rel (%p191) target = $region36
      $region35: #{cnn2d_forward.5} parent=5 // pred_region
        %s195 = ssub.s32 %s12, 1
        // Predicated region
        $region37: #{cnn2d_forward.5} parent=35 // pred_check
          %p196 = pneg %p59
        $region38: #{cnn2d_forward.5} parent=35 // pred_check_branch
          %198 = sbr.rel (%p196) target = $region40
        $region39: #{cnn2d_forward.5} parent=35 // pred_region
          %199 = dma.done [#allocation3], 24576
        $region40: #{cnn2d_forward.5} parent=35 // pred_fallthru
          _
        // Predicated region
        $region41: #{cnn2d_forward.5} parent=35 // pred_check
          %p200 = pneg %p80
        $region42: #{cnn2d_forward.5} parent=35 // pred_check_branch
          %202 = sbr.rel (%p200) target = $region44
        $region43: #{cnn2d_forward.5} parent=35 // pred_region
          %203 = dma.done [#allocation5], 64
        $region44: #{cnn2d_forward.5} parent=35 // pred_fallthru
          _
        // Predicated region
        $region45: #{cnn2d_forward.5} parent=35 // pred_check
          %p204 = pneg %p101
        $region46: #{cnn2d_forward.5} parent=35 // pred_check_branch
          %206 = sbr.rel (%p204) target = $region48
        $region47: #{cnn2d_forward.5} parent=35 // pred_region
          %207 = dma.done [#allocation5], 64
        $region48: #{cnn2d_forward.5} parent=35 // pred_fallthru
          _
        %p208 = scmp.lt.s32.totalorder %s17, 1
        %s209 = scalar_select %p208, %s17, 1
        %s210 = smul.addr %s209, 12
        %s211 = smul.addr %s210, 4
        %s212 = scalar_lea.vmem %s0, %s211
        %p213 = pneg %p38
        %p214 = pneg %p35
        %p215 = pneg %p59
        %p216 = pneg %p56
        %p217 = pneg %p80
        %p218 = pneg %p77
        %p219 = pneg %p101
        %p220 = pneg %p98
        %p221 = pneg %p127
        %p222 = pneg %p124
        %p223 = scmp.lt.s32.totalorder %s17, 1
        %s224 = scalar_select %p223, %s17, 1
        %s225 = smul.addr %s224, 4
        %s226 = smul.addr %s225, 4
        %s227 = scalar_lea.vmem %s4, %s226
        %p228 = scmp.lt.s32.totalorder %s17, 1
        %s229 = scalar_select %p228, %s17, 1
        %s230 = smul.addr %s229, 12
        %s231 = smul.addr %s230, 4
        %s232 = scalar_lea.vmem %s0, %s231
        %p233 = scmp.lt.s32.totalorder %s17, 1
        %s234 = scalar_select %p233, %s17, 1
        %s235 = smul.addr %s234, 4
        %s236 = smul.addr %s235, 4
        %s237 = scalar_lea.vmem %s4, %s236
        %v238 = vld [vmem:[%s232] sm:$0xff]
        %v239 = vld [vmem:[%s232 + $0x8] sm:$0xff]
        %v240 = vld [vmem:[%s232 + $0x10] sm:$0xff]
        %v241 = vld [vmem:[%s232 + $0x18] sm:$0xff]
        %v242 = vld [vmem:[%s232 + $0x20] sm:$0x11]
        %v243 = vld [vmem:[%s232 + $0x28] sm:$0x11]
        %v244 = vld [vmem:[#allocation2] sm:$0xff]
        %v245 = vld [vmem:[#allocation2 + $0x8] sm:$0xff]
        %v246 = vld [vmem:[#allocation2 + $0x10] sm:$0xff]
        %v247 = vld [vmem:[#allocation2 + $0x18] sm:$0xff]
        %v248 = vld [vmem:[#allocation2 + $0x20] sm:$0xff]
        %v249 = vld [vmem:[#allocation2 + $0x28] sm:$0xff]
        %v250 = vld [vmem:[#allocation2 + $0x30] sm:$0xff]
        %v251 = vld [vmem:[#allocation2 + $0x38] sm:$0xff]
        %v252 = vld [vmem:[#allocation2 + $0x40] sm:$0xff]
        %v253 = vld [vmem:[#allocation2 + $0x48] sm:$0xff]
        %v254 = vld [vmem:[#allocation2 + $0x50] sm:$0xff]
        %v255 = vld [vmem:[#allocation2 + $0x58] sm:$0xff]
        %v256 = vld [vmem:[#allocation2 + $0x60] sm:$0xff]
        %v257 = vld [vmem:[#allocation2 + $0x68] sm:$0xff]
        %v258 = vld [vmem:[#allocation2 + $0x70] sm:$0xff]
        %v259 = vld [vmem:[#allocation2 + $0x78] sm:$0xff]
        %v260 = vld [vmem:[#allocation2 + $0x80] sm:$0xff]
        %v261 = vld [vmem:[#allocation2 + $0x88] sm:$0xff]
        %v262 = vld [vmem:[#allocation2 + $0x90] sm:$0xff]
        %v263 = vld [vmem:[#allocation2 + $0x98] sm:$0xff]
        %v264 = vld [vmem:[#allocation2 + $0xa0] sm:$0xff]
        %v265 = vld [vmem:[#allocation2 + $0xa8] sm:$0xff]
        %v266 = vld [vmem:[#allocation2 + $0xb0] sm:$0xff]
        %v267 = vld [vmem:[#allocation2 + $0xb8] sm:$0xff]
        %v268 = vld [vmem:[#allocation2 + $0xc0] sm:$0xff]
        %v269 = vld [vmem:[#allocation2 + $0xc8] sm:$0xff]
        %v270 = vld [vmem:[#allocation2 + $0xd0] sm:$0xff]
        %v271 = vld [vmem:[#allocation2 + $0xd8] sm:$0xff]
        %v272 = vld [vmem:[#allocation2 + $0xe0] sm:$0xff]
        %v273 = vld [vmem:[#allocation2 + $0xe8] sm:$0xff]
        %v274 = vld [vmem:[#allocation2 + $0xf0] sm:$0xff]
        %v275 = vld [vmem:[#allocation2 + $0xf8] sm:$0xff]
        %v276 = vld [vmem:[#allocation2 + $0x100] sm:$0xff]
        %v277 = vld [vmem:[#allocation2 + $0x108] sm:$0xff]
        %v278 = vld [vmem:[#allocation2 + $0x110] sm:$0xff]
        %v279 = vld [vmem:[#allocation2 + $0x118] sm:$0xff]
        %v280 = vld [vmem:[#allocation2 + $0x120] sm:$0xff]
        %v281 = vld [vmem:[#allocation2 + $0x128] sm:$0xff]
        %v282 = vld [vmem:[#allocation2 + $0x130] sm:$0xff]
        %v283 = vld [vmem:[#allocation2 + $0x138] sm:$0xff]
        %v284 = vld [vmem:[#allocation2 + $0x140] sm:$0xff]
        %v285 = vld [vmem:[#allocation2 + $0x148] sm:$0xff]
        %v286 = vld [vmem:[#allocation2 + $0x150] sm:$0xff]
        %v287 = vld [vmem:[#allocation2 + $0x158] sm:$0xff]
        %v288 = vld [vmem:[#allocation2 + $0x160] sm:$0xff]
        %v289 = vld [vmem:[#allocation2 + $0x168] sm:$0xff]
        %v290 = vld [vmem:[#allocation2 + $0x170] sm:$0xff]
        %v291 = vld [vmem:[#allocation2 + $0x178] sm:$0xff]
        %v292 = vld [vmem:[#allocation2 + $0x180] sm:$0xff]
        %v293 = vld [vmem:[#allocation2 + $0x188] sm:$0xff]
        %v294 = vld [vmem:[#allocation2 + $0x190] sm:$0xff]
        %v295 = vld [vmem:[#allocation2 + $0x198] sm:$0xff]
        %v296 = vld [vmem:[#allocation2 + $0x1a0] sm:$0xff]
        %v297 = vld [vmem:[#allocation2 + $0x1a8] sm:$0xff]
        %v298 = vld [vmem:[#allocation2 + $0x1b0] sm:$0xff]
        %v299 = vld [vmem:[#allocation2 + $0x1b8] sm:$0xff]
        %v300 = vld [vmem:[#allocation2 + $0x1c0] sm:$0xff]
        %v301 = vld [vmem:[#allocation2 + $0x1c8] sm:$0xff]
        %v302 = vld [vmem:[#allocation2 + $0x1d0] sm:$0xff]
        %v303 = vld [vmem:[#allocation2 + $0x1d8] sm:$0xff]
        %v304 = vld [vmem:[#allocation2 + $0x1e0] sm:$0xff]
        %v305 = vld [vmem:[#allocation2 + $0x1e8] sm:$0xff]
        %v306 = vld [vmem:[#allocation2 + $0x1f0] sm:$0xff]
        %v307 = vld [vmem:[#allocation2 + $0x1f8] sm:$0xff]
        %v308 = vld [vmem:[#allocation2 + $0x200] sm:$0xff]
        %v309 = vld [vmem:[#allocation2 + $0x208] sm:$0xff]
        %v310 = vld [vmem:[#allocation2 + $0x210] sm:$0xff]
        %v311 = vld [vmem:[#allocation2 + $0x218] sm:$0xff]
        %v312 = vld [vmem:[#allocation2 + $0x220] sm:$0xff]
        %v313 = vld [vmem:[#allocation2 + $0x228] sm:$0xff]
        %v314 = vld [vmem:[#allocation2 + $0x230] sm:$0xff]
        %v315 = vld [vmem:[#allocation2 + $0x238] sm:$0xff]
        %v316 = vld [vmem:[#allocation2 + $0x240] sm:$0xff]
        %v317 = vld [vmem:[#allocation2 + $0x248] sm:$0xff]
        %v318 = vld [vmem:[#allocation2 + $0x250] sm:$0xff]
        %v319 = vld [vmem:[#allocation2 + $0x258] sm:$0xff]
        %v320 = vld [vmem:[#allocation2 + $0x260] sm:$0xff]
        %v321 = vld [vmem:[#allocation2 + $0x268] sm:$0xff]
        %v322 = vld [vmem:[#allocation2 + $0x270] sm:$0xff]
        %v323 = vld [vmem:[#allocation2 + $0x278] sm:$0xff]
        %v324 = vld [vmem:[#allocation2 + $0x280] sm:$0xff]
        %v325 = vld [vmem:[#allocation2 + $0x288] sm:$0xff]
        %v326 = vld [vmem:[#allocation2 + $0x290] sm:$0xff]
        %v327 = vld [vmem:[#allocation2 + $0x298] sm:$0xff]
        %v328 = vld [vmem:[#allocation2 + $0x2a0] sm:$0xff]
        %v329 = vld [vmem:[#allocation2 + $0x2a8] sm:$0xff]
        %v330 = vld [vmem:[#allocation2 + $0x2b0] sm:$0xff]
        %v331 = vld [vmem:[#allocation2 + $0x2b8] sm:$0xff]
        %v332 = vld [vmem:[#allocation2 + $0x2c0] sm:$0xff]
        %v333 = vld [vmem:[#allocation2 + $0x2c8] sm:$0xff]
        %v334 = vld [vmem:[#allocation2 + $0x2d0] sm:$0xff]
        %v335 = vld [vmem:[#allocation2 + $0x2d8] sm:$0xff]
        %v336 = vld [vmem:[#allocation2 + $0x2e0] sm:$0xff]
        %v337 = vld [vmem:[#allocation2 + $0x2e8] sm:$0xff]
        %v338 = vld [vmem:[#allocation2 + $0x2f0] sm:$0xff]
        %v339 = vld [vmem:[#allocation2 + $0x2f8] sm:$0xff]
        %v340 = vld [vmem:[#allocation2 + $0x300] sm:$0xff]
        %v341 = vld [vmem:[#allocation2 + $0x308] sm:$0xff]
        %v342 = vld [vmem:[#allocation2 + $0x310] sm:$0xff]
        %v343 = vld [vmem:[#allocation2 + $0x318] sm:$0xff]
        %v344 = vld [vmem:[#allocation2 + $0x320] sm:$0xff]
        %v345 = vld [vmem:[#allocation2 + $0x328] sm:$0xff]
        %v346 = vld [vmem:[#allocation2 + $0x330] sm:$0xff]
        %v347 = vld [vmem:[#allocation2 + $0x338] sm:$0xff]
        %v348 = vld [vmem:[#allocation2 + $0x340] sm:$0xff]
        %v349 = vld [vmem:[#allocation2 + $0x348] sm:$0xff]
        %v350 = vld [vmem:[#allocation2 + $0x350] sm:$0xff]
        %v351 = vld [vmem:[#allocation2 + $0x358] sm:$0xff]
        %v352 = vld [vmem:[#allocation2 + $0x360] sm:$0xff]
        %v353 = vld [vmem:[#allocation2 + $0x368] sm:$0xff]
        %v354 = vld [vmem:[#allocation2 + $0x370] sm:$0xff]
        %v355 = vld [vmem:[#allocation2 + $0x378] sm:$0xff]
        %v356 = vld [vmem:[#allocation2 + $0x380] sm:$0xff]
        %v357 = vld [vmem:[#allocation2 + $0x388] sm:$0xff]
        %v358 = vld [vmem:[#allocation2 + $0x390] sm:$0xff]
        %v359 = vld [vmem:[#allocation2 + $0x398] sm:$0xff]
        %v360 = vld [vmem:[#allocation2 + $0x3a0] sm:$0xff]
        %v361 = vld [vmem:[#allocation2 + $0x3a8] sm:$0xff]
        %v362 = vld [vmem:[#allocation2 + $0x3b0] sm:$0xff]
        %v363 = vld [vmem:[#allocation2 + $0x3b8] sm:$0xff]
        %v364 = vld [vmem:[#allocation2 + $0x3c0] sm:$0xff]
        %v365 = vld [vmem:[#allocation2 + $0x3c8] sm:$0xff]
        %v366 = vld [vmem:[#allocation2 + $0x3d0] sm:$0xff]
        %v367 = vld [vmem:[#allocation2 + $0x3d8] sm:$0xff]
        %v368 = vld [vmem:[#allocation2 + $0x3e0] sm:$0xff]
        %v369 = vld [vmem:[#allocation2 + $0x3e8] sm:$0xff]
        %v370 = vld [vmem:[#allocation2 + $0x3f0] sm:$0xff]
        %v371 = vld [vmem:[#allocation2 + $0x3f8] sm:$0xff]
        %v372 = vld [vmem:[#allocation2 + $0x400] sm:$0xff]
        %v373 = vld [vmem:[#allocation2 + $0x408] sm:$0xff]
        %v374 = vld [vmem:[#allocation2 + $0x410] sm:$0xff]
        %v375 = vld [vmem:[#allocation2 + $0x418] sm:$0xff]
        %v376 = vld [vmem:[#allocation2 + $0x420] sm:$0xff]
        %v377 = vld [vmem:[#allocation2 + $0x428] sm:$0xff]
        %v378 = vld [vmem:[#allocation2 + $0x430] sm:$0xff]
        %v379 = vld [vmem:[#allocation2 + $0x438] sm:$0xff]
        %v380 = vld [vmem:[#allocation2 + $0x440] sm:$0xff]
        %v381 = vld [vmem:[#allocation2 + $0x448] sm:$0xff]
        %v382 = vld [vmem:[#allocation2 + $0x450] sm:$0xff]
        %v383 = vld [vmem:[#allocation2 + $0x458] sm:$0xff]
        %v384 = vld [vmem:[#allocation2 + $0x460] sm:$0xff]
        %v385 = vld [vmem:[#allocation2 + $0x468] sm:$0xff]
        %v386 = vld [vmem:[#allocation2 + $0x470] sm:$0xff]
        %v387 = vld [vmem:[#allocation2 + $0x478] sm:$0xff]
        %v388 = vld [vmem:[#allocation2 + $0x480] sm:$0xff]
        %v389 = vld [vmem:[#allocation2 + $0x488] sm:$0xff]
        %v390 = vld [vmem:[#allocation2 + $0x490] sm:$0xff]
        %v391 = vld [vmem:[#allocation2 + $0x498] sm:$0xff]
        %v392 = vld [vmem:[#allocation2 + $0x4a0] sm:$0xff]
        %v393 = vld [vmem:[#allocation2 + $0x4a8] sm:$0xff]
        %v394 = vld [vmem:[#allocation2 + $0x4b0] sm:$0xff]
        %v395 = vld [vmem:[#allocation2 + $0x4b8] sm:$0xff]
        %v396 = vld [vmem:[#allocation2 + $0x4c0] sm:$0xff]
        %v397 = vld [vmem:[#allocation2 + $0x4c8] sm:$0xff]
        %v398 = vld [vmem:[#allocation2 + $0x4d0] sm:$0xff]
        %v399 = vld [vmem:[#allocation2 + $0x4d8] sm:$0xff]
        %v400 = vld [vmem:[#allocation2 + $0x4e0] sm:$0xff]
        %v401 = vld [vmem:[#allocation2 + $0x4e8] sm:$0xff]
        %v402 = vld [vmem:[#allocation2 + $0x4f0] sm:$0xff]
        %v403 = vld [vmem:[#allocation2 + $0x4f8] sm:$0xff]
        %v404 = vld [vmem:[#allocation2 + $0x500] sm:$0xff]
        %v405 = vld [vmem:[#allocation2 + $0x508] sm:$0xff]
        %v406 = vld [vmem:[#allocation2 + $0x510] sm:$0xff]
        %v407 = vld [vmem:[#allocation2 + $0x518] sm:$0xff]
        %v408 = vld [vmem:[#allocation2 + $0x520] sm:$0xff]
        %v409 = vld [vmem:[#allocation2 + $0x528] sm:$0xff]
        %v410 = vld [vmem:[#allocation2 + $0x530] sm:$0xff]
        %v411 = vld [vmem:[#allocation2 + $0x538] sm:$0xff]
        %v412 = vld [vmem:[#allocation2 + $0x540] sm:$0xff]
        %v413 = vld [vmem:[#allocation2 + $0x548] sm:$0xff]
        %v414 = vld [vmem:[#allocation2 + $0x550] sm:$0xff]
        %v415 = vld [vmem:[#allocation2 + $0x558] sm:$0xff]
        %v416 = vld [vmem:[#allocation2 + $0x560] sm:$0xff]
        %v417 = vld [vmem:[#allocation2 + $0x568] sm:$0xff]
        %v418 = vld [vmem:[#allocation2 + $0x570] sm:$0xff]
        %v419 = vld [vmem:[#allocation2 + $0x578] sm:$0xff]
        %v420 = vld [vmem:[#allocation2 + $0x580] sm:$0xff]
        %v421 = vld [vmem:[#allocation2 + $0x588] sm:$0xff]
        %v422 = vld [vmem:[#allocation2 + $0x590] sm:$0xff]
        %v423 = vld [vmem:[#allocation2 + $0x598] sm:$0xff]
        %v424 = vld [vmem:[#allocation2 + $0x5a0] sm:$0xff]
        %v425 = vld [vmem:[#allocation2 + $0x5a8] sm:$0xff]
        %v426 = vld [vmem:[#allocation2 + $0x5b0] sm:$0xff]
        %v427 = vld [vmem:[#allocation2 + $0x5b8] sm:$0xff]
        %v428 = vld [vmem:[#allocation2 + $0x5c0] sm:$0xff]
        %v429 = vld [vmem:[#allocation2 + $0x5c8] sm:$0xff]
        %v430 = vld [vmem:[#allocation2 + $0x5d0] sm:$0xff]
        %v431 = vld [vmem:[#allocation2 + $0x5d8] sm:$0xff]
        %v432 = vld [vmem:[#allocation2 + $0x5e0] sm:$0xff]
        %v433 = vld [vmem:[#allocation2 + $0x5e8] sm:$0xff]
        %v434 = vld [vmem:[#allocation2 + $0x5f0] sm:$0xff]
        %v435 = vld [vmem:[#allocation2 + $0x5f8] sm:$0xff]
        %v440 = vunpack.c.l.b16 %v238
        %v441 = vunpack.c.h.b16 %v238
        %v442 = vunpack.c.l.b16 %v239
        %v443 = vunpack.c.h.b16 %v239
        %v444 = vunpack.c.l.b16 %v240
        %v445 = vunpack.c.h.b16 %v240
        %v446 = vunpack.c.l.b16 %v241
        %v447 = vunpack.c.h.b16 %v241
        %v448 = vpack.c.b16 %v444, %v440
        %v449 = vpack.c.b16 %v445, %v441
        %v450 = vpack.c.b16 %v446, %v442
        %v451 = vpack.c.b16 %v447, %v443
        %v457 = vunpack.c.l.b16 %v242
        %v458 = vunpack.c.h.b16 %v242
        %v459 = vpack.c.b16 %v457, %v457
        %v460 = vpack.c.b16 %v458, %v458
        %vm461 = vsmask.f32 7424
        %v463 = vshrl.u32 %v448, 16
        %v465 = vshll.u32 %v448, 16
        %v467 = vrot.slane %v465, 1
        %v468 = vor.u32 %v463, %v467
        %v470 = vshll.u32 %v459, 16
        %v472 = vrot.slane %v470, 1
        %v473 = vsel %vm461, %v468, %v472
        %v475 = vshrl.u32 %v449, 16
        %v477 = vshll.u32 %v449, 16
        %v479 = vrot.slane %v477, 1
        %v480 = vor.u32 %v475, %v479
        %v482 = vshll.u32 %v460, 16
        %v484 = vrot.slane %v482, 1
        %v485 = vsel %vm461, %v480, %v484
        %v489 = vunpack.c.l.b16 %v243
        %v490 = vunpack.c.h.b16 %v243
        %v491 = vpack.c.b16 %v489, %v489
        %v492 = vpack.c.b16 %v490, %v490
        %v494 = vshrl.u32 %v450, 16
        %v496 = vshll.u32 %v450, 16
        %v498 = vrot.slane %v496, 1
        %v499 = vor.u32 %v494, %v498
        %v501 = vshll.u32 %v491, 16
        %v503 = vrot.slane %v501, 1
        %v504 = vsel %vm461, %v499, %v503
        %v506 = vshrl.u32 %v451, 16
        %v508 = vshll.u32 %v451, 16
        %v510 = vrot.slane %v508, 1
        %v511 = vor.u32 %v506, %v510
        %v513 = vshll.u32 %v492, 16
        %v515 = vrot.slane %v513, 1
        %v516 = vsel %vm461, %v511, %v515
        %v711 = vunpack.c.l.b16 %v244
        %v712 = vunpack.c.h.b16 %v244
        %v713 = vunpack.c.l.b16 %v245
        %v714 = vunpack.c.h.b16 %v245
        %v715 = vunpack.c.l.b16 %v246
        %v716 = vunpack.c.h.b16 %v246
        %v717 = vunpack.c.l.b16 %v247
        %v718 = vunpack.c.h.b16 %v247
        %v719 = vunpack.c.l.b16 %v248
        %v720 = vunpack.c.h.b16 %v248
        %v721 = vunpack.c.l.b16 %v249
        %v722 = vunpack.c.h.b16 %v249
        %v723 = vunpack.c.l.b16 %v250
        %v724 = vunpack.c.h.b16 %v250
        %v725 = vunpack.c.l.b16 %v251
        %v726 = vunpack.c.h.b16 %v251
        %v727 = vunpack.c.l.b16 %v252
        %v728 = vunpack.c.h.b16 %v252
        %v729 = vunpack.c.l.b16 %v253
        %v730 = vunpack.c.h.b16 %v253
        %v731 = vunpack.c.l.b16 %v254
        %v732 = vunpack.c.h.b16 %v254
        %v733 = vunpack.c.l.b16 %v255
        %v734 = vunpack.c.h.b16 %v255
        %v735 = vunpack.c.l.b16 %v256
        %v736 = vunpack.c.h.b16 %v256
        %v737 = vunpack.c.l.b16 %v257
        %v738 = vunpack.c.h.b16 %v257
        %v739 = vunpack.c.l.b16 %v258
        %v740 = vunpack.c.h.b16 %v258
        %v741 = vunpack.c.l.b16 %v259
        %v742 = vunpack.c.h.b16 %v259
        %v743 = vunpack.c.l.b16 %v260
        %v744 = vunpack.c.h.b16 %v260
        %v745 = vunpack.c.l.b16 %v261
        %v746 = vunpack.c.h.b16 %v261
        %v747 = vunpack.c.l.b16 %v262
        %v748 = vunpack.c.h.b16 %v262
        %v749 = vunpack.c.l.b16 %v263
        %v750 = vunpack.c.h.b16 %v263
        %v751 = vunpack.c.l.b16 %v264
        %v752 = vunpack.c.h.b16 %v264
        %v753 = vunpack.c.l.b16 %v265
        %v754 = vunpack.c.h.b16 %v265
        %v755 = vunpack.c.l.b16 %v266
        %v756 = vunpack.c.h.b16 %v266
        %v757 = vunpack.c.l.b16 %v267
        %v758 = vunpack.c.h.b16 %v267
        %v759 = vunpack.c.l.b16 %v268
        %v760 = vunpack.c.h.b16 %v268
        %v761 = vunpack.c.l.b16 %v269
        %v762 = vunpack.c.h.b16 %v269
        %v763 = vunpack.c.l.b16 %v270
        %v764 = vunpack.c.h.b16 %v270
        %v765 = vunpack.c.l.b16 %v271
        %v766 = vunpack.c.h.b16 %v271
        %v767 = vunpack.c.l.b16 %v272
        %v768 = vunpack.c.h.b16 %v272
        %v769 = vunpack.c.l.b16 %v273
        %v770 = vunpack.c.h.b16 %v273
        %v771 = vunpack.c.l.b16 %v274
        %v772 = vunpack.c.h.b16 %v274
        %v773 = vunpack.c.l.b16 %v275
        %v774 = vunpack.c.h.b16 %v275
        %v775 = vunpack.c.l.b16 %v276
        %v776 = vunpack.c.h.b16 %v276
        %v777 = vunpack.c.l.b16 %v277
        %v778 = vunpack.c.h.b16 %v277
        %v779 = vunpack.c.l.b16 %v278
        %v780 = vunpack.c.h.b16 %v278
        %v781 = vunpack.c.l.b16 %v279
        %v782 = vunpack.c.h.b16 %v279
        %v783 = vunpack.c.l.b16 %v280
        %v784 = vunpack.c.h.b16 %v280
        %v785 = vunpack.c.l.b16 %v281
        %v786 = vunpack.c.h.b16 %v281
        %v787 = vunpack.c.l.b16 %v282
        %v788 = vunpack.c.h.b16 %v282
        %v789 = vunpack.c.l.b16 %v283
        %v790 = vunpack.c.h.b16 %v283
        %v791 = vunpack.c.l.b16 %v284
        %v792 = vunpack.c.h.b16 %v284
        %v793 = vunpack.c.l.b16 %v285
        %v794 = vunpack.c.h.b16 %v285
        %v795 = vunpack.c.l.b16 %v286
        %v796 = vunpack.c.h.b16 %v286
        %v797 = vunpack.c.l.b16 %v287
        %v798 = vunpack.c.h.b16 %v287
        %v799 = vunpack.c.l.b16 %v288
        %v800 = vunpack.c.h.b16 %v288
        %v801 = vunpack.c.l.b16 %v289
        %v802 = vunpack.c.h.b16 %v289
        %v803 = vunpack.c.l.b16 %v290
        %v804 = vunpack.c.h.b16 %v290
        %v805 = vunpack.c.l.b16 %v291
        %v806 = vunpack.c.h.b16 %v291
        %v807 = vunpack.c.l.b16 %v292
        %v808 = vunpack.c.h.b16 %v292
        %v809 = vunpack.c.l.b16 %v293
        %v810 = vunpack.c.h.b16 %v293
        %v811 = vunpack.c.l.b16 %v294
        %v812 = vunpack.c.h.b16 %v294
        %v813 = vunpack.c.l.b16 %v295
        %v814 = vunpack.c.h.b16 %v295
        %v815 = vunpack.c.l.b16 %v296
        %v816 = vunpack.c.h.b16 %v296
        %v817 = vunpack.c.l.b16 %v297
        %v818 = vunpack.c.h.b16 %v297
        %v819 = vunpack.c.l.b16 %v298
        %v820 = vunpack.c.h.b16 %v298
        %v821 = vunpack.c.l.b16 %v299
        %v822 = vunpack.c.h.b16 %v299
        %v823 = vunpack.c.l.b16 %v300
        %v824 = vunpack.c.h.b16 %v300
        %v825 = vunpack.c.l.b16 %v301
        %v826 = vunpack.c.h.b16 %v301
        %v827 = vunpack.c.l.b16 %v302
        %v828 = vunpack.c.h.b16 %v302
        %v829 = vunpack.c.l.b16 %v303
        %v830 = vunpack.c.h.b16 %v303
        %v831 = vunpack.c.l.b16 %v304
        %v832 = vunpack.c.h.b16 %v304
        %v833 = vunpack.c.l.b16 %v305
        %v834 = vunpack.c.h.b16 %v305
        %v835 = vunpack.c.l.b16 %v306
        %v836 = vunpack.c.h.b16 %v306
        %v837 = vunpack.c.l.b16 %v307
        %v838 = vunpack.c.h.b16 %v307
        %v839 = vunpack.c.l.b16 %v308
        %v840 = vunpack.c.h.b16 %v308
        %v841 = vunpack.c.l.b16 %v309
        %v842 = vunpack.c.h.b16 %v309
        %v843 = vunpack.c.l.b16 %v310
        %v844 = vunpack.c.h.b16 %v310
        %v845 = vunpack.c.l.b16 %v311
        %v846 = vunpack.c.h.b16 %v311
        %v847 = vunpack.c.l.b16 %v312
        %v848 = vunpack.c.h.b16 %v312
        %v849 = vunpack.c.l.b16 %v313
        %v850 = vunpack.c.h.b16 %v313
        %v851 = vunpack.c.l.b16 %v314
        %v852 = vunpack.c.h.b16 %v314
        %v853 = vunpack.c.l.b16 %v315
        %v854 = vunpack.c.h.b16 %v315
        %v855 = vunpack.c.l.b16 %v316
        %v856 = vunpack.c.h.b16 %v316
        %v857 = vunpack.c.l.b16 %v317
        %v858 = vunpack.c.h.b16 %v317
        %v859 = vunpack.c.l.b16 %v318
        %v860 = vunpack.c.h.b16 %v318
        %v861 = vunpack.c.l.b16 %v319
        %v862 = vunpack.c.h.b16 %v319
        %v863 = vunpack.c.l.b16 %v320
        %v864 = vunpack.c.h.b16 %v320
        %v865 = vunpack.c.l.b16 %v321
        %v866 = vunpack.c.h.b16 %v321
        %v867 = vunpack.c.l.b16 %v322
        %v868 = vunpack.c.h.b16 %v322
        %v869 = vunpack.c.l.b16 %v323
        %v870 = vunpack.c.h.b16 %v323
        %v871 = vunpack.c.l.b16 %v324
        %v872 = vunpack.c.h.b16 %v324
        %v873 = vunpack.c.l.b16 %v325
        %v874 = vunpack.c.h.b16 %v325
        %v875 = vunpack.c.l.b16 %v326
        %v876 = vunpack.c.h.b16 %v326
        %v877 = vunpack.c.l.b16 %v327
        %v878 = vunpack.c.h.b16 %v327
        %v879 = vunpack.c.l.b16 %v328
        %v880 = vunpack.c.h.b16 %v328
        %v881 = vunpack.c.l.b16 %v329
        %v882 = vunpack.c.h.b16 %v329
        %v883 = vunpack.c.l.b16 %v330
        %v884 = vunpack.c.h.b16 %v330
        %v885 = vunpack.c.l.b16 %v331
        %v886 = vunpack.c.h.b16 %v331
        %v887 = vunpack.c.l.b16 %v332
        %v888 = vunpack.c.h.b16 %v332
        %v889 = vunpack.c.l.b16 %v333
        %v890 = vunpack.c.h.b16 %v333
        %v891 = vunpack.c.l.b16 %v334
        %v892 = vunpack.c.h.b16 %v334
        %v893 = vunpack.c.l.b16 %v335
        %v894 = vunpack.c.h.b16 %v335
        %v895 = vunpack.c.l.b16 %v336
        %v896 = vunpack.c.h.b16 %v336
        %v897 = vunpack.c.l.b16 %v337
        %v898 = vunpack.c.h.b16 %v337
        %v899 = vunpack.c.l.b16 %v338
        %v900 = vunpack.c.h.b16 %v338
        %v901 = vunpack.c.l.b16 %v339
        %v902 = vunpack.c.h.b16 %v339
        %v903 = vunpack.c.l.b16 %v340
        %v904 = vunpack.c.h.b16 %v340
        %v905 = vunpack.c.l.b16 %v341
        %v906 = vunpack.c.h.b16 %v341
        %v907 = vunpack.c.l.b16 %v342
        %v908 = vunpack.c.h.b16 %v342
        %v909 = vunpack.c.l.b16 %v343
        %v910 = vunpack.c.h.b16 %v343
        %v911 = vunpack.c.l.b16 %v344
        %v912 = vunpack.c.h.b16 %v344
        %v913 = vunpack.c.l.b16 %v345
        %v914 = vunpack.c.h.b16 %v345
        %v915 = vunpack.c.l.b16 %v346
        %v916 = vunpack.c.h.b16 %v346
        %v917 = vunpack.c.l.b16 %v347
        %v918 = vunpack.c.h.b16 %v347
        %v919 = vunpack.c.l.b16 %v348
        %v920 = vunpack.c.h.b16 %v348
        %v921 = vunpack.c.l.b16 %v349
        %v922 = vunpack.c.h.b16 %v349
        %v923 = vunpack.c.l.b16 %v350
        %v924 = vunpack.c.h.b16 %v350
        %v925 = vunpack.c.l.b16 %v351
        %v926 = vunpack.c.h.b16 %v351
        %v927 = vunpack.c.l.b16 %v352
        %v928 = vunpack.c.h.b16 %v352
        %v929 = vunpack.c.l.b16 %v353
        %v930 = vunpack.c.h.b16 %v353
        %v931 = vunpack.c.l.b16 %v354
        %v932 = vunpack.c.h.b16 %v354
        %v933 = vunpack.c.l.b16 %v355
        %v934 = vunpack.c.h.b16 %v355
        %v935 = vunpack.c.l.b16 %v356
        %v936 = vunpack.c.h.b16 %v356
        %v937 = vunpack.c.l.b16 %v357
        %v938 = vunpack.c.h.b16 %v357
        %v939 = vunpack.c.l.b16 %v358
        %v940 = vunpack.c.h.b16 %v358
        %v941 = vunpack.c.l.b16 %v359
        %v942 = vunpack.c.h.b16 %v359
        %v943 = vunpack.c.l.b16 %v360
        %v944 = vunpack.c.h.b16 %v360
        %v945 = vunpack.c.l.b16 %v361
        %v946 = vunpack.c.h.b16 %v361
        %v947 = vunpack.c.l.b16 %v362
        %v948 = vunpack.c.h.b16 %v362
        %v949 = vunpack.c.l.b16 %v363
        %v950 = vunpack.c.h.b16 %v363
        %v951 = vunpack.c.l.b16 %v364
        %v952 = vunpack.c.h.b16 %v364
        %v953 = vunpack.c.l.b16 %v365
        %v954 = vunpack.c.h.b16 %v365
        %v955 = vunpack.c.l.b16 %v366
        %v956 = vunpack.c.h.b16 %v366
        %v957 = vunpack.c.l.b16 %v367
        %v958 = vunpack.c.h.b16 %v367
        %v959 = vunpack.c.l.b16 %v368
        %v960 = vunpack.c.h.b16 %v368
        %v961 = vunpack.c.l.b16 %v369
        %v962 = vunpack.c.h.b16 %v369
        %v963 = vunpack.c.l.b16 %v370
        %v964 = vunpack.c.h.b16 %v370
        %v965 = vunpack.c.l.b16 %v371
        %v966 = vunpack.c.h.b16 %v371
        %v967 = vunpack.c.l.b16 %v372
        %v968 = vunpack.c.h.b16 %v372
        %v969 = vunpack.c.l.b16 %v373
        %v970 = vunpack.c.h.b16 %v373
        %v971 = vunpack.c.l.b16 %v374
        %v972 = vunpack.c.h.b16 %v374
        %v973 = vunpack.c.l.b16 %v375
        %v974 = vunpack.c.h.b16 %v375
        %v975 = vunpack.c.l.b16 %v376
        %v976 = vunpack.c.h.b16 %v376
        %v977 = vunpack.c.l.b16 %v377
        %v978 = vunpack.c.h.b16 %v377
        %v979 = vunpack.c.l.b16 %v378
        %v980 = vunpack.c.h.b16 %v378
        %v981 = vunpack.c.l.b16 %v379
        %v982 = vunpack.c.h.b16 %v379
        %v983 = vunpack.c.l.b16 %v380
        %v984 = vunpack.c.h.b16 %v380
        %v985 = vunpack.c.l.b16 %v381
        %v986 = vunpack.c.h.b16 %v381
        %v987 = vunpack.c.l.b16 %v382
        %v988 = vunpack.c.h.b16 %v382
        %v989 = vunpack.c.l.b16 %v383
        %v990 = vunpack.c.h.b16 %v383
        %v991 = vunpack.c.l.b16 %v384
        %v992 = vunpack.c.h.b16 %v384
        %v993 = vunpack.c.l.b16 %v385
        %v994 = vunpack.c.h.b16 %v385
        %v995 = vunpack.c.l.b16 %v386
        %v996 = vunpack.c.h.b16 %v386
        %v997 = vunpack.c.l.b16 %v387
        %v998 = vunpack.c.h.b16 %v387
        %v999 = vunpack.c.l.b16 %v388
        %v1000 = vunpack.c.h.b16 %v388
        %v1001 = vunpack.c.l.b16 %v389
        %v1002 = vunpack.c.h.b16 %v389
        %v1003 = vunpack.c.l.b16 %v390
        %v1004 = vunpack.c.h.b16 %v390
        %v1005 = vunpack.c.l.b16 %v391
        %v1006 = vunpack.c.h.b16 %v391
        %v1007 = vunpack.c.l.b16 %v392
        %v1008 = vunpack.c.h.b16 %v392
        %v1009 = vunpack.c.l.b16 %v393
        %v1010 = vunpack.c.h.b16 %v393
        %v1011 = vunpack.c.l.b16 %v394
        %v1012 = vunpack.c.h.b16 %v394
        %v1013 = vunpack.c.l.b16 %v395
        %v1014 = vunpack.c.h.b16 %v395
        %v1015 = vunpack.c.l.b16 %v396
        %v1016 = vunpack.c.h.b16 %v396
        %v1017 = vunpack.c.l.b16 %v397
        %v1018 = vunpack.c.h.b16 %v397
        %v1019 = vunpack.c.l.b16 %v398
        %v1020 = vunpack.c.h.b16 %v398
        %v1021 = vunpack.c.l.b16 %v399
        %v1022 = vunpack.c.h.b16 %v399
        %v1023 = vunpack.c.l.b16 %v400
        %v1024 = vunpack.c.h.b16 %v400
        %v1025 = vunpack.c.l.b16 %v401
        %v1026 = vunpack.c.h.b16 %v401
        %v1027 = vunpack.c.l.b16 %v402
        %v1028 = vunpack.c.h.b16 %v402
        %v1029 = vunpack.c.l.b16 %v403
        %v1030 = vunpack.c.h.b16 %v403
        %v1031 = vunpack.c.l.b16 %v404
        %v1032 = vunpack.c.h.b16 %v404
        %v1033 = vunpack.c.l.b16 %v405
        %v1034 = vunpack.c.h.b16 %v405
        %v1035 = vunpack.c.l.b16 %v406
        %v1036 = vunpack.c.h.b16 %v406
        %v1037 = vunpack.c.l.b16 %v407
        %v1038 = vunpack.c.h.b16 %v407
        %v1039 = vunpack.c.l.b16 %v408
        %v1040 = vunpack.c.h.b16 %v408
        %v1041 = vunpack.c.l.b16 %v409
        %v1042 = vunpack.c.h.b16 %v409
        %v1043 = vunpack.c.l.b16 %v410
        %v1044 = vunpack.c.h.b16 %v410
        %v1045 = vunpack.c.l.b16 %v411
        %v1046 = vunpack.c.h.b16 %v411
        %v1047 = vunpack.c.l.b16 %v412
        %v1048 = vunpack.c.h.b16 %v412
        %v1049 = vunpack.c.l.b16 %v413
        %v1050 = vunpack.c.h.b16 %v413
        %v1051 = vunpack.c.l.b16 %v414
        %v1052 = vunpack.c.h.b16 %v414
        %v1053 = vunpack.c.l.b16 %v415
        %v1054 = vunpack.c.h.b16 %v415
        %v1055 = vunpack.c.l.b16 %v416
        %v1056 = vunpack.c.h.b16 %v416
        %v1057 = vunpack.c.l.b16 %v417
        %v1058 = vunpack.c.h.b16 %v417
        %v1059 = vunpack.c.l.b16 %v418
        %v1060 = vunpack.c.h.b16 %v418
        %v1061 = vunpack.c.l.b16 %v419
        %v1062 = vunpack.c.h.b16 %v419
        %v1063 = vunpack.c.l.b16 %v420
        %v1064 = vunpack.c.h.b16 %v420
        %v1065 = vunpack.c.l.b16 %v421
        %v1066 = vunpack.c.h.b16 %v421
        %v1067 = vunpack.c.l.b16 %v422
        %v1068 = vunpack.c.h.b16 %v422
        %v1069 = vunpack.c.l.b16 %v423
        %v1070 = vunpack.c.h.b16 %v423
        %v1071 = vunpack.c.l.b16 %v424
        %v1072 = vunpack.c.h.b16 %v424
        %v1073 = vunpack.c.l.b16 %v425
        %v1074 = vunpack.c.h.b16 %v425
        %v1075 = vunpack.c.l.b16 %v426
        %v1076 = vunpack.c.h.b16 %v426
        %v1077 = vunpack.c.l.b16 %v427
        %v1078 = vunpack.c.h.b16 %v427
        %v1079 = vunpack.c.l.b16 %v428
        %v1080 = vunpack.c.h.b16 %v428
        %v1081 = vunpack.c.l.b16 %v429
        %v1082 = vunpack.c.h.b16 %v429
        %v1083 = vunpack.c.l.b16 %v430
        %v1084 = vunpack.c.h.b16 %v430
        %v1085 = vunpack.c.l.b16 %v431
        %v1086 = vunpack.c.h.b16 %v431
        %v1087 = vunpack.c.l.b16 %v432
        %v1088 = vunpack.c.h.b16 %v432
        %v1089 = vunpack.c.l.b16 %v433
        %v1090 = vunpack.c.h.b16 %v433
        %v1091 = vunpack.c.l.b16 %v434
        %v1092 = vunpack.c.h.b16 %v434
        %v1093 = vunpack.c.l.b16 %v435
        %v1094 = vunpack.c.h.b16 %v435
        %v1095 = vpack.c.b16 %v715, %v711
        %v1096 = vpack.c.b16 %v716, %v712
        %v1097 = vpack.c.b16 %v717, %v713
        %v1098 = vpack.c.b16 %v718, %v714
        %v1099 = vpack.c.b16 %v723, %v719
        %v1100 = vpack.c.b16 %v724, %v720
        %v1101 = vpack.c.b16 %v725, %v721
        %v1102 = vpack.c.b16 %v726, %v722
        %v1103 = vpack.c.b16 %v731, %v727
        %v1104 = vpack.c.b16 %v732, %v728
        %v1105 = vpack.c.b16 %v733, %v729
        %v1106 = vpack.c.b16 %v734, %v730
        %v1107 = vpack.c.b16 %v739, %v735
        %v1108 = vpack.c.b16 %v740, %v736
        %v1109 = vpack.c.b16 %v741, %v737
        %v1110 = vpack.c.b16 %v742, %v738
        %v1111 = vpack.c.b16 %v747, %v743
        %v1112 = vpack.c.b16 %v748, %v744
        %v1113 = vpack.c.b16 %v749, %v745
        %v1114 = vpack.c.b16 %v750, %v746
        %v1115 = vpack.c.b16 %v755, %v751
        %v1116 = vpack.c.b16 %v756, %v752
        %v1117 = vpack.c.b16 %v757, %v753
        %v1118 = vpack.c.b16 %v758, %v754
        %v1119 = vpack.c.b16 %v763, %v759
        %v1120 = vpack.c.b16 %v764, %v760
        %v1121 = vpack.c.b16 %v765, %v761
        %v1122 = vpack.c.b16 %v766, %v762
        %v1123 = vpack.c.b16 %v771, %v767
        %v1124 = vpack.c.b16 %v772, %v768
        %v1125 = vpack.c.b16 %v773, %v769
        %v1126 = vpack.c.b16 %v774, %v770
        %v1127 = vpack.c.b16 %v779, %v775
        %v1128 = vpack.c.b16 %v780, %v776
        %v1129 = vpack.c.b16 %v781, %v777
        %v1130 = vpack.c.b16 %v782, %v778
        %v1131 = vpack.c.b16 %v787, %v783
        %v1132 = vpack.c.b16 %v788, %v784
        %v1133 = vpack.c.b16 %v789, %v785
        %v1134 = vpack.c.b16 %v790, %v786
        %v1135 = vpack.c.b16 %v795, %v791
        %v1136 = vpack.c.b16 %v796, %v792
        %v1137 = vpack.c.b16 %v797, %v793
        %v1138 = vpack.c.b16 %v798, %v794
        %v1139 = vpack.c.b16 %v803, %v799
        %v1140 = vpack.c.b16 %v804, %v800
        %v1141 = vpack.c.b16 %v805, %v801
        %v1142 = vpack.c.b16 %v806, %v802
        %v1143 = vpack.c.b16 %v811, %v807
        %v1144 = vpack.c.b16 %v812, %v808
        %v1145 = vpack.c.b16 %v813, %v809
        %v1146 = vpack.c.b16 %v814, %v810
        %v1147 = vpack.c.b16 %v819, %v815
        %v1148 = vpack.c.b16 %v820, %v816
        %v1149 = vpack.c.b16 %v821, %v817
        %v1150 = vpack.c.b16 %v822, %v818
        %v1151 = vpack.c.b16 %v827, %v823
        %v1152 = vpack.c.b16 %v828, %v824
        %v1153 = vpack.c.b16 %v829, %v825
        %v1154 = vpack.c.b16 %v830, %v826
        %v1155 = vpack.c.b16 %v835, %v831
        %v1156 = vpack.c.b16 %v836, %v832
        %v1157 = vpack.c.b16 %v837, %v833
        %v1158 = vpack.c.b16 %v838, %v834
        %v1159 = vpack.c.b16 %v843, %v839
        %v1160 = vpack.c.b16 %v844, %v840
        %v1161 = vpack.c.b16 %v845, %v841
        %v1162 = vpack.c.b16 %v846, %v842
        %v1163 = vpack.c.b16 %v851, %v847
        %v1164 = vpack.c.b16 %v852, %v848
        %v1165 = vpack.c.b16 %v853, %v849
        %v1166 = vpack.c.b16 %v854, %v850
        %v1167 = vpack.c.b16 %v859, %v855
        %v1168 = vpack.c.b16 %v860, %v856
        %v1169 = vpack.c.b16 %v861, %v857
        %v1170 = vpack.c.b16 %v862, %v858
        %v1171 = vpack.c.b16 %v867, %v863
        %v1172 = vpack.c.b16 %v868, %v864
        %v1173 = vpack.c.b16 %v869, %v865
        %v1174 = vpack.c.b16 %v870, %v866
        %v1175 = vpack.c.b16 %v875, %v871
        %v1176 = vpack.c.b16 %v876, %v872
        %v1177 = vpack.c.b16 %v877, %v873
        %v1178 = vpack.c.b16 %v878, %v874
        %v1179 = vpack.c.b16 %v883, %v879
        %v1180 = vpack.c.b16 %v884, %v880
        %v1181 = vpack.c.b16 %v885, %v881
        %v1182 = vpack.c.b16 %v886, %v882
        %v1183 = vpack.c.b16 %v891, %v887
        %v1184 = vpack.c.b16 %v892, %v888
        %v1185 = vpack.c.b16 %v893, %v889
        %v1186 = vpack.c.b16 %v894, %v890
        %v1187 = vpack.c.b16 %v899, %v895
        %v1188 = vpack.c.b16 %v900, %v896
        %v1189 = vpack.c.b16 %v901, %v897
        %v1190 = vpack.c.b16 %v902, %v898
        %v1191 = vpack.c.b16 %v907, %v903
        %v1192 = vpack.c.b16 %v908, %v904
        %v1193 = vpack.c.b16 %v909, %v905
        %v1194 = vpack.c.b16 %v910, %v906
        %v1195 = vpack.c.b16 %v915, %v911
        %v1196 = vpack.c.b16 %v916, %v912
        %v1197 = vpack.c.b16 %v917, %v913
        %v1198 = vpack.c.b16 %v918, %v914
        %v1199 = vpack.c.b16 %v923, %v919
        %v1200 = vpack.c.b16 %v924, %v920
        %v1201 = vpack.c.b16 %v925, %v921
        %v1202 = vpack.c.b16 %v926, %v922
        %v1203 = vpack.c.b16 %v931, %v927
        %v1204 = vpack.c.b16 %v932, %v928
        %v1205 = vpack.c.b16 %v933, %v929
        %v1206 = vpack.c.b16 %v934, %v930
        %v1207 = vpack.c.b16 %v939, %v935
        %v1208 = vpack.c.b16 %v940, %v936
        %v1209 = vpack.c.b16 %v941, %v937
        %v1210 = vpack.c.b16 %v942, %v938
        %v1211 = vpack.c.b16 %v947, %v943
        %v1212 = vpack.c.b16 %v948, %v944
        %v1213 = vpack.c.b16 %v949, %v945
        %v1214 = vpack.c.b16 %v950, %v946
        %v1215 = vpack.c.b16 %v955, %v951
        %v1216 = vpack.c.b16 %v956, %v952
        %v1217 = vpack.c.b16 %v957, %v953
        %v1218 = vpack.c.b16 %v958, %v954
        %v1219 = vpack.c.b16 %v963, %v959
        %v1220 = vpack.c.b16 %v964, %v960
        %v1221 = vpack.c.b16 %v965, %v961
        %v1222 = vpack.c.b16 %v966, %v962
        %v1223 = vpack.c.b16 %v971, %v967
        %v1224 = vpack.c.b16 %v972, %v968
        %v1225 = vpack.c.b16 %v973, %v969
        %v1226 = vpack.c.b16 %v974, %v970
        %v1227 = vpack.c.b16 %v979, %v975
        %v1228 = vpack.c.b16 %v980, %v976
        %v1229 = vpack.c.b16 %v981, %v977
        %v1230 = vpack.c.b16 %v982, %v978
        %v1231 = vpack.c.b16 %v987, %v983
        %v1232 = vpack.c.b16 %v988, %v984
        %v1233 = vpack.c.b16 %v989, %v985
        %v1234 = vpack.c.b16 %v990, %v986
        %v1235 = vpack.c.b16 %v995, %v991
        %v1236 = vpack.c.b16 %v996, %v992
        %v1237 = vpack.c.b16 %v997, %v993
        %v1238 = vpack.c.b16 %v998, %v994
        %v1239 = vpack.c.b16 %v1003, %v999
        %v1240 = vpack.c.b16 %v1004, %v1000
        %v1241 = vpack.c.b16 %v1005, %v1001
        %v1242 = vpack.c.b16 %v1006, %v1002
        %v1243 = vpack.c.b16 %v1011, %v1007
        %v1244 = vpack.c.b16 %v1012, %v1008
        %v1245 = vpack.c.b16 %v1013, %v1009
        %v1246 = vpack.c.b16 %v1014, %v1010
        %v1247 = vpack.c.b16 %v1019, %v1015
        %v1248 = vpack.c.b16 %v1020, %v1016
        %v1249 = vpack.c.b16 %v1021, %v1017
        %v1250 = vpack.c.b16 %v1022, %v1018
        %v1251 = vpack.c.b16 %v1027, %v1023
        %v1252 = vpack.c.b16 %v1028, %v1024
        %v1253 = vpack.c.b16 %v1029, %v1025
        %v1254 = vpack.c.b16 %v1030, %v1026
        %v1255 = vpack.c.b16 %v1035, %v1031
        %v1256 = vpack.c.b16 %v1036, %v1032
        %v1257 = vpack.c.b16 %v1037, %v1033
        %v1258 = vpack.c.b16 %v1038, %v1034
        %v1259 = vpack.c.b16 %v1043, %v1039
        %v1260 = vpack.c.b16 %v1044, %v1040
        %v1261 = vpack.c.b16 %v1045, %v1041
        %v1262 = vpack.c.b16 %v1046, %v1042
        %v1263 = vpack.c.b16 %v1051, %v1047
        %v1264 = vpack.c.b16 %v1052, %v1048
        %v1265 = vpack.c.b16 %v1053, %v1049
        %v1266 = vpack.c.b16 %v1054, %v1050
        %v1267 = vpack.c.b16 %v1059, %v1055
        %v1268 = vpack.c.b16 %v1060, %v1056
        %v1269 = vpack.c.b16 %v1061, %v1057
        %v1270 = vpack.c.b16 %v1062, %v1058
        %v1271 = vpack.c.b16 %v1067, %v1063
        %v1272 = vpack.c.b16 %v1068, %v1064
        %v1273 = vpack.c.b16 %v1069, %v1065
        %v1274 = vpack.c.b16 %v1070, %v1066
        %v1275 = vpack.c.b16 %v1075, %v1071
        %v1276 = vpack.c.b16 %v1076, %v1072
        %v1277 = vpack.c.b16 %v1077, %v1073
        %v1278 = vpack.c.b16 %v1078, %v1074
        %v1279 = vpack.c.b16 %v1083, %v1079
        %v1280 = vpack.c.b16 %v1084, %v1080
        %v1281 = vpack.c.b16 %v1085, %v1081
        %v1282 = vpack.c.b16 %v1086, %v1082
        %v1283 = vpack.c.b16 %v1091, %v1087
        %v1284 = vpack.c.b16 %v1092, %v1088
        %v1285 = vpack.c.b16 %v1093, %v1089
        %v1286 = vpack.c.b16 %v1094, %v1090
        %1479 = vmatprep.subr.bf16.mxu0 %v1096
        %1480 = vmatpush1.bf16.msra.mxu0 %v1095
        %1481 = vmatprep.subr.bf16.mxu0 %v1100
        %1482 = vmatpush1.bf16.msra.mxu0 %v1099
        %1483 = vmatprep.subr.bf16.mxu0 %v1104
        %1484 = vmatpush1.bf16.msra.mxu0 %v1103
        %1485 = vmatprep.subr.bf16.mxu0 %v1108
        %1486 = vmatpush1.bf16.msra.mxu0 %v1107
        %1487 = vmatprep.subr.bf16.mxu0 %v1112
        %1488 = vmatpush1.bf16.msra.mxu0 %v1111
        %1489 = vmatprep.subr.bf16.mxu0 %v1116
        %1490 = vmatpush1.bf16.msra.mxu0 %v1115
        %1491 = vmatprep.subr.bf16.mxu0 %v1120
        %1492 = vmatpush1.bf16.msra.mxu0 %v1119
        %1493 = vmatprep.subr.bf16.mxu0 %v1124
        %1494 = vmatpush1.bf16.msra.mxu0 %v1123
        %1495 = vmatprep.subr.bf16.mxu0 %v1128
        %1496 = vmatpush1.bf16.msra.mxu0 %v1127
        %1497 = vmatprep.subr.bf16.mxu0 %v1132
        %1498 = vmatpush1.bf16.msra.mxu0 %v1131
        %1499 = vmatprep.subr.bf16.mxu0 %v1136
        %1500 = vmatpush1.bf16.msra.mxu0 %v1135
        %1501 = vmatprep.subr.bf16.mxu0 %v1140
        %1502 = vmatpush1.bf16.msra.mxu0 %v1139
        %1503 = vmatprep.subr.bf16.mxu0 %v1144
        %1504 = vmatpush1.bf16.msra.mxu0 %v1143
        %1505 = vmatprep.subr.bf16.mxu0 %v1148
        %1506 = vmatpush1.bf16.msra.mxu0 %v1147
        %1507 = vmatprep.subr.bf16.mxu0 %v1152
        %1508 = vmatpush1.bf16.msra.mxu0 %v1151
        %1509 = vmatprep.subr.bf16.mxu0 %v1156
        %1510 = vmatpush1.bf16.msra.mxu0 %v1155
        %1511 = vmatprep.mubr.bf16.mxu0 %v449
        %1512 = vmatmul.mubr.bf16.gmra.mrb[0].mxu0 %v448
        %v1513 = vpop.f32.mrb[0].mxu0
        %v1514 = vadd.f32 0.0, %v1513
        %v1515 = vpop.f32.mrb[0].mxu0
        %v1516 = vadd.f32 0.0, %v1515
        %v1517 = vpop.f32.mrb[0].mxu0
        %v1518 = vadd.f32 0.0, %v1517
        %v1519 = vpop.f32.mrb[0].mxu0
        %v1520 = vadd.f32 0.0, %v1519
        %1521 = vdwg.mxu0
        %1522 = vmatprep.subr.bf16.mxu0 %v1160
        %1523 = vmatpush1.bf16.msra.mxu0 %v1159
        %1524 = vmatprep.subr.bf16.mxu0 %v1164
        %1525 = vmatpush1.bf16.msra.mxu0 %v1163
        %1526 = vmatprep.subr.bf16.mxu0 %v1168
        %1527 = vmatpush1.bf16.msra.mxu0 %v1167
        %1528 = vmatprep.subr.bf16.mxu0 %v1172
        %1529 = vmatpush1.bf16.msra.mxu0 %v1171
        %1530 = vmatprep.subr.bf16.mxu0 %v1176
        %1531 = vmatpush1.bf16.msra.mxu0 %v1175
        %1532 = vmatprep.subr.bf16.mxu0 %v1180
        %1533 = vmatpush1.bf16.msra.mxu0 %v1179
        %1534 = vmatprep.subr.bf16.mxu0 %v1184
        %1535 = vmatpush1.bf16.msra.mxu0 %v1183
        %1536 = vmatprep.subr.bf16.mxu0 %v1188
        %1537 = vmatpush1.bf16.msra.mxu0 %v1187
        %1538 = vmatprep.subr.bf16.mxu0 %v1192
        %1539 = vmatpush1.bf16.msra.mxu0 %v1191
        %1540 = vmatprep.subr.bf16.mxu0 %v1196
        %1541 = vmatpush1.bf16.msra.mxu0 %v1195
        %1542 = vmatprep.subr.bf16.mxu0 %v1200
        %1543 = vmatpush1.bf16.msra.mxu0 %v1199
        %1544 = vmatprep.subr.bf16.mxu0 %v1204
        %1545 = vmatpush1.bf16.msra.mxu0 %v1203
        %1546 = vmatprep.subr.bf16.mxu0 %v1208
        %1547 = vmatpush1.bf16.msra.mxu0 %v1207
        %1548 = vmatprep.subr.bf16.mxu0 %v1212
        %1549 = vmatpush1.bf16.msra.mxu0 %v1211
        %1550 = vmatprep.subr.bf16.mxu0 %v1216
        %1551 = vmatpush1.bf16.msra.mxu0 %v1215
        %1552 = vmatprep.subr.bf16.mxu0 %v1220
        %1553 = vmatpush1.bf16.msra.mxu0 %v1219
        %1554 = vmatprep.mubr.bf16.mxu0 %v451
        %1555 = vmatmul.mubr.bf16.gmra.mrb[0].mxu0 %v450
        %v1556 = vpop.f32.mrb[0].mxu0
        %v1557 = vadd.f32 %v1514, %v1556
        %v1558 = vpop.f32.mrb[0].mxu0
        %v1559 = vadd.f32 %v1516, %v1558
        %v1560 = vpop.f32.mrb[0].mxu0
        %v1561 = vadd.f32 %v1518, %v1560
        %v1562 = vpop.f32.mrb[0].mxu0
        %v1563 = vadd.f32 %v1520, %v1562
        %1564 = vdwg.mxu0
        %1565 = vmatprep.subr.bf16.mxu0 %v1224
        %1566 = vmatpush1.bf16.msra.mxu0 %v1223
        %1567 = vmatprep.subr.bf16.mxu0 %v1228
        %1568 = vmatpush1.bf16.msra.mxu0 %v1227
        %1569 = vmatprep.subr.bf16.mxu0 %v1232
        %1570 = vmatpush1.bf16.msra.mxu0 %v1231
        %1571 = vmatprep.subr.bf16.mxu0 %v1236
        %1572 = vmatpush1.bf16.msra.mxu0 %v1235
        %1573 = vmatprep.subr.bf16.mxu0 %v1240
        %1574 = vmatpush1.bf16.msra.mxu0 %v1239
        %1575 = vmatprep.subr.bf16.mxu0 %v1244
        %1576 = vmatpush1.bf16.msra.mxu0 %v1243
        %1577 = vmatprep.subr.bf16.mxu0 %v1248
        %1578 = vmatpush1.bf16.msra.mxu0 %v1247
        %1579 = vmatprep.subr.bf16.mxu0 %v1252
        %1580 = vmatpush1.bf16.msra.mxu0 %v1251
        %1581 = vmatprep.subr.bf16.mxu0 %v1256
        %1582 = vmatpush1.bf16.msra.mxu0 %v1255
        %1583 = vmatprep.subr.bf16.mxu0 %v1260
        %1584 = vmatpush1.bf16.msra.mxu0 %v1259
        %1585 = vmatprep.subr.bf16.mxu0 %v1264
        %1586 = vmatpush1.bf16.msra.mxu0 %v1263
        %1587 = vmatprep.subr.bf16.mxu0 %v1268
        %1588 = vmatpush1.bf16.msra.mxu0 %v1267
        %1589 = vmatprep.subr.bf16.mxu0 %v1272
        %1590 = vmatpush1.bf16.msra.mxu0 %v1271
        %1591 = vmatprep.subr.bf16.mxu0 %v1276
        %1592 = vmatpush1.bf16.msra.mxu0 %v1275
        %1593 = vmatprep.subr.bf16.mxu0 %v1280
        %1594 = vmatpush1.bf16.msra.mxu0 %v1279
        %1595 = vmatprep.subr.bf16.mxu0 %v1284
        %1596 = vmatpush1.bf16.msra.mxu0 %v1283
        %1597 = vmatprep.mubr.bf16.mxu0 %v485
        %1598 = vmatmul.mubr.bf16.gmra.mrb[0].mxu0 %v473
        %v1599 = vpop.f32.mrb[0].mxu0
        %v1600 = vadd.f32 %v1557, %v1599
        %v1601 = vpop.f32.mrb[0].mxu0
        %v1602 = vadd.f32 %v1559, %v1601
        %v1603 = vpop.f32.mrb[0].mxu0
        %v1604 = vadd.f32 %v1561, %v1603
        %v1605 = vpop.f32.mrb[0].mxu0
        %v1606 = vadd.f32 %v1563, %v1605
        %1607 = vdwg.mxu0
        %1608 = vmatprep.subr.bf16.mxu0 %v1098
        %1609 = vmatpush1.bf16.msra.mxu0 %v1097
        %1610 = vmatprep.subr.bf16.mxu0 %v1102
        %1611 = vmatpush1.bf16.msra.mxu0 %v1101
        %1612 = vmatprep.subr.bf16.mxu0 %v1106
        %1613 = vmatpush1.bf16.msra.mxu0 %v1105
        %1614 = vmatprep.subr.bf16.mxu0 %v1110
        %1615 = vmatpush1.bf16.msra.mxu0 %v1109
        %1616 = vmatprep.subr.bf16.mxu0 %v1114
        %1617 = vmatpush1.bf16.msra.mxu0 %v1113
        %1618 = vmatprep.subr.bf16.mxu0 %v1118
        %1619 = vmatpush1.bf16.msra.mxu0 %v1117
        %1620 = vmatprep.subr.bf16.mxu0 %v1122
        %1621 = vmatpush1.bf16.msra.mxu0 %v1121
        %1622 = vmatprep.subr.bf16.mxu0 %v1126
        %1623 = vmatpush1.bf16.msra.mxu0 %v1125
        %1624 = vmatprep.subr.bf16.mxu0 %v1130
        %1625 = vmatpush1.bf16.msra.mxu0 %v1129
        %1626 = vmatprep.subr.bf16.mxu0 %v1134
        %1627 = vmatpush1.bf16.msra.mxu0 %v1133
        %1628 = vmatprep.subr.bf16.mxu0 %v1138
        %1629 = vmatpush1.bf16.msra.mxu0 %v1137
        %1630 = vmatprep.subr.bf16.mxu0 %v1142
        %1631 = vmatpush1.bf16.msra.mxu0 %v1141
        %1632 = vmatprep.subr.bf16.mxu0 %v1146
        %1633 = vmatpush1.bf16.msra.mxu0 %v1145
        %1634 = vmatprep.subr.bf16.mxu0 %v1150
        %1635 = vmatpush1.bf16.msra.mxu0 %v1149
        %1636 = vmatprep.subr.bf16.mxu0 %v1154
        %1637 = vmatpush1.bf16.msra.mxu0 %v1153
        %1638 = vmatprep.subr.bf16.mxu0 %v1158
        %1639 = vmatpush1.bf16.msra.mxu0 %v1157
        %1640 = vmatprep.mubr.bf16.mxu0 %v449
        %1641 = vmatmul.mubr.bf16.gmra.mrb[0].mxu0 %v448
        %v1642 = vpop.f32.mrb[0].mxu0
        %v1643 = vadd.f32 0.0, %v1642
        %v1644 = vpop.f32.mrb[0].mxu0
        %v1645 = vadd.f32 0.0, %v1644
        %v1646 = vpop.f32.mrb[0].mxu0
        %v1647 = vadd.f32 0.0, %v1646
        %v1648 = vpop.f32.mrb[0].mxu0
        %v1649 = vadd.f32 0.0, %v1648
        %1650 = vdwg.mxu0
        %1651 = vmatprep.subr.bf16.mxu0 %v1162
        %1652 = vmatpush1.bf16.msra.mxu0 %v1161
        %1653 = vmatprep.subr.bf16.mxu0 %v1166
        %1654 = vmatpush1.bf16.msra.mxu0 %v1165
        %1655 = vmatprep.subr.bf16.mxu0 %v1170
        %1656 = vmatpush1.bf16.msra.mxu0 %v1169
        %1657 = vmatprep.subr.bf16.mxu0 %v1174
        %1658 = vmatpush1.bf16.msra.mxu0 %v1173
        %1659 = vmatprep.subr.bf16.mxu0 %v1178
        %1660 = vmatpush1.bf16.msra.mxu0 %v1177
        %1661 = vmatprep.subr.bf16.mxu0 %v1182
        %1662 = vmatpush1.bf16.msra.mxu0 %v1181
        %1663 = vmatprep.subr.bf16.mxu0 %v1186
        %1664 = vmatpush1.bf16.msra.mxu0 %v1185
        %1665 = vmatprep.subr.bf16.mxu0 %v1190
        %1666 = vmatpush1.bf16.msra.mxu0 %v1189
        %1667 = vmatprep.subr.bf16.mxu0 %v1194
        %1668 = vmatpush1.bf16.msra.mxu0 %v1193
        %1669 = vmatprep.subr.bf16.mxu0 %v1198
        %1670 = vmatpush1.bf16.msra.mxu0 %v1197
        %1671 = vmatprep.subr.bf16.mxu0 %v1202
        %1672 = vmatpush1.bf16.msra.mxu0 %v1201
        %1673 = vmatprep.subr.bf16.mxu0 %v1206
        %1674 = vmatpush1.bf16.msra.mxu0 %v1205
        %1675 = vmatprep.subr.bf16.mxu0 %v1210
        %1676 = vmatpush1.bf16.msra.mxu0 %v1209
        %1677 = vmatprep.subr.bf16.mxu0 %v1214
        %1678 = vmatpush1.bf16.msra.mxu0 %v1213
        %1679 = vmatprep.subr.bf16.mxu0 %v1218
        %1680 = vmatpush1.bf16.msra.mxu0 %v1217
        %1681 = vmatprep.subr.bf16.mxu0 %v1222
        %1682 = vmatpush1.bf16.msra.mxu0 %v1221
        %1683 = vmatprep.mubr.bf16.mxu0 %v451
        %1684 = vmatmul.mubr.bf16.gmra.mrb[0].mxu0 %v450
        %v1685 = vpop.f32.mrb[0].mxu0
        %v1686 = vadd.f32 %v1643, %v1685
        %v1687 = vpop.f32.mrb[0].mxu0
        %v1688 = vadd.f32 %v1645, %v1687
        %v1689 = vpop.f32.mrb[0].mxu0
        %v1690 = vadd.f32 %v1647, %v1689
        %v1691 = vpop.f32.mrb[0].mxu0
        %v1692 = vadd.f32 %v1649, %v1691
        %1693 = vdwg.mxu0
        %1694 = vmatprep.subr.bf16.mxu0 %v1226
        %1695 = vmatpush1.bf16.msra.mxu0 %v1225
        %1696 = vmatprep.subr.bf16.mxu0 %v1230
        %1697 = vmatpush1.bf16.msra.mxu0 %v1229
        %1698 = vmatprep.subr.bf16.mxu0 %v1234
        %1699 = vmatpush1.bf16.msra.mxu0 %v1233
        %1700 = vmatprep.subr.bf16.mxu0 %v1238
        %1701 = vmatpush1.bf16.msra.mxu0 %v1237
        %1702 = vmatprep.subr.bf16.mxu0 %v1242
        %1703 = vmatpush1.bf16.msra.mxu0 %v1241
        %1704 = vmatprep.subr.bf16.mxu0 %v1246
        %1705 = vmatpush1.bf16.msra.mxu0 %v1245
        %1706 = vmatprep.subr.bf16.mxu0 %v1250
        %1707 = vmatpush1.bf16.msra.mxu0 %v1249
        %1708 = vmatprep.subr.bf16.mxu0 %v1254
        %1709 = vmatpush1.bf16.msra.mxu0 %v1253
        %1710 = vmatprep.subr.bf16.mxu0 %v1258
        %1711 = vmatpush1.bf16.msra.mxu0 %v1257
        %1712 = vmatprep.subr.bf16.mxu0 %v1262
        %1713 = vmatpush1.bf16.msra.mxu0 %v1261
        %1714 = vmatprep.subr.bf16.mxu0 %v1266
        %1715 = vmatpush1.bf16.msra.mxu0 %v1265
        %1716 = vmatprep.subr.bf16.mxu0 %v1270
        %1717 = vmatpush1.bf16.msra.mxu0 %v1269
        %1718 = vmatprep.subr.bf16.mxu0 %v1274
        %1719 = vmatpush1.bf16.msra.mxu0 %v1273
        %1720 = vmatprep.subr.bf16.mxu0 %v1278
        %1721 = vmatpush1.bf16.msra.mxu0 %v1277
        %1722 = vmatprep.subr.bf16.mxu0 %v1282
        %1723 = vmatpush1.bf16.msra.mxu0 %v1281
        %1724 = vmatprep.subr.bf16.mxu0 %v1286
        %1725 = vmatpush1.bf16.msra.mxu0 %v1285
        %1726 = vmatprep.mubr.bf16.mxu0 %v485
        %1727 = vmatmul.mubr.bf16.gmra.mrb[0].mxu0 %v473
        %v1728 = vpop.f32.mrb[0].mxu0
        %v1729 = vadd.f32 %v1686, %v1728
        %v1730 = vpop.f32.mrb[0].mxu0
        %v1731 = vadd.f32 %v1688, %v1730
        %v1732 = vpop.f32.mrb[0].mxu0
        %v1733 = vadd.f32 %v1690, %v1732
        %v1734 = vpop.f32.mrb[0].mxu0
        %v1735 = vadd.f32 %v1692, %v1734
        %1736 = vdwg.mxu0
        %1737 = vmatprep.subr.bf16.mxu0 %v1096
        %1738 = vmatpush1.bf16.msra.mxu0 %v1095
        %1739 = vmatprep.subr.bf16.mxu0 %v1100
        %1740 = vmatpush1.bf16.msra.mxu0 %v1099
        %1741 = vmatprep.subr.bf16.mxu0 %v1104
        %1742 = vmatpush1.bf16.msra.mxu0 %v1103
        %1743 = vmatprep.subr.bf16.mxu0 %v1108
        %1744 = vmatpush1.bf16.msra.mxu0 %v1107
        %1745 = vmatprep.subr.bf16.mxu0 %v1112
        %1746 = vmatpush1.bf16.msra.mxu0 %v1111
        %1747 = vmatprep.subr.bf16.mxu0 %v1116
        %1748 = vmatpush1.bf16.msra.mxu0 %v1115
        %1749 = vmatprep.subr.bf16.mxu0 %v1120
        %1750 = vmatpush1.bf16.msra.mxu0 %v1119
        %1751 = vmatprep.subr.bf16.mxu0 %v1124
        %1752 = vmatpush1.bf16.msra.mxu0 %v1123
        %1753 = vmatprep.subr.bf16.mxu0 %v1128
        %1754 = vmatpush1.bf16.msra.mxu0 %v1127
        %1755 = vmatprep.subr.bf16.mxu0 %v1132
        %1756 = vmatpush1.bf16.msra.mxu0 %v1131
        %1757 = vmatprep.subr.bf16.mxu0 %v1136
        %1758 = vmatpush1.bf16.msra.mxu0 %v1135
        %1759 = vmatprep.subr.bf16.mxu0 %v1140
        %1760 = vmatpush1.bf16.msra.mxu0 %v1139
        %1761 = vmatprep.subr.bf16.mxu0 %v1144
        %1762 = vmatpush1.bf16.msra.mxu0 %v1143
        %1763 = vmatprep.subr.bf16.mxu0 %v1148
        %1764 = vmatpush1.bf16.msra.mxu0 %v1147
        %1765 = vmatprep.subr.bf16.mxu0 %v1152
        %1766 = vmatpush1.bf16.msra.mxu0 %v1151
        %1767 = vmatprep.subr.bf16.mxu0 %v1156
        %1768 = vmatpush1.bf16.msra.mxu0 %v1155
        %1769 = vmatprep.mubr.bf16.mxu0 %v451
        %1770 = vmatmul.mubr.bf16.gmra.mrb[0].mxu0 %v450
        %v1771 = vpop.f32.mrb[0].mxu0
        %v1772 = vadd.f32 0.0, %v1771
        %v1773 = vpop.f32.mrb[0].mxu0
        %v1774 = vadd.f32 0.0, %v1773
        %v1775 = vpop.f32.mrb[0].mxu0
        %v1776 = vadd.f32 0.0, %v1775
        %v1777 = vpop.f32.mrb[0].mxu0
        %v1778 = vadd.f32 0.0, %v1777
        %1779 = vdwg.mxu0
        %1780 = vmatprep.subr.bf16.mxu0 %v1160
        %1781 = vmatpush1.bf16.msra.mxu0 %v1159
        %1782 = vmatprep.subr.bf16.mxu0 %v1164
        %1783 = vmatpush1.bf16.msra.mxu0 %v1163
        %1784 = vmatprep.subr.bf16.mxu0 %v1168
        %1785 = vmatpush1.bf16.msra.mxu0 %v1167
        %1786 = vmatprep.subr.bf16.mxu0 %v1172
        %1787 = vmatpush1.bf16.msra.mxu0 %v1171
        %1788 = vmatprep.subr.bf16.mxu0 %v1176
        %1789 = vmatpush1.bf16.msra.mxu0 %v1175
        %1790 = vmatprep.subr.bf16.mxu0 %v1180
        %1791 = vmatpush1.bf16.msra.mxu0 %v1179
        %1792 = vmatprep.subr.bf16.mxu0 %v1184
        %1793 = vmatpush1.bf16.msra.mxu0 %v1183
        %1794 = vmatprep.subr.bf16.mxu0 %v1188
        %1795 = vmatpush1.bf16.msra.mxu0 %v1187
        %1796 = vmatprep.subr.bf16.mxu0 %v1192
        %1797 = vmatpush1.bf16.msra.mxu0 %v1191
        %1798 = vmatprep.subr.bf16.mxu0 %v1196
        %1799 = vmatpush1.bf16.msra.mxu0 %v1195
        %1800 = vmatprep.subr.bf16.mxu0 %v1200
        %1801 = vmatpush1.bf16.msra.mxu0 %v1199
        %1802 = vmatprep.subr.bf16.mxu0 %v1204
        %1803 = vmatpush1.bf16.msra.mxu0 %v1203
        %1804 = vmatprep.subr.bf16.mxu0 %v1208
        %1805 = vmatpush1.bf16.msra.mxu0 %v1207
        %1806 = vmatprep.subr.bf16.mxu0 %v1212
        %1807 = vmatpush1.bf16.msra.mxu0 %v1211
        %1808 = vmatprep.subr.bf16.mxu0 %v1216
        %1809 = vmatpush1.bf16.msra.mxu0 %v1215
        %1810 = vmatprep.subr.bf16.mxu0 %v1220
        %1811 = vmatpush1.bf16.msra.mxu0 %v1219
        %1812 = vmatprep.mubr.bf16.mxu0 %v485
        %1813 = vmatmul.mubr.bf16.gmra.mrb[0].mxu0 %v473
        %v1814 = vpop.f32.mrb[0].mxu0
        %v1815 = vadd.f32 %v1772, %v1814
        %v1816 = vpop.f32.mrb[0].mxu0
        %v1817 = vadd.f32 %v1774, %v1816
        %v1818 = vpop.f32.mrb[0].mxu0
        %v1819 = vadd.f32 %v1776, %v1818
        %v1820 = vpop.f32.mrb[0].mxu0
        %v1821 = vadd.f32 %v1778, %v1820
        %1822 = vdwg.mxu0
        %1823 = vmatprep.subr.bf16.mxu0 %v1224
        %1824 = vmatpush1.bf16.msra.mxu0 %v1223
        %1825 = vmatprep.subr.bf16.mxu0 %v1228
        %1826 = vmatpush1.bf16.msra.mxu0 %v1227
        %1827 = vmatprep.subr.bf16.mxu0 %v1232
        %1828 = vmatpush1.bf16.msra.mxu0 %v1231
        %1829 = vmatprep.subr.bf16.mxu0 %v1236
        %1830 = vmatpush1.bf16.msra.mxu0 %v1235
        %1831 = vmatprep.subr.bf16.mxu0 %v1240
        %1832 = vmatpush1.bf16.msra.mxu0 %v1239
        %1833 = vmatprep.subr.bf16.mxu0 %v1244
        %1834 = vmatpush1.bf16.msra.mxu0 %v1243
        %1835 = vmatprep.subr.bf16.mxu0 %v1248
        %1836 = vmatpush1.bf16.msra.mxu0 %v1247
        %1837 = vmatprep.subr.bf16.mxu0 %v1252
        %1838 = vmatpush1.bf16.msra.mxu0 %v1251
        %1839 = vmatprep.subr.bf16.mxu0 %v1256
        %1840 = vmatpush1.bf16.msra.mxu0 %v1255
        %1841 = vmatprep.subr.bf16.mxu0 %v1260
        %1842 = vmatpush1.bf16.msra.mxu0 %v1259
        %1843 = vmatprep.subr.bf16.mxu0 %v1264
        %1844 = vmatpush1.bf16.msra.mxu0 %v1263
        %1845 = vmatprep.subr.bf16.mxu0 %v1268
        %1846 = vmatpush1.bf16.msra.mxu0 %v1267
        %1847 = vmatprep.subr.bf16.mxu0 %v1272
        %1848 = vmatpush1.bf16.msra.mxu0 %v1271
        %1849 = vmatprep.subr.bf16.mxu0 %v1276
        %1850 = vmatpush1.bf16.msra.mxu0 %v1275
        %1851 = vmatprep.subr.bf16.mxu0 %v1280
        %1852 = vmatpush1.bf16.msra.mxu0 %v1279
        %1853 = vmatprep.subr.bf16.mxu0 %v1284
        %1854 = vmatpush1.bf16.msra.mxu0 %v1283
        %1855 = vmatprep.mubr.bf16.mxu0 %v516
        %1856 = vmatmul.mubr.bf16.gmra.mrb[0].mxu0 %v504
        %v1857 = vpop.f32.mrb[0].mxu0
        %v1858 = vadd.f32 %v1815, %v1857
        %v1859 = vpop.f32.mrb[0].mxu0
        %v1860 = vadd.f32 %v1817, %v1859
        %v1861 = vpop.f32.mrb[0].mxu0
        %v1862 = vadd.f32 %v1819, %v1861
        %v1863 = vpop.f32.mrb[0].mxu0
        %v1864 = vadd.f32 %v1821, %v1863
        %1865 = vdwg.mxu0
        %1866 = vmatprep.subr.bf16.mxu0 %v1098
        %1867 = vmatpush1.bf16.msra.mxu0 %v1097
        %1868 = vmatprep.subr.bf16.mxu0 %v1102
        %1869 = vmatpush1.bf16.msra.mxu0 %v1101
        %1870 = vmatprep.subr.bf16.mxu0 %v1106
        %1871 = vmatpush1.bf16.msra.mxu0 %v1105
        %1872 = vmatprep.subr.bf16.mxu0 %v1110
        %1873 = vmatpush1.bf16.msra.mxu0 %v1109
        %1874 = vmatprep.subr.bf16.mxu0 %v1114
        %1875 = vmatpush1.bf16.msra.mxu0 %v1113
        %1876 = vmatprep.subr.bf16.mxu0 %v1118
        %1877 = vmatpush1.bf16.msra.mxu0 %v1117
        %1878 = vmatprep.subr.bf16.mxu0 %v1122
        %1879 = vmatpush1.bf16.msra.mxu0 %v1121
        %1880 = vmatprep.subr.bf16.mxu0 %v1126
        %1881 = vmatpush1.bf16.msra.mxu0 %v1125
        %1882 = vmatprep.subr.bf16.mxu0 %v1130
        %1883 = vmatpush1.bf16.msra.mxu0 %v1129
        %1884 = vmatprep.subr.bf16.mxu0 %v1134
        %1885 = vmatpush1.bf16.msra.mxu0 %v1133
        %1886 = vmatprep.subr.bf16.mxu0 %v1138
        %1887 = vmatpush1.bf16.msra.mxu0 %v1137
        %1888 = vmatprep.subr.bf16.mxu0 %v1142
        %1889 = vmatpush1.bf16.msra.mxu0 %v1141
        %1890 = vmatprep.subr.bf16.mxu0 %v1146
        %1891 = vmatpush1.bf16.msra.mxu0 %v1145
        %1892 = vmatprep.subr.bf16.mxu0 %v1150
        %1893 = vmatpush1.bf16.msra.mxu0 %v1149
        %1894 = vmatprep.subr.bf16.mxu0 %v1154
        %1895 = vmatpush1.bf16.msra.mxu0 %v1153
        %1896 = vmatprep.subr.bf16.mxu0 %v1158
        %1897 = vmatpush1.bf16.msra.mxu0 %v1157
        %1898 = vmatprep.mubr.bf16.mxu0 %v451
        %1899 = vmatmul.mubr.bf16.gmra.mrb[0].mxu0 %v450
        %v1900 = vpop.f32.mrb[0].mxu0
        %v1901 = vadd.f32 0.0, %v1900
        %v1902 = vpop.f32.mrb[0].mxu0
        %v1903 = vadd.f32 0.0, %v1902
        %v1904 = vpop.f32.mrb[0].mxu0
        %v1905 = vadd.f32 0.0, %v1904
        %v1906 = vpop.f32.mrb[0].mxu0
        %v1907 = vadd.f32 0.0, %v1906
        %1908 = vdwg.mxu0
        %1909 = vmatprep.subr.bf16.mxu0 %v1162
        %1910 = vmatpush1.bf16.msra.mxu0 %v1161
        %1911 = vmatprep.subr.bf16.mxu0 %v1166
        %1912 = vmatpush1.bf16.msra.mxu0 %v1165
        %1913 = vmatprep.subr.bf16.mxu0 %v1170
        %1914 = vmatpush1.bf16.msra.mxu0 %v1169
        %1915 = vmatprep.subr.bf16.mxu0 %v1174
        %1916 = vmatpush1.bf16.msra.mxu0 %v1173
        %1917 = vmatprep.subr.bf16.mxu0 %v1178
        %1918 = vmatpush1.bf16.msra.mxu0 %v1177
        %1919 = vmatprep.subr.bf16.mxu0 %v1182
        %1920 = vmatpush1.bf16.msra.mxu0 %v1181
        %1921 = vmatprep.subr.bf16.mxu0 %v1186
        %1922 = vmatpush1.bf16.msra.mxu0 %v1185
        %1923 = vmatprep.subr.bf16.mxu0 %v1190
        %1924 = vmatpush1.bf16.msra.mxu0 %v1189
        %1925 = vmatprep.subr.bf16.mxu0 %v1194
        %1926 = vmatpush1.bf16.msra.mxu0 %v1193
        %1927 = vmatprep.subr.bf16.mxu0 %v1198
        %1928 = vmatpush1.bf16.msra.mxu0 %v1197
        %1929 = vmatprep.subr.bf16.mxu0 %v1202
        %1930 = vmatpush1.bf16.msra.mxu0 %v1201
        %1931 = vmatprep.subr.bf16.mxu0 %v1206
        %1932 = vmatpush1.bf16.msra.mxu0 %v1205
        %1933 = vmatprep.subr.bf16.mxu0 %v1210
        %1934 = vmatpush1.bf16.msra.mxu0 %v1209
        %1935 = vmatprep.subr.bf16.mxu0 %v1214
        %1936 = vmatpush1.bf16.msra.mxu0 %v1213
        %1937 = vmatprep.subr.bf16.mxu0 %v1218
        %1938 = vmatpush1.bf16.msra.mxu0 %v1217
        %1939 = vmatprep.subr.bf16.mxu0 %v1222
        %1940 = vmatpush1.bf16.msra.mxu0 %v1221
        %1941 = vmatprep.mubr.bf16.mxu0 %v485
        %1942 = vmatmul.mubr.bf16.gmra.mrb[0].mxu0 %v473
        %v1943 = vpop.f32.mrb[0].mxu0
        %v1944 = vadd.f32 %v1901, %v1943
        %v1945 = vpop.f32.mrb[0].mxu0
        %v1946 = vadd.f32 %v1903, %v1945
        %v1947 = vpop.f32.mrb[0].mxu0
        %v1948 = vadd.f32 %v1905, %v1947
        %v1949 = vpop.f32.mrb[0].mxu0
        %v1950 = vadd.f32 %v1907, %v1949
        %1951 = vdwg.mxu0
        %1952 = vmatprep.subr.bf16.mxu0 %v1226
        %1953 = vmatpush1.bf16.msra.mxu0 %v1225
        %1954 = vmatprep.subr.bf16.mxu0 %v1230
        %1955 = vmatpush1.bf16.msra.mxu0 %v1229
        %1956 = vmatprep.subr.bf16.mxu0 %v1234
        %1957 = vmatpush1.bf16.msra.mxu0 %v1233
        %1958 = vmatprep.subr.bf16.mxu0 %v1238
        %1959 = vmatpush1.bf16.msra.mxu0 %v1237
        %1960 = vmatprep.subr.bf16.mxu0 %v1242
        %1961 = vmatpush1.bf16.msra.mxu0 %v1241
        %1962 = vmatprep.subr.bf16.mxu0 %v1246
        %1963 = vmatpush1.bf16.msra.mxu0 %v1245
        %1964 = vmatprep.subr.bf16.mxu0 %v1250
        %1965 = vmatpush1.bf16.msra.mxu0 %v1249
        %1966 = vmatprep.subr.bf16.mxu0 %v1254
        %1967 = vmatpush1.bf16.msra.mxu0 %v1253
        %1968 = vmatprep.subr.bf16.mxu0 %v1258
        %1969 = vmatpush1.bf16.msra.mxu0 %v1257
        %1970 = vmatprep.subr.bf16.mxu0 %v1262
        %1971 = vmatpush1.bf16.msra.mxu0 %v1261
        %1972 = vmatprep.subr.bf16.mxu0 %v1266
        %1973 = vmatpush1.bf16.msra.mxu0 %v1265
        %1974 = vmatprep.subr.bf16.mxu0 %v1270
        %1975 = vmatpush1.bf16.msra.mxu0 %v1269
        %1976 = vmatprep.subr.bf16.mxu0 %v1274
        %1977 = vmatpush1.bf16.msra.mxu0 %v1273
        %1978 = vmatprep.subr.bf16.mxu0 %v1278
        %1979 = vmatpush1.bf16.msra.mxu0 %v1277
        %1980 = vmatprep.subr.bf16.mxu0 %v1282
        %1981 = vmatpush1.bf16.msra.mxu0 %v1281
        %1982 = vmatprep.subr.bf16.mxu0 %v1286
        %1983 = vmatpush1.bf16.msra.mxu0 %v1285
        %1984 = vmatprep.mubr.bf16.mxu0 %v516
        %1985 = vmatmul.mubr.bf16.gmra.mrb[0].mxu0 %v504
        %v1986 = vpop.f32.mrb[0].mxu0
        %v1987 = vadd.f32 %v1944, %v1986
        %v1988 = vpop.f32.mrb[0].mxu0
        %v1989 = vadd.f32 %v1946, %v1988
        %v1990 = vpop.f32.mrb[0].mxu0
        %v1991 = vadd.f32 %v1948, %v1990
        %v1992 = vpop.f32.mrb[0].mxu0
        %v1993 = vadd.f32 %v1950, %v1992
        %1994 = vdwg.mxu0
        %v1995 = vld [vmem:[#allocation4] sm:$0xf]
        %v1996 = vld [vmem:[#allocation6] sm:$0xf]
        %v1998 = vlaneseq
        %v1999 = vshrl.u32 %v1998, 7
        %v2000 = vsub.s32 0, %v1999
        %v2001 = vrot.slane %v1995, %v2000
        %v2002 = vlaneseq
        %v2003 = vshrl.u32 %v2002, 7
        %v2004 = vsub.s32 1, %v2003
        %v2005 = vrot.slane %v1995, %v2004
        %v2006 = vlaneseq
        %v2007 = vshrl.u32 %v2006, 7
        %v2008 = vsub.s32 2, %v2007
        %v2009 = vrot.slane %v1995, %v2008
        %v2010 = vlaneseq
        %v2011 = vshrl.u32 %v2010, 7
        %v2012 = vsub.s32 3, %v2011
        %v2013 = vrot.slane %v1995, %v2012
        %v2018 = vmul.f32 %v1600, %v2001
        %v2019 = vmul.f32 %v1602, %v2005
        %v2020 = vmul.f32 %v1729, %v2009
        %v2021 = vmul.f32 %v1731, %v2013
        %v2022 = vmul.f32 %v1604, %v2001
        %v2023 = vmul.f32 %v1606, %v2005
        %v2024 = vmul.f32 %v1733, %v2009
        %v2025 = vmul.f32 %v1735, %v2013
        %v2027 = vlaneseq
        %v2028 = vshrl.u32 %v2027, 7
        %v2029 = vsub.s32 0, %v2028
        %v2030 = vrot.slane %v1996, %v2029
        %v2031 = vlaneseq
        %v2032 = vshrl.u32 %v2031, 7
        %v2033 = vsub.s32 1, %v2032
        %v2034 = vrot.slane %v1996, %v2033
        %v2035 = vlaneseq
        %v2036 = vshrl.u32 %v2035, 7
        %v2037 = vsub.s32 2, %v2036
        %v2038 = vrot.slane %v1996, %v2037
        %v2039 = vlaneseq
        %v2040 = vshrl.u32 %v2039, 7
        %v2041 = vsub.s32 3, %v2040
        %v2042 = vrot.slane %v1996, %v2041
        %v2047 = vadd.f32 %v2018, %v2030
        %v2048 = vadd.f32 %v2019, %v2034
        %v2049 = vadd.f32 %v2020, %v2038
        %v2050 = vadd.f32 %v2021, %v2042
        %v2051 = vadd.f32 %v2022, %v2030
        %v2052 = vadd.f32 %v2023, %v2034
        %v2053 = vadd.f32 %v2024, %v2038
        %v2054 = vadd.f32 %v2025, %v2042
        %v2055 = vmax.f32 %v2047, 0.0
        %v2056 = vmax.f32 %v2048, 0.0
        %v2057 = vmax.f32 %v2049, 0.0
        %v2058 = vmax.f32 %v2050, 0.0
        %v2059 = vmax.f32 %v2051, 0.0
        %v2060 = vmax.f32 %v2052, 0.0
        %v2061 = vmax.f32 %v2053, 0.0
        %v2062 = vmax.f32 %v2054, 0.0
        %v2063 = vmul.f32 %v1858, %v2001
        %v2064 = vmul.f32 %v1860, %v2005
        %v2065 = vmul.f32 %v1987, %v2009
        %v2066 = vmul.f32 %v1989, %v2013
        %v2067 = vmul.f32 %v1862, %v2001
        %v2068 = vmul.f32 %v1864, %v2005
        %v2069 = vmul.f32 %v1991, %v2009
        %v2070 = vmul.f32 %v1993, %v2013
        %v2071 = vadd.f32 %v2063, %v2030
        %v2072 = vadd.f32 %v2064, %v2034
        %v2073 = vadd.f32 %v2065, %v2038
        %v2074 = vadd.f32 %v2066, %v2042
        %v2075 = vadd.f32 %v2067, %v2030
        %v2076 = vadd.f32 %v2068, %v2034
        %v2077 = vadd.f32 %v2069, %v2038
        %v2078 = vadd.f32 %v2070, %v2042
        %v2079 = vmax.f32 %v2071, 0.0
        %v2080 = vmax.f32 %v2072, 0.0
        %v2081 = vmax.f32 %v2073, 0.0
        %v2082 = vmax.f32 %v2074, 0.0
        %v2083 = vmax.f32 %v2075, 0.0
        %v2084 = vmax.f32 %v2076, 0.0
        %v2085 = vmax.f32 %v2077, 0.0
        %v2086 = vmax.f32 %v2078, 0.0
        %v2087 = vmax.f32 %v2055, %v2079
        %v2088 = vmax.f32 %v2056, %v2080
        %v2089 = vmax.f32 %v2057, %v2081
        %v2090 = vmax.f32 %v2058, %v2082
        %v2091 = vmax.f32 %v2059, %v2083
        %v2092 = vmax.f32 %v2060, %v2084
        %v2093 = vmax.f32 %v2061, %v2085
        %v2094 = vmax.f32 %v2062, %v2086
        %v2095 = vmax.f32 %v2087, %v2089
        %v2096 = vmax.f32 %v2088, %v2090
        %v2097 = vmax.f32 %v2091, %v2093
        %v2098 = vmax.f32 %v2092, %v2094
        %v2099 = vpack.c.bf16 %v2097, %v2095
        %v2100 = vpack.c.bf16 %v2098, %v2096
        %v2103 = vunpack.c.l.b16 %v2099
        %v2104 = vunpack.c.l.b16 %v2100
        %v2105 = vunpack.c.h.b16 %v2099
        %v2106 = vunpack.c.h.b16 %v2100
        %v2107 = vpack.c.b16 %v2104, %v2103
        %v2108 = vpack.c.b16 %v2106, %v2105
        %2111 = vst [vmem:[%s237] sm:$0xff] %v2107
        %2112 = vst [vmem:[%s237 + $0x8] sm:$0xff] %v2108
        %p2113 = scmp.lt.s32.totalorder %s17, 1
        %s2114 = scalar_select %p2113, %s17, 1
        %s2115 = smul.addr %s2114, 4
        %s2116 = smul.addr %s2115, 4
        %s2117 = scalar_lea.vmem %s4, %s2116
        // Predicated region
        $region49: #{cnn2d_forward.5} parent=35 // pred_check
          %p2118 = pneg %p124
        $region50: #{cnn2d_forward.5} parent=35 // pred_check_branch
          %2120 = sbr.rel (%p2118) target = $region52
        $region51: #{cnn2d_forward.5} parent=35 // pred_region
          _
        $region52: #{cnn2d_forward.5} parent=35 // pred_fallthru
          _
      $region36: #{cnn2d_forward.5} parent=5 // pred_fallthru
        _
      %p2121 = scmp.le.s32.totalorder 2, %s12
      // Predicated region
      $region53: #{cnn2d_forward.5} parent=5 // pred_check
        %p2122 = pneg %p2121
      $region54: #{cnn2d_forward.5} parent=5 // pred_check_branch
        %2124 = sbr.rel (%p2122) target = $region56
      $region55: #{cnn2d_forward.5} parent=5 // pred_region
        %s2125 = ssub.s32 %s12, 2
        // Predicated region
        $region57: #{cnn2d_forward.5} parent=55 // pred_check
          %p2126 = pneg %p130
        $region58: #{cnn2d_forward.5} parent=55 // pred_check_branch
          %2128 = sbr.rel (%p2126) target = $region60
        $region59: #{cnn2d_forward.5} parent=55 // pred_region
          %p2129 = scmp.lt.s32.totalorder %s18, 1
          %s2130 = scalar_select %p2129, %s18, 1
          %s2131 = smul.addr %s2130, 4
          %s2132 = smul.addr %s2131, 4
          %s2133 = scalar_lea.vmem %s4, %s2132
        $region60: #{cnn2d_forward.5} parent=55 // pred_fallthru
          _
      $region56: #{cnn2d_forward.5} parent=5 // pred_fallthru
        _
    $region6: #{cnn2d_forward.5} parent=1 // loop_footer
      %s16 = sadd.s32 1, %s12
    $region7: #{cnn2d_forward.5} parent=1 // loop_footer_branch
      %11 = sbr.rel target = $region3
    $region8: #{cnn2d_forward.5} parent=1 // loop_exit
      _
    %2134 = vsyncpa [#allocation3], 1
    %s2135 = scalar_lea.sflag [#allocation3], 1
    %2136 = vsyncpa %s2135, 1
    %2137 = vsyncpa [#allocation5], 1

// kernel: cnn2d_forward.6
$region0: #{cnn2d_forward.6}
  #allocation0 [shape = 'u32[]', space=smem, size = 0x4, offset = 0x4, fixed_abs, tag = 'smem constant byte address 0x4 - core index']
  #allocation1 [shape = 'u32[144,128]{1,0:T(1,128)}', space=vmem, size = 0x12000, scoped, tag = 'internal scratch']
  %s0 = inlined_call_operand.vmem [shape: bf16[2,9,512], index: 0, kind: input, shape index: {}]
  %s1 = inlined_call_operand.vmem [shape: bf16[768,512], index: 1, kind: input, shape index: {}]
  %s2 = inlined_call_operand.vmem [shape: f32[1,512], index: 2, kind: input, shape index: {}]
  %s3 = inlined_call_operand.vmem [shape: f32[1,512], index: 3, kind: input, shape index: {}]
  %s4 = inlined_call_operand.vmem [shape: bf16[2,8,256], index: 4, kind: output, shape index: {}]
  %s5 = sld [smem:[#allocation0]]
  $region49: #{cnn2d_forward.6} parent=0
    _
  %s7 = ssub.s32 1, %s5
  %s8 = scalar_select 0, %s7, %s5
  loop: start=0, step=1, limit=4
  $region2: #{cnn2d_forward.6} parent=0 // loop_pre_header
    _
  $region3: #{cnn2d_forward.6} parent=0 // loop_header
    %s10 = sphi 0, %s14
    %p11 = scmp.ge.s32.totalorder %s10, 4
    %s20 = sphi 0, %s22
    %s23 = sphi 0, %s20
    %s24 = sphi 0, %s23
    %s40 = sphi 0, %s24
    %s44 = sphi 0, %s44
    %s46 = sphi 0, %s44
    %s47 = sphi 0, %s46
    %s61 = sphi 0, %s47
    %s65 = sphi 0, %s65
    %s67 = sphi 0, %s65
    %s68 = sphi 0, %s67
    %s82 = sphi 0, %s68
    %s86 = sphi 0, %s86
    %s88 = sphi 0, %s86
    %s89 = sphi 0, %s88
    %s103 = sphi 0, %s89
    %s109 = sphi 0, %s111
    %s112 = sphi 0, %s109
    %s113 = sphi 0, %s112
    %s129 = sphi 0, %s113
  $region4: #{cnn2d_forward.6} parent=0 // loop_header_branch
    %13 = sbr.rel (%p11) target = $region8
  $region5: #{cnn2d_forward.6} parent=0 // loop_body
    %s15 = ssub.s32 %s10, 1
    %s16 = ssub.s32 %s10, 2
    %s17 = sadd.s32 %s10, 1
    %s18 = ssub.s32 %s10, %s17
    %p19 = scmp.eq.s32.totalorder %s18, 0
    %s21 = sadd.s32 %s20, 1
    %s22 = scalar_select %p19, %s20, %s21
    %p25 = pneg %p19
    %p26 = scmp.eq.s32.totalorder %s10, 1
    %p27 = por %p25, %p26
    %p28 = scmp.ne.s32.totalorder %s20, %s23
    %p29 = scmp.eq.s32.totalorder %s10, 0
    %p30 = por %p28, %p29
    %p31 = scmp.ne.s32.totalorder %s20, %s23
    %p32 = scmp.eq.s32.totalorder %s15, 1
    %p33 = por %p31, %p32
    %p34 = scmp.ne.s32.totalorder %s23, %s24
    %p35 = scmp.eq.s32.totalorder %s15, 0
    %p36 = por %p34, %p35
    %p37 = scmp.ne.s32.totalorder %s23, %s24
    %p38 = scmp.eq.s32.totalorder %s16, 1
    %p39 = por %p37, %p38
    %p41 = scmp.ne.s32.totalorder %s24, %s40
    %p42 = scmp.eq.s32.totalorder %s16, 0
    %p43 = por %p41, %p42
    %s45 = sadd.s32 %s44, 1
    %p48 = scmp.eq.s32.totalorder %s10, 1
    %p49 = scmp.ne.s32.totalorder %s44, %s46
    %p50 = scmp.eq.s32.totalorder %s10, 0
    %p51 = por %p49, %p50
    %p52 = scmp.ne.s32.totalorder %s44, %s46
    %p53 = scmp.eq.s32.totalorder %s15, 1
    %p54 = por %p52, %p53
    %p55 = scmp.ne.s32.totalorder %s46, %s47
    %p56 = scmp.eq.s32.totalorder %s15, 0
    %p57 = por %p55, %p56
    %p58 = scmp.ne.s32.totalorder %s46, %s47
    %p59 = scmp.eq.s32.totalorder %s16, 1
    %p60 = por %p58, %p59
    %p62 = scmp.ne.s32.totalorder %s47, %s61
    %p63 = scmp.eq.s32.totalorder %s16, 0
    %p64 = por %p62, %p63
    %s66 = sadd.s32 %s65, 1
    %p69 = scmp.eq.s32.totalorder %s10, 1
    %p70 = scmp.ne.s32.totalorder %s65, %s67
    %p71 = scmp.eq.s32.totalorder %s10, 0
    %p72 = por %p70, %p71
    %p73 = scmp.ne.s32.totalorder %s65, %s67
    %p74 = scmp.eq.s32.totalorder %s15, 1
    %p75 = por %p73, %p74
    %p76 = scmp.ne.s32.totalorder %s67, %s68
    %p77 = scmp.eq.s32.totalorder %s15, 0
    %p78 = por %p76, %p77
    %p79 = scmp.ne.s32.totalorder %s67, %s68
    %p80 = scmp.eq.s32.totalorder %s16, 1
    %p81 = por %p79, %p80
    %p83 = scmp.ne.s32.totalorder %s68, %s82
    %p84 = scmp.eq.s32.totalorder %s16, 0
    %p85 = por %p83, %p84
    %s87 = sadd.s32 %s86, 1
    %p90 = scmp.eq.s32.totalorder %s10, 1
    %p91 = scmp.ne.s32.totalorder %s86, %s88
    %p92 = scmp.eq.s32.totalorder %s10, 0
    %p93 = por %p91, %p92
    %p94 = scmp.ne.s32.totalorder %s86, %s88
    %p95 = scmp.eq.s32.totalorder %s15, 1
    %p96 = por %p94, %p95
    %p97 = scmp.ne.s32.totalorder %s88, %s89
    %p98 = scmp.eq.s32.totalorder %s15, 0
    %p99 = por %p97, %p98
    %p100 = scmp.ne.s32.totalorder %s88, %s89
    %p101 = scmp.eq.s32.totalorder %s16, 1
    %p102 = por %p100, %p101
    %p104 = scmp.ne.s32.totalorder %s89, %s103
    %p105 = scmp.eq.s32.totalorder %s16, 0
    %p106 = por %p104, %p105
    %s107 = ssub.s32 %s10, %s17
    %p108 = scmp.eq.s32.totalorder %s107, 0
    %s110 = sadd.s32 %s109, 1
    %s111 = scalar_select %p108, %s109, %s110
    %p114 = pneg %p108
    %p115 = scmp.eq.s32.totalorder %s10, 1
    %p116 = por %p114, %p115
    %p117 = scmp.ne.s32.totalorder %s109, %s112
    %p118 = scmp.eq.s32.totalorder %s10, 0
    %p119 = por %p117, %p118
    %p120 = scmp.ne.s32.totalorder %s109, %s112
    %p121 = scmp.eq.s32.totalorder %s15, 1
    %p122 = por %p120, %p121
    %p123 = scmp.ne.s32.totalorder %s112, %s113
    %p124 = scmp.eq.s32.totalorder %s15, 0
    %p125 = por %p123, %p124
    %p126 = scmp.ne.s32.totalorder %s112, %s113
    %p127 = scmp.eq.s32.totalorder %s16, 1
    %p128 = por %p126, %p127
    %p130 = scmp.ne.s32.totalorder %s113, %s129
    %p131 = scmp.eq.s32.totalorder %s16, 0
    %p132 = por %p130, %p131
    %p133 = scmp.le.s32.totalorder 1, %s10
    %p134 = scmp.lt.s32.totalorder %s10, 3
    %p135 = pnand %p133, %p134
    %p136 = pneg %p135
    // Predicated region
    $region9: #{cnn2d_forward.6} parent=5 // pred_check
      _
    $region10: #{cnn2d_forward.6} parent=5 // pred_check_branch
      %138 = sbr.rel (%p135) target = $region12
    $region11: #{cnn2d_forward.6} parent=5 // pred_region
      %s139 = ssub.s32 %s10, 1
      // Predicated region
      $region13: #{cnn2d_forward.6} parent=11 // pred_check
        %p140 = pneg %p57
      $region14: #{cnn2d_forward.6} parent=11 // pred_check_branch
        %142 = sbr.rel (%p140) target = $region16
      $region15: #{cnn2d_forward.6} parent=11 // pred_region
        _
      $region16: #{cnn2d_forward.6} parent=11 // pred_fallthru
        _
      // Predicated region
      $region17: #{cnn2d_forward.6} parent=11 // pred_check
        %p143 = pneg %p78
      $region18: #{cnn2d_forward.6} parent=11 // pred_check_branch
        %145 = sbr.rel (%p143) target = $region20
      $region19: #{cnn2d_forward.6} parent=11 // pred_region
        _
      $region20: #{cnn2d_forward.6} parent=11 // pred_fallthru
        _
      // Predicated region
      $region21: #{cnn2d_forward.6} parent=11 // pred_check
        %p146 = pneg %p99
      $region22: #{cnn2d_forward.6} parent=11 // pred_check_branch
        %148 = sbr.rel (%p146) target = $region24
      $region23: #{cnn2d_forward.6} parent=11 // pred_region
        _
      $region24: #{cnn2d_forward.6} parent=11 // pred_fallthru
        _
    $region12: #{cnn2d_forward.6} parent=5 // pred_fallthru
      _
    %p149 = scmp.lt.s32.totalorder %s10, 2
    // Predicated region
    $region25: #{cnn2d_forward.6} parent=5 // pred_check
      %p150 = pneg %p149
    $region26: #{cnn2d_forward.6} parent=5 // pred_check_branch
      %152 = sbr.rel (%p150) target = $region28
    $region27: #{cnn2d_forward.6} parent=5 // pred_region
      // Predicated region
      $region29: #{cnn2d_forward.6} parent=27 // pred_check
        %p153 = pneg %p30
      $region30: #{cnn2d_forward.6} parent=27 // pred_check_branch
        %155 = sbr.rel (%p153) target = $region32
      $region31: #{cnn2d_forward.6} parent=27 // pred_region
        %p156 = scmp.lt.s32.totalorder %s10, 1
        %s157 = scalar_select %p156, %s10, 1
        %s158 = smul.addr %s157, 8
        %s159 = smul.addr %s158, 4
        %s160 = scalar_lea.vmem %s0, %s159
      $region32: #{cnn2d_forward.6} parent=27 // pred_fallthru
        _
    $region28: #{cnn2d_forward.6} parent=5 // pred_fallthru
      _
    %p161 = scmp.le.s32.totalorder 1, %s10
    %p162 = scmp.lt.s32.totalorder %s10, 3
    %p163 = pnand %p161, %p162
    %p164 = pneg %p163
    // Predicated region
    $region33: #{cnn2d_forward.6} parent=5 // pred_check
      _
    $region34: #{cnn2d_forward.6} parent=5 // pred_check_branch
      %166 = sbr.rel (%p163) target = $region36
    $region35: #{cnn2d_forward.6} parent=5 // pred_region
      %s167 = ssub.s32 %s10, 1
      %p168 = scmp.lt.s32.totalorder %s15, 1
      %s169 = scalar_select %p168, %s15, 1
      %s170 = smul.addr %s169, 8
      %s171 = smul.addr %s170, 4
      %s172 = scalar_lea.vmem %s0, %s171
      %p173 = pneg %p36
      %p174 = pneg %p33
      %p175 = pneg %p57
      %p176 = pneg %p54
      %p177 = pneg %p78
      %p178 = pneg %p75
      %p179 = pneg %p99
      %p180 = pneg %p96
      %p181 = pneg %p125
      %p182 = pneg %p122
      %p183 = scmp.lt.s32.totalorder %s15, 1
      %s184 = scalar_select %p183, %s15, 1
      %s185 = smul.addr %s184, 2
      %s186 = smul.addr %s185, 4
      %s187 = scalar_lea.vmem %s4, %s186
      %p188 = scmp.lt.s32.totalorder %s15, 1
      %s189 = scalar_select %p188, %s15, 1
      %s190 = smul.addr %s189, 8
      %s191 = smul.addr %s190, 4
      %s192 = scalar_lea.vmem %s0, %s191
      %p193 = scmp.lt.s32.totalorder %s15, 1
      %s194 = scalar_select %p193, %s15, 1
      %s195 = smul.addr %s194, 2
      %s196 = smul.addr %s195, 4
      %s197 = scalar_lea.vmem %s4, %s196
      %v198 = vld [vmem:[%s192] sm:$0xff]
      %v199 = vld [vmem:[%s192 + $0x8] sm:$0xff]
      %v200 = vld [vmem:[%s192 + $0x10] sm:$0x11]
      %v201 = vld [vmem:[%s192 + $0x18] sm:$0x11]
      %v202 = vld [vmem:[%s1] sm:$0xff]
      %v203 = vld [vmem:[%s1 + $0x8] sm:$0xff]
      %v204 = vld [vmem:[%s1 + $0x10] sm:$0xff]
      %v205 = vld [vmem:[%s1 + $0x18] sm:$0xff]
      %v206 = vld [vmem:[%s1 + $0x20] sm:$0xff]
      %v207 = vld [vmem:[%s1 + $0x28] sm:$0xff]
      %v208 = vld [vmem:[%s1 + $0x30] sm:$0xff]
      %v209 = vld [vmem:[%s1 + $0x38] sm:$0xff]
      %v210 = vld [vmem:[%s1 + $0x40] sm:$0xff]
      %v211 = vld [vmem:[%s1 + $0x48] sm:$0xff]
      %v212 = vld [vmem:[%s1 + $0x50] sm:$0xff]
      %v213 = vld [vmem:[%s1 + $0x58] sm:$0xff]
      %v214 = vld [vmem:[%s1 + $0x60] sm:$0xff]
      %v215 = vld [vmem:[%s1 + $0x68] sm:$0xff]
      %v216 = vld [vmem:[%s1 + $0x70] sm:$0xff]
      %v217 = vld [vmem:[%s1 + $0x78] sm:$0xff]
      %v218 = vld [vmem:[%s1 + $0x80] sm:$0xff]
      %v219 = vld [vmem:[%s1 + $0x88] sm:$0xff]
      %v220 = vld [vmem:[%s1 + $0x90] sm:$0xff]
      %v221 = vld [vmem:[%s1 + $0x98] sm:$0xff]
      %v222 = vld [vmem:[%s1 + $0xa0] sm:$0xff]
      %v223 = vld [vmem:[%s1 + $0xa8] sm:$0xff]
      %v224 = vld [vmem:[%s1 + $0xb0] sm:$0xff]
      %v225 = vld [vmem:[%s1 + $0xb8] sm:$0xff]
      %v226 = vld [vmem:[%s1 + $0xc0] sm:$0xff]
      %v227 = vld [vmem:[%s1 + $0xc8] sm:$0xff]
      %v228 = vld [vmem:[%s1 + $0xd0] sm:$0xff]
      %v229 = vld [vmem:[%s1 + $0xd8] sm:$0xff]
      %v230 = vld [vmem:[%s1 + $0xe0] sm:$0xff]
      %v231 = vld [vmem:[%s1 + $0xe8] sm:$0xff]
      %v232 = vld [vmem:[%s1 + $0xf0] sm:$0xff]
      %v233 = vld [vmem:[%s1 + $0xf8] sm:$0xff]
      %v234 = vld [vmem:[%s1 + $0x100] sm:$0xff]
      %v235 = vld [vmem:[%s1 + $0x108] sm:$0xff]
      %v236 = vld [vmem:[%s1 + $0x110] sm:$0xff]
      %v237 = vld [vmem:[%s1 + $0x118] sm:$0xff]
      %v238 = vld [vmem:[%s1 + $0x120] sm:$0xff]
      %v239 = vld [vmem:[%s1 + $0x128] sm:$0xff]
      %v240 = vld [vmem:[%s1 + $0x130] sm:$0xff]
      %v241 = vld [vmem:[%s1 + $0x138] sm:$0xff]
      %v242 = vld [vmem:[%s1 + $0x140] sm:$0xff]
      %v243 = vld [vmem:[%s1 + $0x148] sm:$0xff]
      %v244 = vld [vmem:[%s1 + $0x150] sm:$0xff]
      %v245 = vld [vmem:[%s1 + $0x158] sm:$0xff]
      %v246 = vld [vmem:[%s1 + $0x160] sm:$0xff]
      %v247 = vld [vmem:[%s1 + $0x168] sm:$0xff]
      %v248 = vld [vmem:[%s1 + $0x170] sm:$0xff]
      %v249 = vld [vmem:[%s1 + $0x178] sm:$0xff]
      %v250 = vld [vmem:[%s1 + $0x180] sm:$0xff]
      %v251 = vld [vmem:[%s1 + $0x188] sm:$0xff]
      %v252 = vld [vmem:[%s1 + $0x190] sm:$0xff]
      %v253 = vld [vmem:[%s1 + $0x198] sm:$0xff]
      %v254 = vld [vmem:[%s1 + $0x1a0] sm:$0xff]
      %v255 = vld [vmem:[%s1 + $0x1a8] sm:$0xff]
      %v256 = vld [vmem:[%s1 + $0x1b0] sm:$0xff]
      %v257 = vld [vmem:[%s1 + $0x1b8] sm:$0xff]
      %v258 = vld [vmem:[%s1 + $0x1c0] sm:$0xff]
      %v259 = vld [vmem:[%s1 + $0x1c8] sm:$0xff]
      %v260 = vld [vmem:[%s1 + $0x1d0] sm:$0xff]
      %v261 = vld [vmem:[%s1 + $0x1d8] sm:$0xff]
      %v262 = vld [vmem:[%s1 + $0x1e0] sm:$0xff]
      %v263 = vld [vmem:[%s1 + $0x1e8] sm:$0xff]
      %v264 = vld [vmem:[%s1 + $0x1f0] sm:$0xff]
      %v265 = vld [vmem:[%s1 + $0x1f8] sm:$0xff]
      %v266 = vld [vmem:[%s1 + $0x200] sm:$0xff]
      %v267 = vld [vmem:[%s1 + $0x208] sm:$0xff]
      %v268 = vld [vmem:[%s1 + $0x210] sm:$0xff]
      %v269 = vld [vmem:[%s1 + $0x218] sm:$0xff]
      %v270 = vld [vmem:[%s1 + $0x220] sm:$0xff]
      %v271 = vld [vmem:[%s1 + $0x228] sm:$0xff]
      %v272 = vld [vmem:[%s1 + $0x230] sm:$0xff]
      %v273 = vld [vmem:[%s1 + $0x238] sm:$0xff]
      %v274 = vld [vmem:[%s1 + $0x240] sm:$0xff]
      %v275 = vld [vmem:[%s1 + $0x248] sm:$0xff]
      %v276 = vld [vmem:[%s1 + $0x250] sm:$0xff]
      %v277 = vld [vmem:[%s1 + $0x258] sm:$0xff]
      %v278 = vld [vmem:[%s1 + $0x260] sm:$0xff]
      %v279 = vld [vmem:[%s1 + $0x268] sm:$0xff]
      %v280 = vld [vmem:[%s1 + $0x270] sm:$0xff]
      %v281 = vld [vmem:[%s1 + $0x278] sm:$0xff]
      %v282 = vld [vmem:[%s1 + $0x280] sm:$0xff]
      %v283 = vld [vmem:[%s1 + $0x288] sm:$0xff]
      %v284 = vld [vmem:[%s1 + $0x290] sm:$0xff]
      %v285 = vld [vmem:[%s1 + $0x298] sm:$0xff]
      %v286 = vld [vmem:[%s1 + $0x2a0] sm:$0xff]
      %v287 = vld [vmem:[%s1 + $0x2a8] sm:$0xff]
      %v288 = vld [vmem:[%s1 + $0x2b0] sm:$0xff]
      %v289 = vld [vmem:[%s1 + $0x2b8] sm:$0xff]
      %v290 = vld [vmem:[%s1 + $0x2c0] sm:$0xff]
      %v291 = vld [vmem:[%s1 + $0x2c8] sm:$0xff]
      %v292 = vld [vmem:[%s1 + $0x2d0] sm:$0xff]
      %v293 = vld [vmem:[%s1 + $0x2d8] sm:$0xff]
      %v294 = vld [vmem:[%s1 + $0x2e0] sm:$0xff]
      %v295 = vld [vmem:[%s1 + $0x2e8] sm:$0xff]
      %v296 = vld [vmem:[%s1 + $0x2f0] sm:$0xff]
      %v297 = vld [vmem:[%s1 + $0x2f8] sm:$0xff]
      %v298 = vld [vmem:[%s1 + $0x300] sm:$0xff]
      %v299 = vld [vmem:[%s1 + $0x308] sm:$0xff]
      %v300 = vld [vmem:[%s1 + $0x310] sm:$0xff]
      %v301 = vld [vmem:[%s1 + $0x318] sm:$0xff]
      %v302 = vld [vmem:[%s1 + $0x320] sm:$0xff]
      %v303 = vld [vmem:[%s1 + $0x328] sm:$0xff]
      %v304 = vld [vmem:[%s1 + $0x330] sm:$0xff]
      %v305 = vld [vmem:[%s1 + $0x338] sm:$0xff]
      %v306 = vld [vmem:[%s1 + $0x340] sm:$0xff]
      %v307 = vld [vmem:[%s1 + $0x348] sm:$0xff]
      %v308 = vld [vmem:[%s1 + $0x350] sm:$0xff]
      %v309 = vld [vmem:[%s1 + $0x358] sm:$0xff]
      %v310 = vld [vmem:[%s1 + $0x360] sm:$0xff]
      %v311 = vld [vmem:[%s1 + $0x368] sm:$0xff]
      %v312 = vld [vmem:[%s1 + $0x370] sm:$0xff]
      %v313 = vld [vmem:[%s1 + $0x378] sm:$0xff]
      %v314 = vld [vmem:[%s1 + $0x380] sm:$0xff]
      %v315 = vld [vmem:[%s1 + $0x388] sm:$0xff]
      %v316 = vld [vmem:[%s1 + $0x390] sm:$0xff]
      %v317 = vld [vmem:[%s1 + $0x398] sm:$0xff]
      %v318 = vld [vmem:[%s1 + $0x3a0] sm:$0xff]
      %v319 = vld [vmem:[%s1 + $0x3a8] sm:$0xff]
      %v320 = vld [vmem:[%s1 + $0x3b0] sm:$0xff]
      %v321 = vld [vmem:[%s1 + $0x3b8] sm:$0xff]
      %v322 = vld [vmem:[%s1 + $0x3c0] sm:$0xff]
      %v323 = vld [vmem:[%s1 + $0x3c8] sm:$0xff]
      %v324 = vld [vmem:[%s1 + $0x3d0] sm:$0xff]
      %v325 = vld [vmem:[%s1 + $0x3d8] sm:$0xff]
      %v326 = vld [vmem:[%s1 + $0x3e0] sm:$0xff]
      %v327 = vld [vmem:[%s1 + $0x3e8] sm:$0xff]
      %v328 = vld [vmem:[%s1 + $0x3f0] sm:$0xff]
      %v329 = vld [vmem:[%s1 + $0x3f8] sm:$0xff]
      %v330 = vld [vmem:[%s1 + $0x400] sm:$0xff]
      %v331 = vld [vmem:[%s1 + $0x408] sm:$0xff]
      %v332 = vld [vmem:[%s1 + $0x410] sm:$0xff]
      %v333 = vld [vmem:[%s1 + $0x418] sm:$0xff]
      %v334 = vld [vmem:[%s1 + $0x420] sm:$0xff]
      %v335 = vld [vmem:[%s1 + $0x428] sm:$0xff]
      %v336 = vld [vmem:[%s1 + $0x430] sm:$0xff]
      %v337 = vld [vmem:[%s1 + $0x438] sm:$0xff]
      %v338 = vld [vmem:[%s1 + $0x440] sm:$0xff]
      %v339 = vld [vmem:[%s1 + $0x448] sm:$0xff]
      %v340 = vld [vmem:[%s1 + $0x450] sm:$0xff]
      %v341 = vld [vmem:[%s1 + $0x458] sm:$0xff]
      %v342 = vld [vmem:[%s1 + $0x460] sm:$0xff]
      %v343 = vld [vmem:[%s1 + $0x468] sm:$0xff]
      %v344 = vld [vmem:[%s1 + $0x470] sm:$0xff]
      %v345 = vld [vmem:[%s1 + $0x478] sm:$0xff]
      %v346 = vld [vmem:[%s1 + $0x480] sm:$0xff]
      %v347 = vld [vmem:[%s1 + $0x488] sm:$0xff]
      %v348 = vld [vmem:[%s1 + $0x490] sm:$0xff]
      %v349 = vld [vmem:[%s1 + $0x498] sm:$0xff]
      %v350 = vld [vmem:[%s1 + $0x4a0] sm:$0xff]
      %v351 = vld [vmem:[%s1 + $0x4a8] sm:$0xff]
      %v352 = vld [vmem:[%s1 + $0x4b0] sm:$0xff]
      %v353 = vld [vmem:[%s1 + $0x4b8] sm:$0xff]
      %v354 = vld [vmem:[%s1 + $0x4c0] sm:$0xff]
      %v355 = vld [vmem:[%s1 + $0x4c8] sm:$0xff]
      %v356 = vld [vmem:[%s1 + $0x4d0] sm:$0xff]
      %v357 = vld [vmem:[%s1 + $0x4d8] sm:$0xff]
      %v358 = vld [vmem:[%s1 + $0x4e0] sm:$0xff]
      %v359 = vld [vmem:[%s1 + $0x4e8] sm:$0xff]
      %v360 = vld [vmem:[%s1 + $0x4f0] sm:$0xff]
      %v361 = vld [vmem:[%s1 + $0x4f8] sm:$0xff]
      %v362 = vld [vmem:[%s1 + $0x500] sm:$0xff]
      %v363 = vld [vmem:[%s1 + $0x508] sm:$0xff]
      %v364 = vld [vmem:[%s1 + $0x510] sm:$0xff]
      %v365 = vld [vmem:[%s1 + $0x518] sm:$0xff]
      %v366 = vld [vmem:[%s1 + $0x520] sm:$0xff]
      %v367 = vld [vmem:[%s1 + $0x528] sm:$0xff]
      %v368 = vld [vmem:[%s1 + $0x530] sm:$0xff]
      %v369 = vld [vmem:[%s1 + $0x538] sm:$0xff]
      %v370 = vld [vmem:[%s1 + $0x540] sm:$0xff]
      %v371 = vld [vmem:[%s1 + $0x548] sm:$0xff]
      %v372 = vld [vmem:[%s1 + $0x550] sm:$0xff]
      %v373 = vld [vmem:[%s1 + $0x558] sm:$0xff]
      %v374 = vld [vmem:[%s1 + $0x560] sm:$0xff]
      %v375 = vld [vmem:[%s1 + $0x568] sm:$0xff]
      %v376 = vld [vmem:[%s1 + $0x570] sm:$0xff]
      %v377 = vld [vmem:[%s1 + $0x578] sm:$0xff]
      %v378 = vld [vmem:[%s1 + $0x580] sm:$0xff]
      %v379 = vld [vmem:[%s1 + $0x588] sm:$0xff]
      %v380 = vld [vmem:[%s1 + $0x590] sm:$0xff]
      %v381 = vld [vmem:[%s1 + $0x598] sm:$0xff]
      %v382 = vld [vmem:[%s1 + $0x5a0] sm:$0xff]
      %v383 = vld [vmem:[%s1 + $0x5a8] sm:$0xff]
      %v384 = vld [vmem:[%s1 + $0x5b0] sm:$0xff]
      %v385 = vld [vmem:[%s1 + $0x5b8] sm:$0xff]
      %v386 = vld [vmem:[%s1 + $0x5c0] sm:$0xff]
      %v387 = vld [vmem:[%s1 + $0x5c8] sm:$0xff]
      %v388 = vld [vmem:[%s1 + $0x5d0] sm:$0xff]
      %v389 = vld [vmem:[%s1 + $0x5d8] sm:$0xff]
      %v390 = vld [vmem:[%s1 + $0x5e0] sm:$0xff]
      %v391 = vld [vmem:[%s1 + $0x5e8] sm:$0xff]
      %v392 = vld [vmem:[%s1 + $0x5f0] sm:$0xff]
      %v393 = vld [vmem:[%s1 + $0x5f8] sm:$0xff]
      %v396 = vunpack.c.l.b16 %v198
      %v397 = vunpack.c.h.b16 %v198
      %v398 = vunpack.c.l.b16 %v199
      %v399 = vunpack.c.h.b16 %v199
      %v400 = vpack.c.b16 %v396, %v396
      %v401 = vpack.c.b16 %v397, %v397
      %v402 = vpack.c.b16 %v398, %v398
      %v403 = vpack.c.b16 %v399, %v399
      %v409 = vunpack.c.l.b16 %v200
      %v410 = vunpack.c.h.b16 %v200
      %v411 = vpack.c.b16 %v409, %v396
      %v412 = vpack.c.b16 %v410, %v397
      %v414 = vshrl.u32 %v411, 16
      %v416 = vshll.u32 %v411, 16
      %v418 = vrot.slane %v416, 1
      %v419 = vor.u32 %v414, %v418
      %v421 = vshrl.u32 %v412, 16
      %v423 = vshll.u32 %v412, 16
      %v425 = vrot.slane %v423, 1
      %v426 = vor.u32 %v421, %v425
      %v430 = vunpack.c.l.b16 %v201
      %v431 = vunpack.c.h.b16 %v201
      %v432 = vpack.c.b16 %v430, %v398
      %v433 = vpack.c.b16 %v431, %v399
      %v435 = vshrl.u32 %v432, 16
      %v437 = vshll.u32 %v432, 16
      %v439 = vrot.slane %v437, 1
      %v440 = vor.u32 %v435, %v439
      %v442 = vshrl.u32 %v433, 16
      %v444 = vshll.u32 %v433, 16
      %v446 = vrot.slane %v444, 1
      %v447 = vor.u32 %v442, %v446
      %v642 = vunpack.c.l.b16 %v202
      %v643 = vunpack.c.h.b16 %v202
      %v644 = vunpack.c.l.b16 %v203
      %v645 = vunpack.c.h.b16 %v203
      %v646 = vunpack.c.l.b16 %v204
      %v647 = vunpack.c.h.b16 %v204
      %v648 = vunpack.c.l.b16 %v205
      %v649 = vunpack.c.h.b16 %v205
      %v650 = vunpack.c.l.b16 %v206
      %v651 = vunpack.c.h.b16 %v206
      %v652 = vunpack.c.l.b16 %v207
      %v653 = vunpack.c.h.b16 %v207
      %v654 = vunpack.c.l.b16 %v208
      %v655 = vunpack.c.h.b16 %v208
      %v656 = vunpack.c.l.b16 %v209
      %v657 = vunpack.c.h.b16 %v209
      %v658 = vunpack.c.l.b16 %v210
      %v659 = vunpack.c.h.b16 %v210
      %v660 = vunpack.c.l.b16 %v211
      %v661 = vunpack.c.h.b16 %v211
      %v662 = vunpack.c.l.b16 %v212
      %v663 = vunpack.c.h.b16 %v212
      %v664 = vunpack.c.l.b16 %v213
      %v665 = vunpack.c.h.b16 %v213
      %v666 = vunpack.c.l.b16 %v214
      %v667 = vunpack.c.h.b16 %v214
      %v668 = vunpack.c.l.b16 %v215
      %v669 = vunpack.c.h.b16 %v215
      %v670 = vunpack.c.l.b16 %v216
      %v671 = vunpack.c.h.b16 %v216
      %v672 = vunpack.c.l.b16 %v217
      %v673 = vunpack.c.h.b16 %v217
      %v674 = vunpack.c.l.b16 %v218
      %v675 = vunpack.c.h.b16 %v218
      %v676 = vunpack.c.l.b16 %v219
      %v677 = vunpack.c.h.b16 %v219
      %v678 = vunpack.c.l.b16 %v220
      %v679 = vunpack.c.h.b16 %v220
      %v680 = vunpack.c.l.b16 %v221
      %v681 = vunpack.c.h.b16 %v221
      %v682 = vunpack.c.l.b16 %v222
      %v683 = vunpack.c.h.b16 %v222
      %v684 = vunpack.c.l.b16 %v223
      %v685 = vunpack.c.h.b16 %v223
      %v686 = vunpack.c.l.b16 %v224
      %v687 = vunpack.c.h.b16 %v224
      %v688 = vunpack.c.l.b16 %v225
      %v689 = vunpack.c.h.b16 %v225
      %v690 = vunpack.c.l.b16 %v226
      %v691 = vunpack.c.h.b16 %v226
      %v692 = vunpack.c.l.b16 %v227
      %v693 = vunpack.c.h.b16 %v227
      %v694 = vunpack.c.l.b16 %v228
      %v695 = vunpack.c.h.b16 %v228
      %v696 = vunpack.c.l.b16 %v229
      %v697 = vunpack.c.h.b16 %v229
      %v698 = vunpack.c.l.b16 %v230
      %v699 = vunpack.c.h.b16 %v230
      %v700 = vunpack.c.l.b16 %v231
      %v701 = vunpack.c.h.b16 %v231
      %v702 = vunpack.c.l.b16 %v232
      %v703 = vunpack.c.h.b16 %v232
      %v704 = vunpack.c.l.b16 %v233
      %v705 = vunpack.c.h.b16 %v233
      %v706 = vunpack.c.l.b16 %v234
      %v707 = vunpack.c.h.b16 %v234
      %v708 = vunpack.c.l.b16 %v235
      %v709 = vunpack.c.h.b16 %v235
      %v710 = vunpack.c.l.b16 %v236
      %v711 = vunpack.c.h.b16 %v236
      %v712 = vunpack.c.l.b16 %v237
      %v713 = vunpack.c.h.b16 %v237
      %v714 = vunpack.c.l.b16 %v238
      %v715 = vunpack.c.h.b16 %v238
      %v716 = vunpack.c.l.b16 %v239
      %v717 = vunpack.c.h.b16 %v239
      %v718 = vunpack.c.l.b16 %v240
      %v719 = vunpack.c.h.b16 %v240
      %v720 = vunpack.c.l.b16 %v241
      %v721 = vunpack.c.h.b16 %v241
      %v722 = vunpack.c.l.b16 %v242
      %v723 = vunpack.c.h.b16 %v242
      %v724 = vunpack.c.l.b16 %v243
      %v725 = vunpack.c.h.b16 %v243
      %v726 = vunpack.c.l.b16 %v244
      %v727 = vunpack.c.h.b16 %v244
      %v728 = vunpack.c.l.b16 %v245
      %v729 = vunpack.c.h.b16 %v245
      %v730 = vunpack.c.l.b16 %v246
      %v731 = vunpack.c.h.b16 %v246
      %v732 = vunpack.c.l.b16 %v247
      %v733 = vunpack.c.h.b16 %v247
      %v734 = vunpack.c.l.b16 %v248
      %v735 = vunpack.c.h.b16 %v248
      %v736 = vunpack.c.l.b16 %v249
      %v737 = vunpack.c.h.b16 %v249
      %v738 = vunpack.c.l.b16 %v250
      %v739 = vunpack.c.h.b16 %v250
      %v740 = vunpack.c.l.b16 %v251
      %v741 = vunpack.c.h.b16 %v251
      %v742 = vunpack.c.l.b16 %v252
      %v743 = vunpack.c.h.b16 %v252
      %v744 = vunpack.c.l.b16 %v253
      %v745 = vunpack.c.h.b16 %v253
      %v746 = vunpack.c.l.b16 %v254
      %v747 = vunpack.c.h.b16 %v254
      %v748 = vunpack.c.l.b16 %v255
      %v749 = vunpack.c.h.b16 %v255
      %v750 = vunpack.c.l.b16 %v256
      %v751 = vunpack.c.h.b16 %v256
      %v752 = vunpack.c.l.b16 %v257
      %v753 = vunpack.c.h.b16 %v257
      %v754 = vunpack.c.l.b16 %v258
      %v755 = vunpack.c.h.b16 %v258
      %v756 = vunpack.c.l.b16 %v259
      %v757 = vunpack.c.h.b16 %v259
      %v758 = vunpack.c.l.b16 %v260
      %v759 = vunpack.c.h.b16 %v260
      %v760 = vunpack.c.l.b16 %v261
      %v761 = vunpack.c.h.b16 %v261
      %v762 = vunpack.c.l.b16 %v262
      %v763 = vunpack.c.h.b16 %v262
      %v764 = vunpack.c.l.b16 %v263
      %v765 = vunpack.c.h.b16 %v263
      %v766 = vunpack.c.l.b16 %v264
      %v767 = vunpack.c.h.b16 %v264
      %v768 = vunpack.c.l.b16 %v265
      %v769 = vunpack.c.h.b16 %v265
      %v770 = vunpack.c.l.b16 %v266
      %v771 = vunpack.c.h.b16 %v266
      %v772 = vunpack.c.l.b16 %v267
      %v773 = vunpack.c.h.b16 %v267
      %v774 = vunpack.c.l.b16 %v268
      %v775 = vunpack.c.h.b16 %v268
      %v776 = vunpack.c.l.b16 %v269
      %v777 = vunpack.c.h.b16 %v269
      %v778 = vunpack.c.l.b16 %v270
      %v779 = vunpack.c.h.b16 %v270
      %v780 = vunpack.c.l.b16 %v271
      %v781 = vunpack.c.h.b16 %v271
      %v782 = vunpack.c.l.b16 %v272
      %v783 = vunpack.c.h.b16 %v272
      %v784 = vunpack.c.l.b16 %v273
      %v785 = vunpack.c.h.b16 %v273
      %v786 = vunpack.c.l.b16 %v274
      %v787 = vunpack.c.h.b16 %v274
      %v788 = vunpack.c.l.b16 %v275
      %v789 = vunpack.c.h.b16 %v275
      %v790 = vunpack.c.l.b16 %v276
      %v791 = vunpack.c.h.b16 %v276
      %v792 = vunpack.c.l.b16 %v277
      %v793 = vunpack.c.h.b16 %v277
      %v794 = vunpack.c.l.b16 %v278
      %v795 = vunpack.c.h.b16 %v278
      %v796 = vunpack.c.l.b16 %v279
      %v797 = vunpack.c.h.b16 %v279
      %v798 = vunpack.c.l.b16 %v280
      %v799 = vunpack.c.h.b16 %v280
      %v800 = vunpack.c.l.b16 %v281
      %v801 = vunpack.c.h.b16 %v281
      %v802 = vunpack.c.l.b16 %v282
      %v803 = vunpack.c.h.b16 %v282
      %v804 = vunpack.c.l.b16 %v283
      %v805 = vunpack.c.h.b16 %v283
      %v806 = vunpack.c.l.b16 %v284
      %v807 = vunpack.c.h.b16 %v284
      %v808 = vunpack.c.l.b16 %v285
      %v809 = vunpack.c.h.b16 %v285
      %v810 = vunpack.c.l.b16 %v286
      %v811 = vunpack.c.h.b16 %v286
      %v812 = vunpack.c.l.b16 %v287
      %v813 = vunpack.c.h.b16 %v287
      %v814 = vunpack.c.l.b16 %v288
      %v815 = vunpack.c.h.b16 %v288
      %v816 = vunpack.c.l.b16 %v289
      %v817 = vunpack.c.h.b16 %v289
      %v818 = vunpack.c.l.b16 %v290
      %v819 = vunpack.c.h.b16 %v290
      %v820 = vunpack.c.l.b16 %v291
      %v821 = vunpack.c.h.b16 %v291
      %v822 = vunpack.c.l.b16 %v292
      %v823 = vunpack.c.h.b16 %v292
      %v824 = vunpack.c.l.b16 %v293
      %v825 = vunpack.c.h.b16 %v293
      %v826 = vunpack.c.l.b16 %v294
      %v827 = vunpack.c.h.b16 %v294
      %v828 = vunpack.c.l.b16 %v295
      %v829 = vunpack.c.h.b16 %v295
      %v830 = vunpack.c.l.b16 %v296
      %v831 = vunpack.c.h.b16 %v296
      %v832 = vunpack.c.l.b16 %v297
      %v833 = vunpack.c.h.b16 %v297
      %v834 = vunpack.c.l.b16 %v298
      %v835 = vunpack.c.h.b16 %v298
      %v836 = vunpack.c.l.b16 %v299
      %v837 = vunpack.c.h.b16 %v299
      %v838 = vunpack.c.l.b16 %v300
      %v839 = vunpack.c.h.b16 %v300
      %v840 = vunpack.c.l.b16 %v301
      %v841 = vunpack.c.h.b16 %v301
      %v842 = vunpack.c.l.b16 %v302
      %v843 = vunpack.c.h.b16 %v302
      %v844 = vunpack.c.l.b16 %v303
      %v845 = vunpack.c.h.b16 %v303
      %v846 = vunpack.c.l.b16 %v304
      %v847 = vunpack.c.h.b16 %v304
      %v848 = vunpack.c.l.b16 %v305
      %v849 = vunpack.c.h.b16 %v305
      %v850 = vunpack.c.l.b16 %v306
      %v851 = vunpack.c.h.b16 %v306
      %v852 = vunpack.c.l.b16 %v307
      %v853 = vunpack.c.h.b16 %v307
      %v854 = vunpack.c.l.b16 %v308
      %v855 = vunpack.c.h.b16 %v308
      %v856 = vunpack.c.l.b16 %v309
      %v857 = vunpack.c.h.b16 %v309
      %v858 = vunpack.c.l.b16 %v310
      %v859 = vunpack.c.h.b16 %v310
      %v860 = vunpack.c.l.b16 %v311
      %v861 = vunpack.c.h.b16 %v311
      %v862 = vunpack.c.l.b16 %v312
      %v863 = vunpack.c.h.b16 %v312
      %v864 = vunpack.c.l.b16 %v313
      %v865 = vunpack.c.h.b16 %v313
      %v866 = vunpack.c.l.b16 %v314
      %v867 = vunpack.c.h.b16 %v314
      %v868 = vunpack.c.l.b16 %v315
      %v869 = vunpack.c.h.b16 %v315
      %v870 = vunpack.c.l.b16 %v316
      %v871 = vunpack.c.h.b16 %v316
      %v872 = vunpack.c.l.b16 %v317
      %v873 = vunpack.c.h.b16 %v317
      %v874 = vunpack.c.l.b16 %v318
      %v875 = vunpack.c.h.b16 %v318
      %v876 = vunpack.c.l.b16 %v319
      %v877 = vunpack.c.h.b16 %v319
      %v878 = vunpack.c.l.b16 %v320
      %v879 = vunpack.c.h.b16 %v320
      %v880 = vunpack.c.l.b16 %v321
      %v881 = vunpack.c.h.b16 %v321
      %v882 = vunpack.c.l.b16 %v322
      %v883 = vunpack.c.h.b16 %v322
      %v884 = vunpack.c.l.b16 %v323
      %v885 = vunpack.c.h.b16 %v323
      %v886 = vunpack.c.l.b16 %v324
      %v887 = vunpack.c.h.b16 %v324
      %v888 = vunpack.c.l.b16 %v325
      %v889 = vunpack.c.h.b16 %v325
      %v890 = vunpack.c.l.b16 %v326
      %v891 = vunpack.c.h.b16 %v326
      %v892 = vunpack.c.l.b16 %v327
      %v893 = vunpack.c.h.b16 %v327
      %v894 = vunpack.c.l.b16 %v328
      %v895 = vunpack.c.h.b16 %v328
      %v896 = vunpack.c.l.b16 %v329
      %v897 = vunpack.c.h.b16 %v329
      %v898 = vunpack.c.l.b16 %v330
      %v899 = vunpack.c.h.b16 %v330
      %v900 = vunpack.c.l.b16 %v331
      %v901 = vunpack.c.h.b16 %v331
      %v902 = vunpack.c.l.b16 %v332
      %v903 = vunpack.c.h.b16 %v332
      %v904 = vunpack.c.l.b16 %v333
      %v905 = vunpack.c.h.b16 %v333
      %v906 = vunpack.c.l.b16 %v334
      %v907 = vunpack.c.h.b16 %v334
      %v908 = vunpack.c.l.b16 %v335
      %v909 = vunpack.c.h.b16 %v335
      %v910 = vunpack.c.l.b16 %v336
      %v911 = vunpack.c.h.b16 %v336
      %v912 = vunpack.c.l.b16 %v337
      %v913 = vunpack.c.h.b16 %v337
      %v914 = vunpack.c.l.b16 %v338
      %v915 = vunpack.c.h.b16 %v338
      %v916 = vunpack.c.l.b16 %v339
      %v917 = vunpack.c.h.b16 %v339
      %v918 = vunpack.c.l.b16 %v340
      %v919 = vunpack.c.h.b16 %v340
      %v920 = vunpack.c.l.b16 %v341
      %v921 = vunpack.c.h.b16 %v341
      %v922 = vunpack.c.l.b16 %v342
      %v923 = vunpack.c.h.b16 %v342
      %v924 = vunpack.c.l.b16 %v343
      %v925 = vunpack.c.h.b16 %v343
      %v926 = vunpack.c.l.b16 %v344
      %v927 = vunpack.c.h.b16 %v344
      %v928 = vunpack.c.l.b16 %v345
      %v929 = vunpack.c.h.b16 %v345
      %v930 = vunpack.c.l.b16 %v346
      %v931 = vunpack.c.h.b16 %v346
      %v932 = vunpack.c.l.b16 %v347
      %v933 = vunpack.c.h.b16 %v347
      %v934 = vunpack.c.l.b16 %v348
      %v935 = vunpack.c.h.b16 %v348
      %v936 = vunpack.c.l.b16 %v349
      %v937 = vunpack.c.h.b16 %v349
      %v938 = vunpack.c.l.b16 %v350
      %v939 = vunpack.c.h.b16 %v350
      %v940 = vunpack.c.l.b16 %v351
      %v941 = vunpack.c.h.b16 %v351
      %v942 = vunpack.c.l.b16 %v352
      %v943 = vunpack.c.h.b16 %v352
      %v944 = vunpack.c.l.b16 %v353
      %v945 = vunpack.c.h.b16 %v353
      %v946 = vunpack.c.l.b16 %v354
      %v947 = vunpack.c.h.b16 %v354
      %v948 = vunpack.c.l.b16 %v355
      %v949 = vunpack.c.h.b16 %v355
      %v950 = vunpack.c.l.b16 %v356
      %v951 = vunpack.c.h.b16 %v356
      %v952 = vunpack.c.l.b16 %v357
      %v953 = vunpack.c.h.b16 %v357
      %v954 = vunpack.c.l.b16 %v358
      %v955 = vunpack.c.h.b16 %v358
      %v956 = vunpack.c.l.b16 %v359
      %v957 = vunpack.c.h.b16 %v359
      %v958 = vunpack.c.l.b16 %v360
      %v959 = vunpack.c.h.b16 %v360
      %v960 = vunpack.c.l.b16 %v361
      %v961 = vunpack.c.h.b16 %v361
      %v962 = vunpack.c.l.b16 %v362
      %v963 = vunpack.c.h.b16 %v362
      %v964 = vunpack.c.l.b16 %v363
      %v965 = vunpack.c.h.b16 %v363
      %v966 = vunpack.c.l.b16 %v364
      %v967 = vunpack.c.h.b16 %v364
      %v968 = vunpack.c.l.b16 %v365
      %v969 = vunpack.c.h.b16 %v365
      %v970 = vunpack.c.l.b16 %v366
      %v971 = vunpack.c.h.b16 %v366
      %v972 = vunpack.c.l.b16 %v367
      %v973 = vunpack.c.h.b16 %v367
      %v974 = vunpack.c.l.b16 %v368
      %v975 = vunpack.c.h.b16 %v368
      %v976 = vunpack.c.l.b16 %v369
      %v977 = vunpack.c.h.b16 %v369
      %v978 = vunpack.c.l.b16 %v370
      %v979 = vunpack.c.h.b16 %v370
      %v980 = vunpack.c.l.b16 %v371
      %v981 = vunpack.c.h.b16 %v371
      %v982 = vunpack.c.l.b16 %v372
      %v983 = vunpack.c.h.b16 %v372
      %v984 = vunpack.c.l.b16 %v373
      %v985 = vunpack.c.h.b16 %v373
      %v986 = vunpack.c.l.b16 %v374
      %v987 = vunpack.c.h.b16 %v374
      %v988 = vunpack.c.l.b16 %v375
      %v989 = vunpack.c.h.b16 %v375
      %v990 = vunpack.c.l.b16 %v376
      %v991 = vunpack.c.h.b16 %v376
      %v992 = vunpack.c.l.b16 %v377
      %v993 = vunpack.c.h.b16 %v377
      %v994 = vunpack.c.l.b16 %v378
      %v995 = vunpack.c.h.b16 %v378
      %v996 = vunpack.c.l.b16 %v379
      %v997 = vunpack.c.h.b16 %v379
      %v998 = vunpack.c.l.b16 %v380
      %v999 = vunpack.c.h.b16 %v380
      %v1000 = vunpack.c.l.b16 %v381
      %v1001 = vunpack.c.h.b16 %v381
      %v1002 = vunpack.c.l.b16 %v382
      %v1003 = vunpack.c.h.b16 %v382
      %v1004 = vunpack.c.l.b16 %v383
      %v1005 = vunpack.c.h.b16 %v383
      %v1006 = vunpack.c.l.b16 %v384
      %v1007 = vunpack.c.h.b16 %v384
      %v1008 = vunpack.c.l.b16 %v385
      %v1009 = vunpack.c.h.b16 %v385
      %v1010 = vunpack.c.l.b16 %v386
      %v1011 = vunpack.c.h.b16 %v386
      %v1012 = vunpack.c.l.b16 %v387
      %v1013 = vunpack.c.h.b16 %v387
      %v1014 = vunpack.c.l.b16 %v388
      %v1015 = vunpack.c.h.b16 %v388
      %v1016 = vunpack.c.l.b16 %v389
      %v1017 = vunpack.c.h.b16 %v389
      %v1018 = vunpack.c.l.b16 %v390
      %v1019 = vunpack.c.h.b16 %v390
      %v1020 = vunpack.c.l.b16 %v391
      %v1021 = vunpack.c.h.b16 %v391
      %v1022 = vunpack.c.l.b16 %v392
      %v1023 = vunpack.c.h.b16 %v392
      %v1024 = vunpack.c.l.b16 %v393
      %v1025 = vunpack.c.h.b16 %v393
      %v1026 = vpack.c.b16 %v646, %v642
      %v1027 = vpack.c.b16 %v647, %v643
      %v1028 = vpack.c.b16 %v648, %v644
      %v1029 = vpack.c.b16 %v649, %v645
      %v1030 = vpack.c.b16 %v654, %v650
      %v1031 = vpack.c.b16 %v655, %v651
      %v1032 = vpack.c.b16 %v656, %v652
      %v1033 = vpack.c.b16 %v657, %v653
      %v1034 = vpack.c.b16 %v662, %v658
      %v1035 = vpack.c.b16 %v663, %v659
      %v1036 = vpack.c.b16 %v664, %v660
      %v1037 = vpack.c.b16 %v665, %v661
      %v1038 = vpack.c.b16 %v670, %v666
      %v1039 = vpack.c.b16 %v671, %v667
      %v1040 = vpack.c.b16 %v672, %v668
      %v1041 = vpack.c.b16 %v673, %v669
      %v1042 = vpack.c.b16 %v678, %v674
      %v1043 = vpack.c.b16 %v679, %v675
      %v1044 = vpack.c.b16 %v680, %v676
      %v1045 = vpack.c.b16 %v681, %v677
      %v1046 = vpack.c.b16 %v686, %v682
      %v1047 = vpack.c.b16 %v687, %v683
      %v1048 = vpack.c.b16 %v688, %v684
      %v1049 = vpack.c.b16 %v689, %v685
      %v1050 = vpack.c.b16 %v694, %v690
      %v1051 = vpack.c.b16 %v695, %v691
      %v1052 = vpack.c.b16 %v696, %v692
      %v1053 = vpack.c.b16 %v697, %v693
      %v1054 = vpack.c.b16 %v702, %v698
      %v1055 = vpack.c.b16 %v703, %v699
      %v1056 = vpack.c.b16 %v704, %v700
      %v1057 = vpack.c.b16 %v705, %v701
      %v1058 = vpack.c.b16 %v710, %v706
      %v1059 = vpack.c.b16 %v711, %v707
      %v1060 = vpack.c.b16 %v712, %v708
      %v1061 = vpack.c.b16 %v713, %v709
      %v1062 = vpack.c.b16 %v718, %v714
      %v1063 = vpack.c.b16 %v719, %v715
      %v1064 = vpack.c.b16 %v720, %v716
      %v1065 = vpack.c.b16 %v721, %v717
      %v1066 = vpack.c.b16 %v726, %v722
      %v1067 = vpack.c.b16 %v727, %v723
      %v1068 = vpack.c.b16 %v728, %v724
      %v1069 = vpack.c.b16 %v729, %v725
      %v1070 = vpack.c.b16 %v734, %v730
      %v1071 = vpack.c.b16 %v735, %v731
      %v1072 = vpack.c.b16 %v736, %v732
      %v1073 = vpack.c.b16 %v737, %v733
      %v1074 = vpack.c.b16 %v742, %v738
      %v1075 = vpack.c.b16 %v743, %v739
      %v1076 = vpack.c.b16 %v744, %v740
      %v1077 = vpack.c.b16 %v745, %v741
      %v1078 = vpack.c.b16 %v750, %v746
      %v1079 = vpack.c.b16 %v751, %v747
      %v1080 = vpack.c.b16 %v752, %v748
      %v1081 = vpack.c.b16 %v753, %v749
      %v1082 = vpack.c.b16 %v758, %v754
      %v1083 = vpack.c.b16 %v759, %v755
      %v1084 = vpack.c.b16 %v760, %v756
      %v1085 = vpack.c.b16 %v761, %v757
      %v1086 = vpack.c.b16 %v766, %v762
      %v1087 = vpack.c.b16 %v767, %v763
      %v1088 = vpack.c.b16 %v768, %v764
      %v1089 = vpack.c.b16 %v769, %v765
      %v1090 = vpack.c.b16 %v774, %v770
      %v1091 = vpack.c.b16 %v775, %v771
      %v1092 = vpack.c.b16 %v776, %v772
      %v1093 = vpack.c.b16 %v777, %v773
      %v1094 = vpack.c.b16 %v782, %v778
      %v1095 = vpack.c.b16 %v783, %v779
      %v1096 = vpack.c.b16 %v784, %v780
      %v1097 = vpack.c.b16 %v785, %v781
      %v1098 = vpack.c.b16 %v790, %v786
      %v1099 = vpack.c.b16 %v791, %v787
      %v1100 = vpack.c.b16 %v792, %v788
      %v1101 = vpack.c.b16 %v793, %v789
      %v1102 = vpack.c.b16 %v798, %v794
      %v1103 = vpack.c.b16 %v799, %v795
      %v1104 = vpack.c.b16 %v800, %v796
      %v1105 = vpack.c.b16 %v801, %v797
      %v1106 = vpack.c.b16 %v806, %v802
      %v1107 = vpack.c.b16 %v807, %v803
      %v1108 = vpack.c.b16 %v808, %v804
      %v1109 = vpack.c.b16 %v809, %v805
      %v1110 = vpack.c.b16 %v814, %v810
      %v1111 = vpack.c.b16 %v815, %v811
      %v1112 = vpack.c.b16 %v816, %v812
      %v1113 = vpack.c.b16 %v817, %v813
      %v1114 = vpack.c.b16 %v822, %v818
      %v1115 = vpack.c.b16 %v823, %v819
      %v1116 = vpack.c.b16 %v824, %v820
      %v1117 = vpack.c.b16 %v825, %v821
      %v1118 = vpack.c.b16 %v830, %v826
      %v1119 = vpack.c.b16 %v831, %v827
      %v1120 = vpack.c.b16 %v832, %v828
      %v1121 = vpack.c.b16 %v833, %v829
      %v1122 = vpack.c.b16 %v838, %v834
      %v1123 = vpack.c.b16 %v839, %v835
      %v1124 = vpack.c.b16 %v840, %v836
      %v1125 = vpack.c.b16 %v841, %v837
      %v1126 = vpack.c.b16 %v846, %v842
      %v1127 = vpack.c.b16 %v847, %v843
      %v1128 = vpack.c.b16 %v848, %v844
      %v1129 = vpack.c.b16 %v849, %v845
      %v1130 = vpack.c.b16 %v854, %v850
      %v1131 = vpack.c.b16 %v855, %v851
      %v1132 = vpack.c.b16 %v856, %v852
      %v1133 = vpack.c.b16 %v857, %v853
      %v1134 = vpack.c.b16 %v862, %v858
      %v1135 = vpack.c.b16 %v863, %v859
      %v1136 = vpack.c.b16 %v864, %v860
      %v1137 = vpack.c.b16 %v865, %v861
      %v1138 = vpack.c.b16 %v870, %v866
      %v1139 = vpack.c.b16 %v871, %v867
      %v1140 = vpack.c.b16 %v872, %v868
      %v1141 = vpack.c.b16 %v873, %v869
      %v1142 = vpack.c.b16 %v878, %v874
      %v1143 = vpack.c.b16 %v879, %v875
      %v1144 = vpack.c.b16 %v880, %v876
      %v1145 = vpack.c.b16 %v881, %v877
      %v1146 = vpack.c.b16 %v886, %v882
      %v1147 = vpack.c.b16 %v887, %v883
      %v1148 = vpack.c.b16 %v888, %v884
      %v1149 = vpack.c.b16 %v889, %v885
      %v1150 = vpack.c.b16 %v894, %v890
      %v1151 = vpack.c.b16 %v895, %v891
      %v1152 = vpack.c.b16 %v896, %v892
      %v1153 = vpack.c.b16 %v897, %v893
      %v1154 = vpack.c.b16 %v902, %v898
      %v1155 = vpack.c.b16 %v903, %v899
      %v1156 = vpack.c.b16 %v904, %v900
      %v1157 = vpack.c.b16 %v905, %v901
      %v1158 = vpack.c.b16 %v910, %v906
      %v1159 = vpack.c.b16 %v911, %v907
      %v1160 = vpack.c.b16 %v912, %v908
      %v1161 = vpack.c.b16 %v913, %v909
      %v1162 = vpack.c.b16 %v918, %v914
      %v1163 = vpack.c.b16 %v919, %v915
      %v1164 = vpack.c.b16 %v920, %v916
      %v1165 = vpack.c.b16 %v921, %v917
      %v1166 = vpack.c.b16 %v926, %v922
      %v1167 = vpack.c.b16 %v927, %v923
      %v1168 = vpack.c.b16 %v928, %v924
      %v1169 = vpack.c.b16 %v929, %v925
      %v1170 = vpack.c.b16 %v934, %v930
      %v1171 = vpack.c.b16 %v935, %v931
      %v1172 = vpack.c.b16 %v936, %v932
      %v1173 = vpack.c.b16 %v937, %v933
      %v1174 = vpack.c.b16 %v942, %v938
      %v1175 = vpack.c.b16 %v943, %v939
      %v1176 = vpack.c.b16 %v944, %v940
      %v1177 = vpack.c.b16 %v945, %v941
      %v1178 = vpack.c.b16 %v950, %v946
      %v1179 = vpack.c.b16 %v951, %v947
      %v1180 = vpack.c.b16 %v952, %v948
      %v1181 = vpack.c.b16 %v953, %v949
      %v1182 = vpack.c.b16 %v958, %v954
      %v1183 = vpack.c.b16 %v959, %v955
      %v1184 = vpack.c.b16 %v960, %v956
      %v1185 = vpack.c.b16 %v961, %v957
      %v1186 = vpack.c.b16 %v966, %v962
      %v1187 = vpack.c.b16 %v967, %v963
      %v1188 = vpack.c.b16 %v968, %v964
      %v1189 = vpack.c.b16 %v969, %v965
      %v1190 = vpack.c.b16 %v974, %v970
      %v1191 = vpack.c.b16 %v975, %v971
      %v1192 = vpack.c.b16 %v976, %v972
      %v1193 = vpack.c.b16 %v977, %v973
      %v1194 = vpack.c.b16 %v982, %v978
      %v1195 = vpack.c.b16 %v983, %v979
      %v1196 = vpack.c.b16 %v984, %v980
      %v1197 = vpack.c.b16 %v985, %v981
      %v1198 = vpack.c.b16 %v990, %v986
      %v1199 = vpack.c.b16 %v991, %v987
      %v1200 = vpack.c.b16 %v992, %v988
      %v1201 = vpack.c.b16 %v993, %v989
      %v1202 = vpack.c.b16 %v998, %v994
      %v1203 = vpack.c.b16 %v999, %v995
      %v1204 = vpack.c.b16 %v1000, %v996
      %v1205 = vpack.c.b16 %v1001, %v997
      %v1206 = vpack.c.b16 %v1006, %v1002
      %v1207 = vpack.c.b16 %v1007, %v1003
      %v1208 = vpack.c.b16 %v1008, %v1004
      %v1209 = vpack.c.b16 %v1009, %v1005
      %v1210 = vpack.c.b16 %v1014, %v1010
      %v1211 = vpack.c.b16 %v1015, %v1011
      %v1212 = vpack.c.b16 %v1016, %v1012
      %v1213 = vpack.c.b16 %v1017, %v1013
      %v1214 = vpack.c.b16 %v1022, %v1018
      %v1215 = vpack.c.b16 %v1023, %v1019
      %v1216 = vpack.c.b16 %v1024, %v1020
      %v1217 = vpack.c.b16 %v1025, %v1021
      %1410 = vmatprep.subr.bf16.mxu0 %v1027
      %1411 = vmatpush1.bf16.msra.mxu0 %v1026
      %1412 = vmatprep.subr.bf16.mxu0 %v1031
      %1413 = vmatpush1.bf16.msra.mxu0 %v1030
      %1414 = vmatprep.subr.bf16.mxu0 %v1035
      %1415 = vmatpush1.bf16.msra.mxu0 %v1034
      %1416 = vmatprep.subr.bf16.mxu0 %v1039
      %1417 = vmatpush1.bf16.msra.mxu0 %v1038
      %1418 = vmatprep.subr.bf16.mxu0 %v1043
      %1419 = vmatpush1.bf16.msra.mxu0 %v1042
      %1420 = vmatprep.subr.bf16.mxu0 %v1047
      %1421 = vmatpush1.bf16.msra.mxu0 %v1046
      %1422 = vmatprep.subr.bf16.mxu0 %v1051
      %1423 = vmatpush1.bf16.msra.mxu0 %v1050
      %1424 = vmatprep.subr.bf16.mxu0 %v1055
      %1425 = vmatpush1.bf16.msra.mxu0 %v1054
      %1426 = vmatprep.subr.bf16.mxu0 %v1059
      %1427 = vmatpush1.bf16.msra.mxu0 %v1058
      %1428 = vmatprep.subr.bf16.mxu0 %v1063
      %1429 = vmatpush1.bf16.msra.mxu0 %v1062
      %1430 = vmatprep.subr.bf16.mxu0 %v1067
      %1431 = vmatpush1.bf16.msra.mxu0 %v1066
      %1432 = vmatprep.subr.bf16.mxu0 %v1071
      %1433 = vmatpush1.bf16.msra.mxu0 %v1070
      %1434 = vmatprep.subr.bf16.mxu0 %v1075
      %1435 = vmatpush1.bf16.msra.mxu0 %v1074
      %1436 = vmatprep.subr.bf16.mxu0 %v1079
      %1437 = vmatpush1.bf16.msra.mxu0 %v1078
      %1438 = vmatprep.subr.bf16.mxu0 %v1083
      %1439 = vmatpush1.bf16.msra.mxu0 %v1082
      %1440 = vmatprep.subr.bf16.mxu0 %v1087
      %1441 = vmatpush1.bf16.msra.mxu0 %v1086
      %1442 = vmatprep.mubr.bf16.mxu0 %v401
      %1443 = vmatmul.mubr.bf16.gmra.mrb[0].mxu0 %v400
      %v1444 = vpop.f32.mrb[0].mxu0
      %v1445 = vadd.f32 0.0, %v1444
      %v1446 = vpop.f32.mrb[0].mxu0
      %v1447 = vadd.f32 0.0, %v1446
      %v1448 = vpop.f32.mrb[0].mxu0
      %v1449 = vpop.f32.mrb[0].mxu0
      %1450 = vdwg.mxu0
      %1451 = vmatprep.subr.bf16.mxu0 %v1091
      %1452 = vmatpush1.bf16.msra.mxu0 %v1090
      %1453 = vmatprep.subr.bf16.mxu0 %v1095
      %1454 = vmatpush1.bf16.msra.mxu0 %v1094
      %1455 = vmatprep.subr.bf16.mxu0 %v1099
      %1456 = vmatpush1.bf16.msra.mxu0 %v1098
      %1457 = vmatprep.subr.bf16.mxu0 %v1103
      %1458 = vmatpush1.bf16.msra.mxu0 %v1102
      %1459 = vmatprep.subr.bf16.mxu0 %v1107
      %1460 = vmatpush1.bf16.msra.mxu0 %v1106
      %1461 = vmatprep.subr.bf16.mxu0 %v1111
      %1462 = vmatpush1.bf16.msra.mxu0 %v1110
      %1463 = vmatprep.subr.bf16.mxu0 %v1115
      %1464 = vmatpush1.bf16.msra.mxu0 %v1114
      %1465 = vmatprep.subr.bf16.mxu0 %v1119
      %1466 = vmatpush1.bf16.msra.mxu0 %v1118
      %1467 = vmatprep.subr.bf16.mxu0 %v1123
      %1468 = vmatpush1.bf16.msra.mxu0 %v1122
      %1469 = vmatprep.subr.bf16.mxu0 %v1127
      %1470 = vmatpush1.bf16.msra.mxu0 %v1126
      %1471 = vmatprep.subr.bf16.mxu0 %v1131
      %1472 = vmatpush1.bf16.msra.mxu0 %v1130
      %1473 = vmatprep.subr.bf16.mxu0 %v1135
      %1474 = vmatpush1.bf16.msra.mxu0 %v1134
      %1475 = vmatprep.subr.bf16.mxu0 %v1139
      %1476 = vmatpush1.bf16.msra.mxu0 %v1138
      %1477 = vmatprep.subr.bf16.mxu0 %v1143
      %1478 = vmatpush1.bf16.msra.mxu0 %v1142
      %1479 = vmatprep.subr.bf16.mxu0 %v1147
      %1480 = vmatpush1.bf16.msra.mxu0 %v1146
      %1481 = vmatprep.subr.bf16.mxu0 %v1151
      %1482 = vmatpush1.bf16.msra.mxu0 %v1150
      %1483 = vmatprep.mubr.bf16.mxu0 %v403
      %1484 = vmatmul.mubr.bf16.gmra.mrb[0].mxu0 %v402
      %v1485 = vpop.f32.mrb[0].mxu0
      %v1486 = vadd.f32 %v1445, %v1485
      %v1487 = vpop.f32.mrb[0].mxu0
      %v1488 = vadd.f32 %v1447, %v1487
      %v1489 = vpop.f32.mrb[0].mxu0
      %v1490 = vpop.f32.mrb[0].mxu0
      %1491 = vdwg.mxu0
      %1492 = vmatprep.subr.bf16.mxu0 %v1155
      %1493 = vmatpush1.bf16.msra.mxu0 %v1154
      %1494 = vmatprep.subr.bf16.mxu0 %v1159
      %1495 = vmatpush1.bf16.msra.mxu0 %v1158
      %1496 = vmatprep.subr.bf16.mxu0 %v1163
      %1497 = vmatpush1.bf16.msra.mxu0 %v1162
      %1498 = vmatprep.subr.bf16.mxu0 %v1167
      %1499 = vmatpush1.bf16.msra.mxu0 %v1166
      %1500 = vmatprep.subr.bf16.mxu0 %v1171
      %1501 = vmatpush1.bf16.msra.mxu0 %v1170
      %1502 = vmatprep.subr.bf16.mxu0 %v1175
      %1503 = vmatpush1.bf16.msra.mxu0 %v1174
      %1504 = vmatprep.subr.bf16.mxu0 %v1179
      %1505 = vmatpush1.bf16.msra.mxu0 %v1178
      %1506 = vmatprep.subr.bf16.mxu0 %v1183
      %1507 = vmatpush1.bf16.msra.mxu0 %v1182
      %1508 = vmatprep.subr.bf16.mxu0 %v1187
      %1509 = vmatpush1.bf16.msra.mxu0 %v1186
      %1510 = vmatprep.subr.bf16.mxu0 %v1191
      %1511 = vmatpush1.bf16.msra.mxu0 %v1190
      %1512 = vmatprep.subr.bf16.mxu0 %v1195
      %1513 = vmatpush1.bf16.msra.mxu0 %v1194
      %1514 = vmatprep.subr.bf16.mxu0 %v1199
      %1515 = vmatpush1.bf16.msra.mxu0 %v1198
      %1516 = vmatprep.subr.bf16.mxu0 %v1203
      %1517 = vmatpush1.bf16.msra.mxu0 %v1202
      %1518 = vmatprep.subr.bf16.mxu0 %v1207
      %1519 = vmatpush1.bf16.msra.mxu0 %v1206
      %1520 = vmatprep.subr.bf16.mxu0 %v1211
      %1521 = vmatpush1.bf16.msra.mxu0 %v1210
      %1522 = vmatprep.subr.bf16.mxu0 %v1215
      %1523 = vmatpush1.bf16.msra.mxu0 %v1214
      %1524 = vmatprep.mubr.bf16.mxu0 %v426
      %1525 = vmatmul.mubr.bf16.gmra.mrb[0].mxu0 %v419
      %v1526 = vpop.f32.mrb[0].mxu0
      %v1527 = vadd.f32 %v1486, %v1526
      %v1528 = vpop.f32.mrb[0].mxu0
      %v1529 = vadd.f32 %v1488, %v1528
      %v1530 = vpop.f32.mrb[0].mxu0
      %v1531 = vpop.f32.mrb[0].mxu0
      %1532 = vdwg.mxu0
      %1533 = vmatprep.subr.bf16.mxu0 %v1029
      %1534 = vmatpush1.bf16.msra.mxu0 %v1028
      %1535 = vmatprep.subr.bf16.mxu0 %v1033
      %1536 = vmatpush1.bf16.msra.mxu0 %v1032
      %1537 = vmatprep.subr.bf16.mxu0 %v1037
      %1538 = vmatpush1.bf16.msra.mxu0 %v1036
      %1539 = vmatprep.subr.bf16.mxu0 %v1041
      %1540 = vmatpush1.bf16.msra.mxu0 %v1040
      %1541 = vmatprep.subr.bf16.mxu0 %v1045
      %1542 = vmatpush1.bf16.msra.mxu0 %v1044
      %1543 = vmatprep.subr.bf16.mxu0 %v1049
      %1544 = vmatpush1.bf16.msra.mxu0 %v1048
      %1545 = vmatprep.subr.bf16.mxu0 %v1053
      %1546 = vmatpush1.bf16.msra.mxu0 %v1052
      %1547 = vmatprep.subr.bf16.mxu0 %v1057
      %1548 = vmatpush1.bf16.msra.mxu0 %v1056
      %1549 = vmatprep.subr.bf16.mxu0 %v1061
      %1550 = vmatpush1.bf16.msra.mxu0 %v1060
      %1551 = vmatprep.subr.bf16.mxu0 %v1065
      %1552 = vmatpush1.bf16.msra.mxu0 %v1064
      %1553 = vmatprep.subr.bf16.mxu0 %v1069
      %1554 = vmatpush1.bf16.msra.mxu0 %v1068
      %1555 = vmatprep.subr.bf16.mxu0 %v1073
      %1556 = vmatpush1.bf16.msra.mxu0 %v1072
      %1557 = vmatprep.subr.bf16.mxu0 %v1077
      %1558 = vmatpush1.bf16.msra.mxu0 %v1076
      %1559 = vmatprep.subr.bf16.mxu0 %v1081
      %1560 = vmatpush1.bf16.msra.mxu0 %v1080
      %1561 = vmatprep.subr.bf16.mxu0 %v1085
      %1562 = vmatpush1.bf16.msra.mxu0 %v1084
      %1563 = vmatprep.subr.bf16.mxu0 %v1089
      %1564 = vmatpush1.bf16.msra.mxu0 %v1088
      %1565 = vmatprep.mubr.bf16.mxu0 %v401
      %1566 = vmatmul.mubr.bf16.gmra.mrb[0].mxu0 %v400
      %v1567 = vpop.f32.mrb[0].mxu0
      %v1568 = vadd.f32 0.0, %v1567
      %v1569 = vpop.f32.mrb[0].mxu0
      %v1570 = vadd.f32 0.0, %v1569
      %v1571 = vpop.f32.mrb[0].mxu0
      %v1572 = vpop.f32.mrb[0].mxu0
      %1573 = vdwg.mxu0
      %1574 = vmatprep.subr.bf16.mxu0 %v1093
      %1575 = vmatpush1.bf16.msra.mxu0 %v1092
      %1576 = vmatprep.subr.bf16.mxu0 %v1097
      %1577 = vmatpush1.bf16.msra.mxu0 %v1096
      %1578 = vmatprep.subr.bf16.mxu0 %v1101
      %1579 = vmatpush1.bf16.msra.mxu0 %v1100
      %1580 = vmatprep.subr.bf16.mxu0 %v1105
      %1581 = vmatpush1.bf16.msra.mxu0 %v1104
      %1582 = vmatprep.subr.bf16.mxu0 %v1109
      %1583 = vmatpush1.bf16.msra.mxu0 %v1108
      %1584 = vmatprep.subr.bf16.mxu0 %v1113
      %1585 = vmatpush1.bf16.msra.mxu0 %v1112
      %1586 = vmatprep.subr.bf16.mxu0 %v1117
      %1587 = vmatpush1.bf16.msra.mxu0 %v1116
      %1588 = vmatprep.subr.bf16.mxu0 %v1121
      %1589 = vmatpush1.bf16.msra.mxu0 %v1120
      %1590 = vmatprep.subr.bf16.mxu0 %v1125
      %1591 = vmatpush1.bf16.msra.mxu0 %v1124
      %1592 = vmatprep.subr.bf16.mxu0 %v1129
      %1593 = vmatpush1.bf16.msra.mxu0 %v1128
      %1594 = vmatprep.subr.bf16.mxu0 %v1133
      %1595 = vmatpush1.bf16.msra.mxu0 %v1132
      %1596 = vmatprep.subr.bf16.mxu0 %v1137
      %1597 = vmatpush1.bf16.msra.mxu0 %v1136
      %1598 = vmatprep.subr.bf16.mxu0 %v1141
      %1599 = vmatpush1.bf16.msra.mxu0 %v1140
      %1600 = vmatprep.subr.bf16.mxu0 %v1145
      %1601 = vmatpush1.bf16.msra.mxu0 %v1144
      %1602 = vmatprep.subr.bf16.mxu0 %v1149
      %1603 = vmatpush1.bf16.msra.mxu0 %v1148
      %1604 = vmatprep.subr.bf16.mxu0 %v1153
      %1605 = vmatpush1.bf16.msra.mxu0 %v1152
      %1606 = vmatprep.mubr.bf16.mxu0 %v403
      %1607 = vmatmul.mubr.bf16.gmra.mrb[0].mxu0 %v402
      %v1608 = vpop.f32.mrb[0].mxu0
      %v1609 = vadd.f32 %v1568, %v1608
      %v1610 = vpop.f32.mrb[0].mxu0
      %v1611 = vadd.f32 %v1570, %v1610
      %v1612 = vpop.f32.mrb[0].mxu0
      %v1613 = vpop.f32.mrb[0].mxu0
      %1614 = vdwg.mxu0
      %1615 = vmatprep.subr.bf16.mxu0 %v1157
      %1616 = vmatpush1.bf16.msra.mxu0 %v1156
      %1617 = vmatprep.subr.bf16.mxu0 %v1161
      %1618 = vmatpush1.bf16.msra.mxu0 %v1160
      %1619 = vmatprep.subr.bf16.mxu0 %v1165
      %1620 = vmatpush1.bf16.msra.mxu0 %v1164
      %1621 = vmatprep.subr.bf16.mxu0 %v1169
      %1622 = vmatpush1.bf16.msra.mxu0 %v1168
      %1623 = vmatprep.subr.bf16.mxu0 %v1173
      %1624 = vmatpush1.bf16.msra.mxu0 %v1172
      %1625 = vmatprep.subr.bf16.mxu0 %v1177
      %1626 = vmatpush1.bf16.msra.mxu0 %v1176
      %1627 = vmatprep.subr.bf16.mxu0 %v1181
      %1628 = vmatpush1.bf16.msra.mxu0 %v1180
      %1629 = vmatprep.subr.bf16.mxu0 %v1185
      %1630 = vmatpush1.bf16.msra.mxu0 %v1184
      %1631 = vmatprep.subr.bf16.mxu0 %v1189
      %1632 = vmatpush1.bf16.msra.mxu0 %v1188
      %1633 = vmatprep.subr.bf16.mxu0 %v1193
      %1634 = vmatpush1.bf16.msra.mxu0 %v1192
      %1635 = vmatprep.subr.bf16.mxu0 %v1197
      %1636 = vmatpush1.bf16.msra.mxu0 %v1196
      %1637 = vmatprep.subr.bf16.mxu0 %v1201
      %1638 = vmatpush1.bf16.msra.mxu0 %v1200
      %1639 = vmatprep.subr.bf16.mxu0 %v1205
      %1640 = vmatpush1.bf16.msra.mxu0 %v1204
      %1641 = vmatprep.subr.bf16.mxu0 %v1209
      %1642 = vmatpush1.bf16.msra.mxu0 %v1208
      %1643 = vmatprep.subr.bf16.mxu0 %v1213
      %1644 = vmatpush1.bf16.msra.mxu0 %v1212
      %1645 = vmatprep.subr.bf16.mxu0 %v1217
      %1646 = vmatpush1.bf16.msra.mxu0 %v1216
      %1647 = vmatprep.mubr.bf16.mxu0 %v426
      %1648 = vmatmul.mubr.bf16.gmra.mrb[0].mxu0 %v419
      %v1649 = vpop.f32.mrb[0].mxu0
      %v1650 = vadd.f32 %v1609, %v1649
      %v1651 = vpop.f32.mrb[0].mxu0
      %v1652 = vadd.f32 %v1611, %v1651
      %v1653 = vpop.f32.mrb[0].mxu0
      %v1654 = vpop.f32.mrb[0].mxu0
      %1655 = vdwg.mxu0
      %1656 = vmatprep.subr.bf16.mxu0 %v1027
      %1657 = vmatpush1.bf16.msra.mxu0 %v1026
      %1658 = vmatprep.subr.bf16.mxu0 %v1031
      %1659 = vmatpush1.bf16.msra.mxu0 %v1030
      %1660 = vmatprep.subr.bf16.mxu0 %v1035
      %1661 = vmatpush1.bf16.msra.mxu0 %v1034
      %1662 = vmatprep.subr.bf16.mxu0 %v1039
      %1663 = vmatpush1.bf16.msra.mxu0 %v1038
      %1664 = vmatprep.subr.bf16.mxu0 %v1043
      %1665 = vmatpush1.bf16.msra.mxu0 %v1042
      %1666 = vmatprep.subr.bf16.mxu0 %v1047
      %1667 = vmatpush1.bf16.msra.mxu0 %v1046
      %1668 = vmatprep.subr.bf16.mxu0 %v1051
      %1669 = vmatpush1.bf16.msra.mxu0 %v1050
      %1670 = vmatprep.subr.bf16.mxu0 %v1055
      %1671 = vmatpush1.bf16.msra.mxu0 %v1054
      %1672 = vmatprep.subr.bf16.mxu0 %v1059
      %1673 = vmatpush1.bf16.msra.mxu0 %v1058
      %1674 = vmatprep.subr.bf16.mxu0 %v1063
      %1675 = vmatpush1.bf16.msra.mxu0 %v1062
      %1676 = vmatprep.subr.bf16.mxu0 %v1067
      %1677 = vmatpush1.bf16.msra.mxu0 %v1066
      %1678 = vmatprep.subr.bf16.mxu0 %v1071
      %1679 = vmatpush1.bf16.msra.mxu0 %v1070
      %1680 = vmatprep.subr.bf16.mxu0 %v1075
      %1681 = vmatpush1.bf16.msra.mxu0 %v1074
      %1682 = vmatprep.subr.bf16.mxu0 %v1079
      %1683 = vmatpush1.bf16.msra.mxu0 %v1078
      %1684 = vmatprep.subr.bf16.mxu0 %v1083
      %1685 = vmatpush1.bf16.msra.mxu0 %v1082
      %1686 = vmatprep.subr.bf16.mxu0 %v1087
      %1687 = vmatpush1.bf16.msra.mxu0 %v1086
      %1688 = vmatprep.mubr.bf16.mxu0 %v403
      %1689 = vmatmul.mubr.bf16.gmra.mrb[0].mxu0 %v402
      %v1690 = vpop.f32.mrb[0].mxu0
      %v1691 = vadd.f32 0.0, %v1690
      %v1692 = vpop.f32.mrb[0].mxu0
      %v1693 = vadd.f32 0.0, %v1692
      %v1694 = vpop.f32.mrb[0].mxu0
      %v1695 = vpop.f32.mrb[0].mxu0
      %1696 = vdwg.mxu0
      %1697 = vmatprep.subr.bf16.mxu0 %v1091
      %1698 = vmatpush1.bf16.msra.mxu0 %v1090
      %1699 = vmatprep.subr.bf16.mxu0 %v1095
      %1700 = vmatpush1.bf16.msra.mxu0 %v1094
      %1701 = vmatprep.subr.bf16.mxu0 %v1099
      %1702 = vmatpush1.bf16.msra.mxu0 %v1098
      %1703 = vmatprep.subr.bf16.mxu0 %v1103
      %1704 = vmatpush1.bf16.msra.mxu0 %v1102
      %1705 = vmatprep.subr.bf16.mxu0 %v1107
      %1706 = vmatpush1.bf16.msra.mxu0 %v1106
      %1707 = vmatprep.subr.bf16.mxu0 %v1111
      %1708 = vmatpush1.bf16.msra.mxu0 %v1110
      %1709 = vmatprep.subr.bf16.mxu0 %v1115
      %1710 = vmatpush1.bf16.msra.mxu0 %v1114
      %1711 = vmatprep.subr.bf16.mxu0 %v1119
      %1712 = vmatpush1.bf16.msra.mxu0 %v1118
      %1713 = vmatprep.subr.bf16.mxu0 %v1123
      %1714 = vmatpush1.bf16.msra.mxu0 %v1122
      %1715 = vmatprep.subr.bf16.mxu0 %v1127
      %1716 = vmatpush1.bf16.msra.mxu0 %v1126
      %1717 = vmatprep.subr.bf16.mxu0 %v1131
      %1718 = vmatpush1.bf16.msra.mxu0 %v1130
      %1719 = vmatprep.subr.bf16.mxu0 %v1135
      %1720 = vmatpush1.bf16.msra.mxu0 %v1134
      %1721 = vmatprep.subr.bf16.mxu0 %v1139
      %1722 = vmatpush1.bf16.msra.mxu0 %v1138
      %1723 = vmatprep.subr.bf16.mxu0 %v1143
      %1724 = vmatpush1.bf16.msra.mxu0 %v1142
      %1725 = vmatprep.subr.bf16.mxu0 %v1147
      %1726 = vmatpush1.bf16.msra.mxu0 %v1146
      %1727 = vmatprep.subr.bf16.mxu0 %v1151
      %1728 = vmatpush1.bf16.msra.mxu0 %v1150
      %1729 = vmatprep.mubr.bf16.mxu0 %v426
      %1730 = vmatmul.mubr.bf16.gmra.mrb[0].mxu0 %v419
      %v1731 = vpop.f32.mrb[0].mxu0
      %v1732 = vadd.f32 %v1691, %v1731
      %v1733 = vpop.f32.mrb[0].mxu0
      %v1734 = vadd.f32 %v1693, %v1733
      %v1735 = vpop.f32.mrb[0].mxu0
      %v1736 = vpop.f32.mrb[0].mxu0
      %1737 = vdwg.mxu0
      %1738 = vmatprep.subr.bf16.mxu0 %v1155
      %1739 = vmatpush1.bf16.msra.mxu0 %v1154
      %1740 = vmatprep.subr.bf16.mxu0 %v1159
      %1741 = vmatpush1.bf16.msra.mxu0 %v1158
      %1742 = vmatprep.subr.bf16.mxu0 %v1163
      %1743 = vmatpush1.bf16.msra.mxu0 %v1162
      %1744 = vmatprep.subr.bf16.mxu0 %v1167
      %1745 = vmatpush1.bf16.msra.mxu0 %v1166
      %1746 = vmatprep.subr.bf16.mxu0 %v1171
      %1747 = vmatpush1.bf16.msra.mxu0 %v1170
      %1748 = vmatprep.subr.bf16.mxu0 %v1175
      %1749 = vmatpush1.bf16.msra.mxu0 %v1174
      %1750 = vmatprep.subr.bf16.mxu0 %v1179
      %1751 = vmatpush1.bf16.msra.mxu0 %v1178
      %1752 = vmatprep.subr.bf16.mxu0 %v1183
      %1753 = vmatpush1.bf16.msra.mxu0 %v1182
      %1754 = vmatprep.subr.bf16.mxu0 %v1187
      %1755 = vmatpush1.bf16.msra.mxu0 %v1186
      %1756 = vmatprep.subr.bf16.mxu0 %v1191
      %1757 = vmatpush1.bf16.msra.mxu0 %v1190
      %1758 = vmatprep.subr.bf16.mxu0 %v1195
      %1759 = vmatpush1.bf16.msra.mxu0 %v1194
      %1760 = vmatprep.subr.bf16.mxu0 %v1199
      %1761 = vmatpush1.bf16.msra.mxu0 %v1198
      %1762 = vmatprep.subr.bf16.mxu0 %v1203
      %1763 = vmatpush1.bf16.msra.mxu0 %v1202
      %1764 = vmatprep.subr.bf16.mxu0 %v1207
      %1765 = vmatpush1.bf16.msra.mxu0 %v1206
      %1766 = vmatprep.subr.bf16.mxu0 %v1211
      %1767 = vmatpush1.bf16.msra.mxu0 %v1210
      %1768 = vmatprep.subr.bf16.mxu0 %v1215
      %1769 = vmatpush1.bf16.msra.mxu0 %v1214
      %1770 = vmatprep.mubr.bf16.mxu0 %v447
      %1771 = vmatmul.mubr.bf16.gmra.mrb[0].mxu0 %v440
      %v1772 = vpop.f32.mrb[0].mxu0
      %v1773 = vadd.f32 %v1732, %v1772
      %v1774 = vpop.f32.mrb[0].mxu0
      %v1775 = vadd.f32 %v1734, %v1774
      %v1776 = vpop.f32.mrb[0].mxu0
      %v1777 = vpop.f32.mrb[0].mxu0
      %1778 = vdwg.mxu0
      %1779 = vmatprep.subr.bf16.mxu0 %v1029
      %1780 = vmatpush1.bf16.msra.mxu0 %v1028
      %1781 = vmatprep.subr.bf16.mxu0 %v1033
      %1782 = vmatpush1.bf16.msra.mxu0 %v1032
      %1783 = vmatprep.subr.bf16.mxu0 %v1037
      %1784 = vmatpush1.bf16.msra.mxu0 %v1036
      %1785 = vmatprep.subr.bf16.mxu0 %v1041
      %1786 = vmatpush1.bf16.msra.mxu0 %v1040
      %1787 = vmatprep.subr.bf16.mxu0 %v1045
      %1788 = vmatpush1.bf16.msra.mxu0 %v1044
      %1789 = vmatprep.subr.bf16.mxu0 %v1049
      %1790 = vmatpush1.bf16.msra.mxu0 %v1048
      %1791 = vmatprep.subr.bf16.mxu0 %v1053
      %1792 = vmatpush1.bf16.msra.mxu0 %v1052
      %1793 = vmatprep.subr.bf16.mxu0 %v1057
      %1794 = vmatpush1.bf16.msra.mxu0 %v1056
      %1795 = vmatprep.subr.bf16.mxu0 %v1061
      %1796 = vmatpush1.bf16.msra.mxu0 %v1060
      %1797 = vmatprep.subr.bf16.mxu0 %v1065
      %1798 = vmatpush1.bf16.msra.mxu0 %v1064
      %1799 = vmatprep.subr.bf16.mxu0 %v1069
      %1800 = vmatpush1.bf16.msra.mxu0 %v1068
      %1801 = vmatprep.subr.bf16.mxu0 %v1073
      %1802 = vmatpush1.bf16.msra.mxu0 %v1072
      %1803 = vmatprep.subr.bf16.mxu0 %v1077
      %1804 = vmatpush1.bf16.msra.mxu0 %v1076
      %1805 = vmatprep.subr.bf16.mxu0 %v1081
      %1806 = vmatpush1.bf16.msra.mxu0 %v1080
      %1807 = vmatprep.subr.bf16.mxu0 %v1085
      %1808 = vmatpush1.bf16.msra.mxu0 %v1084
      %1809 = vmatprep.subr.bf16.mxu0 %v1089
      %1810 = vmatpush1.bf16.msra.mxu0 %v1088
      %1811 = vmatprep.mubr.bf16.mxu0 %v403
      %1812 = vmatmul.mubr.bf16.gmra.mrb[0].mxu0 %v402
      %v1813 = vpop.f32.mrb[0].mxu0
      %v1814 = vadd.f32 0.0, %v1813
      %v1815 = vpop.f32.mrb[0].mxu0
      %v1816 = vadd.f32 0.0, %v1815
      %v1817 = vpop.f32.mrb[0].mxu0
      %v1818 = vpop.f32.mrb[0].mxu0
      %1819 = vdwg.mxu0
      %1820 = vmatprep.subr.bf16.mxu0 %v1093
      %1821 = vmatpush1.bf16.msra.mxu0 %v1092
      %1822 = vmatprep.subr.bf16.mxu0 %v1097
      %1823 = vmatpush1.bf16.msra.mxu0 %v1096
      %1824 = vmatprep.subr.bf16.mxu0 %v1101
      %1825 = vmatpush1.bf16.msra.mxu0 %v1100
      %1826 = vmatprep.subr.bf16.mxu0 %v1105
      %1827 = vmatpush1.bf16.msra.mxu0 %v1104
      %1828 = vmatprep.subr.bf16.mxu0 %v1109
      %1829 = vmatpush1.bf16.msra.mxu0 %v1108
      %1830 = vmatprep.subr.bf16.mxu0 %v1113
      %1831 = vmatpush1.bf16.msra.mxu0 %v1112
      %1832 = vmatprep.subr.bf16.mxu0 %v1117
      %1833 = vmatpush1.bf16.msra.mxu0 %v1116
      %1834 = vmatprep.subr.bf16.mxu0 %v1121
      %1835 = vmatpush1.bf16.msra.mxu0 %v1120
      %1836 = vmatprep.subr.bf16.mxu0 %v1125
      %1837 = vmatpush1.bf16.msra.mxu0 %v1124
      %1838 = vmatprep.subr.bf16.mxu0 %v1129
      %1839 = vmatpush1.bf16.msra.mxu0 %v1128
      %1840 = vmatprep.subr.bf16.mxu0 %v1133
      %1841 = vmatpush1.bf16.msra.mxu0 %v1132
      %1842 = vmatprep.subr.bf16.mxu0 %v1137
      %1843 = vmatpush1.bf16.msra.mxu0 %v1136
      %1844 = vmatprep.subr.bf16.mxu0 %v1141
      %1845 = vmatpush1.bf16.msra.mxu0 %v1140
      %1846 = vmatprep.subr.bf16.mxu0 %v1145
      %1847 = vmatpush1.bf16.msra.mxu0 %v1144
      %1848 = vmatprep.subr.bf16.mxu0 %v1149
      %1849 = vmatpush1.bf16.msra.mxu0 %v1148
      %1850 = vmatprep.subr.bf16.mxu0 %v1153
      %1851 = vmatpush1.bf16.msra.mxu0 %v1152
      %1852 = vmatprep.mubr.bf16.mxu0 %v426
      %1853 = vmatmul.mubr.bf16.gmra.mrb[0].mxu0 %v419
      %v1854 = vpop.f32.mrb[0].mxu0
      %v1855 = vadd.f32 %v1814, %v1854
      %v1856 = vpop.f32.mrb[0].mxu0
      %v1857 = vadd.f32 %v1816, %v1856
      %v1858 = vpop.f32.mrb[0].mxu0
      %v1859 = vpop.f32.mrb[0].mxu0
      %1860 = vdwg.mxu0
      %1861 = vmatprep.subr.bf16.mxu0 %v1157
      %1862 = vmatpush1.bf16.msra.mxu0 %v1156
      %1863 = vmatprep.subr.bf16.mxu0 %v1161
      %1864 = vmatpush1.bf16.msra.mxu0 %v1160
      %1865 = vmatprep.subr.bf16.mxu0 %v1165
      %1866 = vmatpush1.bf16.msra.mxu0 %v1164
      %1867 = vmatprep.subr.bf16.mxu0 %v1169
      %1868 = vmatpush1.bf16.msra.mxu0 %v1168
      %1869 = vmatprep.subr.bf16.mxu0 %v1173
      %1870 = vmatpush1.bf16.msra.mxu0 %v1172
      %1871 = vmatprep.subr.bf16.mxu0 %v1177
      %1872 = vmatpush1.bf16.msra.mxu0 %v1176
      %1873 = vmatprep.subr.bf16.mxu0 %v1181
      %1874 = vmatpush1.bf16.msra.mxu0 %v1180
      %1875 = vmatprep.subr.bf16.mxu0 %v1185
      %1876 = vmatpush1.bf16.msra.mxu0 %v1184
      %1877 = vmatprep.subr.bf16.mxu0 %v1189
      %1878 = vmatpush1.bf16.msra.mxu0 %v1188
      %1879 = vmatprep.subr.bf16.mxu0 %v1193
      %1880 = vmatpush1.bf16.msra.mxu0 %v1192
      %1881 = vmatprep.subr.bf16.mxu0 %v1197
      %1882 = vmatpush1.bf16.msra.mxu0 %v1196
      %1883 = vmatprep.subr.bf16.mxu0 %v1201
      %1884 = vmatpush1.bf16.msra.mxu0 %v1200
      %1885 = vmatprep.subr.bf16.mxu0 %v1205
      %1886 = vmatpush1.bf16.msra.mxu0 %v1204
      %1887 = vmatprep.subr.bf16.mxu0 %v1209
      %1888 = vmatpush1.bf16.msra.mxu0 %v1208
      %1889 = vmatprep.subr.bf16.mxu0 %v1213
      %1890 = vmatpush1.bf16.msra.mxu0 %v1212
      %1891 = vmatprep.subr.bf16.mxu0 %v1217
      %1892 = vmatpush1.bf16.msra.mxu0 %v1216
      %1893 = vmatprep.mubr.bf16.mxu0 %v447
      %1894 = vmatmul.mubr.bf16.gmra.mrb[0].mxu0 %v440
      %v1895 = vpop.f32.mrb[0].mxu0
      %v1896 = vadd.f32 %v1855, %v1895
      %v1897 = vpop.f32.mrb[0].mxu0
      %v1898 = vadd.f32 %v1857, %v1897
      %v1899 = vpop.f32.mrb[0].mxu0
      %v1900 = vpop.f32.mrb[0].mxu0
      %1901 = vdwg.mxu0
      %v1902 = vld [vmem:[%s2] sm:$0xf]
      %v1903 = vld [vmem:[%s3] sm:$0xf]
      %v1905 = vlaneseq
      %v1906 = vshrl.u32 %v1905, 7
      %v1907 = vsub.s32 0, %v1906
      %v1908 = vrot.slane %v1902, %v1907
      %v1909 = vlaneseq
      %v1910 = vshrl.u32 %v1909, 7
      %v1911 = vsub.s32 1, %v1910
      %v1912 = vrot.slane %v1902, %v1911
      %v1913 = vlaneseq
      %v1914 = vshrl.u32 %v1913, 7
      %v1915 = vsub.s32 2, %v1914
      %v1916 = vrot.slane %v1902, %v1915
      %v1917 = vlaneseq
      %v1918 = vshrl.u32 %v1917, 7
      %v1919 = vsub.s32 3, %v1918
      %v1920 = vrot.slane %v1902, %v1919
      %v1925 = vmul.f32 %v1527, %v1908
      %v1926 = vmul.f32 %v1529, %v1912
      %v1927 = vmul.f32 %v1650, %v1916
      %v1928 = vmul.f32 %v1652, %v1920
      %v1930 = vlaneseq
      %v1931 = vshrl.u32 %v1930, 7
      %v1932 = vsub.s32 0, %v1931
      %v1933 = vrot.slane %v1903, %v1932
      %v1934 = vlaneseq
      %v1935 = vshrl.u32 %v1934, 7
      %v1936 = vsub.s32 1, %v1935
      %v1937 = vrot.slane %v1903, %v1936
      %v1938 = vlaneseq
      %v1939 = vshrl.u32 %v1938, 7
      %v1940 = vsub.s32 2, %v1939
      %v1941 = vrot.slane %v1903, %v1940
      %v1942 = vlaneseq
      %v1943 = vshrl.u32 %v1942, 7
      %v1944 = vsub.s32 3, %v1943
      %v1945 = vrot.slane %v1903, %v1944
      %v1950 = vadd.f32 %v1925, %v1933
      %v1951 = vadd.f32 %v1926, %v1937
      %v1952 = vadd.f32 %v1927, %v1941
      %v1953 = vadd.f32 %v1928, %v1945
      %v1954 = vmax.f32 %v1950, 0.0
      %v1955 = vmax.f32 %v1951, 0.0
      %v1956 = vmax.f32 %v1952, 0.0
      %v1957 = vmax.f32 %v1953, 0.0
      %v1958 = vmul.f32 %v1773, %v1908
      %v1959 = vmul.f32 %v1775, %v1912
      %v1960 = vmul.f32 %v1896, %v1916
      %v1961 = vmul.f32 %v1898, %v1920
      %v1962 = vadd.f32 %v1958, %v1933
      %v1963 = vadd.f32 %v1959, %v1937
      %v1964 = vadd.f32 %v1960, %v1941
      %v1965 = vadd.f32 %v1961, %v1945
      %v1966 = vmax.f32 %v1962, 0.0
      %v1967 = vmax.f32 %v1963, 0.0
      %v1968 = vmax.f32 %v1964, 0.0
      %v1969 = vmax.f32 %v1965, 0.0
      %v1970 = vmax.f32 %v1954, %v1966
      %v1971 = vmax.f32 %v1955, %v1967
      %v1972 = vmax.f32 %v1956, %v1968
      %v1973 = vmax.f32 %v1957, %v1969
      %v1974 = vmax.f32 %v1970, %v1972
      %v1975 = vmax.f32 %v1971, %v1973
      %v1976 = vpack.c.bf16 %v1974, %v1974
      %v1977 = vpack.c.bf16 %v1975, %v1975
      %v1980 = vunpack.c.l.b16 %v1976
      %v1981 = vunpack.c.l.b16 %v1977
      %v1982 = vpack.c.b16 %v1981, %v1980
      %1984 = vst [vmem:[%s197] sm:$0xff] %v1982
      %p1985 = scmp.lt.s32.totalorder %s15, 1
      %s1986 = scalar_select %p1985, %s15, 1
      %s1987 = smul.addr %s1986, 2
      %s1988 = smul.addr %s1987, 4
      %s1989 = scalar_lea.vmem %s4, %s1988
      // Predicated region
      $region37: #{cnn2d_forward.6} parent=35 // pred_check
        %p1990 = pneg %p122
      $region38: #{cnn2d_forward.6} parent=35 // pred_check_branch
        %1992 = sbr.rel (%p1990) target = $region40
      $region39: #{cnn2d_forward.6} parent=35 // pred_region
        _
      $region40: #{cnn2d_forward.6} parent=35 // pred_fallthru
        _
    $region36: #{cnn2d_forward.6} parent=5 // pred_fallthru
      _
    %p1993 = scmp.le.s32.totalorder 2, %s10
    // Predicated region
    $region41: #{cnn2d_forward.6} parent=5 // pred_check
      %p1994 = pneg %p1993
    $region42: #{cnn2d_forward.6} parent=5 // pred_check_branch
      %1996 = sbr.rel (%p1994) target = $region44
    $region43: #{cnn2d_forward.6} parent=5 // pred_region
      %s1997 = ssub.s32 %s10, 2
      // Predicated region
      $region45: #{cnn2d_forward.6} parent=43 // pred_check
        %p1998 = pneg %p128
      $region46: #{cnn2d_forward.6} parent=43 // pred_check_branch
        %2000 = sbr.rel (%p1998) target = $region48
      $region47: #{cnn2d_forward.6} parent=43 // pred_region
        %p2001 = scmp.lt.s32.totalorder %s16, 1
        %s2002 = scalar_select %p2001, %s16, 1
        %s2003 = smul.addr %s2002, 2
        %s2004 = smul.addr %s2003, 4
        %s2005 = scalar_lea.vmem %s4, %s2004
      $region48: #{cnn2d_forward.6} parent=43 // pred_fallthru
        _
    $region44: #{cnn2d_forward.6} parent=5 // pred_fallthru
      _
  $region6: #{cnn2d_forward.6} parent=0 // loop_footer
    %s14 = sadd.s32 1, %s10
  $region7: #{cnn2d_forward.6} parent=0 // loop_footer_branch
    %9 = sbr.rel target = $region3
  $region8: #{cnn2d_forward.6} parent=0 // loop_exit
    _

// kernel: cnn2d_forward.7
$region0: #{cnn2d_forward.7}
  #allocation0 [shape = 'u32[]', space=smem, size = 0x4, offset = 0x4, fixed_abs, tag = 'smem constant byte address 0x4 - core index']
  #allocation1 [shape = 'u32[144,128]{1,0:T(1,128)}', space=vmem, size = 0x12000, scoped, tag = 'internal scratch']
  %s0 = inlined_call_operand.vmem [shape: bf16[2,2048], index: 0, kind: input, shape index: {}]
  %s1 = inlined_call_operand.vmem [shape: bf16[2048,64], index: 1, kind: input, shape index: {}]
  %s2 = inlined_call_operand.vmem [shape: f32[1,64], index: 2, kind: input, shape index: {}]
  %s3 = inlined_call_operand.vmem [shape: bf16[64,32], index: 3, kind: input, shape index: {}]
  %s4 = inlined_call_operand.vmem [shape: f32[1,32], index: 4, kind: input, shape index: {}]
  %s5 = inlined_call_operand.vmem [shape: bf16[32,16], index: 5, kind: input, shape index: {}]
  %s6 = inlined_call_operand.vmem [shape: f32[1,16], index: 6, kind: input, shape index: {}]
  %s7 = inlined_call_operand.vmem [shape: bf16[16,10], index: 7, kind: input, shape index: {}]
  %s8 = inlined_call_operand.vmem [shape: f32[1,10], index: 8, kind: input, shape index: {}]
  %s9 = inlined_call_operand.hbm [shape: f32[2,10], index: 9, kind: output, shape index: {}]
  %s10 = sld [smem:[#allocation0]]
  $region46: #{cnn2d_forward.7} parent=0
    _
  %s12 = ssub.s32 1, %s10
  %s13 = scalar_select 0, %s12, %s10
  $region1: #{cnn2d_forward.7} parent=0
    #allocation2 [shape = 'u8[1024]{0}', space=vmem, size = 0x400, scoped, tag = 'output window, operand 0, single buffered']
    #allocation3 [shape = 's32[1]{0}', space=sflag, size = 0x4, scoped, tag = 'scoped memory for cnn2d_forward.7']
    %14 = vsyncpa [#allocation3], 0
    // Predicated region
    $region2: #{cnn2d_forward.7} parent=1 // pred_check
      _
    $region3: #{cnn2d_forward.7} parent=1 // pred_check_branch
      %16 = sbr.rel (0) target = $region5
    $region4: #{cnn2d_forward.7} parent=1 // pred_region
      _
    $region5: #{cnn2d_forward.7} parent=1 // pred_fallthru
      _
    // Predicated region
    $region6: #{cnn2d_forward.7} parent=1 // pred_check
      _
    $region7: #{cnn2d_forward.7} parent=1 // pred_check_branch
      %18 = sbr.rel (0) target = $region9
    $region8: #{cnn2d_forward.7} parent=1 // pred_region
      _
    $region9: #{cnn2d_forward.7} parent=1 // pred_fallthru
      _
    // Predicated region
    $region10: #{cnn2d_forward.7} parent=1 // pred_check
      _
    $region11: #{cnn2d_forward.7} parent=1 // pred_check_branch
      %20 = sbr.rel (0) target = $region13
    $region12: #{cnn2d_forward.7} parent=1 // pred_region
      _
    $region13: #{cnn2d_forward.7} parent=1 // pred_fallthru
      _
    // Predicated region
    $region14: #{cnn2d_forward.7} parent=1 // pred_check
      _
    $region15: #{cnn2d_forward.7} parent=1 // pred_check_branch
      %22 = sbr.rel (0) target = $region17
    $region16: #{cnn2d_forward.7} parent=1 // pred_region
      _
    $region17: #{cnn2d_forward.7} parent=1 // pred_fallthru
      _
    // Predicated region
    $region18: #{cnn2d_forward.7} parent=1 // pred_check
      _
    $region19: #{cnn2d_forward.7} parent=1 // pred_check_branch
      %24 = sbr.rel (0) target = $region21
    $region20: #{cnn2d_forward.7} parent=1 // pred_region
      _
    $region21: #{cnn2d_forward.7} parent=1 // pred_fallthru
      _
    // Predicated region
    $region22: #{cnn2d_forward.7} parent=1 // pred_check
      _
    $region23: #{cnn2d_forward.7} parent=1 // pred_check_branch
      %26 = sbr.rel (0) target = $region25
    $region24: #{cnn2d_forward.7} parent=1 // pred_region
      _
    $region25: #{cnn2d_forward.7} parent=1 // pred_fallthru
      _
    // Predicated region
    $region26: #{cnn2d_forward.7} parent=1 // pred_check
      _
    $region27: #{cnn2d_forward.7} parent=1 // pred_check_branch
      %28 = sbr.rel (0) target = $region29
    $region28: #{cnn2d_forward.7} parent=1 // pred_region
      _
    $region29: #{cnn2d_forward.7} parent=1 // pred_fallthru
      _
    // Predicated region
    $region30: #{cnn2d_forward.7} parent=1 // pred_check
      _
    $region31: #{cnn2d_forward.7} parent=1 // pred_check_branch
      %30 = sbr.rel (0) target = $region33
    $region32: #{cnn2d_forward.7} parent=1 // pred_region
      _
    $region33: #{cnn2d_forward.7} parent=1 // pred_fallthru
      _
    // Predicated region
    $region34: #{cnn2d_forward.7} parent=1 // pred_check
      _
    $region35: #{cnn2d_forward.7} parent=1 // pred_check_branch
      %32 = sbr.rel (0) target = $region37
    $region36: #{cnn2d_forward.7} parent=1 // pred_region
      _
    $region37: #{cnn2d_forward.7} parent=1 // pred_fallthru
      _
    %v34 = vld [vmem:[%s0] sm:$0xff]
    %v35 = vld [vmem:[%s0 + $0x8] sm:$0xff]
    %v36 = vld [vmem:[%s1] sm:$0xf]
    %v37 = vld [vmem:[%s1 + $0x4] sm:$0xf]
    %v38 = vld [vmem:[%s1 + $0x8] sm:$0xf]
    %v39 = vld [vmem:[%s1 + $0xc] sm:$0xf]
    %v40 = vld [vmem:[%s1 + $0x10] sm:$0xf]
    %v41 = vld [vmem:[%s1 + $0x14] sm:$0xf]
    %v42 = vld [vmem:[%s1 + $0x18] sm:$0xf]
    %v43 = vld [vmem:[%s1 + $0x1c] sm:$0xf]
    %v44 = vld [vmem:[%s1 + $0x20] sm:$0xf]
    %v45 = vld [vmem:[%s1 + $0x24] sm:$0xf]
    %v46 = vld [vmem:[%s1 + $0x28] sm:$0xf]
    %v47 = vld [vmem:[%s1 + $0x2c] sm:$0xf]
    %v48 = vld [vmem:[%s1 + $0x30] sm:$0xf]
    %v49 = vld [vmem:[%s1 + $0x34] sm:$0xf]
    %v50 = vld [vmem:[%s1 + $0x38] sm:$0xf]
    %v51 = vld [vmem:[%s1 + $0x3c] sm:$0xf]
    %v52 = vld [vmem:[%s1 + $0x40] sm:$0xf]
    %v53 = vld [vmem:[%s1 + $0x44] sm:$0xf]
    %v54 = vld [vmem:[%s1 + $0x48] sm:$0xf]
    %v55 = vld [vmem:[%s1 + $0x4c] sm:$0xf]
    %v56 = vld [vmem:[%s1 + $0x50] sm:$0xf]
    %v57 = vld [vmem:[%s1 + $0x54] sm:$0xf]
    %v58 = vld [vmem:[%s1 + $0x58] sm:$0xf]
    %v59 = vld [vmem:[%s1 + $0x5c] sm:$0xf]
    %v60 = vld [vmem:[%s1 + $0x60] sm:$0xf]
    %v61 = vld [vmem:[%s1 + $0x64] sm:$0xf]
    %v62 = vld [vmem:[%s1 + $0x68] sm:$0xf]
    %v63 = vld [vmem:[%s1 + $0x6c] sm:$0xf]
    %v64 = vld [vmem:[%s1 + $0x70] sm:$0xf]
    %v65 = vld [vmem:[%s1 + $0x74] sm:$0xf]
    %v66 = vld [vmem:[%s1 + $0x78] sm:$0xf]
    %v67 = vld [vmem:[%s1 + $0x7c] sm:$0xf]
    %v68 = vld [vmem:[%s1 + $0x80] sm:$0xf]
    %v69 = vld [vmem:[%s1 + $0x84] sm:$0xf]
    %v70 = vld [vmem:[%s1 + $0x88] sm:$0xf]
    %v71 = vld [vmem:[%s1 + $0x8c] sm:$0xf]
    %v72 = vld [vmem:[%s1 + $0x90] sm:$0xf]
    %v73 = vld [vmem:[%s1 + $0x94] sm:$0xf]
    %v74 = vld [vmem:[%s1 + $0x98] sm:$0xf]
    %v75 = vld [vmem:[%s1 + $0x9c] sm:$0xf]
    %v76 = vld [vmem:[%s1 + $0xa0] sm:$0xf]
    %v77 = vld [vmem:[%s1 + $0xa4] sm:$0xf]
    %v78 = vld [vmem:[%s1 + $0xa8] sm:$0xf]
    %v79 = vld [vmem:[%s1 + $0xac] sm:$0xf]
    %v80 = vld [vmem:[%s1 + $0xb0] sm:$0xf]
    %v81 = vld [vmem:[%s1 + $0xb4] sm:$0xf]
    %v82 = vld [vmem:[%s1 + $0xb8] sm:$0xf]
    %v83 = vld [vmem:[%s1 + $0xbc] sm:$0xf]
    %v84 = vld [vmem:[%s1 + $0xc0] sm:$0xf]
    %v85 = vld [vmem:[%s1 + $0xc4] sm:$0xf]
    %v86 = vld [vmem:[%s1 + $0xc8] sm:$0xf]
    %v87 = vld [vmem:[%s1 + $0xcc] sm:$0xf]
    %v88 = vld [vmem:[%s1 + $0xd0] sm:$0xf]
    %v89 = vld [vmem:[%s1 + $0xd4] sm:$0xf]
    %v90 = vld [vmem:[%s1 + $0xd8] sm:$0xf]
    %v91 = vld [vmem:[%s1 + $0xdc] sm:$0xf]
    %v92 = vld [vmem:[%s1 + $0xe0] sm:$0xf]
    %v93 = vld [vmem:[%s1 + $0xe4] sm:$0xf]
    %v94 = vld [vmem:[%s1 + $0xe8] sm:$0xf]
    %v95 = vld [vmem:[%s1 + $0xec] sm:$0xf]
    %v96 = vld [vmem:[%s1 + $0xf0] sm:$0xf]
    %v97 = vld [vmem:[%s1 + $0xf4] sm:$0xf]
    %v98 = vld [vmem:[%s1 + $0xf8] sm:$0xf]
    %v99 = vld [vmem:[%s1 + $0xfc] sm:$0xf]
    %v100 = vld [vmem:[%s1 + $0x100] sm:$0xf]
    %v101 = vld [vmem:[%s1 + $0x104] sm:$0xf]
    %v102 = vld [vmem:[%s1 + $0x108] sm:$0xf]
    %v103 = vld [vmem:[%s1 + $0x10c] sm:$0xf]
    %v104 = vld [vmem:[%s1 + $0x110] sm:$0xf]
    %v105 = vld [vmem:[%s1 + $0x114] sm:$0xf]
    %v106 = vld [vmem:[%s1 + $0x118] sm:$0xf]
    %v107 = vld [vmem:[%s1 + $0x11c] sm:$0xf]
    %v108 = vld [vmem:[%s1 + $0x120] sm:$0xf]
    %v109 = vld [vmem:[%s1 + $0x124] sm:$0xf]
    %v110 = vld [vmem:[%s1 + $0x128] sm:$0xf]
    %v111 = vld [vmem:[%s1 + $0x12c] sm:$0xf]
    %v112 = vld [vmem:[%s1 + $0x130] sm:$0xf]
    %v113 = vld [vmem:[%s1 + $0x134] sm:$0xf]
    %v114 = vld [vmem:[%s1 + $0x138] sm:$0xf]
    %v115 = vld [vmem:[%s1 + $0x13c] sm:$0xf]
    %v116 = vld [vmem:[%s1 + $0x140] sm:$0xf]
    %v117 = vld [vmem:[%s1 + $0x144] sm:$0xf]
    %v118 = vld [vmem:[%s1 + $0x148] sm:$0xf]
    %v119 = vld [vmem:[%s1 + $0x14c] sm:$0xf]
    %v120 = vld [vmem:[%s1 + $0x150] sm:$0xf]
    %v121 = vld [vmem:[%s1 + $0x154] sm:$0xf]
    %v122 = vld [vmem:[%s1 + $0x158] sm:$0xf]
    %v123 = vld [vmem:[%s1 + $0x15c] sm:$0xf]
    %v124 = vld [vmem:[%s1 + $0x160] sm:$0xf]
    %v125 = vld [vmem:[%s1 + $0x164] sm:$0xf]
    %v126 = vld [vmem:[%s1 + $0x168] sm:$0xf]
    %v127 = vld [vmem:[%s1 + $0x16c] sm:$0xf]
    %v128 = vld [vmem:[%s1 + $0x170] sm:$0xf]
    %v129 = vld [vmem:[%s1 + $0x174] sm:$0xf]
    %v130 = vld [vmem:[%s1 + $0x178] sm:$0xf]
    %v131 = vld [vmem:[%s1 + $0x17c] sm:$0xf]
    %v132 = vld [vmem:[%s1 + $0x180] sm:$0xf]
    %v133 = vld [vmem:[%s1 + $0x184] sm:$0xf]
    %v134 = vld [vmem:[%s1 + $0x188] sm:$0xf]
    %v135 = vld [vmem:[%s1 + $0x18c] sm:$0xf]
    %v136 = vld [vmem:[%s1 + $0x190] sm:$0xf]
    %v137 = vld [vmem:[%s1 + $0x194] sm:$0xf]
    %v138 = vld [vmem:[%s1 + $0x198] sm:$0xf]
    %v139 = vld [vmem:[%s1 + $0x19c] sm:$0xf]
    %v140 = vld [vmem:[%s1 + $0x1a0] sm:$0xf]
    %v141 = vld [vmem:[%s1 + $0x1a4] sm:$0xf]
    %v142 = vld [vmem:[%s1 + $0x1a8] sm:$0xf]
    %v143 = vld [vmem:[%s1 + $0x1ac] sm:$0xf]
    %v144 = vld [vmem:[%s1 + $0x1b0] sm:$0xf]
    %v145 = vld [vmem:[%s1 + $0x1b4] sm:$0xf]
    %v146 = vld [vmem:[%s1 + $0x1b8] sm:$0xf]
    %v147 = vld [vmem:[%s1 + $0x1bc] sm:$0xf]
    %v148 = vld [vmem:[%s1 + $0x1c0] sm:$0xf]
    %v149 = vld [vmem:[%s1 + $0x1c4] sm:$0xf]
    %v150 = vld [vmem:[%s1 + $0x1c8] sm:$0xf]
    %v151 = vld [vmem:[%s1 + $0x1cc] sm:$0xf]
    %v152 = vld [vmem:[%s1 + $0x1d0] sm:$0xf]
    %v153 = vld [vmem:[%s1 + $0x1d4] sm:$0xf]
    %v154 = vld [vmem:[%s1 + $0x1d8] sm:$0xf]
    %v155 = vld [vmem:[%s1 + $0x1dc] sm:$0xf]
    %v156 = vld [vmem:[%s1 + $0x1e0] sm:$0xf]
    %v157 = vld [vmem:[%s1 + $0x1e4] sm:$0xf]
    %v158 = vld [vmem:[%s1 + $0x1e8] sm:$0xf]
    %v159 = vld [vmem:[%s1 + $0x1ec] sm:$0xf]
    %v160 = vld [vmem:[%s1 + $0x1f0] sm:$0xf]
    %v161 = vld [vmem:[%s1 + $0x1f4] sm:$0xf]
    %v162 = vld [vmem:[%s1 + $0x1f8] sm:$0xf]
    %v163 = vld [vmem:[%s1 + $0x1fc] sm:$0xf]
    %v164 = vld [vmem:[%s1 + $0x200] sm:$0xf]
    %v165 = vld [vmem:[%s1 + $0x204] sm:$0xf]
    %v166 = vld [vmem:[%s1 + $0x208] sm:$0xf]
    %v167 = vld [vmem:[%s1 + $0x20c] sm:$0xf]
    %v168 = vld [vmem:[%s1 + $0x210] sm:$0xf]
    %v169 = vld [vmem:[%s1 + $0x214] sm:$0xf]
    %v170 = vld [vmem:[%s1 + $0x218] sm:$0xf]
    %v171 = vld [vmem:[%s1 + $0x21c] sm:$0xf]
    %v172 = vld [vmem:[%s1 + $0x220] sm:$0xf]
    %v173 = vld [vmem:[%s1 + $0x224] sm:$0xf]
    %v174 = vld [vmem:[%s1 + $0x228] sm:$0xf]
    %v175 = vld [vmem:[%s1 + $0x22c] sm:$0xf]
    %v176 = vld [vmem:[%s1 + $0x230] sm:$0xf]
    %v177 = vld [vmem:[%s1 + $0x234] sm:$0xf]
    %v178 = vld [vmem:[%s1 + $0x238] sm:$0xf]
    %v179 = vld [vmem:[%s1 + $0x23c] sm:$0xf]
    %v180 = vld [vmem:[%s1 + $0x240] sm:$0xf]
    %v181 = vld [vmem:[%s1 + $0x244] sm:$0xf]
    %v182 = vld [vmem:[%s1 + $0x248] sm:$0xf]
    %v183 = vld [vmem:[%s1 + $0x24c] sm:$0xf]
    %v184 = vld [vmem:[%s1 + $0x250] sm:$0xf]
    %v185 = vld [vmem:[%s1 + $0x254] sm:$0xf]
    %v186 = vld [vmem:[%s1 + $0x258] sm:$0xf]
    %v187 = vld [vmem:[%s1 + $0x25c] sm:$0xf]
    %v188 = vld [vmem:[%s1 + $0x260] sm:$0xf]
    %v189 = vld [vmem:[%s1 + $0x264] sm:$0xf]
    %v190 = vld [vmem:[%s1 + $0x268] sm:$0xf]
    %v191 = vld [vmem:[%s1 + $0x26c] sm:$0xf]
    %v192 = vld [vmem:[%s1 + $0x270] sm:$0xf]
    %v193 = vld [vmem:[%s1 + $0x274] sm:$0xf]
    %v194 = vld [vmem:[%s1 + $0x278] sm:$0xf]
    %v195 = vld [vmem:[%s1 + $0x27c] sm:$0xf]
    %v196 = vld [vmem:[%s1 + $0x280] sm:$0xf]
    %v197 = vld [vmem:[%s1 + $0x284] sm:$0xf]
    %v198 = vld [vmem:[%s1 + $0x288] sm:$0xf]
    %v199 = vld [vmem:[%s1 + $0x28c] sm:$0xf]
    %v200 = vld [vmem:[%s1 + $0x290] sm:$0xf]
    %v201 = vld [vmem:[%s1 + $0x294] sm:$0xf]
    %v202 = vld [vmem:[%s1 + $0x298] sm:$0xf]
    %v203 = vld [vmem:[%s1 + $0x29c] sm:$0xf]
    %v204 = vld [vmem:[%s1 + $0x2a0] sm:$0xf]
    %v205 = vld [vmem:[%s1 + $0x2a4] sm:$0xf]
    %v206 = vld [vmem:[%s1 + $0x2a8] sm:$0xf]
    %v207 = vld [vmem:[%s1 + $0x2ac] sm:$0xf]
    %v208 = vld [vmem:[%s1 + $0x2b0] sm:$0xf]
    %v209 = vld [vmem:[%s1 + $0x2b4] sm:$0xf]
    %v210 = vld [vmem:[%s1 + $0x2b8] sm:$0xf]
    %v211 = vld [vmem:[%s1 + $0x2bc] sm:$0xf]
    %v212 = vld [vmem:[%s1 + $0x2c0] sm:$0xf]
    %v213 = vld [vmem:[%s1 + $0x2c4] sm:$0xf]
    %v214 = vld [vmem:[%s1 + $0x2c8] sm:$0xf]
    %v215 = vld [vmem:[%s1 + $0x2cc] sm:$0xf]
    %v216 = vld [vmem:[%s1 + $0x2d0] sm:$0xf]
    %v217 = vld [vmem:[%s1 + $0x2d4] sm:$0xf]
    %v218 = vld [vmem:[%s1 + $0x2d8] sm:$0xf]
    %v219 = vld [vmem:[%s1 + $0x2dc] sm:$0xf]
    %v220 = vld [vmem:[%s1 + $0x2e0] sm:$0xf]
    %v221 = vld [vmem:[%s1 + $0x2e4] sm:$0xf]
    %v222 = vld [vmem:[%s1 + $0x2e8] sm:$0xf]
    %v223 = vld [vmem:[%s1 + $0x2ec] sm:$0xf]
    %v224 = vld [vmem:[%s1 + $0x2f0] sm:$0xf]
    %v225 = vld [vmem:[%s1 + $0x2f4] sm:$0xf]
    %v226 = vld [vmem:[%s1 + $0x2f8] sm:$0xf]
    %v227 = vld [vmem:[%s1 + $0x2fc] sm:$0xf]
    %v228 = vld [vmem:[%s1 + $0x300] sm:$0xf]
    %v229 = vld [vmem:[%s1 + $0x304] sm:$0xf]
    %v230 = vld [vmem:[%s1 + $0x308] sm:$0xf]
    %v231 = vld [vmem:[%s1 + $0x30c] sm:$0xf]
    %v232 = vld [vmem:[%s1 + $0x310] sm:$0xf]
    %v233 = vld [vmem:[%s1 + $0x314] sm:$0xf]
    %v234 = vld [vmem:[%s1 + $0x318] sm:$0xf]
    %v235 = vld [vmem:[%s1 + $0x31c] sm:$0xf]
    %v236 = vld [vmem:[%s1 + $0x320] sm:$0xf]
    %v237 = vld [vmem:[%s1 + $0x324] sm:$0xf]
    %v238 = vld [vmem:[%s1 + $0x328] sm:$0xf]
    %v239 = vld [vmem:[%s1 + $0x32c] sm:$0xf]
    %v240 = vld [vmem:[%s1 + $0x330] sm:$0xf]
    %v241 = vld [vmem:[%s1 + $0x334] sm:$0xf]
    %v242 = vld [vmem:[%s1 + $0x338] sm:$0xf]
    %v243 = vld [vmem:[%s1 + $0x33c] sm:$0xf]
    %v244 = vld [vmem:[%s1 + $0x340] sm:$0xf]
    %v245 = vld [vmem:[%s1 + $0x344] sm:$0xf]
    %v246 = vld [vmem:[%s1 + $0x348] sm:$0xf]
    %v247 = vld [vmem:[%s1 + $0x34c] sm:$0xf]
    %v248 = vld [vmem:[%s1 + $0x350] sm:$0xf]
    %v249 = vld [vmem:[%s1 + $0x354] sm:$0xf]
    %v250 = vld [vmem:[%s1 + $0x358] sm:$0xf]
    %v251 = vld [vmem:[%s1 + $0x35c] sm:$0xf]
    %v252 = vld [vmem:[%s1 + $0x360] sm:$0xf]
    %v253 = vld [vmem:[%s1 + $0x364] sm:$0xf]
    %v254 = vld [vmem:[%s1 + $0x368] sm:$0xf]
    %v255 = vld [vmem:[%s1 + $0x36c] sm:$0xf]
    %v256 = vld [vmem:[%s1 + $0x370] sm:$0xf]
    %v257 = vld [vmem:[%s1 + $0x374] sm:$0xf]
    %v258 = vld [vmem:[%s1 + $0x378] sm:$0xf]
    %v259 = vld [vmem:[%s1 + $0x37c] sm:$0xf]
    %v260 = vld [vmem:[%s1 + $0x380] sm:$0xf]
    %v261 = vld [vmem:[%s1 + $0x384] sm:$0xf]
    %v262 = vld [vmem:[%s1 + $0x388] sm:$0xf]
    %v263 = vld [vmem:[%s1 + $0x38c] sm:$0xf]
    %v264 = vld [vmem:[%s1 + $0x390] sm:$0xf]
    %v265 = vld [vmem:[%s1 + $0x394] sm:$0xf]
    %v266 = vld [vmem:[%s1 + $0x398] sm:$0xf]
    %v267 = vld [vmem:[%s1 + $0x39c] sm:$0xf]
    %v268 = vld [vmem:[%s1 + $0x3a0] sm:$0xf]
    %v269 = vld [vmem:[%s1 + $0x3a4] sm:$0xf]
    %v270 = vld [vmem:[%s1 + $0x3a8] sm:$0xf]
    %v271 = vld [vmem:[%s1 + $0x3ac] sm:$0xf]
    %v272 = vld [vmem:[%s1 + $0x3b0] sm:$0xf]
    %v273 = vld [vmem:[%s1 + $0x3b4] sm:$0xf]
    %v274 = vld [vmem:[%s1 + $0x3b8] sm:$0xf]
    %v275 = vld [vmem:[%s1 + $0x3bc] sm:$0xf]
    %v276 = vld [vmem:[%s1 + $0x3c0] sm:$0xf]
    %v277 = vld [vmem:[%s1 + $0x3c4] sm:$0xf]
    %v278 = vld [vmem:[%s1 + $0x3c8] sm:$0xf]
    %v279 = vld [vmem:[%s1 + $0x3cc] sm:$0xf]
    %v280 = vld [vmem:[%s1 + $0x3d0] sm:$0xf]
    %v281 = vld [vmem:[%s1 + $0x3d4] sm:$0xf]
    %v282 = vld [vmem:[%s1 + $0x3d8] sm:$0xf]
    %v283 = vld [vmem:[%s1 + $0x3dc] sm:$0xf]
    %v284 = vld [vmem:[%s1 + $0x3e0] sm:$0xf]
    %v285 = vld [vmem:[%s1 + $0x3e4] sm:$0xf]
    %v286 = vld [vmem:[%s1 + $0x3e8] sm:$0xf]
    %v287 = vld [vmem:[%s1 + $0x3ec] sm:$0xf]
    %v288 = vld [vmem:[%s1 + $0x3f0] sm:$0xf]
    %v289 = vld [vmem:[%s1 + $0x3f4] sm:$0xf]
    %v290 = vld [vmem:[%s1 + $0x3f8] sm:$0xf]
    %v291 = vld [vmem:[%s1 + $0x3fc] sm:$0xf]
    %v292 = vld [vmem:[%s2] sm:$0x1]
    %v294 = vlaneseq
    %v295 = vshrl.u32 %v294, 7
    %v296 = vsub.s32 0, %v295
    %v297 = vrot.slane %v292, %v296
    %v301 = vcombine.high %v34, %v34
    %v303 = vunpack.c.l.s4 1966171168
    %v304 = vunpack.c.0.s8 %v303
    %v305 = vlaneseq
    %v306 = vshrl.u32 %v305, 7
    %v307 = vsub.s32 %v304, %v306
    %v308 = vrot.slane %v34, %v307
    %v310 = vunpack.c.l.s4 1966171168
    %v311 = vunpack.c.0.s8 %v310
    %v312 = vlaneseq
    %v313 = vshrl.u32 %v312, 7
    %v314 = vsub.s32 %v311, %v313
    %v315 = vrot.slane %v301, %v314
    %v316 = vcombine.high %v308, %v308
    %v317 = vcombine.high %v315, %v315
    %v319 = vunpack.c.l.s4 1966171168
    %v320 = vunpack.c.0.s8 %v319
    %v321 = vlaneseq
    %v322 = vshrl.u32 %v321, 7
    %v323 = vsub.s32 %v320, %v322
    %v324 = vrot.slane %v308, %v323
    %v326 = vunpack.c.l.s4 1966171168
    %v327 = vunpack.c.0.s8 %v326
    %v328 = vlaneseq
    %v329 = vshrl.u32 %v328, 7
    %v330 = vsub.s32 %v327, %v329
    %v331 = vrot.slane %v315, %v330
    %v333 = vunpack.c.l.s4 1966171168
    %v334 = vunpack.c.0.s8 %v333
    %v335 = vlaneseq
    %v336 = vshrl.u32 %v335, 7
    %v337 = vsub.s32 %v334, %v336
    %v338 = vrot.slane %v316, %v337
    %v340 = vunpack.c.l.s4 1966171168
    %v341 = vunpack.c.0.s8 %v340
    %v342 = vlaneseq
    %v343 = vshrl.u32 %v342, 7
    %v344 = vsub.s32 %v341, %v343
    %v345 = vrot.slane %v317, %v344
    %v346 = vcombine.high %v324, %v324
    %v347 = vcombine.high %v331, %v331
    %v348 = vcombine.high %v338, %v338
    %v349 = vcombine.high %v345, %v345
    %v350 = vcombine.high %v35, %v35
    %v352 = vunpack.c.l.s4 1966171168
    %v353 = vunpack.c.0.s8 %v352
    %v354 = vlaneseq
    %v355 = vshrl.u32 %v354, 7
    %v356 = vsub.s32 %v353, %v355
    %v357 = vrot.slane %v35, %v356
    %v359 = vunpack.c.l.s4 1966171168
    %v360 = vunpack.c.0.s8 %v359
    %v361 = vlaneseq
    %v362 = vshrl.u32 %v361, 7
    %v363 = vsub.s32 %v360, %v362
    %v364 = vrot.slane %v350, %v363
    %v365 = vcombine.high %v357, %v357
    %v366 = vcombine.high %v364, %v364
    %v368 = vunpack.c.l.s4 1966171168
    %v369 = vunpack.c.0.s8 %v368
    %v370 = vlaneseq
    %v371 = vshrl.u32 %v370, 7
    %v372 = vsub.s32 %v369, %v371
    %v373 = vrot.slane %v357, %v372
    %v375 = vunpack.c.l.s4 1966171168
    %v376 = vunpack.c.0.s8 %v375
    %v377 = vlaneseq
    %v378 = vshrl.u32 %v377, 7
    %v379 = vsub.s32 %v376, %v378
    %v380 = vrot.slane %v364, %v379
    %v382 = vunpack.c.l.s4 1966171168
    %v383 = vunpack.c.0.s8 %v382
    %v384 = vlaneseq
    %v385 = vshrl.u32 %v384, 7
    %v386 = vsub.s32 %v383, %v385
    %v387 = vrot.slane %v365, %v386
    %v389 = vunpack.c.l.s4 1966171168
    %v390 = vunpack.c.0.s8 %v389
    %v391 = vlaneseq
    %v392 = vshrl.u32 %v391, 7
    %v393 = vsub.s32 %v390, %v392
    %v394 = vrot.slane %v366, %v393
    %v395 = vcombine.high %v373, %v373
    %v396 = vcombine.high %v380, %v380
    %v397 = vcombine.high %v387, %v387
    %v398 = vcombine.high %v394, %v394
    %v671 = vunpack.c.l.b16 %v36
    %v672 = vunpack.c.l.b16 %v37
    %v673 = vunpack.c.l.b16 %v38
    %v674 = vunpack.c.l.b16 %v39
    %v675 = vunpack.c.l.b16 %v40
    %v676 = vunpack.c.l.b16 %v41
    %v677 = vunpack.c.l.b16 %v42
    %v678 = vunpack.c.l.b16 %v43
    %v679 = vunpack.c.l.b16 %v44
    %v680 = vunpack.c.l.b16 %v45
    %v681 = vunpack.c.l.b16 %v46
    %v682 = vunpack.c.l.b16 %v47
    %v683 = vunpack.c.l.b16 %v48
    %v684 = vunpack.c.l.b16 %v49
    %v685 = vunpack.c.l.b16 %v50
    %v686 = vunpack.c.l.b16 %v51
    %v687 = vunpack.c.l.b16 %v52
    %v688 = vunpack.c.l.b16 %v53
    %v689 = vunpack.c.l.b16 %v54
    %v690 = vunpack.c.l.b16 %v55
    %v691 = vunpack.c.l.b16 %v56
    %v692 = vunpack.c.l.b16 %v57
    %v693 = vunpack.c.l.b16 %v58
    %v694 = vunpack.c.l.b16 %v59
    %v695 = vunpack.c.l.b16 %v60
    %v696 = vunpack.c.l.b16 %v61
    %v697 = vunpack.c.l.b16 %v62
    %v698 = vunpack.c.l.b16 %v63
    %v699 = vunpack.c.l.b16 %v64
    %v700 = vunpack.c.l.b16 %v65
    %v701 = vunpack.c.l.b16 %v66
    %v702 = vunpack.c.l.b16 %v67
    %v703 = vunpack.c.l.b16 %v68
    %v704 = vunpack.c.l.b16 %v69
    %v705 = vunpack.c.l.b16 %v70
    %v706 = vunpack.c.l.b16 %v71
    %v707 = vunpack.c.l.b16 %v72
    %v708 = vunpack.c.l.b16 %v73
    %v709 = vunpack.c.l.b16 %v74
    %v710 = vunpack.c.l.b16 %v75
    %v711 = vunpack.c.l.b16 %v76
    %v712 = vunpack.c.l.b16 %v77
    %v713 = vunpack.c.l.b16 %v78
    %v714 = vunpack.c.l.b16 %v79
    %v715 = vunpack.c.l.b16 %v80
    %v716 = vunpack.c.l.b16 %v81
    %v717 = vunpack.c.l.b16 %v82
    %v718 = vunpack.c.l.b16 %v83
    %v719 = vunpack.c.l.b16 %v84
    %v720 = vunpack.c.l.b16 %v85
    %v721 = vunpack.c.l.b16 %v86
    %v722 = vunpack.c.l.b16 %v87
    %v723 = vunpack.c.l.b16 %v88
    %v724 = vunpack.c.l.b16 %v89
    %v725 = vunpack.c.l.b16 %v90
    %v726 = vunpack.c.l.b16 %v91
    %v727 = vunpack.c.l.b16 %v92
    %v728 = vunpack.c.l.b16 %v93
    %v729 = vunpack.c.l.b16 %v94
    %v730 = vunpack.c.l.b16 %v95
    %v731 = vunpack.c.l.b16 %v96
    %v732 = vunpack.c.l.b16 %v97
    %v733 = vunpack.c.l.b16 %v98
    %v734 = vunpack.c.l.b16 %v99
    %v735 = vunpack.c.l.b16 %v100
    %v736 = vunpack.c.l.b16 %v101
    %v737 = vunpack.c.l.b16 %v102
    %v738 = vunpack.c.l.b16 %v103
    %v739 = vunpack.c.l.b16 %v104
    %v740 = vunpack.c.l.b16 %v105
    %v741 = vunpack.c.l.b16 %v106
    %v742 = vunpack.c.l.b16 %v107
    %v743 = vunpack.c.l.b16 %v108
    %v744 = vunpack.c.l.b16 %v109
    %v745 = vunpack.c.l.b16 %v110
    %v746 = vunpack.c.l.b16 %v111
    %v747 = vunpack.c.l.b16 %v112
    %v748 = vunpack.c.l.b16 %v113
    %v749 = vunpack.c.l.b16 %v114
    %v750 = vunpack.c.l.b16 %v115
    %v751 = vunpack.c.l.b16 %v116
    %v752 = vunpack.c.l.b16 %v117
    %v753 = vunpack.c.l.b16 %v118
    %v754 = vunpack.c.l.b16 %v119
    %v755 = vunpack.c.l.b16 %v120
    %v756 = vunpack.c.l.b16 %v121
    %v757 = vunpack.c.l.b16 %v122
    %v758 = vunpack.c.l.b16 %v123
    %v759 = vunpack.c.l.b16 %v124
    %v760 = vunpack.c.l.b16 %v125
    %v761 = vunpack.c.l.b16 %v126
    %v762 = vunpack.c.l.b16 %v127
    %v763 = vunpack.c.l.b16 %v128
    %v764 = vunpack.c.l.b16 %v129
    %v765 = vunpack.c.l.b16 %v130
    %v766 = vunpack.c.l.b16 %v131
    %v767 = vunpack.c.l.b16 %v132
    %v768 = vunpack.c.l.b16 %v133
    %v769 = vunpack.c.l.b16 %v134
    %v770 = vunpack.c.l.b16 %v135
    %v771 = vunpack.c.l.b16 %v136
    %v772 = vunpack.c.l.b16 %v137
    %v773 = vunpack.c.l.b16 %v138
    %v774 = vunpack.c.l.b16 %v139
    %v775 = vunpack.c.l.b16 %v140
    %v776 = vunpack.c.l.b16 %v141
    %v777 = vunpack.c.l.b16 %v142
    %v778 = vunpack.c.l.b16 %v143
    %v779 = vunpack.c.l.b16 %v144
    %v780 = vunpack.c.l.b16 %v145
    %v781 = vunpack.c.l.b16 %v146
    %v782 = vunpack.c.l.b16 %v147
    %v783 = vunpack.c.l.b16 %v148
    %v784 = vunpack.c.l.b16 %v149
    %v785 = vunpack.c.l.b16 %v150
    %v786 = vunpack.c.l.b16 %v151
    %v787 = vunpack.c.l.b16 %v152
    %v788 = vunpack.c.l.b16 %v153
    %v789 = vunpack.c.l.b16 %v154
    %v790 = vunpack.c.l.b16 %v155
    %v791 = vunpack.c.l.b16 %v156
    %v792 = vunpack.c.l.b16 %v157
    %v793 = vunpack.c.l.b16 %v158
    %v794 = vunpack.c.l.b16 %v159
    %v795 = vunpack.c.l.b16 %v160
    %v796 = vunpack.c.l.b16 %v161
    %v797 = vunpack.c.l.b16 %v162
    %v798 = vunpack.c.l.b16 %v163
    %v799 = vunpack.c.l.b16 %v164
    %v800 = vunpack.c.l.b16 %v165
    %v801 = vunpack.c.l.b16 %v166
    %v802 = vunpack.c.l.b16 %v167
    %v803 = vunpack.c.l.b16 %v168
    %v804 = vunpack.c.l.b16 %v169
    %v805 = vunpack.c.l.b16 %v170
    %v806 = vunpack.c.l.b16 %v171
    %v807 = vunpack.c.l.b16 %v172
    %v808 = vunpack.c.l.b16 %v173
    %v809 = vunpack.c.l.b16 %v174
    %v810 = vunpack.c.l.b16 %v175
    %v811 = vunpack.c.l.b16 %v176
    %v812 = vunpack.c.l.b16 %v177
    %v813 = vunpack.c.l.b16 %v178
    %v814 = vunpack.c.l.b16 %v179
    %v815 = vunpack.c.l.b16 %v180
    %v816 = vunpack.c.l.b16 %v181
    %v817 = vunpack.c.l.b16 %v182
    %v818 = vunpack.c.l.b16 %v183
    %v819 = vunpack.c.l.b16 %v184
    %v820 = vunpack.c.l.b16 %v185
    %v821 = vunpack.c.l.b16 %v186
    %v822 = vunpack.c.l.b16 %v187
    %v823 = vunpack.c.l.b16 %v188
    %v824 = vunpack.c.l.b16 %v189
    %v825 = vunpack.c.l.b16 %v190
    %v826 = vunpack.c.l.b16 %v191
    %v827 = vunpack.c.l.b16 %v192
    %v828 = vunpack.c.l.b16 %v193
    %v829 = vunpack.c.l.b16 %v194
    %v830 = vunpack.c.l.b16 %v195
    %v831 = vunpack.c.l.b16 %v196
    %v832 = vunpack.c.l.b16 %v197
    %v833 = vunpack.c.l.b16 %v198
    %v834 = vunpack.c.l.b16 %v199
    %v835 = vunpack.c.l.b16 %v200
    %v836 = vunpack.c.l.b16 %v201
    %v837 = vunpack.c.l.b16 %v202
    %v838 = vunpack.c.l.b16 %v203
    %v839 = vunpack.c.l.b16 %v204
    %v840 = vunpack.c.l.b16 %v205
    %v841 = vunpack.c.l.b16 %v206
    %v842 = vunpack.c.l.b16 %v207
    %v843 = vunpack.c.l.b16 %v208
    %v844 = vunpack.c.l.b16 %v209
    %v845 = vunpack.c.l.b16 %v210
    %v846 = vunpack.c.l.b16 %v211
    %v847 = vunpack.c.l.b16 %v212
    %v848 = vunpack.c.l.b16 %v213
    %v849 = vunpack.c.l.b16 %v214
    %v850 = vunpack.c.l.b16 %v215
    %v851 = vunpack.c.l.b16 %v216
    %v852 = vunpack.c.l.b16 %v217
    %v853 = vunpack.c.l.b16 %v218
    %v854 = vunpack.c.l.b16 %v219
    %v855 = vunpack.c.l.b16 %v220
    %v856 = vunpack.c.l.b16 %v221
    %v857 = vunpack.c.l.b16 %v222
    %v858 = vunpack.c.l.b16 %v223
    %v859 = vunpack.c.l.b16 %v224
    %v860 = vunpack.c.l.b16 %v225
    %v861 = vunpack.c.l.b16 %v226
    %v862 = vunpack.c.l.b16 %v227
    %v863 = vunpack.c.l.b16 %v228
    %v864 = vunpack.c.l.b16 %v229
    %v865 = vunpack.c.l.b16 %v230
    %v866 = vunpack.c.l.b16 %v231
    %v867 = vunpack.c.l.b16 %v232
    %v868 = vunpack.c.l.b16 %v233
    %v869 = vunpack.c.l.b16 %v234
    %v870 = vunpack.c.l.b16 %v235
    %v871 = vunpack.c.l.b16 %v236
    %v872 = vunpack.c.l.b16 %v237
    %v873 = vunpack.c.l.b16 %v238
    %v874 = vunpack.c.l.b16 %v239
    %v875 = vunpack.c.l.b16 %v240
    %v876 = vunpack.c.l.b16 %v241
    %v877 = vunpack.c.l.b16 %v242
    %v878 = vunpack.c.l.b16 %v243
    %v879 = vunpack.c.l.b16 %v244
    %v880 = vunpack.c.l.b16 %v245
    %v881 = vunpack.c.l.b16 %v246
    %v882 = vunpack.c.l.b16 %v247
    %v883 = vunpack.c.l.b16 %v248
    %v884 = vunpack.c.l.b16 %v249
    %v885 = vunpack.c.l.b16 %v250
    %v886 = vunpack.c.l.b16 %v251
    %v887 = vunpack.c.l.b16 %v252
    %v888 = vunpack.c.l.b16 %v253
    %v889 = vunpack.c.l.b16 %v254
    %v890 = vunpack.c.l.b16 %v255
    %v891 = vunpack.c.l.b16 %v256
    %v892 = vunpack.c.l.b16 %v257
    %v893 = vunpack.c.l.b16 %v258
    %v894 = vunpack.c.l.b16 %v259
    %v895 = vunpack.c.l.b16 %v260
    %v896 = vunpack.c.l.b16 %v261
    %v897 = vunpack.c.l.b16 %v262
    %v898 = vunpack.c.l.b16 %v263
    %v899 = vunpack.c.l.b16 %v264
    %v900 = vunpack.c.l.b16 %v265
    %v901 = vunpack.c.l.b16 %v266
    %v902 = vunpack.c.l.b16 %v267
    %v903 = vunpack.c.l.b16 %v268
    %v904 = vunpack.c.l.b16 %v269
    %v905 = vunpack.c.l.b16 %v270
    %v906 = vunpack.c.l.b16 %v271
    %v907 = vunpack.c.l.b16 %v272
    %v908 = vunpack.c.l.b16 %v273
    %v909 = vunpack.c.l.b16 %v274
    %v910 = vunpack.c.l.b16 %v275
    %v911 = vunpack.c.l.b16 %v276
    %v912 = vunpack.c.l.b16 %v277
    %v913 = vunpack.c.l.b16 %v278
    %v914 = vunpack.c.l.b16 %v279
    %v915 = vunpack.c.l.b16 %v280
    %v916 = vunpack.c.l.b16 %v281
    %v917 = vunpack.c.l.b16 %v282
    %v918 = vunpack.c.l.b16 %v283
    %v919 = vunpack.c.l.b16 %v284
    %v920 = vunpack.c.l.b16 %v285
    %v921 = vunpack.c.l.b16 %v286
    %v922 = vunpack.c.l.b16 %v287
    %v923 = vunpack.c.l.b16 %v288
    %v924 = vunpack.c.l.b16 %v289
    %v925 = vunpack.c.l.b16 %v290
    %v926 = vunpack.c.l.b16 %v291
    %v927 = vpack.c.b16 %v672, %v671
    %v928 = vpack.c.b16 %v674, %v673
    %v929 = vpack.c.b16 %v676, %v675
    %v930 = vpack.c.b16 %v678, %v677
    %v931 = vpack.c.b16 %v680, %v679
    %v932 = vpack.c.b16 %v682, %v681
    %v933 = vpack.c.b16 %v684, %v683
    %v934 = vpack.c.b16 %v686, %v685
    %v935 = vpack.c.b16 %v688, %v687
    %v936 = vpack.c.b16 %v690, %v689
    %v937 = vpack.c.b16 %v692, %v691
    %v938 = vpack.c.b16 %v694, %v693
    %v939 = vpack.c.b16 %v696, %v695
    %v940 = vpack.c.b16 %v698, %v697
    %v941 = vpack.c.b16 %v700, %v699
    %v942 = vpack.c.b16 %v702, %v701
    %v943 = vpack.c.b16 %v704, %v703
    %v944 = vpack.c.b16 %v706, %v705
    %v945 = vpack.c.b16 %v708, %v707
    %v946 = vpack.c.b16 %v710, %v709
    %v947 = vpack.c.b16 %v712, %v711
    %v948 = vpack.c.b16 %v714, %v713
    %v949 = vpack.c.b16 %v716, %v715
    %v950 = vpack.c.b16 %v718, %v717
    %v951 = vpack.c.b16 %v720, %v719
    %v952 = vpack.c.b16 %v722, %v721
    %v953 = vpack.c.b16 %v724, %v723
    %v954 = vpack.c.b16 %v726, %v725
    %v955 = vpack.c.b16 %v728, %v727
    %v956 = vpack.c.b16 %v730, %v729
    %v957 = vpack.c.b16 %v732, %v731
    %v958 = vpack.c.b16 %v734, %v733
    %v959 = vpack.c.b16 %v736, %v735
    %v960 = vpack.c.b16 %v738, %v737
    %v961 = vpack.c.b16 %v740, %v739
    %v962 = vpack.c.b16 %v742, %v741
    %v963 = vpack.c.b16 %v744, %v743
    %v964 = vpack.c.b16 %v746, %v745
    %v965 = vpack.c.b16 %v748, %v747
    %v966 = vpack.c.b16 %v750, %v749
    %v967 = vpack.c.b16 %v752, %v751
    %v968 = vpack.c.b16 %v754, %v753
    %v969 = vpack.c.b16 %v756, %v755
    %v970 = vpack.c.b16 %v758, %v757
    %v971 = vpack.c.b16 %v760, %v759
    %v972 = vpack.c.b16 %v762, %v761
    %v973 = vpack.c.b16 %v764, %v763
    %v974 = vpack.c.b16 %v766, %v765
    %v975 = vpack.c.b16 %v768, %v767
    %v976 = vpack.c.b16 %v770, %v769
    %v977 = vpack.c.b16 %v772, %v771
    %v978 = vpack.c.b16 %v774, %v773
    %v979 = vpack.c.b16 %v776, %v775
    %v980 = vpack.c.b16 %v778, %v777
    %v981 = vpack.c.b16 %v780, %v779
    %v982 = vpack.c.b16 %v782, %v781
    %v983 = vpack.c.b16 %v784, %v783
    %v984 = vpack.c.b16 %v786, %v785
    %v985 = vpack.c.b16 %v788, %v787
    %v986 = vpack.c.b16 %v790, %v789
    %v987 = vpack.c.b16 %v792, %v791
    %v988 = vpack.c.b16 %v794, %v793
    %v989 = vpack.c.b16 %v796, %v795
    %v990 = vpack.c.b16 %v798, %v797
    %v991 = vpack.c.b16 %v800, %v799
    %v992 = vpack.c.b16 %v802, %v801
    %v993 = vpack.c.b16 %v804, %v803
    %v994 = vpack.c.b16 %v806, %v805
    %v995 = vpack.c.b16 %v808, %v807
    %v996 = vpack.c.b16 %v810, %v809
    %v997 = vpack.c.b16 %v812, %v811
    %v998 = vpack.c.b16 %v814, %v813
    %v999 = vpack.c.b16 %v816, %v815
    %v1000 = vpack.c.b16 %v818, %v817
    %v1001 = vpack.c.b16 %v820, %v819
    %v1002 = vpack.c.b16 %v822, %v821
    %v1003 = vpack.c.b16 %v824, %v823
    %v1004 = vpack.c.b16 %v826, %v825
    %v1005 = vpack.c.b16 %v828, %v827
    %v1006 = vpack.c.b16 %v830, %v829
    %v1007 = vpack.c.b16 %v832, %v831
    %v1008 = vpack.c.b16 %v834, %v833
    %v1009 = vpack.c.b16 %v836, %v835
    %v1010 = vpack.c.b16 %v838, %v837
    %v1011 = vpack.c.b16 %v840, %v839
    %v1012 = vpack.c.b16 %v842, %v841
    %v1013 = vpack.c.b16 %v844, %v843
    %v1014 = vpack.c.b16 %v846, %v845
    %v1015 = vpack.c.b16 %v848, %v847
    %v1016 = vpack.c.b16 %v850, %v849
    %v1017 = vpack.c.b16 %v852, %v851
    %v1018 = vpack.c.b16 %v854, %v853
    %v1019 = vpack.c.b16 %v856, %v855
    %v1020 = vpack.c.b16 %v858, %v857
    %v1021 = vpack.c.b16 %v860, %v859
    %v1022 = vpack.c.b16 %v862, %v861
    %v1023 = vpack.c.b16 %v864, %v863
    %v1024 = vpack.c.b16 %v866, %v865
    %v1025 = vpack.c.b16 %v868, %v867
    %v1026 = vpack.c.b16 %v870, %v869
    %v1027 = vpack.c.b16 %v872, %v871
    %v1028 = vpack.c.b16 %v874, %v873
    %v1029 = vpack.c.b16 %v876, %v875
    %v1030 = vpack.c.b16 %v878, %v877
    %v1031 = vpack.c.b16 %v880, %v879
    %v1032 = vpack.c.b16 %v882, %v881
    %v1033 = vpack.c.b16 %v884, %v883
    %v1034 = vpack.c.b16 %v886, %v885
    %v1035 = vpack.c.b16 %v888, %v887
    %v1036 = vpack.c.b16 %v890, %v889
    %v1037 = vpack.c.b16 %v892, %v891
    %v1038 = vpack.c.b16 %v894, %v893
    %v1039 = vpack.c.b16 %v896, %v895
    %v1040 = vpack.c.b16 %v898, %v897
    %v1041 = vpack.c.b16 %v900, %v899
    %v1042 = vpack.c.b16 %v902, %v901
    %v1043 = vpack.c.b16 %v904, %v903
    %v1044 = vpack.c.b16 %v906, %v905
    %v1045 = vpack.c.b16 %v908, %v907
    %v1046 = vpack.c.b16 %v910, %v909
    %v1047 = vpack.c.b16 %v912, %v911
    %v1048 = vpack.c.b16 %v914, %v913
    %v1049 = vpack.c.b16 %v916, %v915
    %v1050 = vpack.c.b16 %v918, %v917
    %v1051 = vpack.c.b16 %v920, %v919
    %v1052 = vpack.c.b16 %v922, %v921
    %v1053 = vpack.c.b16 %v924, %v923
    %v1054 = vpack.c.b16 %v926, %v925
    %1183 = vmatprep.subr.bf16.mxu0 0
    %1184 = vmatpush1.bf16.msra.mxu0 %v927
    %1185 = vmatprep.subr.bf16.mxu0 0
    %1186 = vmatpush1.bf16.msra.mxu0 %v928
    %1187 = vmatprep.subr.bf16.mxu0 0
    %1188 = vmatpush1.bf16.msra.mxu0 %v929
    %1189 = vmatprep.subr.bf16.mxu0 0
    %1190 = vmatpush1.bf16.msra.mxu0 %v930
    %1191 = vmatprep.subr.bf16.mxu0 0
    %1192 = vmatpush1.bf16.msra.mxu0 %v931
    %1193 = vmatprep.subr.bf16.mxu0 0
    %1194 = vmatpush1.bf16.msra.mxu0 %v932
    %1195 = vmatprep.subr.bf16.mxu0 0
    %1196 = vmatpush1.bf16.msra.mxu0 %v933
    %1197 = vmatprep.subr.bf16.mxu0 0
    %1198 = vmatpush1.bf16.msra.mxu0 %v934
    %1199 = vmatprep.subr.bf16.mxu0 0
    %1200 = vmatpush1.bf16.msra.mxu0 %v935
    %1201 = vmatprep.subr.bf16.mxu0 0
    %1202 = vmatpush1.bf16.msra.mxu0 %v936
    %1203 = vmatprep.subr.bf16.mxu0 0
    %1204 = vmatpush1.bf16.msra.mxu0 %v937
    %1205 = vmatprep.subr.bf16.mxu0 0
    %1206 = vmatpush1.bf16.msra.mxu0 %v938
    %1207 = vmatprep.subr.bf16.mxu0 0
    %1208 = vmatpush1.bf16.msra.mxu0 %v939
    %1209 = vmatprep.subr.bf16.mxu0 0
    %1210 = vmatpush1.bf16.msra.mxu0 %v940
    %1211 = vmatprep.subr.bf16.mxu0 0
    %1212 = vmatpush1.bf16.msra.mxu0 %v941
    %1213 = vmatprep.subr.bf16.mxu0 0
    %1214 = vmatpush1.bf16.msra.mxu0 %v942
    %1215 = vmatprep.mubr.bf16.mxu0 %v338
    %1216 = vmatmul.mubr.bf16.gmra.mrb[0].mxu0 %v324
    %v1217 = vpop.f32.mrb[0].mxu0
    %v1218 = vadd.f32 %v297, %v1217
    %v1219 = vpop.f32.mrb[0].mxu0
    %v1220 = vpop.f32.mrb[0].mxu0
    %v1221 = vpop.f32.mrb[0].mxu0
    %1222 = vdwg.mxu0
    %1223 = vmatprep.subr.bf16.mxu0 0
    %1224 = vmatpush1.bf16.msra.mxu0 %v943
    %1225 = vmatprep.subr.bf16.mxu0 0
    %1226 = vmatpush1.bf16.msra.mxu0 %v944
    %1227 = vmatprep.subr.bf16.mxu0 0
    %1228 = vmatpush1.bf16.msra.mxu0 %v945
    %1229 = vmatprep.subr.bf16.mxu0 0
    %1230 = vmatpush1.bf16.msra.mxu0 %v946
    %1231 = vmatprep.subr.bf16.mxu0 0
    %1232 = vmatpush1.bf16.msra.mxu0 %v947
    %1233 = vmatprep.subr.bf16.mxu0 0
    %1234 = vmatpush1.bf16.msra.mxu0 %v948
    %1235 = vmatprep.subr.bf16.mxu0 0
    %1236 = vmatpush1.bf16.msra.mxu0 %v949
    %1237 = vmatprep.subr.bf16.mxu0 0
    %1238 = vmatpush1.bf16.msra.mxu0 %v950
    %1239 = vmatprep.subr.bf16.mxu0 0
    %1240 = vmatpush1.bf16.msra.mxu0 %v951
    %1241 = vmatprep.subr.bf16.mxu0 0
    %1242 = vmatpush1.bf16.msra.mxu0 %v952
    %1243 = vmatprep.subr.bf16.mxu0 0
    %1244 = vmatpush1.bf16.msra.mxu0 %v953
    %1245 = vmatprep.subr.bf16.mxu0 0
    %1246 = vmatpush1.bf16.msra.mxu0 %v954
    %1247 = vmatprep.subr.bf16.mxu0 0
    %1248 = vmatpush1.bf16.msra.mxu0 %v955
    %1249 = vmatprep.subr.bf16.mxu0 0
    %1250 = vmatpush1.bf16.msra.mxu0 %v956
    %1251 = vmatprep.subr.bf16.mxu0 0
    %1252 = vmatpush1.bf16.msra.mxu0 %v957
    %1253 = vmatprep.subr.bf16.mxu0 0
    %1254 = vmatpush1.bf16.msra.mxu0 %v958
    %1255 = vmatprep.mubr.bf16.mxu0 %v348
    %1256 = vmatmul.mubr.bf16.gmra.mrb[0].mxu0 %v346
    %v1257 = vpop.f32.mrb[0].mxu0
    %v1258 = vadd.f32 %v1218, %v1257
    %v1259 = vpop.f32.mrb[0].mxu0
    %v1260 = vpop.f32.mrb[0].mxu0
    %v1261 = vpop.f32.mrb[0].mxu0
    %1262 = vdwg.mxu0
    %1263 = vmatprep.subr.bf16.mxu0 0
    %1264 = vmatpush1.bf16.msra.mxu0 %v959
    %1265 = vmatprep.subr.bf16.mxu0 0
    %1266 = vmatpush1.bf16.msra.mxu0 %v960
    %1267 = vmatprep.subr.bf16.mxu0 0
    %1268 = vmatpush1.bf16.msra.mxu0 %v961
    %1269 = vmatprep.subr.bf16.mxu0 0
    %1270 = vmatpush1.bf16.msra.mxu0 %v962
    %1271 = vmatprep.subr.bf16.mxu0 0
    %1272 = vmatpush1.bf16.msra.mxu0 %v963
    %1273 = vmatprep.subr.bf16.mxu0 0
    %1274 = vmatpush1.bf16.msra.mxu0 %v964
    %1275 = vmatprep.subr.bf16.mxu0 0
    %1276 = vmatpush1.bf16.msra.mxu0 %v965
    %1277 = vmatprep.subr.bf16.mxu0 0
    %1278 = vmatpush1.bf16.msra.mxu0 %v966
    %1279 = vmatprep.subr.bf16.mxu0 0
    %1280 = vmatpush1.bf16.msra.mxu0 %v967
    %1281 = vmatprep.subr.bf16.mxu0 0
    %1282 = vmatpush1.bf16.msra.mxu0 %v968
    %1283 = vmatprep.subr.bf16.mxu0 0
    %1284 = vmatpush1.bf16.msra.mxu0 %v969
    %1285 = vmatprep.subr.bf16.mxu0 0
    %1286 = vmatpush1.bf16.msra.mxu0 %v970
    %1287 = vmatprep.subr.bf16.mxu0 0
    %1288 = vmatpush1.bf16.msra.mxu0 %v971
    %1289 = vmatprep.subr.bf16.mxu0 0
    %1290 = vmatpush1.bf16.msra.mxu0 %v972
    %1291 = vmatprep.subr.bf16.mxu0 0
    %1292 = vmatpush1.bf16.msra.mxu0 %v973
    %1293 = vmatprep.subr.bf16.mxu0 0
    %1294 = vmatpush1.bf16.msra.mxu0 %v974
    %1295 = vmatprep.mubr.bf16.mxu0 %v345
    %1296 = vmatmul.mubr.bf16.gmra.mrb[0].mxu0 %v331
    %v1297 = vpop.f32.mrb[0].mxu0
    %v1298 = vadd.f32 %v1258, %v1297
    %v1299 = vpop.f32.mrb[0].mxu0
    %v1300 = vpop.f32.mrb[0].mxu0
    %v1301 = vpop.f32.mrb[0].mxu0
    %1302 = vdwg.mxu0
    %1303 = vmatprep.subr.bf16.mxu0 0
    %1304 = vmatpush1.bf16.msra.mxu0 %v975
    %1305 = vmatprep.subr.bf16.mxu0 0
    %1306 = vmatpush1.bf16.msra.mxu0 %v976
    %1307 = vmatprep.subr.bf16.mxu0 0
    %1308 = vmatpush1.bf16.msra.mxu0 %v977
    %1309 = vmatprep.subr.bf16.mxu0 0
    %1310 = vmatpush1.bf16.msra.mxu0 %v978
    %1311 = vmatprep.subr.bf16.mxu0 0
    %1312 = vmatpush1.bf16.msra.mxu0 %v979
    %1313 = vmatprep.subr.bf16.mxu0 0
    %1314 = vmatpush1.bf16.msra.mxu0 %v980
    %1315 = vmatprep.subr.bf16.mxu0 0
    %1316 = vmatpush1.bf16.msra.mxu0 %v981
    %1317 = vmatprep.subr.bf16.mxu0 0
    %1318 = vmatpush1.bf16.msra.mxu0 %v982
    %1319 = vmatprep.subr.bf16.mxu0 0
    %1320 = vmatpush1.bf16.msra.mxu0 %v983
    %1321 = vmatprep.subr.bf16.mxu0 0
    %1322 = vmatpush1.bf16.msra.mxu0 %v984
    %1323 = vmatprep.subr.bf16.mxu0 0
    %1324 = vmatpush1.bf16.msra.mxu0 %v985
    %1325 = vmatprep.subr.bf16.mxu0 0
    %1326 = vmatpush1.bf16.msra.mxu0 %v986
    %1327 = vmatprep.subr.bf16.mxu0 0
    %1328 = vmatpush1.bf16.msra.mxu0 %v987
    %1329 = vmatprep.subr.bf16.mxu0 0
    %1330 = vmatpush1.bf16.msra.mxu0 %v988
    %1331 = vmatprep.subr.bf16.mxu0 0
    %1332 = vmatpush1.bf16.msra.mxu0 %v989
    %1333 = vmatprep.subr.bf16.mxu0 0
    %1334 = vmatpush1.bf16.msra.mxu0 %v990
    %1335 = vmatprep.mubr.bf16.mxu0 %v349
    %1336 = vmatmul.mubr.bf16.gmra.mrb[0].mxu0 %v347
    %v1337 = vpop.f32.mrb[0].mxu0
    %v1338 = vadd.f32 %v1298, %v1337
    %v1339 = vpop.f32.mrb[0].mxu0
    %v1340 = vpop.f32.mrb[0].mxu0
    %v1341 = vpop.f32.mrb[0].mxu0
    %1342 = vdwg.mxu0
    %1343 = vmatprep.subr.bf16.mxu0 0
    %1344 = vmatpush1.bf16.msra.mxu0 %v991
    %1345 = vmatprep.subr.bf16.mxu0 0
    %1346 = vmatpush1.bf16.msra.mxu0 %v992
    %1347 = vmatprep.subr.bf16.mxu0 0
    %1348 = vmatpush1.bf16.msra.mxu0 %v993
    %1349 = vmatprep.subr.bf16.mxu0 0
    %1350 = vmatpush1.bf16.msra.mxu0 %v994
    %1351 = vmatprep.subr.bf16.mxu0 0
    %1352 = vmatpush1.bf16.msra.mxu0 %v995
    %1353 = vmatprep.subr.bf16.mxu0 0
    %1354 = vmatpush1.bf16.msra.mxu0 %v996
    %1355 = vmatprep.subr.bf16.mxu0 0
    %1356 = vmatpush1.bf16.msra.mxu0 %v997
    %1357 = vmatprep.subr.bf16.mxu0 0
    %1358 = vmatpush1.bf16.msra.mxu0 %v998
    %1359 = vmatprep.subr.bf16.mxu0 0
    %1360 = vmatpush1.bf16.msra.mxu0 %v999
    %1361 = vmatprep.subr.bf16.mxu0 0
    %1362 = vmatpush1.bf16.msra.mxu0 %v1000
    %1363 = vmatprep.subr.bf16.mxu0 0
    %1364 = vmatpush1.bf16.msra.mxu0 %v1001
    %1365 = vmatprep.subr.bf16.mxu0 0
    %1366 = vmatpush1.bf16.msra.mxu0 %v1002
    %1367 = vmatprep.subr.bf16.mxu0 0
    %1368 = vmatpush1.bf16.msra.mxu0 %v1003
    %1369 = vmatprep.subr.bf16.mxu0 0
    %1370 = vmatpush1.bf16.msra.mxu0 %v1004
    %1371 = vmatprep.subr.bf16.mxu0 0
    %1372 = vmatpush1.bf16.msra.mxu0 %v1005
    %1373 = vmatprep.subr.bf16.mxu0 0
    %1374 = vmatpush1.bf16.msra.mxu0 %v1006
    %1375 = vmatprep.mubr.bf16.mxu0 %v387
    %1376 = vmatmul.mubr.bf16.gmra.mrb[0].mxu0 %v373
    %v1377 = vpop.f32.mrb[0].mxu0
    %v1378 = vadd.f32 %v1338, %v1377
    %v1379 = vpop.f32.mrb[0].mxu0
    %v1380 = vpop.f32.mrb[0].mxu0
    %v1381 = vpop.f32.mrb[0].mxu0
    %1382 = vdwg.mxu0
    %1383 = vmatprep.subr.bf16.mxu0 0
    %1384 = vmatpush1.bf16.msra.mxu0 %v1007
    %1385 = vmatprep.subr.bf16.mxu0 0
    %1386 = vmatpush1.bf16.msra.mxu0 %v1008
    %1387 = vmatprep.subr.bf16.mxu0 0
    %1388 = vmatpush1.bf16.msra.mxu0 %v1009
    %1389 = vmatprep.subr.bf16.mxu0 0
    %1390 = vmatpush1.bf16.msra.mxu0 %v1010
    %1391 = vmatprep.subr.bf16.mxu0 0
    %1392 = vmatpush1.bf16.msra.mxu0 %v1011
    %1393 = vmatprep.subr.bf16.mxu0 0
    %1394 = vmatpush1.bf16.msra.mxu0 %v1012
    %1395 = vmatprep.subr.bf16.mxu0 0
    %1396 = vmatpush1.bf16.msra.mxu0 %v1013
    %1397 = vmatprep.subr.bf16.mxu0 0
    %1398 = vmatpush1.bf16.msra.mxu0 %v1014
    %1399 = vmatprep.subr.bf16.mxu0 0
    %1400 = vmatpush1.bf16.msra.mxu0 %v1015
    %1401 = vmatprep.subr.bf16.mxu0 0
    %1402 = vmatpush1.bf16.msra.mxu0 %v1016
    %1403 = vmatprep.subr.bf16.mxu0 0
    %1404 = vmatpush1.bf16.msra.mxu0 %v1017
    %1405 = vmatprep.subr.bf16.mxu0 0
    %1406 = vmatpush1.bf16.msra.mxu0 %v1018
    %1407 = vmatprep.subr.bf16.mxu0 0
    %1408 = vmatpush1.bf16.msra.mxu0 %v1019
    %1409 = vmatprep.subr.bf16.mxu0 0
    %1410 = vmatpush1.bf16.msra.mxu0 %v1020
    %1411 = vmatprep.subr.bf16.mxu0 0
    %1412 = vmatpush1.bf16.msra.mxu0 %v1021
    %1413 = vmatprep.subr.bf16.mxu0 0
    %1414 = vmatpush1.bf16.msra.mxu0 %v1022
    %1415 = vmatprep.mubr.bf16.mxu0 %v397
    %1416 = vmatmul.mubr.bf16.gmra.mrb[0].mxu0 %v395
    %v1417 = vpop.f32.mrb[0].mxu0
    %v1418 = vadd.f32 %v1378, %v1417
    %v1419 = vpop.f32.mrb[0].mxu0
    %v1420 = vpop.f32.mrb[0].mxu0
    %v1421 = vpop.f32.mrb[0].mxu0
    %1422 = vdwg.mxu0
    %1423 = vmatprep.subr.bf16.mxu0 0
    %1424 = vmatpush1.bf16.msra.mxu0 %v1023
    %1425 = vmatprep.subr.bf16.mxu0 0
    %1426 = vmatpush1.bf16.msra.mxu0 %v1024
    %1427 = vmatprep.subr.bf16.mxu0 0
    %1428 = vmatpush1.bf16.msra.mxu0 %v1025
    %1429 = vmatprep.subr.bf16.mxu0 0
    %1430 = vmatpush1.bf16.msra.mxu0 %v1026
    %1431 = vmatprep.subr.bf16.mxu0 0
    %1432 = vmatpush1.bf16.msra.mxu0 %v1027
    %1433 = vmatprep.subr.bf16.mxu0 0
    %1434 = vmatpush1.bf16.msra.mxu0 %v1028
    %1435 = vmatprep.subr.bf16.mxu0 0
    %1436 = vmatpush1.bf16.msra.mxu0 %v1029
    %1437 = vmatprep.subr.bf16.mxu0 0
    %1438 = vmatpush1.bf16.msra.mxu0 %v1030
    %1439 = vmatprep.subr.bf16.mxu0 0
    %1440 = vmatpush1.bf16.msra.mxu0 %v1031
    %1441 = vmatprep.subr.bf16.mxu0 0
    %1442 = vmatpush1.bf16.msra.mxu0 %v1032
    %1443 = vmatprep.subr.bf16.mxu0 0
    %1444 = vmatpush1.bf16.msra.mxu0 %v1033
    %1445 = vmatprep.subr.bf16.mxu0 0
    %1446 = vmatpush1.bf16.msra.mxu0 %v1034
    %1447 = vmatprep.subr.bf16.mxu0 0
    %1448 = vmatpush1.bf16.msra.mxu0 %v1035
    %1449 = vmatprep.subr.bf16.mxu0 0
    %1450 = vmatpush1.bf16.msra.mxu0 %v1036
    %1451 = vmatprep.subr.bf16.mxu0 0
    %1452 = vmatpush1.bf16.msra.mxu0 %v1037
    %1453 = vmatprep.subr.bf16.mxu0 0
    %1454 = vmatpush1.bf16.msra.mxu0 %v1038
    %1455 = vmatprep.mubr.bf16.mxu0 %v394
    %1456 = vmatmul.mubr.bf16.gmra.mrb[0].mxu0 %v380
    %v1457 = vpop.f32.mrb[0].mxu0
    %v1458 = vadd.f32 %v1418, %v1457
    %v1459 = vpop.f32.mrb[0].mxu0
    %v1460 = vpop.f32.mrb[0].mxu0
    %v1461 = vpop.f32.mrb[0].mxu0
    %1462 = vdwg.mxu0
    %1463 = vmatprep.subr.bf16.mxu0 0
    %1464 = vmatpush1.bf16.msra.mxu0 %v1039
    %1465 = vmatprep.subr.bf16.mxu0 0
    %1466 = vmatpush1.bf16.msra.mxu0 %v1040
    %1467 = vmatprep.subr.bf16.mxu0 0
    %1468 = vmatpush1.bf16.msra.mxu0 %v1041
    %1469 = vmatprep.subr.bf16.mxu0 0
    %1470 = vmatpush1.bf16.msra.mxu0 %v1042
    %1471 = vmatprep.subr.bf16.mxu0 0
    %1472 = vmatpush1.bf16.msra.mxu0 %v1043
    %1473 = vmatprep.subr.bf16.mxu0 0
    %1474 = vmatpush1.bf16.msra.mxu0 %v1044
    %1475 = vmatprep.subr.bf16.mxu0 0
    %1476 = vmatpush1.bf16.msra.mxu0 %v1045
    %1477 = vmatprep.subr.bf16.mxu0 0
    %1478 = vmatpush1.bf16.msra.mxu0 %v1046
    %1479 = vmatprep.subr.bf16.mxu0 0
    %1480 = vmatpush1.bf16.msra.mxu0 %v1047
    %1481 = vmatprep.subr.bf16.mxu0 0
    %1482 = vmatpush1.bf16.msra.mxu0 %v1048
    %1483 = vmatprep.subr.bf16.mxu0 0
    %1484 = vmatpush1.bf16.msra.mxu0 %v1049
    %1485 = vmatprep.subr.bf16.mxu0 0
    %1486 = vmatpush1.bf16.msra.mxu0 %v1050
    %1487 = vmatprep.subr.bf16.mxu0 0
    %1488 = vmatpush1.bf16.msra.mxu0 %v1051
    %1489 = vmatprep.subr.bf16.mxu0 0
    %1490 = vmatpush1.bf16.msra.mxu0 %v1052
    %1491 = vmatprep.subr.bf16.mxu0 0
    %1492 = vmatpush1.bf16.msra.mxu0 %v1053
    %1493 = vmatprep.subr.bf16.mxu0 0
    %1494 = vmatpush1.bf16.msra.mxu0 %v1054
    %1495 = vmatprep.mubr.bf16.mxu0 %v398
    %1496 = vmatmul.mubr.bf16.gmra.mrb[0].mxu0 %v396
    %v1497 = vpop.f32.mrb[0].mxu0
    %v1498 = vadd.f32 %v1458, %v1497
    %v1499 = vpop.f32.mrb[0].mxu0
    %v1500 = vpop.f32.mrb[0].mxu0
    %v1501 = vpop.f32.mrb[0].mxu0
    %1502 = vdwg.mxu0
    %v1503 = vtanh.pop %v1498
    %v1504 = vpack.c.bf16 %v1503, %v1503
    %v1505 = vld [vmem:[%s3] sm:$0xf]
    %v1506 = vld [vmem:[%s3 + $0x4] sm:$0xf]
    %v1507 = vld [vmem:[%s3 + $0x8] sm:$0xf]
    %v1508 = vld [vmem:[%s3 + $0xc] sm:$0xf]
    %v1509 = vld [vmem:[%s3 + $0x10] sm:$0xf]
    %v1510 = vld [vmem:[%s3 + $0x14] sm:$0xf]
    %v1511 = vld [vmem:[%s3 + $0x18] sm:$0xf]
    %v1512 = vld [vmem:[%s3 + $0x1c] sm:$0xf]
    %v1513 = vld [vmem:[%s4] sm:$0x1]
    %v1515 = vlaneseq
    %v1516 = vshrl.u32 %v1515, 7
    %v1517 = vsub.s32 0, %v1516
    %v1518 = vrot.slane %v1513, %v1517
    %v1528 = vunpack.c.l.b16 %v1505
    %v1529 = vunpack.c.l.b16 %v1506
    %v1530 = vunpack.c.l.b16 %v1507
    %v1531 = vunpack.c.l.b16 %v1508
    %v1532 = vunpack.c.l.b16 %v1509
    %v1533 = vunpack.c.l.b16 %v1510
    %v1534 = vunpack.c.l.b16 %v1511
    %v1535 = vunpack.c.l.b16 %v1512
    %v1536 = vpack.c.b16 %v1529, %v1528
    %v1537 = vpack.c.b16 %v1531, %v1530
    %v1538 = vpack.c.b16 %v1533, %v1532
    %v1539 = vpack.c.b16 %v1535, %v1534
    %vm1544 = vcmask 523264
    %v1546 = vsel %vm1544, %v1504, 0
    %1548 = vmatprep.subr.bf16.mxu0 0
    %1549 = vmatpush1.bf16.msra.mxu0 %v1536
    %1550 = vmatprep.subr.bf16.mxu0 0
    %1551 = vmatpush1.bf16.msra.mxu0 %v1537
    %1552 = vmatprep.subr.bf16.mxu0 0
    %1553 = vmatpush1.bf16.msra.mxu0 %v1538
    %1554 = vmatprep.subr.bf16.mxu0 0
    %1555 = vmatpush1.bf16.msra.mxu0 %v1539
    %1556 = vmatprep.subr.bf16.mxu0 0
    %1557 = vmatpush1.bf16.msra.mxu0 0
    %1558 = vmatprep.subr.bf16.mxu0 0
    %1559 = vmatpush1.bf16.msra.mxu0 0
    %1560 = vmatprep.subr.bf16.mxu0 0
    %1561 = vmatpush1.bf16.msra.mxu0 0
    %1562 = vmatprep.subr.bf16.mxu0 0
    %1563 = vmatpush1.bf16.msra.mxu0 0
    %1564 = vmatprep.subr.bf16.mxu0 0
    %1565 = vmatpush1.bf16.msra.mxu0 0
    %1566 = vmatprep.subr.bf16.mxu0 0
    %1567 = vmatpush1.bf16.msra.mxu0 0
    %1568 = vmatprep.subr.bf16.mxu0 0
    %1569 = vmatpush1.bf16.msra.mxu0 0
    %1570 = vmatprep.subr.bf16.mxu0 0
    %1571 = vmatpush1.bf16.msra.mxu0 0
    %1572 = vmatprep.subr.bf16.mxu0 0
    %1573 = vmatpush1.bf16.msra.mxu0 0
    %1574 = vmatprep.subr.bf16.mxu0 0
    %1575 = vmatpush1.bf16.msra.mxu0 0
    %1576 = vmatprep.subr.bf16.mxu0 0
    %1577 = vmatpush1.bf16.msra.mxu0 0
    %1578 = vmatprep.subr.bf16.mxu0 0
    %1579 = vmatpush1.bf16.msra.mxu0 0
    %1580 = vmatprep.mubr.bf16.mxu0 0
    %1581 = vmatmul.mubr.bf16.gmra.mrb[0].mxu0 %v1546
    %v1582 = vpop.f32.mrb[0].mxu0
    %v1583 = vadd.f32 %v1518, %v1582
    %v1584 = vpop.f32.mrb[0].mxu0
    %v1585 = vpop.f32.mrb[0].mxu0
    %v1586 = vpop.f32.mrb[0].mxu0
    %1587 = vdwg.mxu0
    %v1588 = vtanh.pop %v1583
    %v1589 = vpack.c.bf16 %v1588, %v1588
    %v1590 = vld [vmem:[%s5] sm:$0xf]
    %v1591 = vld [vmem:[%s5 + $0x4] sm:$0xf]
    %v1592 = vld [vmem:[%s5 + $0x8] sm:$0xf]
    %v1593 = vld [vmem:[%s5 + $0xc] sm:$0xf]
    %v1594 = vld [vmem:[%s6] sm:$0x1]
    %v1596 = vlaneseq
    %v1597 = vshrl.u32 %v1596, 7
    %v1598 = vsub.s32 0, %v1597
    %v1599 = vrot.slane %v1594, %v1598
    %v1605 = vunpack.c.l.b16 %v1590
    %v1606 = vunpack.c.l.b16 %v1591
    %v1607 = vunpack.c.l.b16 %v1592
    %v1608 = vunpack.c.l.b16 %v1593
    %v1609 = vpack.c.b16 %v1606, %v1605
    %v1610 = vpack.c.b16 %v1608, %v1607
    %vm1613 = vcmask 261120
    %v1615 = vsel %vm1613, %v1589, 0
    %1617 = vmatprep.subr.bf16.mxu0 0
    %1618 = vmatpush1.bf16.msra.mxu0 %v1609
    %1619 = vmatprep.subr.bf16.mxu0 0
    %1620 = vmatpush1.bf16.msra.mxu0 %v1610
    %1621 = vmatprep.subr.bf16.mxu0 0
    %1622 = vmatpush1.bf16.msra.mxu0 0
    %1623 = vmatprep.subr.bf16.mxu0 0
    %1624 = vmatpush1.bf16.msra.mxu0 0
    %1625 = vmatprep.subr.bf16.mxu0 0
    %1626 = vmatpush1.bf16.msra.mxu0 0
    %1627 = vmatprep.subr.bf16.mxu0 0
    %1628 = vmatpush1.bf16.msra.mxu0 0
    %1629 = vmatprep.subr.bf16.mxu0 0
    %1630 = vmatpush1.bf16.msra.mxu0 0
    %1631 = vmatprep.subr.bf16.mxu0 0
    %1632 = vmatpush1.bf16.msra.mxu0 0
    %1633 = vmatprep.subr.bf16.mxu0 0
    %1634 = vmatpush1.bf16.msra.mxu0 0
    %1635 = vmatprep.subr.bf16.mxu0 0
    %1636 = vmatpush1.bf16.msra.mxu0 0
    %1637 = vmatprep.subr.bf16.mxu0 0
    %1638 = vmatpush1.bf16.msra.mxu0 0
    %1639 = vmatprep.subr.bf16.mxu0 0
    %1640 = vmatpush1.bf16.msra.mxu0 0
    %1641 = vmatprep.subr.bf16.mxu0 0
    %1642 = vmatpush1.bf16.msra.mxu0 0
    %1643 = vmatprep.subr.bf16.mxu0 0
    %1644 = vmatpush1.bf16.msra.mxu0 0
    %1645 = vmatprep.subr.bf16.mxu0 0
    %1646 = vmatpush1.bf16.msra.mxu0 0
    %1647 = vmatprep.subr.bf16.mxu0 0
    %1648 = vmatpush1.bf16.msra.mxu0 0
    %1649 = vmatprep.mubr.bf16.mxu0 0
    %1650 = vmatmul.mubr.bf16.gmra.mrb[0].mxu0 %v1615
    %v1651 = vpop.f32.mrb[0].mxu0
    %v1652 = vadd.f32 %v1599, %v1651
    %v1653 = vpop.f32.mrb[0].mxu0
    %v1654 = vpop.f32.mrb[0].mxu0
    %v1655 = vpop.f32.mrb[0].mxu0
    %1656 = vdwg.mxu0
    %v1657 = vmax.f32 %v1652, 0.0
    %v1658 = vpack.c.bf16 %v1657, %v1657
    %v1659 = vld [vmem:[%s7] sm:$0xf]
    %v1660 = vld [vmem:[%s7 + $0x4] sm:$0xf]
    %v1661 = vld [vmem:[%s8] sm:$0x1]
    %v1663 = vlaneseq
    %v1664 = vshrl.u32 %v1663, 7
    %v1665 = vsub.s32 0, %v1664
    %v1666 = vrot.slane %v1661, %v1665
    %v1670 = vunpack.c.l.b16 %v1659
    %v1671 = vunpack.c.l.b16 %v1660
    %v1672 = vpack.c.b16 %v1671, %v1670
    %vm1674 = vcmask 130048
    %v1676 = vsel %vm1674, %v1658, 0
    %1678 = vmatprep.subr.bf16.mxu0 0
    %1679 = vmatpush1.bf16.msra.mxu0 %v1672
    %1680 = vmatprep.subr.bf16.mxu0 0
    %1681 = vmatpush1.bf16.msra.mxu0 0
    %1682 = vmatprep.subr.bf16.mxu0 0
    %1683 = vmatpush1.bf16.msra.mxu0 0
    %1684 = vmatprep.subr.bf16.mxu0 0
    %1685 = vmatpush1.bf16.msra.mxu0 0
    %1686 = vmatprep.subr.bf16.mxu0 0
    %1687 = vmatpush1.bf16.msra.mxu0 0
    %1688 = vmatprep.subr.bf16.mxu0 0
    %1689 = vmatpush1.bf16.msra.mxu0 0
    %1690 = vmatprep.subr.bf16.mxu0 0
    %1691 = vmatpush1.bf16.msra.mxu0 0
    %1692 = vmatprep.subr.bf16.mxu0 0
    %1693 = vmatpush1.bf16.msra.mxu0 0
    %1694 = vmatprep.subr.bf16.mxu0 0
    %1695 = vmatpush1.bf16.msra.mxu0 0
    %1696 = vmatprep.subr.bf16.mxu0 0
    %1697 = vmatpush1.bf16.msra.mxu0 0
    %1698 = vmatprep.subr.bf16.mxu0 0
    %1699 = vmatpush1.bf16.msra.mxu0 0
    %1700 = vmatprep.subr.bf16.mxu0 0
    %1701 = vmatpush1.bf16.msra.mxu0 0
    %1702 = vmatprep.subr.bf16.mxu0 0
    %1703 = vmatpush1.bf16.msra.mxu0 0
    %1704 = vmatprep.subr.bf16.mxu0 0
    %1705 = vmatpush1.bf16.msra.mxu0 0
    %1706 = vmatprep.subr.bf16.mxu0 0
    %1707 = vmatpush1.bf16.msra.mxu0 0
    %1708 = vmatprep.subr.bf16.mxu0 0
    %1709 = vmatpush1.bf16.msra.mxu0 0
    %1710 = vmatprep.mubr.bf16.mxu0 0
    %1711 = vmatmul.mubr.bf16.gmra.mrb[0].mxu0 %v1676
    %v1712 = vpop.f32.mrb[0].mxu0
    %v1713 = vadd.f32 %v1666, %v1712
    %v1714 = vpop.f32.mrb[0].mxu0
    %v1715 = vpop.f32.mrb[0].mxu0
    %v1716 = vpop.f32.mrb[0].mxu0
    %1717 = vdwg.mxu0
    %vm1718 = vcmask 74752
    %1719 = vst.msk [vmem:[#allocation2] sm:$0x3] %vm1718, %v1713
    // Predicated region
    $region38: #{cnn2d_forward.7} parent=1 // pred_check
      _
    $region39: #{cnn2d_forward.7} parent=1 // pred_check_branch
      %1721 = sbr.rel (0) target = $region41
    $region40: #{cnn2d_forward.7} parent=1 // pred_region
      %s1723 = ssub.s32 32, 32
      %1724 = vsyncadd [#allocation3], %s1723
      %s1726 = sshll.u32 [#allocation2], 4
      %s1727 = int_to_ptr.vmem [resolvable:$true] %s1726
      %1729 = dma.vmem_to_hbm [thread:$0]  %s1727, 32, %s9, [#allocation3]
    $region41: #{cnn2d_forward.7} parent=1 // pred_fallthru
      _
    // Predicated region
    $region42: #{cnn2d_forward.7} parent=1 // pred_check
      _
    $region43: #{cnn2d_forward.7} parent=1 // pred_check_branch
      %1731 = sbr.rel (0) target = $region45
    $region44: #{cnn2d_forward.7} parent=1 // pred_region
      %1732 = dma.done [#allocation3], 32
    $region45: #{cnn2d_forward.7} parent=1 // pred_fallthru
      _
    %1733 = vsyncpa [#allocation3], 1

</llo_original>
